<compile_context>
chip_gen: v5e
topology: v5e:2x2
jax: 0.10.0
libtpu: 0.0.40
codegen_flags: <defaults>
</compile_context>

<pallas_src>
import math

import numpy as np

import jax
import jax.numpy as jnp
from jax import lax
from jax.experimental import pallas as pl
from jax.experimental.pallas import tpu as pltpu

KSIZE = 3
STRIDE = 2
IN_CH = 1
CONV_CH = 16
IMG = 63            # spatial size implied by Linear(7*7*16, ...) with k=3, s=2, VALID
MLP_SIZE = 64
LANE = 128


def _out_size(s):
    return (s - KSIZE) // STRIDE + 1


def _pad_lanes(n):
    return ((n + LANE - 1) // LANE) * LANE


# --------------------------------------------------------------------------- #
# Kernel: whole CNN forward for one batch tile.
# Activation layout: (H, B, W*C) bf16; lanes = w*C + c, sublanes = batch.
# --------------------------------------------------------------------------- #
def _cnn_kernel(x_ref, m1_ref, b1_ref, m2_ref, b2_ref, m3_ref, b3_ref,
                g_ref, bfc_ref, o_ref):

    def conv_relu(act, m_ref, b_ref):
        h_in, bsz, wc = act.shape
        h_out = (h_in - KSIZE) // STRIDE + 1          # h_in = 2*h_out + 1
        # Stride-2 row taps as free leading-dim slices (no gather matmuls):
        lo = act[: 2 * h_out].reshape(h_out, 2, bsz, wc)        # rows 2q / 2q+1
        hi = act[1: 2 * h_out + 1].reshape(h_out, 2, bsz, wc)   # rows 2q+1 / 2q+2
        taps = jnp.concatenate([lo[:, 0], lo[:, 1], hi[:, 1]], axis=-1)
        taps = taps.reshape(h_out * bsz, KSIZE * wc)            # (M, K) bf16
        acc = jnp.dot(taps, m_ref[...], preferred_element_type=jnp.float32)
        out = jnp.maximum(acc + b_ref[...], 0.0)                # f32 epilogue
        return out.astype(jnp.bfloat16).reshape(h_out, bsz, m_ref.shape[1])

    act = x_ref[...]                           # (63, B, 128)
    act = conv_relu(act, m1_ref, b1_ref)       # (31, B, 512)
    act = conv_relu(act, m2_ref, b2_ref)       # (15, B, 256)
    act = conv_relu(act, m3_ref, b3_ref)       # ( 7, B, 128)

    # Linear(7*7*16 -> 64) + ReLU: 7 leading-dim indexed dots, f32 accumulation.
    acc = jnp.dot(act[0], g_ref[0], preferred_element_type=jnp.float32)
    for h in range(1, act.shape[0]):
        acc = acc + jnp.dot(act[h], g_ref[h], preferred_element_type=jnp.float32)
    o_ref[...] = jnp.maximum(acc + bfc_ref[...], 0.0)


# --------------------------------------------------------------------------- #
# Trace-time folding of conv weights into a single lane-mixing matmul per layer
# --------------------------------------------------------------------------- #
def _fold_conv(w, w_in, w_out):
    """(Cout,Cin,K,K) weights -> (K*in_pad, out_pad) bf16 matrix.

    Row ky*in_pad + (iw*Cin + ci), column ow*Cout + co holds W[co, ci, ky, kx]
    where iw == STRIDE*ow + kx; all other entries (incl. lane padding) are zero.
    """
    cout, cin, k, _ = w.shape
    in_pad = _pad_lanes(w_in * cin)
    out_pad = _pad_lanes(w_out * cout)
    t = np.zeros((w_in, w_out, k), np.float32)
    for ow in range(w_out):
        for kx in range(k):
            t[STRIDE * ow + kx, ow, kx] = 1.0
    wt = jnp.transpose(w.astype(jnp.float32), (2, 3, 1, 0))      # (ky,kx,ci,co)
    m = jnp.einsum('wok,ykic->ywioc', jnp.asarray(t), wt)        # (ky,iw,ci,ow,co)
    m = m.reshape(k, w_in * cin, w_out * cout)
    m = jnp.pad(m, ((0, 0), (0, in_pad - w_in * cin), (0, out_pad - w_out * cout)))
    return m.reshape(k * in_pad, out_pad).astype(jnp.bfloat16)


def _fold_bias(b, w_out):
    out_pad = _pad_lanes(w_out * b.shape[0])
    bb = jnp.tile(b.astype(jnp.float32), w_out)                  # lanes = w*C + c
    return jnp.pad(bb, (0, out_pad - bb.shape[0]))[None, :]      # (1, out_pad) f32


# --------------------------------------------------------------------------- #
# Wrapper
# --------------------------------------------------------------------------- #
def cnn_forward(x, params, batch_tile=None):
    if x.ndim == 3:                            # mirror torch `unsqueeze(0)`
        x = x[None]
    n, cin, h0, w0 = x.shape
    assert cin == IN_CH
    hs, ws = [h0], [w0]
    for _ in range(3):
        hs.append(_out_size(hs[-1]))
        ws.append(_out_size(ws[-1]))
    assert hs[3] * ws[3] * CONV_CH == params["w_fc"].shape[1], \
        "input spatial size inconsistent with Linear(7*7*16, ...)"

    if batch_tile is None:
        batch_tile = 16 if n <= 16 else 64     # multiple of 16: bf16 (16,128) tiles
    bt = batch_tile
    n_pad = ((n + bt - 1) // bt) * bt

    in_pad0 = _pad_lanes(w0 * cin)
    out_pad_fc = _pad_lanes(MLP_SIZE)
    f32 = jnp.float32

    # Input slab (H, N, W*C): lanes = w*C + c, batch/lane padded with zeros.
    xs = jnp.transpose(x.astype(f32), (2, 0, 3, 1)).reshape(h0, n, w0 * cin)
    xs = jnp.pad(xs, ((0, 0), (0, n_pad - n), (0, in_pad0 - w0 * cin)))
    xs = xs.astype(jnp.bfloat16)

    m1 = _fold_conv(params["w1"], ws[0], ws[1]); b1 = _fold_bias(params["b1"], ws[1])
    m2 = _fold_conv(params["w2"], ws[1], ws[2]); b2 = _fold_bias(params["b2"], ws[2])
    m3 = _fold_conv(params["w3"], ws[2], ws[3]); b3 = _fold_bias(params["b3"], ws[3])

    # FC weight regrouped to (h, w*c, out) to match the conv slab's lane layout
    # (torch flatten of NCHW is (c, h, w) order); pad both lane dims to 128.
    feat_pad = _pad_lanes(ws[3] * CONV_CH)
    g = (params["w_fc"].astype(f32)
         .reshape(MLP_SIZE, CONV_CH, hs[3], ws[3])
         .transpose(2, 3, 1, 0)
         .reshape(hs[3], ws[3] * CONV_CH, MLP_SIZE))
    g = jnp.pad(g, ((0, 0), (0, feat_pad - ws[3] * CONV_CH),
                    (0, out_pad_fc - MLP_SIZE))).astype(jnp.bfloat16)
    bfc = jnp.pad(params["b_fc"].astype(f32), (0, out_pad_fc - MLP_SIZE))[None, :]

    grid = (n_pad // bt,)

    def _full_spec(arr):
        nd = arr.ndim
        return pl.BlockSpec(arr.shape, lambda i, _nd=nd: (0,) * _nd)

    flops_step = (2 * hs[1] * bt * m1.shape[0] * m1.shape[1] +
                  2 * hs[2] * bt * m2.shape[0] * m2.shape[1] +
                  2 * hs[3] * bt * m3.shape[0] * m3.shape[1] +
                  2 * hs[3] * bt * feat_pad * out_pad_fc)
    bytes_accessed = int(xs.size * 2 + (m1.size + m2.size + m3.size + g.size) * 2 +
                         (b1.size + b2.size + b3.size + bfc.size) * 4 +
                         n_pad * out_pad_fc * 4)
    cost = pl.CostEstimate(flops=flops_step * grid[0], transcendentals=0,
                           bytes_accessed=bytes_accessed)

    out = pl.pallas_call(
        _cnn_kernel,
        out_shape=jax.ShapeDtypeStruct((n_pad, out_pad_fc), jnp.float32),
        grid=grid,
        in_specs=[
            pl.BlockSpec((h0, bt, in_pad0), lambda i: (0, i, 0)),
            _full_spec(m1), _full_spec(b1),
            _full_spec(m2), _full_spec(b2),
            _full_spec(m3), _full_spec(b3),
            _full_spec(g), _full_spec(bfc),
        ],
        out_specs=pl.BlockSpec((bt, out_pad_fc), lambda i: (i, 0)),
        compiler_params=pltpu.CompilerParams(
            dimension_semantics=("parallel",),
            vmem_limit_bytes=32 * 1024 * 1024),
        cost_estimate=cost,
    )(xs, m1, b1, m2, b2, m3, b3, g, bfc)

    return out[:n, :MLP_SIZE]


# --------------------------------------------------------------------------- #
# Deterministic synthetic parameters (forward semantics match the module; the
# exact orthogonal/kaiming init scheme is irrelevant to the forward pass).
# --------------------------------------------------------------------------- #
def init_params(key):
    ks = jax.random.split(key, 8)

    def conv_w(k, cout, cin):
        std = math.sqrt(2.0 / (cin * KSIZE * KSIZE))
        return std * jax.random.normal(k, (cout, cin, KSIZE, KSIZE), jnp.float32)

    feat = CONV_CH * _out_size(_out_size(_out_size(IMG))) ** 2
    return {
        "w1": conv_w(ks[0], CONV_CH, IN_CH),
        "b1": 0.1 * jax.random.normal(ks[1], (CONV_CH,), jnp.float32),
        "w2": conv_w(ks[2], CONV_CH, CONV_CH),
        "b2": 0.1 * jax.random.normal(ks[3], (CONV_CH,), jnp.float32),
        "w3": conv_w(ks[4], CONV_CH, CONV_CH),
        "b3": 0.1 * jax.random.normal(ks[5], (CONV_CH,), jnp.float32),
        "w_fc": math.sqrt(1.0 / feat)
                * jax.random.normal(ks[6], (MLP_SIZE, feat), jnp.float32),
        "b_fc": jnp.full((MLP_SIZE,), 0.01, jnp.float32),
    }


def _reference(x, params):
    """Pure-JAX f32 replica of the PyTorch forward (NCHW, VALID, stride 2)."""
    if x.ndim == 3:
        x = x[None]
    h = x.astype(jnp.float32)
    for i in (1, 2, 3):
        h = lax.conv_general_dilated(
            h, params[f"w{i}"], window_strides=(STRIDE, STRIDE), padding="VALID",
            dimension_numbers=("NCHW", "OIHW", "NCHW"))
        h = jnp.maximum(h + params[f"b{i}"][None, :, None, None], 0.0)
    hf = h.reshape(h.shape[0], -1)                   # == torch x.view(N, -1)
    return jnp.maximum(hf @ params["w_fc"].T + params["b_fc"][None, :], 0.0)


if __name__ == "__main__":
    key = jax.random.PRNGKey(0)
    kx, kp = jax.random.split(key)

    batch = 2
    x = jax.random.normal(kx, (batch, IN_CH, IMG, IMG), dtype=jnp.float32)
    params = init_params(kp)

    fwd = jax.jit(cnn_forward)
    out = jax.block_until_ready(fwd(x, params))

    ref = _reference(x, params)
    assert out.shape == (batch, MLP_SIZE)
    # bf16 MXU operands (f32 accumulation) -> slightly looser tolerance than f32.
    assert jnp.allclose(out, ref, atol=5e-2, rtol=5e-2), \
        float(jnp.max(jnp.abs(out - ref)))

    print("KERNEL_OK")
</pallas_src>

<mosaic_0001>
module attributes {stable_mosaic.version = 11 : i64} {
  func.func @_cnn_kernel(%arg0: i32, %arg1: memref<63x16x128xbf16, #tpu.memory_space<vmem>>, %arg2: memref<384x512xbf16, #tpu.memory_space<vmem>>, %arg3: memref<1x512xf32, #tpu.memory_space<vmem>>, %arg4: memref<1536x256xbf16, #tpu.memory_space<vmem>>, %arg5: memref<1x256xf32, #tpu.memory_space<vmem>>, %arg6: memref<768x128xbf16, #tpu.memory_space<vmem>>, %arg7: memref<1x128xf32, #tpu.memory_space<vmem>>, %arg8: memref<7x128x128xbf16, #tpu.memory_space<vmem>>, %arg9: memref<1x128xf32, #tpu.memory_space<vmem>>, %arg10: memref<16x128xf32, #tpu.memory_space<vmem>>) attributes {dimension_semantics = [#tpu.dimension_semantics<parallel>], iteration_bounds = array<i64: 1>, scalar_prefetch = 0 : i64, scratch_operands = 0 : i64, tpu.core_type = #tpu.core_type<tc>, window_params = [{transform_indices = @transform_0, window_bounds = array<i64: 63, 16, 128>}, {pipeline_mode = #tpu.pipeline_mode<synchronous>, transform_indices = @transform_1, window_bounds = array<i64: 384, 512>}, {pipeline_mode = #tpu.pipeline_mode<synchronous>, transform_indices = @transform_2, window_bounds = array<i64: 1, 512>}, {pipeline_mode = #tpu.pipeline_mode<synchronous>, transform_indices = @transform_3, window_bounds = array<i64: 1536, 256>}, {pipeline_mode = #tpu.pipeline_mode<synchronous>, transform_indices = @transform_4, window_bounds = array<i64: 1, 256>}, {pipeline_mode = #tpu.pipeline_mode<synchronous>, transform_indices = @transform_5, window_bounds = array<i64: 768, 128>}, {pipeline_mode = #tpu.pipeline_mode<synchronous>, transform_indices = @transform_6, window_bounds = array<i64: 1, 128>}, {pipeline_mode = #tpu.pipeline_mode<synchronous>, transform_indices = @transform_7, window_bounds = array<i64: 7, 128, 128>}, {pipeline_mode = #tpu.pipeline_mode<synchronous>, transform_indices = @transform_8, window_bounds = array<i64: 1, 128>}, {transform_indices = @transform_9, window_bounds = array<i64: 16, 128>}]} {
    %c0 = arith.constant 0 : index
    %c0_0 = arith.constant 0 : index
    %c0_1 = arith.constant 0 : index
    %0 = vector.load %arg1[%c0, %c0_0, %c0_1] : memref<63x16x128xbf16, #tpu.memory_space<vmem>>, vector<63x16x128xbf16>
    %1 = vector.extract_strided_slice %0 {offsets = [0, 0, 0], sizes = [62, 16, 128], strides = [1, 1, 1]} : vector<63x16x128xbf16> to vector<62x16x128xbf16>
    %2 = vector.shape_cast %1 : vector<62x16x128xbf16> to vector<31x2x16x128xbf16>
    %3 = vector.extract_strided_slice %0 {offsets = [1, 0, 0], sizes = [62, 16, 128], strides = [1, 1, 1]} : vector<63x16x128xbf16> to vector<62x16x128xbf16>
    %4 = vector.shape_cast %3 : vector<62x16x128xbf16> to vector<31x2x16x128xbf16>
    %5 = vector.extract_strided_slice %2 {offsets = [0, 0, 0, 0], sizes = [31, 1, 16, 128], strides = [1, 1, 1, 1]} : vector<31x2x16x128xbf16> to vector<31x1x16x128xbf16>
    %6 = vector.shape_cast %5 : vector<31x1x16x128xbf16> to vector<31x16x128xbf16>
    %7 = vector.extract_strided_slice %2 {offsets = [0, 1, 0, 0], sizes = [31, 1, 16, 128], strides = [1, 1, 1, 1]} : vector<31x2x16x128xbf16> to vector<31x1x16x128xbf16>
    %8 = vector.shape_cast %7 : vector<31x1x16x128xbf16> to vector<31x16x128xbf16>
    %9 = vector.extract_strided_slice %4 {offsets = [0, 1, 0, 0], sizes = [31, 1, 16, 128], strides = [1, 1, 1, 1]} : vector<31x2x16x128xbf16> to vector<31x1x16x128xbf16>
    %10 = vector.shape_cast %9 : vector<31x1x16x128xbf16> to vector<31x16x128xbf16>
    %11 = tpu.concatenate %6, %8, %10 in 2 : vector<31x16x128xbf16>, vector<31x16x128xbf16>, vector<31x16x128xbf16> -> vector<31x16x384xbf16>
    %12 = vector.shape_cast %11 : vector<31x16x384xbf16> to vector<496x384xbf16>
    %c0_2 = arith.constant 0 : index
    %c0_3 = arith.constant 0 : index
    %13 = vector.load %arg2[%c0_2, %c0_3] : memref<384x512xbf16, #tpu.memory_space<vmem>>, vector<384x512xbf16>
    %cst = arith.constant dense<0.000000e+00> : vector<496x512xf32>
    %14 = tpu.matmul %12, %13, %cst {dimension_numbers = #tpu.dot_dimension_numbers<[1], [0], [0], [1], [0, 0, 1, 1], [], []>} : vector<496x384xbf16>, vector<384x512xbf16>, vector<496x512xf32> -> vector<496x512xf32>
    %c0_4 = arith.constant 0 : index
    %c0_5 = arith.constant 0 : index
    %15 = vector.load %arg3[%c0_4, %c0_5] : memref<1x512xf32, #tpu.memory_space<vmem>>, vector<1x512xf32>
    %16 = vector.broadcast %15 : vector<1x512xf32> to vector<496x512xf32>
    %17 = arith.addf %14, %16 : vector<496x512xf32>
    %cst_6 = arith.constant 0.000000e+00 : f32
    %18 = vector.broadcast %cst_6 : f32 to vector<496x512xf32>
    %19 = arith.maximumf %17, %18 : vector<496x512xf32>
    %20 = arith.truncf %19 : vector<496x512xf32> to vector<496x512xbf16>
    %21 = vector.shape_cast %20 : vector<496x512xbf16> to vector<31x16x512xbf16>
    %22 = vector.extract_strided_slice %21 {offsets = [0, 0, 0], sizes = [30, 16, 512], strides = [1, 1, 1]} : vector<31x16x512xbf16> to vector<30x16x512xbf16>
    %23 = vector.shape_cast %22 : vector<30x16x512xbf16> to vector<15x2x16x512xbf16>
    %24 = vector.extract_strided_slice %21 {offsets = [1, 0, 0], sizes = [30, 16, 512], strides = [1, 1, 1]} : vector<31x16x512xbf16> to vector<30x16x512xbf16>
    %25 = vector.shape_cast %24 : vector<30x16x512xbf16> to vector<15x2x16x512xbf16>
    %26 = vector.extract_strided_slice %23 {offsets = [0, 0, 0, 0], sizes = [15, 1, 16, 512], strides = [1, 1, 1, 1]} : vector<15x2x16x512xbf16> to vector<15x1x16x512xbf16>
    %27 = vector.shape_cast %26 : vector<15x1x16x512xbf16> to vector<15x16x512xbf16>
    %28 = vector.extract_strided_slice %23 {offsets = [0, 1, 0, 0], sizes = [15, 1, 16, 512], strides = [1, 1, 1, 1]} : vector<15x2x16x512xbf16> to vector<15x1x16x512xbf16>
    %29 = vector.shape_cast %28 : vector<15x1x16x512xbf16> to vector<15x16x512xbf16>
    %30 = vector.extract_strided_slice %25 {offsets = [0, 1, 0, 0], sizes = [15, 1, 16, 512], strides = [1, 1, 1, 1]} : vector<15x2x16x512xbf16> to vector<15x1x16x512xbf16>
    %31 = vector.shape_cast %30 : vector<15x1x16x512xbf16> to vector<15x16x512xbf16>
    %32 = tpu.concatenate %27, %29, %31 in 2 : vector<15x16x512xbf16>, vector<15x16x512xbf16>, vector<15x16x512xbf16> -> vector<15x16x1536xbf16>
    %33 = vector.shape_cast %32 : vector<15x16x1536xbf16> to vector<240x1536xbf16>
    %c0_7 = arith.constant 0 : index
    %c0_8 = arith.constant 0 : index
    %34 = vector.load %arg4[%c0_7, %c0_8] : memref<1536x256xbf16, #tpu.memory_space<vmem>>, vector<1536x256xbf16>
    %cst_9 = arith.constant dense<0.000000e+00> : vector<240x256xf32>
    %35 = tpu.matmul %33, %34, %cst_9 {dimension_numbers = #tpu.dot_dimension_numbers<[1], [0], [0], [1], [0, 0, 1, 1], [], []>} : vector<240x1536xbf16>, vector<1536x256xbf16>, vector<240x256xf32> -> vector<240x256xf32>
    %c0_10 = arith.constant 0 : index
    %c0_11 = arith.constant 0 : index
    %36 = vector.load %arg5[%c0_10, %c0_11] : memref<1x256xf32, #tpu.memory_space<vmem>>, vector<1x256xf32>
    %37 = vector.broadcast %36 : vector<1x256xf32> to vector<240x256xf32>
    %38 = arith.addf %35, %37 : vector<240x256xf32>
    %cst_12 = arith.constant 0.000000e+00 : f32
    %39 = vector.broadcast %cst_12 : f32 to vector<240x256xf32>
    %40 = arith.maximumf %38, %39 : vector<240x256xf32>
    %41 = arith.truncf %40 : vector<240x256xf32> to vector<240x256xbf16>
    %42 = vector.shape_cast %41 : vector<240x256xbf16> to vector<15x16x256xbf16>
    %43 = vector.extract_strided_slice %42 {offsets = [0, 0, 0], sizes = [14, 16, 256], strides = [1, 1, 1]} : vector<15x16x256xbf16> to vector<14x16x256xbf16>
    %44 = vector.shape_cast %43 : vector<14x16x256xbf16> to vector<7x2x16x256xbf16>
    %45 = vector.extract_strided_slice %42 {offsets = [1, 0, 0], sizes = [14, 16, 256], strides = [1, 1, 1]} : vector<15x16x256xbf16> to vector<14x16x256xbf16>
    %46 = vector.shape_cast %45 : vector<14x16x256xbf16> to vector<7x2x16x256xbf16>
    %47 = vector.extract_strided_slice %44 {offsets = [0, 0, 0, 0], sizes = [7, 1, 16, 256], strides = [1, 1, 1, 1]} : vector<7x2x16x256xbf16> to vector<7x1x16x256xbf16>
    %48 = vector.shape_cast %47 : vector<7x1x16x256xbf16> to vector<7x16x256xbf16>
    %49 = vector.extract_strided_slice %44 {offsets = [0, 1, 0, 0], sizes = [7, 1, 16, 256], strides = [1, 1, 1, 1]} : vector<7x2x16x256xbf16> to vector<7x1x16x256xbf16>
    %50 = vector.shape_cast %49 : vector<7x1x16x256xbf16> to vector<7x16x256xbf16>
    %51 = vector.extract_strided_slice %46 {offsets = [0, 1, 0, 0], sizes = [7, 1, 16, 256], strides = [1, 1, 1, 1]} : vector<7x2x16x256xbf16> to vector<7x1x16x256xbf16>
    %52 = vector.shape_cast %51 : vector<7x1x16x256xbf16> to vector<7x16x256xbf16>
    %53 = tpu.concatenate %48, %50, %52 in 2 : vector<7x16x256xbf16>, vector<7x16x256xbf16>, vector<7x16x256xbf16> -> vector<7x16x768xbf16>
    %54 = vector.shape_cast %53 : vector<7x16x768xbf16> to vector<112x768xbf16>
    %c0_13 = arith.constant 0 : index
    %c0_14 = arith.constant 0 : index
    %55 = vector.load %arg6[%c0_13, %c0_14] : memref<768x128xbf16, #tpu.memory_space<vmem>>, vector<768x128xbf16>
    %cst_15 = arith.constant dense<0.000000e+00> : vector<112x128xf32>
    %56 = tpu.matmul %54, %55, %cst_15 {dimension_numbers = #tpu.dot_dimension_numbers<[1], [0], [0], [1], [0, 0, 1, 1], [], []>} : vector<112x768xbf16>, vector<768x128xbf16>, vector<112x128xf32> -> vector<112x128xf32>
    %c0_16 = arith.constant 0 : index
    %c0_17 = arith.constant 0 : index
    %57 = vector.load %arg7[%c0_16, %c0_17] : memref<1x128xf32, #tpu.memory_space<vmem>>, vector<1x128xf32>
    %58 = vector.broadcast %57 : vector<1x128xf32> to vector<112x128xf32>
    %59 = arith.addf %56, %58 : vector<112x128xf32>
    %cst_18 = arith.constant 0.000000e+00 : f32
    %60 = vector.broadcast %cst_18 : f32 to vector<112x128xf32>
    %61 = arith.maximumf %59, %60 : vector<112x128xf32>
    %62 = arith.truncf %61 : vector<112x128xf32> to vector<112x128xbf16>
    %63 = vector.shape_cast %62 : vector<112x128xbf16> to vector<7x16x128xbf16>
    %64 = vector.extract_strided_slice %63 {offsets = [0, 0, 0], sizes = [1, 16, 128], strides = [1, 1, 1]} : vector<7x16x128xbf16> to vector<1x16x128xbf16>
    %65 = vector.shape_cast %64 : vector<1x16x128xbf16> to vector<16x128xbf16>
    %c0_19 = arith.constant 0 : index
    %c0_20 = arith.constant 0 : index
    %c0_21 = arith.constant 0 : index
    %66 = vector.load %arg8[%c0_19, %c0_20, %c0_21] : memref<7x128x128xbf16, #tpu.memory_space<vmem>>, vector<1x128x128xbf16>
    %67 = vector.shape_cast %66 : vector<1x128x128xbf16> to vector<128x128xbf16>
    %cst_22 = arith.constant dense<0.000000e+00> : vector<16x128xf32>
    %68 = tpu.matmul %65, %67, %cst_22 {dimension_numbers = #tpu.dot_dimension_numbers<[1], [0], [0], [1], [0, 0, 1, 1], [], []>} : vector<16x128xbf16>, vector<128x128xbf16>, vector<16x128xf32> -> vector<16x128xf32>
    %69 = vector.extract_strided_slice %63 {offsets = [1, 0, 0], sizes = [1, 16, 128], strides = [1, 1, 1]} : vector<7x16x128xbf16> to vector<1x16x128xbf16>
    %70 = vector.shape_cast %69 : vector<1x16x128xbf16> to vector<16x128xbf16>
    %c1 = arith.constant 1 : index
    %c0_23 = arith.constant 0 : index
    %c0_24 = arith.constant 0 : index
    %71 = vector.load %arg8[%c1, %c0_23, %c0_24] : memref<7x128x128xbf16, #tpu.memory_space<vmem>>, vector<1x128x128xbf16>
    %72 = vector.shape_cast %71 : vector<1x128x128xbf16> to vector<128x128xbf16>
    %cst_25 = arith.constant dense<0.000000e+00> : vector<16x128xf32>
    %73 = tpu.matmul %70, %72, %cst_25 {dimension_numbers = #tpu.dot_dimension_numbers<[1], [0], [0], [1], [0, 0, 1, 1], [], []>} : vector<16x128xbf16>, vector<128x128xbf16>, vector<16x128xf32> -> vector<16x128xf32>
    %74 = arith.addf %68, %73 : vector<16x128xf32>
    %75 = vector.extract_strided_slice %63 {offsets = [2, 0, 0], sizes = [1, 16, 128], strides = [1, 1, 1]} : vector<7x16x128xbf16> to vector<1x16x128xbf16>
    %76 = vector.shape_cast %75 : vector<1x16x128xbf16> to vector<16x128xbf16>
    %c2 = arith.constant 2 : index
    %c0_26 = arith.constant 0 : index
    %c0_27 = arith.constant 0 : index
    %77 = vector.load %arg8[%c2, %c0_26, %c0_27] : memref<7x128x128xbf16, #tpu.memory_space<vmem>>, vector<1x128x128xbf16>
    %78 = vector.shape_cast %77 : vector<1x128x128xbf16> to vector<128x128xbf16>
    %cst_28 = arith.constant dense<0.000000e+00> : vector<16x128xf32>
    %79 = tpu.matmul %76, %78, %cst_28 {dimension_numbers = #tpu.dot_dimension_numbers<[1], [0], [0], [1], [0, 0, 1, 1], [], []>} : vector<16x128xbf16>, vector<128x128xbf16>, vector<16x128xf32> -> vector<16x128xf32>
    %80 = arith.addf %74, %79 : vector<16x128xf32>
    %81 = vector.extract_strided_slice %63 {offsets = [3, 0, 0], sizes = [1, 16, 128], strides = [1, 1, 1]} : vector<7x16x128xbf16> to vector<1x16x128xbf16>
    %82 = vector.shape_cast %81 : vector<1x16x128xbf16> to vector<16x128xbf16>
    %c3 = arith.constant 3 : index
    %c0_29 = arith.constant 0 : index
    %c0_30 = arith.constant 0 : index
    %83 = vector.load %arg8[%c3, %c0_29, %c0_30] : memref<7x128x128xbf16, #tpu.memory_space<vmem>>, vector<1x128x128xbf16>
    %84 = vector.shape_cast %83 : vector<1x128x128xbf16> to vector<128x128xbf16>
    %cst_31 = arith.constant dense<0.000000e+00> : vector<16x128xf32>
    %85 = tpu.matmul %82, %84, %cst_31 {dimension_numbers = #tpu.dot_dimension_numbers<[1], [0], [0], [1], [0, 0, 1, 1], [], []>} : vector<16x128xbf16>, vector<128x128xbf16>, vector<16x128xf32> -> vector<16x128xf32>
    %86 = arith.addf %80, %85 : vector<16x128xf32>
    %87 = vector.extract_strided_slice %63 {offsets = [4, 0, 0], sizes = [1, 16, 128], strides = [1, 1, 1]} : vector<7x16x128xbf16> to vector<1x16x128xbf16>
    %88 = vector.shape_cast %87 : vector<1x16x128xbf16> to vector<16x128xbf16>
    %c4 = arith.constant 4 : index
    %c0_32 = arith.constant 0 : index
    %c0_33 = arith.constant 0 : index
    %89 = vector.load %arg8[%c4, %c0_32, %c0_33] : memref<7x128x128xbf16, #tpu.memory_space<vmem>>, vector<1x128x128xbf16>
    %90 = vector.shape_cast %89 : vector<1x128x128xbf16> to vector<128x128xbf16>
    %cst_34 = arith.constant dense<0.000000e+00> : vector<16x128xf32>
    %91 = tpu.matmul %88, %90, %cst_34 {dimension_numbers = #tpu.dot_dimension_numbers<[1], [0], [0], [1], [0, 0, 1, 1], [], []>} : vector<16x128xbf16>, vector<128x128xbf16>, vector<16x128xf32> -> vector<16x128xf32>
    %92 = arith.addf %86, %91 : vector<16x128xf32>
    %93 = vector.extract_strided_slice %63 {offsets = [5, 0, 0], sizes = [1, 16, 128], strides = [1, 1, 1]} : vector<7x16x128xbf16> to vector<1x16x128xbf16>
    %94 = vector.shape_cast %93 : vector<1x16x128xbf16> to vector<16x128xbf16>
    %c5 = arith.constant 5 : index
    %c0_35 = arith.constant 0 : index
    %c0_36 = arith.constant 0 : index
    %95 = vector.load %arg8[%c5, %c0_35, %c0_36] : memref<7x128x128xbf16, #tpu.memory_space<vmem>>, vector<1x128x128xbf16>
    %96 = vector.shape_cast %95 : vector<1x128x128xbf16> to vector<128x128xbf16>
    %cst_37 = arith.constant dense<0.000000e+00> : vector<16x128xf32>
    %97 = tpu.matmul %94, %96, %cst_37 {dimension_numbers = #tpu.dot_dimension_numbers<[1], [0], [0], [1], [0, 0, 1, 1], [], []>} : vector<16x128xbf16>, vector<128x128xbf16>, vector<16x128xf32> -> vector<16x128xf32>
    %98 = arith.addf %92, %97 : vector<16x128xf32>
    %99 = vector.extract_strided_slice %63 {offsets = [6, 0, 0], sizes = [1, 16, 128], strides = [1, 1, 1]} : vector<7x16x128xbf16> to vector<1x16x128xbf16>
    %100 = vector.shape_cast %99 : vector<1x16x128xbf16> to vector<16x128xbf16>
    %c6 = arith.constant 6 : index
    %c0_38 = arith.constant 0 : index
    %c0_39 = arith.constant 0 : index
    %101 = vector.load %arg8[%c6, %c0_38, %c0_39] : memref<7x128x128xbf16, #tpu.memory_space<vmem>>, vector<1x128x128xbf16>
    %102 = vector.shape_cast %101 : vector<1x128x128xbf16> to vector<128x128xbf16>
    %cst_40 = arith.constant dense<0.000000e+00> : vector<16x128xf32>
    %103 = tpu.matmul %100, %102, %cst_40 {dimension_numbers = #tpu.dot_dimension_numbers<[1], [0], [0], [1], [0, 0, 1, 1], [], []>} : vector<16x128xbf16>, vector<128x128xbf16>, vector<16x128xf32> -> vector<16x128xf32>
    %104 = arith.addf %98, %103 : vector<16x128xf32>
    %c0_41 = arith.constant 0 : index
    %c0_42 = arith.constant 0 : index
    %105 = vector.load %arg9[%c0_41, %c0_42] : memref<1x128xf32, #tpu.memory_space<vmem>>, vector<1x128xf32>
    %106 = vector.broadcast %105 : vector<1x128xf32> to vector<16x128xf32>
    %107 = arith.addf %104, %106 : vector<16x128xf32>
    %cst_43 = arith.constant 0.000000e+00 : f32
    %108 = vector.broadcast %cst_43 : f32 to vector<16x128xf32>
    %109 = arith.maximumf %107, %108 : vector<16x128xf32>
    %c0_44 = arith.constant 0 : index
    %c0_45 = arith.constant 0 : index
    %110 = vector.load %arg10[%c0_44, %c0_45] : memref<16x128xf32, #tpu.memory_space<vmem>>, vector<16x128xf32>
    tpu.vector_store %arg10[%c0_44, %c0_45], %109 {strides = array<i32>} : memref<16x128xf32, #tpu.memory_space<vmem>>, vector<16x128xf32>,
    return
  }
  func.func @transform_0(%arg0: i32) -> (i32, i32, i32) {
    %c0_i32 = arith.constant 0 : i32
    %c0_i32_0 = arith.constant 0 : i32
    %c0_i32_1 = arith.constant 0 : i32
    return %c0_i32, %arg0, %c0_i32_0 : i32, i32, i32
  }
  func.func @transform_1(%arg0: i32) -> (i32, i32) {
    %c0_i32 = arith.constant 0 : i32
    %c0_i32_0 = arith.constant 0 : i32
    %c0_i32_1 = arith.constant 0 : i32
    return %c0_i32, %c0_i32_0 : i32, i32
  }
  func.func @transform_2(%arg0: i32) -> (i32, i32) {
    %c0_i32 = arith.constant 0 : i32
    %c0_i32_0 = arith.constant 0 : i32
    %c0_i32_1 = arith.constant 0 : i32
    return %c0_i32, %c0_i32_0 : i32, i32
  }
  func.func @transform_3(%arg0: i32) -> (i32, i32) {
    %c0_i32 = arith.constant 0 : i32
    %c0_i32_0 = arith.constant 0 : i32
    %c0_i32_1 = arith.constant 0 : i32
    return %c0_i32, %c0_i32_0 : i32, i32
  }
  func.func @transform_4(%arg0: i32) -> (i32, i32) {
    %c0_i32 = arith.constant 0 : i32
    %c0_i32_0 = arith.constant 0 : i32
    %c0_i32_1 = arith.constant 0 : i32
    return %c0_i32, %c0_i32_0 : i32, i32
  }
  func.func @transform_5(%arg0: i32) -> (i32, i32) {
    %c0_i32 = arith.constant 0 : i32
    %c0_i32_0 = arith.constant 0 : i32
    %c0_i32_1 = arith.constant 0 : i32
    return %c0_i32, %c0_i32_0 : i32, i32
  }
  func.func @transform_6(%arg0: i32) -> (i32, i32) {
    %c0_i32 = arith.constant 0 : i32
    %c0_i32_0 = arith.constant 0 : i32
    %c0_i32_1 = arith.constant 0 : i32
    return %c0_i32, %c0_i32_0 : i32, i32
  }
  func.func @transform_7(%arg0: i32) -> (i32, i32, i32) {
    %c0_i32 = arith.constant 0 : i32
    %c0_i32_0 = arith.constant 0 : i32
    %c0_i32_1 = arith.constant 0 : i32
    %c0_i32_2 = arith.constant 0 : i32
    return %c0_i32, %c0_i32_0, %c0_i32_1 : i32, i32, i32
  }
  func.func @transform_8(%arg0: i32) -> (i32, i32) {
    %c0_i32 = arith.constant 0 : i32
    %c0_i32_0 = arith.constant 0 : i32
    %c0_i32_1 = arith.constant 0 : i32
    return %c0_i32, %c0_i32_0 : i32, i32
  }
  func.func @transform_9(%arg0: i32) -> (i32, i32) {
    %c0_i32 = arith.constant 0 : i32
    %c0_i32_0 = arith.constant 0 : i32
    return %arg0, %c0_i32 : i32, i32
  }
}

</mosaic_0001>

<llo_original>
// kernel: tile.18
$region0: #{tile.18}
  #allocation0 [shape = 's32[1]{0}', space=sflag, size = 0x4, scoped, tag = 'scoped memory for tile.18']
  %s0 = inlined_call_operand.vmem [shape: f32[16], index: 0, kind: input, shape index: {}]
  %s1 = inlined_call_operand.vmem [shape: f32[31,16], index: 1, kind: output, shape index: {}]
  // Predicated region
  $region2: #{tile.18} parent=0 // pred_check
    _
  $region3: #{tile.18} parent=0 // pred_check_branch
    %3 = sbr.rel (0) target = $region5
  $region4: #{tile.18} parent=0 // pred_region
    _
  $region5: #{tile.18} parent=0 // pred_fallthru
    _
  %v4 = vld [vmem:[%s0] ss:$0 sm:$0xff]
  %5 = vst [vmem:[%s1] sm:$0xff] %v4
  %s6 = scalar_lea.vmem %s1, 8
  %7 = vst [vmem:[%s6] sm:$0xff] %v4
  %s8 = scalar_lea.vmem %s1, 16
  %9 = vst [vmem:[%s8] sm:$0xff] %v4
  %s10 = scalar_lea.vmem %s1, 24
  %11 = vst [vmem:[%s10] sm:$0xff] %v4

// kernel: tile.19
$region0: #{tile.19}
  %s0 = inlined_call_operand.vmem [shape: f32[31,16], index: 0, kind: input, shape index: {}]
  %s1 = inlined_call_operand.vmem [shape: f32[496], index: 1, kind: output, shape index: {}]
  $region1: #{tile.19} parent=0
    #allocation0 [shape = 'u8[4096]{0}', space=vmem, size = 0x1000, scoped, tag = 'scoped mem for output reshape']
    %v2 = vld [vmem:[%s0] ss:$8 sm:$0xf]
    %vm3 = vcmask 130048
    %4 = vst.msk [vmem:[#allocation0] sm:$0xf] %vm3, %v2
    %s5 = scalar_lea.vmem %s0, 7
    %v6 = vld [vmem:[%s5] ss:$8 sm:$0x7]
    %7 = vrot.lane.b32.xlu0 %v6, 112
    %v8 = vpop.permute.xlu0 %7
    %vm9 = vcmask 1048448
    %10 = vst.msk [vmem:[#allocation0] sm:$0x7] %vm9, %v8
    %s11 = scalar_lea.vmem %s0, 6
    %v12 = vld [vmem:[%s11] ss:$8 sm:$0xf]
    %13 = vrot.lane.b32.xlu0 %v12, 96
    %v14 = vpop.permute.xlu0 %13
    %vm15 = vcmask 917248
    %16 = vst.msk [vmem:[#allocation0] sm:$0xf] %vm15, %v14
    %s17 = scalar_lea.vmem %s0, 5
    %v18 = vld [vmem:[%s17] ss:$8 sm:$0xf]
    %19 = vrot.lane.b32.xlu0 %v18, 80
    %v20 = vpop.permute.xlu0 %19
    %vm21 = vcmask 786048
    %22 = vst.msk [vmem:[#allocation0] sm:$0xf] %vm21, %v20
    %s23 = scalar_lea.vmem %s0, 4
    %v24 = vld [vmem:[%s23] ss:$8 sm:$0xf]
    %25 = vrot.lane.b32.xlu0 %v24, 64
    %v26 = vpop.permute.xlu0 %25
    %vm27 = vcmask 654848
    %28 = vst.msk [vmem:[#allocation0] sm:$0xf] %vm27, %v26
    %s29 = scalar_lea.vmem %s0, 3
    %v30 = vld [vmem:[%s29] ss:$8 sm:$0xf]
    %31 = vrot.lane.b32.xlu0 %v30, 48
    %v32 = vpop.permute.xlu0 %31
    %vm33 = vcmask 523648
    %34 = vst.msk [vmem:[#allocation0] sm:$0xf] %vm33, %v32
    %s35 = scalar_lea.vmem %s0, 2
    %v36 = vld [vmem:[%s35] ss:$8 sm:$0xf]
    %37 = vrot.lane.b32.xlu0 %v36, 32
    %v38 = vpop.permute.xlu0 %37
    %vm39 = vcmask 392448
    %40 = vst.msk [vmem:[#allocation0] sm:$0xf] %vm39, %v38
    %s41 = scalar_lea.vmem %s0, 1
    %v42 = vld [vmem:[%s41] ss:$8 sm:$0xf]
    %43 = vrot.lane.b32.xlu0 %v42, 16
    %v44 = vpop.permute.xlu0 %43
    %vm45 = vcmask 261248
    %46 = vst.msk [vmem:[#allocation0] sm:$0xf] %vm45, %v44
    %s48 = ssub.s32 16, 1
    %v49 = vld [vmem:[#allocation0] sm:%s48]
    %s51 = ssub.s32 16, 1
    %52 = vst [vmem:[%s1] sm:%s51] %v49

// kernel: tile.23
$region0: #{tile.23}
  #allocation0 [shape = 's32[1]{0}', space=sflag, size = 0x4, scoped, tag = 'scoped memory for tile.23']
  %s0 = inlined_call_operand.vmem [shape: f32[16], index: 0, kind: input, shape index: {}]
  %s1 = inlined_call_operand.vmem [shape: f32[15,16], index: 1, kind: output, shape index: {}]
  // Predicated region
  $region2: #{tile.23} parent=0 // pred_check
    _
  $region3: #{tile.23} parent=0 // pred_check_branch
    %3 = sbr.rel (0) target = $region5
  $region4: #{tile.23} parent=0 // pred_region
    _
  $region5: #{tile.23} parent=0 // pred_fallthru
    _
  %v4 = vld [vmem:[%s0] ss:$0 sm:$0xff]
  %5 = vst [vmem:[%s1] sm:$0xff] %v4
  %s6 = scalar_lea.vmem %s1, 8
  %7 = vst [vmem:[%s6] sm:$0xff] %v4

// kernel: tile.24
$region0: #{tile.24}
  %s0 = inlined_call_operand.vmem [shape: f32[15,16], index: 0, kind: input, shape index: {}]
  %s1 = inlined_call_operand.vmem [shape: f32[240], index: 1, kind: output, shape index: {}]
  $region1: #{tile.24} parent=0
    #allocation0 [shape = 'u8[4096]{0}', space=vmem, size = 0x1000, scoped, tag = 'scoped mem for output reshape']
    %s2 = smov 3
    %v3 = vld [vmem:[%s0] ss:$8 sm:%s2]
    %vm4 = vcmask 130048
    %5 = vst.msk [vmem:[#allocation0] sm:$0x3] %vm4, %v3
    %s6 = scalar_lea.vmem %s0, 7
    %v7 = vld [vmem:[%s6] sm:$0x1]
    %8 = vrot.lane.b32.xlu0 %v7, 112
    %v9 = vpop.permute.xlu0 %8
    %vm10 = vcmask 1048448
    %11 = vst.msk [vmem:[#allocation0] sm:$0x1] %vm10, %v9
    %s12 = scalar_lea.vmem %s0, 6
    %s13 = smov 3
    %v14 = vld [vmem:[%s12] ss:$8 sm:%s13]
    %15 = vrot.lane.b32.xlu0 %v14, 96
    %v16 = vpop.permute.xlu0 %15
    %vm17 = vcmask 917248
    %18 = vst.msk [vmem:[#allocation0] sm:$0x3] %vm17, %v16
    %s19 = scalar_lea.vmem %s0, 5
    %s20 = smov 3
    %v21 = vld [vmem:[%s19] ss:$8 sm:%s20]
    %22 = vrot.lane.b32.xlu0 %v21, 80
    %v23 = vpop.permute.xlu0 %22
    %vm24 = vcmask 786048
    %25 = vst.msk [vmem:[#allocation0] sm:$0x3] %vm24, %v23
    %s26 = scalar_lea.vmem %s0, 4
    %s27 = smov 3
    %v28 = vld [vmem:[%s26] ss:$8 sm:%s27]
    %29 = vrot.lane.b32.xlu0 %v28, 64
    %v30 = vpop.permute.xlu0 %29
    %vm31 = vcmask 654848
    %32 = vst.msk [vmem:[#allocation0] sm:$0x3] %vm31, %v30
    %s33 = scalar_lea.vmem %s0, 3
    %s34 = smov 3
    %v35 = vld [vmem:[%s33] ss:$8 sm:%s34]
    %36 = vrot.lane.b32.xlu0 %v35, 48
    %v37 = vpop.permute.xlu0 %36
    %vm38 = vcmask 523648
    %39 = vst.msk [vmem:[#allocation0] sm:$0x3] %vm38, %v37
    %s40 = scalar_lea.vmem %s0, 2
    %s41 = smov 3
    %v42 = vld [vmem:[%s40] ss:$8 sm:%s41]
    %43 = vrot.lane.b32.xlu0 %v42, 32
    %v44 = vpop.permute.xlu0 %43
    %vm45 = vcmask 392448
    %46 = vst.msk [vmem:[#allocation0] sm:$0x3] %vm45, %v44
    %s47 = scalar_lea.vmem %s0, 1
    %s48 = smov 3
    %v49 = vld [vmem:[%s47] ss:$8 sm:%s48]
    %50 = vrot.lane.b32.xlu0 %v49, 16
    %v51 = vpop.permute.xlu0 %50
    %vm52 = vcmask 261248
    %53 = vst.msk [vmem:[#allocation0] sm:$0x3] %vm52, %v51
    %s55 = ssub.s32 4, 1
    %v56 = vld [vmem:[#allocation0] sm:%s55]
    %s58 = ssub.s32 4, 1
    %59 = vst [vmem:[%s1] sm:%s58] %v56

// kernel: tile.28
$region0: #{tile.28}
  #allocation0 [shape = 's32[1]{0}', space=sflag, size = 0x4, scoped, tag = 'scoped memory for tile.28']
  %s0 = inlined_call_operand.vmem [shape: f32[16], index: 0, kind: input, shape index: {}]
  %s1 = inlined_call_operand.vmem [shape: f32[7,16], index: 1, kind: output, shape index: {}]
  // Predicated region
  $region2: #{tile.28} parent=0 // pred_check
    _
  $region3: #{tile.28} parent=0 // pred_check_branch
    %3 = sbr.rel (0) target = $region5
  $region4: #{tile.28} parent=0 // pred_region
    _
  $region5: #{tile.28} parent=0 // pred_fallthru
    _
  %v4 = vld [vmem:[%s0] ss:$0 sm:$0xff]
  %5 = vst [vmem:[%s1] sm:$0xff] %v4

// kernel: tile.29
$region0: #{tile.29}
  %s0 = inlined_call_operand.vmem [shape: f32[7,16], index: 0, kind: input, shape index: {}]
  %s1 = inlined_call_operand.vmem [shape: f32[112], index: 1, kind: output, shape index: {}]
  $region1: #{tile.29} parent=0
    #allocation0 [shape = 'u8[4096]{0}', space=vmem, size = 0x1000, scoped, tag = 'scoped mem for output reshape']
    %v2 = vld [vmem:[%s0] sm:$0x1]
    %vm3 = vcmask 130048
    %4 = vst.msk [vmem:[#allocation0] sm:$0x1] %vm3, %v2
    %s5 = scalar_lea.vmem %s0, 6
    %v6 = vld [vmem:[%s5] sm:$0x1]
    %7 = vrot.lane.b32.xlu0 %v6, 96
    %v8 = vpop.permute.xlu0 %7
    %vm9 = vcmask 917248
    %10 = vst.msk [vmem:[#allocation0] sm:$0x1] %vm9, %v8
    %s11 = scalar_lea.vmem %s0, 5
    %v12 = vld [vmem:[%s11] sm:$0x1]
    %13 = vrot.lane.b32.xlu0 %v12, 80
    %v14 = vpop.permute.xlu0 %13
    %vm15 = vcmask 786048
    %16 = vst.msk [vmem:[#allocation0] sm:$0x1] %vm15, %v14
    %s17 = scalar_lea.vmem %s0, 4
    %v18 = vld [vmem:[%s17] sm:$0x1]
    %19 = vrot.lane.b32.xlu0 %v18, 64
    %v20 = vpop.permute.xlu0 %19
    %vm21 = vcmask 654848
    %22 = vst.msk [vmem:[#allocation0] sm:$0x1] %vm21, %v20
    %s23 = scalar_lea.vmem %s0, 3
    %v24 = vld [vmem:[%s23] sm:$0x1]
    %25 = vrot.lane.b32.xlu0 %v24, 48
    %v26 = vpop.permute.xlu0 %25
    %vm27 = vcmask 523648
    %28 = vst.msk [vmem:[#allocation0] sm:$0x1] %vm27, %v26
    %s29 = scalar_lea.vmem %s0, 2
    %v30 = vld [vmem:[%s29] sm:$0x1]
    %31 = vrot.lane.b32.xlu0 %v30, 32
    %v32 = vpop.permute.xlu0 %31
    %vm33 = vcmask 392448
    %34 = vst.msk [vmem:[#allocation0] sm:$0x1] %vm33, %v32
    %s35 = scalar_lea.vmem %s0, 1
    %v36 = vld [vmem:[%s35] sm:$0x1]
    %37 = vrot.lane.b32.xlu0 %v36, 16
    %v38 = vpop.permute.xlu0 %37
    %vm39 = vcmask 261248
    %40 = vst.msk [vmem:[#allocation0] sm:$0x1] %vm39, %v38
    %s42 = ssub.s32 2, 1
    %v43 = vld [vmem:[#allocation0] sm:%s42]
    %s45 = ssub.s32 2, 1
    %46 = vst [vmem:[%s1] sm:%s45] %v43

// kernel: cnn_forward.1
$region0: #{cnn_forward.1}
  #allocation0 [shape = 'u32[]', space=smem, size = 0x4, offset = 0x4, fixed_abs, tag = 'smem constant byte address 0x4 - core index']
  #allocation1 [shape = 'u32[72,128]{1,0:T(1,128)}', space=vmem, size = 0x9000, scoped, tag = 'internal scratch']
  %s0 = inlined_call_operand.vmem [shape: bf16[63,16,128], index: 0, kind: input, shape index: {}]
  %s1 = inlined_call_operand.vmem [shape: bf16[384,512], index: 1, kind: input, shape index: {}]
  %s2 = inlined_call_operand.vmem [shape: f32[1,512], index: 2, kind: input, shape index: {}]
  %s3 = inlined_call_operand.vmem [shape: bf16[1536,256], index: 3, kind: input, shape index: {}]
  %s4 = inlined_call_operand.vmem [shape: f32[1,256], index: 4, kind: input, shape index: {}]
  %s5 = inlined_call_operand.vmem [shape: bf16[768,128], index: 5, kind: input, shape index: {}]
  %s6 = inlined_call_operand.vmem [shape: f32[1,128], index: 6, kind: input, shape index: {}]
  %s7 = inlined_call_operand.vmem [shape: bf16[7,128,128], index: 7, kind: input, shape index: {}]
  %s8 = inlined_call_operand.vmem [shape: f32[1,128], index: 8, kind: input, shape index: {}]
  %s9 = inlined_call_operand.vmem [shape: f32[16,128], index: 9, kind: output, shape index: {}]
  %s10 = sld [smem:[#allocation0]]
  $region46: #{cnn_forward.1} parent=0
    _
  %s12 = ssub.s32 1, %s10
  %s13 = scalar_select 0, %s12, %s10
  // Predicated region
  $region2: #{cnn_forward.1} parent=0 // pred_check
    _
  $region3: #{cnn_forward.1} parent=0 // pred_check_branch
    %15 = sbr.rel (0) target = $region5
  $region4: #{cnn_forward.1} parent=0 // pred_region
    _
  $region5: #{cnn_forward.1} parent=0 // pred_fallthru
    _
  // Predicated region
  $region6: #{cnn_forward.1} parent=0 // pred_check
    _
  $region7: #{cnn_forward.1} parent=0 // pred_check_branch
    %17 = sbr.rel (0) target = $region9
  $region8: #{cnn_forward.1} parent=0 // pred_region
    _
  $region9: #{cnn_forward.1} parent=0 // pred_fallthru
    _
  // Predicated region
  $region10: #{cnn_forward.1} parent=0 // pred_check
    _
  $region11: #{cnn_forward.1} parent=0 // pred_check_branch
    %19 = sbr.rel (0) target = $region13
  $region12: #{cnn_forward.1} parent=0 // pred_region
    _
  $region13: #{cnn_forward.1} parent=0 // pred_fallthru
    _
  // Predicated region
  $region14: #{cnn_forward.1} parent=0 // pred_check
    _
  $region15: #{cnn_forward.1} parent=0 // pred_check_branch
    %21 = sbr.rel (0) target = $region17
  $region16: #{cnn_forward.1} parent=0 // pred_region
    _
  $region17: #{cnn_forward.1} parent=0 // pred_fallthru
    _
  // Predicated region
  $region18: #{cnn_forward.1} parent=0 // pred_check
    _
  $region19: #{cnn_forward.1} parent=0 // pred_check_branch
    %23 = sbr.rel (0) target = $region21
  $region20: #{cnn_forward.1} parent=0 // pred_region
    _
  $region21: #{cnn_forward.1} parent=0 // pred_fallthru
    _
  // Predicated region
  $region22: #{cnn_forward.1} parent=0 // pred_check
    _
  $region23: #{cnn_forward.1} parent=0 // pred_check_branch
    %25 = sbr.rel (0) target = $region25
  $region24: #{cnn_forward.1} parent=0 // pred_region
    _
  $region25: #{cnn_forward.1} parent=0 // pred_fallthru
    _
  // Predicated region
  $region26: #{cnn_forward.1} parent=0 // pred_check
    _
  $region27: #{cnn_forward.1} parent=0 // pred_check_branch
    %27 = sbr.rel (0) target = $region29
  $region28: #{cnn_forward.1} parent=0 // pred_region
    _
  $region29: #{cnn_forward.1} parent=0 // pred_fallthru
    _
  // Predicated region
  $region30: #{cnn_forward.1} parent=0 // pred_check
    _
  $region31: #{cnn_forward.1} parent=0 // pred_check_branch
    %29 = sbr.rel (0) target = $region33
  $region32: #{cnn_forward.1} parent=0 // pred_region
    _
  $region33: #{cnn_forward.1} parent=0 // pred_fallthru
    _
  // Predicated region
  $region34: #{cnn_forward.1} parent=0 // pred_check
    _
  $region35: #{cnn_forward.1} parent=0 // pred_check_branch
    %31 = sbr.rel (0) target = $region37
  $region36: #{cnn_forward.1} parent=0 // pred_region
    _
  $region37: #{cnn_forward.1} parent=0 // pred_fallthru
    _
  %v32 = vld [vmem:[%s0] sm:$0xf]
  %v33 = vld [vmem:[%s0 + $0x4] sm:$0xf]
  %v34 = vld [vmem:[%s0 + $0x8] sm:$0xf]
  %v35 = vld [vmem:[%s0 + $0xc] sm:$0xf]
  %v36 = vld [vmem:[%s0 + $0x10] sm:$0xf]
  %v37 = vld [vmem:[%s0 + $0x14] sm:$0xf]
  %v38 = vld [vmem:[%s0 + $0x18] sm:$0xf]
  %v39 = vld [vmem:[%s0 + $0x1c] sm:$0xf]
  %v40 = vld [vmem:[%s0 + $0x20] sm:$0xf]
  %v41 = vld [vmem:[%s0 + $0x24] sm:$0xf]
  %v42 = vld [vmem:[%s0 + $0x28] sm:$0xf]
  %v43 = vld [vmem:[%s0 + $0x2c] sm:$0xf]
  %v44 = vld [vmem:[%s0 + $0x30] sm:$0xf]
  %v45 = vld [vmem:[%s0 + $0x34] sm:$0xf]
  %v46 = vld [vmem:[%s0 + $0x38] sm:$0xf]
  %v47 = vld [vmem:[%s0 + $0x3c] sm:$0xf]
  %v48 = vld [vmem:[%s0 + $0x40] sm:$0xf]
  %v49 = vld [vmem:[%s0 + $0x44] sm:$0xf]
  %v50 = vld [vmem:[%s0 + $0x48] sm:$0xf]
  %v51 = vld [vmem:[%s0 + $0x4c] sm:$0xf]
  %v52 = vld [vmem:[%s0 + $0x50] sm:$0xf]
  %v53 = vld [vmem:[%s0 + $0x54] sm:$0xf]
  %v54 = vld [vmem:[%s0 + $0x58] sm:$0xf]
  %v55 = vld [vmem:[%s0 + $0x5c] sm:$0xf]
  %v56 = vld [vmem:[%s0 + $0x60] sm:$0xf]
  %v57 = vld [vmem:[%s0 + $0x64] sm:$0xf]
  %v58 = vld [vmem:[%s0 + $0x68] sm:$0xf]
  %v59 = vld [vmem:[%s0 + $0x6c] sm:$0xf]
  %v60 = vld [vmem:[%s0 + $0x70] sm:$0xf]
  %v61 = vld [vmem:[%s0 + $0x74] sm:$0xf]
  %v62 = vld [vmem:[%s0 + $0x78] sm:$0xf]
  %v63 = vld [vmem:[%s0 + $0x7c] sm:$0xf]
  %v64 = vld [vmem:[%s0 + $0x80] sm:$0xf]
  %v65 = vld [vmem:[%s0 + $0x84] sm:$0xf]
  %v66 = vld [vmem:[%s0 + $0x88] sm:$0xf]
  %v67 = vld [vmem:[%s0 + $0x8c] sm:$0xf]
  %v68 = vld [vmem:[%s0 + $0x90] sm:$0xf]
  %v69 = vld [vmem:[%s0 + $0x94] sm:$0xf]
  %v70 = vld [vmem:[%s0 + $0x98] sm:$0xf]
  %v71 = vld [vmem:[%s0 + $0x9c] sm:$0xf]
  %v72 = vld [vmem:[%s0 + $0xa0] sm:$0xf]
  %v73 = vld [vmem:[%s0 + $0xa4] sm:$0xf]
  %v74 = vld [vmem:[%s0 + $0xa8] sm:$0xf]
  %v75 = vld [vmem:[%s0 + $0xac] sm:$0xf]
  %v76 = vld [vmem:[%s0 + $0xb0] sm:$0xf]
  %v77 = vld [vmem:[%s0 + $0xb4] sm:$0xf]
  %v78 = vld [vmem:[%s0 + $0xb8] sm:$0xf]
  %v79 = vld [vmem:[%s0 + $0xbc] sm:$0xf]
  %v80 = vld [vmem:[%s0 + $0xc0] sm:$0xf]
  %v81 = vld [vmem:[%s0 + $0xc4] sm:$0xf]
  %v82 = vld [vmem:[%s0 + $0xc8] sm:$0xf]
  %v83 = vld [vmem:[%s0 + $0xcc] sm:$0xf]
  %v84 = vld [vmem:[%s0 + $0xd0] sm:$0xf]
  %v85 = vld [vmem:[%s0 + $0xd4] sm:$0xf]
  %v86 = vld [vmem:[%s0 + $0xd8] sm:$0xf]
  %v87 = vld [vmem:[%s0 + $0xdc] sm:$0xf]
  %v88 = vld [vmem:[%s0 + $0xe0] sm:$0xf]
  %v89 = vld [vmem:[%s0 + $0xe4] sm:$0xf]
  %v90 = vld [vmem:[%s0 + $0xe8] sm:$0xf]
  %v91 = vld [vmem:[%s0 + $0xec] sm:$0xf]
  %v92 = vld [vmem:[%s0 + $0xf0] sm:$0xf]
  %v93 = vld [vmem:[%s0 + $0xf4] sm:$0xf]
  %v94 = vld [vmem:[%s0 + $0xf8] sm:$0xf]
  %v95 = vld [vmem:[%s0 + $0xfc] sm:$0xf]
  %v96 = vld [vmem:[%s0 + $0x100] sm:$0xf]
  %v97 = vld [vmem:[%s0 + $0x104] sm:$0xf]
  %v98 = vld [vmem:[%s0 + $0x108] sm:$0xf]
  %v99 = vld [vmem:[%s0 + $0x10c] sm:$0xf]
  %v100 = vld [vmem:[%s0 + $0x110] sm:$0xf]
  %v101 = vld [vmem:[%s0 + $0x114] sm:$0xf]
  %v102 = vld [vmem:[%s0 + $0x118] sm:$0xf]
  %v103 = vld [vmem:[%s0 + $0x11c] sm:$0xf]
  %v104 = vld [vmem:[%s0 + $0x120] sm:$0xf]
  %v105 = vld [vmem:[%s0 + $0x124] sm:$0xf]
  %v106 = vld [vmem:[%s0 + $0x128] sm:$0xf]
  %v107 = vld [vmem:[%s0 + $0x12c] sm:$0xf]
  %v108 = vld [vmem:[%s0 + $0x130] sm:$0xf]
  %v109 = vld [vmem:[%s0 + $0x134] sm:$0xf]
  %v110 = vld [vmem:[%s0 + $0x138] sm:$0xf]
  %v111 = vld [vmem:[%s0 + $0x13c] sm:$0xf]
  %v112 = vld [vmem:[%s0 + $0x140] sm:$0xf]
  %v113 = vld [vmem:[%s0 + $0x144] sm:$0xf]
  %v114 = vld [vmem:[%s0 + $0x148] sm:$0xf]
  %v115 = vld [vmem:[%s0 + $0x14c] sm:$0xf]
  %v116 = vld [vmem:[%s0 + $0x150] sm:$0xf]
  %v117 = vld [vmem:[%s0 + $0x154] sm:$0xf]
  %v118 = vld [vmem:[%s0 + $0x158] sm:$0xf]
  %v119 = vld [vmem:[%s0 + $0x15c] sm:$0xf]
  %v120 = vld [vmem:[%s0 + $0x160] sm:$0xf]
  %v121 = vld [vmem:[%s0 + $0x164] sm:$0xf]
  %v122 = vld [vmem:[%s0 + $0x168] sm:$0xf]
  %v123 = vld [vmem:[%s0 + $0x16c] sm:$0xf]
  %v124 = vld [vmem:[%s0 + $0x170] sm:$0xf]
  %v125 = vld [vmem:[%s0 + $0x174] sm:$0xf]
  %v126 = vld [vmem:[%s0 + $0x178] sm:$0xf]
  %v127 = vld [vmem:[%s0 + $0x17c] sm:$0xf]
  %v128 = vld [vmem:[%s0 + $0x180] sm:$0xf]
  %v129 = vld [vmem:[%s0 + $0x184] sm:$0xf]
  %v130 = vld [vmem:[%s0 + $0x188] sm:$0xf]
  %v131 = vld [vmem:[%s0 + $0x18c] sm:$0xf]
  %v132 = vld [vmem:[%s0 + $0x190] sm:$0xf]
  %v133 = vld [vmem:[%s0 + $0x194] sm:$0xf]
  %v134 = vld [vmem:[%s0 + $0x198] sm:$0xf]
  %v135 = vld [vmem:[%s0 + $0x19c] sm:$0xf]
  %v136 = vld [vmem:[%s0 + $0x1a0] sm:$0xf]
  %v137 = vld [vmem:[%s0 + $0x1a4] sm:$0xf]
  %v138 = vld [vmem:[%s0 + $0x1a8] sm:$0xf]
  %v139 = vld [vmem:[%s0 + $0x1ac] sm:$0xf]
  %v140 = vld [vmem:[%s0 + $0x1b0] sm:$0xf]
  %v141 = vld [vmem:[%s0 + $0x1b4] sm:$0xf]
  %v142 = vld [vmem:[%s0 + $0x1b8] sm:$0xf]
  %v143 = vld [vmem:[%s0 + $0x1bc] sm:$0xf]
  %v144 = vld [vmem:[%s0 + $0x1c0] sm:$0xf]
  %v145 = vld [vmem:[%s0 + $0x1c4] sm:$0xf]
  %v146 = vld [vmem:[%s0 + $0x1c8] sm:$0xf]
  %v147 = vld [vmem:[%s0 + $0x1cc] sm:$0xf]
  %v148 = vld [vmem:[%s0 + $0x1d0] sm:$0xf]
  %v149 = vld [vmem:[%s0 + $0x1d4] sm:$0xf]
  %v150 = vld [vmem:[%s0 + $0x1d8] sm:$0xf]
  %v151 = vld [vmem:[%s0 + $0x1dc] sm:$0xf]
  %v152 = vld [vmem:[%s0 + $0x1e0] sm:$0xf]
  %v153 = vld [vmem:[%s0 + $0x1e4] sm:$0xf]
  %v154 = vld [vmem:[%s0 + $0x1e8] sm:$0xf]
  %v155 = vld [vmem:[%s0 + $0x1ec] sm:$0xf]
  %v156 = vld [vmem:[%s0 + $0x1f0] sm:$0xf]
  %v157 = vld [vmem:[%s0 + $0x1f4] sm:$0xf]
  %v220 = vunpack.c.l.b16 %v32
  %v221 = vunpack.c.l.b16 %v33
  %v222 = vunpack.c.l.b16 %v36
  %v223 = vunpack.c.l.b16 %v37
  %v224 = vunpack.c.l.b16 %v40
  %v225 = vunpack.c.l.b16 %v41
  %v226 = vunpack.c.l.b16 %v44
  %v227 = vunpack.c.l.b16 %v45
  %v228 = vunpack.c.l.b16 %v48
  %v229 = vunpack.c.l.b16 %v49
  %v230 = vunpack.c.l.b16 %v52
  %v231 = vunpack.c.l.b16 %v53
  %v232 = vunpack.c.l.b16 %v56
  %v233 = vunpack.c.l.b16 %v57
  %v234 = vunpack.c.l.b16 %v60
  %v235 = vunpack.c.l.b16 %v61
  %v236 = vunpack.c.l.b16 %v64
  %v237 = vunpack.c.l.b16 %v65
  %v238 = vunpack.c.l.b16 %v68
  %v239 = vunpack.c.l.b16 %v69
  %v240 = vunpack.c.l.b16 %v72
  %v241 = vunpack.c.l.b16 %v73
  %v242 = vunpack.c.l.b16 %v76
  %v243 = vunpack.c.l.b16 %v77
  %v244 = vunpack.c.l.b16 %v80
  %v245 = vunpack.c.l.b16 %v81
  %v246 = vunpack.c.l.b16 %v84
  %v247 = vunpack.c.l.b16 %v85
  %v248 = vunpack.c.l.b16 %v88
  %v249 = vunpack.c.l.b16 %v89
  %v250 = vunpack.c.l.b16 %v92
  %v251 = vunpack.c.l.b16 %v93
  %v252 = vunpack.c.l.b16 %v96
  %v253 = vunpack.c.l.b16 %v97
  %v254 = vunpack.c.l.b16 %v100
  %v255 = vunpack.c.l.b16 %v101
  %v256 = vunpack.c.l.b16 %v104
  %v257 = vunpack.c.l.b16 %v105
  %v258 = vunpack.c.l.b16 %v108
  %v259 = vunpack.c.l.b16 %v109
  %v260 = vunpack.c.l.b16 %v112
  %v261 = vunpack.c.l.b16 %v113
  %v262 = vunpack.c.l.b16 %v116
  %v263 = vunpack.c.l.b16 %v117
  %v264 = vunpack.c.l.b16 %v120
  %v265 = vunpack.c.l.b16 %v121
  %v266 = vunpack.c.l.b16 %v124
  %v267 = vunpack.c.l.b16 %v125
  %v268 = vunpack.c.l.b16 %v128
  %v269 = vunpack.c.l.b16 %v129
  %v270 = vunpack.c.l.b16 %v132
  %v271 = vunpack.c.l.b16 %v133
  %v272 = vunpack.c.l.b16 %v136
  %v273 = vunpack.c.l.b16 %v137
  %v274 = vunpack.c.l.b16 %v140
  %v275 = vunpack.c.l.b16 %v141
  %v276 = vunpack.c.l.b16 %v144
  %v277 = vunpack.c.l.b16 %v145
  %v278 = vunpack.c.l.b16 %v148
  %v279 = vunpack.c.l.b16 %v149
  %v280 = vunpack.c.l.b16 %v152
  %v281 = vunpack.c.l.b16 %v153
  %v282 = vpack.c.b16 %v221, %v220
  %v283 = vpack.c.b16 %v223, %v222
  %v284 = vpack.c.b16 %v225, %v224
  %v285 = vpack.c.b16 %v227, %v226
  %v286 = vpack.c.b16 %v229, %v228
  %v287 = vpack.c.b16 %v231, %v230
  %v288 = vpack.c.b16 %v233, %v232
  %v289 = vpack.c.b16 %v235, %v234
  %v290 = vpack.c.b16 %v237, %v236
  %v291 = vpack.c.b16 %v239, %v238
  %v292 = vpack.c.b16 %v241, %v240
  %v293 = vpack.c.b16 %v243, %v242
  %v294 = vpack.c.b16 %v245, %v244
  %v295 = vpack.c.b16 %v247, %v246
  %v296 = vpack.c.b16 %v249, %v248
  %v297 = vpack.c.b16 %v251, %v250
  %v298 = vpack.c.b16 %v253, %v252
  %v299 = vpack.c.b16 %v255, %v254
  %v300 = vpack.c.b16 %v257, %v256
  %v301 = vpack.c.b16 %v259, %v258
  %v302 = vpack.c.b16 %v261, %v260
  %v303 = vpack.c.b16 %v263, %v262
  %v304 = vpack.c.b16 %v265, %v264
  %v305 = vpack.c.b16 %v267, %v266
  %v306 = vpack.c.b16 %v269, %v268
  %v307 = vpack.c.b16 %v271, %v270
  %v308 = vpack.c.b16 %v273, %v272
  %v309 = vpack.c.b16 %v275, %v274
  %v310 = vpack.c.b16 %v277, %v276
  %v311 = vpack.c.b16 %v279, %v278
  %v312 = vpack.c.b16 %v281, %v280
  %v406 = vunpack.c.l.b16 %v34
  %v407 = vunpack.c.l.b16 %v35
  %v408 = vunpack.c.l.b16 %v38
  %v409 = vunpack.c.l.b16 %v39
  %v410 = vunpack.c.l.b16 %v42
  %v411 = vunpack.c.l.b16 %v43
  %v412 = vunpack.c.l.b16 %v46
  %v413 = vunpack.c.l.b16 %v47
  %v414 = vunpack.c.l.b16 %v50
  %v415 = vunpack.c.l.b16 %v51
  %v416 = vunpack.c.l.b16 %v54
  %v417 = vunpack.c.l.b16 %v55
  %v418 = vunpack.c.l.b16 %v58
  %v419 = vunpack.c.l.b16 %v59
  %v420 = vunpack.c.l.b16 %v62
  %v421 = vunpack.c.l.b16 %v63
  %v422 = vunpack.c.l.b16 %v66
  %v423 = vunpack.c.l.b16 %v67
  %v424 = vunpack.c.l.b16 %v70
  %v425 = vunpack.c.l.b16 %v71
  %v426 = vunpack.c.l.b16 %v74
  %v427 = vunpack.c.l.b16 %v75
  %v428 = vunpack.c.l.b16 %v78
  %v429 = vunpack.c.l.b16 %v79
  %v430 = vunpack.c.l.b16 %v82
  %v431 = vunpack.c.l.b16 %v83
  %v432 = vunpack.c.l.b16 %v86
  %v433 = vunpack.c.l.b16 %v87
  %v434 = vunpack.c.l.b16 %v90
  %v435 = vunpack.c.l.b16 %v91
  %v436 = vunpack.c.l.b16 %v94
  %v437 = vunpack.c.l.b16 %v95
  %v438 = vunpack.c.l.b16 %v98
  %v439 = vunpack.c.l.b16 %v99
  %v440 = vunpack.c.l.b16 %v102
  %v441 = vunpack.c.l.b16 %v103
  %v442 = vunpack.c.l.b16 %v106
  %v443 = vunpack.c.l.b16 %v107
  %v444 = vunpack.c.l.b16 %v110
  %v445 = vunpack.c.l.b16 %v111
  %v446 = vunpack.c.l.b16 %v114
  %v447 = vunpack.c.l.b16 %v115
  %v448 = vunpack.c.l.b16 %v118
  %v449 = vunpack.c.l.b16 %v119
  %v450 = vunpack.c.l.b16 %v122
  %v451 = vunpack.c.l.b16 %v123
  %v452 = vunpack.c.l.b16 %v126
  %v453 = vunpack.c.l.b16 %v127
  %v454 = vunpack.c.l.b16 %v130
  %v455 = vunpack.c.l.b16 %v131
  %v456 = vunpack.c.l.b16 %v134
  %v457 = vunpack.c.l.b16 %v135
  %v458 = vunpack.c.l.b16 %v138
  %v459 = vunpack.c.l.b16 %v139
  %v460 = vunpack.c.l.b16 %v142
  %v461 = vunpack.c.l.b16 %v143
  %v462 = vunpack.c.l.b16 %v146
  %v463 = vunpack.c.l.b16 %v147
  %v464 = vunpack.c.l.b16 %v150
  %v465 = vunpack.c.l.b16 %v151
  %v466 = vunpack.c.l.b16 %v154
  %v467 = vunpack.c.l.b16 %v155
  %v468 = vpack.c.b16 %v407, %v406
  %v469 = vpack.c.b16 %v409, %v408
  %v470 = vpack.c.b16 %v411, %v410
  %v471 = vpack.c.b16 %v413, %v412
  %v472 = vpack.c.b16 %v415, %v414
  %v473 = vpack.c.b16 %v417, %v416
  %v474 = vpack.c.b16 %v419, %v418
  %v475 = vpack.c.b16 %v421, %v420
  %v476 = vpack.c.b16 %v423, %v422
  %v477 = vpack.c.b16 %v425, %v424
  %v478 = vpack.c.b16 %v427, %v426
  %v479 = vpack.c.b16 %v429, %v428
  %v480 = vpack.c.b16 %v431, %v430
  %v481 = vpack.c.b16 %v433, %v432
  %v482 = vpack.c.b16 %v435, %v434
  %v483 = vpack.c.b16 %v437, %v436
  %v484 = vpack.c.b16 %v439, %v438
  %v485 = vpack.c.b16 %v441, %v440
  %v486 = vpack.c.b16 %v443, %v442
  %v487 = vpack.c.b16 %v445, %v444
  %v488 = vpack.c.b16 %v447, %v446
  %v489 = vpack.c.b16 %v449, %v448
  %v490 = vpack.c.b16 %v451, %v450
  %v491 = vpack.c.b16 %v453, %v452
  %v492 = vpack.c.b16 %v455, %v454
  %v493 = vpack.c.b16 %v457, %v456
  %v494 = vpack.c.b16 %v459, %v458
  %v495 = vpack.c.b16 %v461, %v460
  %v496 = vpack.c.b16 %v463, %v462
  %v497 = vpack.c.b16 %v465, %v464
  %v498 = vpack.c.b16 %v467, %v466
  %v532 = vunpack.c.l.b16 %v156
  %v533 = vunpack.c.l.b16 %v157
  %v534 = vpack.c.b16 %v533, %v532
  %v536 = vld [vmem:[%s1] sm:$0xff]
  %v537 = vld [vmem:[%s1 + $0x8] sm:$0xff]
  %v538 = vld [vmem:[%s1 + $0x10] sm:$0xff]
  %v539 = vld [vmem:[%s1 + $0x18] sm:$0xff]
  %v540 = vld [vmem:[%s1 + $0x20] sm:$0xff]
  %v541 = vld [vmem:[%s1 + $0x28] sm:$0xff]
  %v542 = vld [vmem:[%s1 + $0x30] sm:$0xff]
  %v543 = vld [vmem:[%s1 + $0x38] sm:$0xff]
  %v544 = vld [vmem:[%s1 + $0x40] sm:$0xff]
  %v545 = vld [vmem:[%s1 + $0x48] sm:$0xff]
  %v546 = vld [vmem:[%s1 + $0x50] sm:$0xff]
  %v547 = vld [vmem:[%s1 + $0x58] sm:$0xff]
  %v548 = vld [vmem:[%s1 + $0x60] sm:$0xff]
  %v549 = vld [vmem:[%s1 + $0x68] sm:$0xff]
  %v550 = vld [vmem:[%s1 + $0x70] sm:$0xff]
  %v551 = vld [vmem:[%s1 + $0x78] sm:$0xff]
  %v552 = vld [vmem:[%s1 + $0x80] sm:$0xff]
  %v553 = vld [vmem:[%s1 + $0x88] sm:$0xff]
  %v554 = vld [vmem:[%s1 + $0x90] sm:$0xff]
  %v555 = vld [vmem:[%s1 + $0x98] sm:$0xff]
  %v556 = vld [vmem:[%s1 + $0xa0] sm:$0xff]
  %v557 = vld [vmem:[%s1 + $0xa8] sm:$0xff]
  %v558 = vld [vmem:[%s1 + $0xb0] sm:$0xff]
  %v559 = vld [vmem:[%s1 + $0xb8] sm:$0xff]
  %v560 = vld [vmem:[%s1 + $0xc0] sm:$0xff]
  %v561 = vld [vmem:[%s1 + $0xc8] sm:$0xff]
  %v562 = vld [vmem:[%s1 + $0xd0] sm:$0xff]
  %v563 = vld [vmem:[%s1 + $0xd8] sm:$0xff]
  %v564 = vld [vmem:[%s1 + $0xe0] sm:$0xff]
  %v565 = vld [vmem:[%s1 + $0xe8] sm:$0xff]
  %v566 = vld [vmem:[%s1 + $0xf0] sm:$0xff]
  %v567 = vld [vmem:[%s1 + $0xf8] sm:$0xff]
  %v568 = vld [vmem:[%s1 + $0x100] sm:$0xff]
  %v569 = vld [vmem:[%s1 + $0x108] sm:$0xff]
  %v570 = vld [vmem:[%s1 + $0x110] sm:$0xff]
  %v571 = vld [vmem:[%s1 + $0x118] sm:$0xff]
  %v572 = vld [vmem:[%s1 + $0x120] sm:$0xff]
  %v573 = vld [vmem:[%s1 + $0x128] sm:$0xff]
  %v574 = vld [vmem:[%s1 + $0x130] sm:$0xff]
  %v575 = vld [vmem:[%s1 + $0x138] sm:$0xff]
  %v576 = vld [vmem:[%s1 + $0x140] sm:$0xff]
  %v577 = vld [vmem:[%s1 + $0x148] sm:$0xff]
  %v578 = vld [vmem:[%s1 + $0x150] sm:$0xff]
  %v579 = vld [vmem:[%s1 + $0x158] sm:$0xff]
  %v580 = vld [vmem:[%s1 + $0x160] sm:$0xff]
  %v581 = vld [vmem:[%s1 + $0x168] sm:$0xff]
  %v582 = vld [vmem:[%s1 + $0x170] sm:$0xff]
  %v583 = vld [vmem:[%s1 + $0x178] sm:$0xff]
  %v584 = vld [vmem:[%s1 + $0x180] sm:$0xff]
  %v585 = vld [vmem:[%s1 + $0x188] sm:$0xff]
  %v586 = vld [vmem:[%s1 + $0x190] sm:$0xff]
  %v587 = vld [vmem:[%s1 + $0x198] sm:$0xff]
  %v588 = vld [vmem:[%s1 + $0x1a0] sm:$0xff]
  %v589 = vld [vmem:[%s1 + $0x1a8] sm:$0xff]
  %v590 = vld [vmem:[%s1 + $0x1b0] sm:$0xff]
  %v591 = vld [vmem:[%s1 + $0x1b8] sm:$0xff]
  %v592 = vld [vmem:[%s1 + $0x1c0] sm:$0xff]
  %v593 = vld [vmem:[%s1 + $0x1c8] sm:$0xff]
  %v594 = vld [vmem:[%s1 + $0x1d0] sm:$0xff]
  %v595 = vld [vmem:[%s1 + $0x1d8] sm:$0xff]
  %v596 = vld [vmem:[%s1 + $0x1e0] sm:$0xff]
  %v597 = vld [vmem:[%s1 + $0x1e8] sm:$0xff]
  %v598 = vld [vmem:[%s1 + $0x1f0] sm:$0xff]
  %v599 = vld [vmem:[%s1 + $0x1f8] sm:$0xff]
  %v600 = vld [vmem:[%s1 + $0x200] sm:$0xff]
  %v601 = vld [vmem:[%s1 + $0x208] sm:$0xff]
  %v602 = vld [vmem:[%s1 + $0x210] sm:$0xff]
  %v603 = vld [vmem:[%s1 + $0x218] sm:$0xff]
  %v604 = vld [vmem:[%s1 + $0x220] sm:$0xff]
  %v605 = vld [vmem:[%s1 + $0x228] sm:$0xff]
  %v606 = vld [vmem:[%s1 + $0x230] sm:$0xff]
  %v607 = vld [vmem:[%s1 + $0x238] sm:$0xff]
  %v608 = vld [vmem:[%s1 + $0x240] sm:$0xff]
  %v609 = vld [vmem:[%s1 + $0x248] sm:$0xff]
  %v610 = vld [vmem:[%s1 + $0x250] sm:$0xff]
  %v611 = vld [vmem:[%s1 + $0x258] sm:$0xff]
  %v612 = vld [vmem:[%s1 + $0x260] sm:$0xff]
  %v613 = vld [vmem:[%s1 + $0x268] sm:$0xff]
  %v614 = vld [vmem:[%s1 + $0x270] sm:$0xff]
  %v615 = vld [vmem:[%s1 + $0x278] sm:$0xff]
  %v616 = vld [vmem:[%s1 + $0x280] sm:$0xff]
  %v617 = vld [vmem:[%s1 + $0x288] sm:$0xff]
  %v618 = vld [vmem:[%s1 + $0x290] sm:$0xff]
  %v619 = vld [vmem:[%s1 + $0x298] sm:$0xff]
  %v620 = vld [vmem:[%s1 + $0x2a0] sm:$0xff]
  %v621 = vld [vmem:[%s1 + $0x2a8] sm:$0xff]
  %v622 = vld [vmem:[%s1 + $0x2b0] sm:$0xff]
  %v623 = vld [vmem:[%s1 + $0x2b8] sm:$0xff]
  %v624 = vld [vmem:[%s1 + $0x2c0] sm:$0xff]
  %v625 = vld [vmem:[%s1 + $0x2c8] sm:$0xff]
  %v626 = vld [vmem:[%s1 + $0x2d0] sm:$0xff]
  %v627 = vld [vmem:[%s1 + $0x2d8] sm:$0xff]
  %v628 = vld [vmem:[%s1 + $0x2e0] sm:$0xff]
  %v629 = vld [vmem:[%s1 + $0x2e8] sm:$0xff]
  %v630 = vld [vmem:[%s1 + $0x2f0] sm:$0xff]
  %v631 = vld [vmem:[%s1 + $0x2f8] sm:$0xff]
  %v632 = vld [vmem:[%s2] sm:$0xf]
  %v634 = vperm.slane %v632, 0
  %v635 = vperm.slane %v632, 1
  %v636 = vperm.slane %v632, 2
  %v637 = vperm.slane %v632, 3
  %v738 = vunpack.c.l.b16 %v536
  %v739 = vunpack.c.h.b16 %v536
  %v740 = vunpack.c.l.b16 %v537
  %v741 = vunpack.c.h.b16 %v537
  %v742 = vunpack.c.l.b16 %v538
  %v743 = vunpack.c.h.b16 %v538
  %v744 = vunpack.c.l.b16 %v539
  %v745 = vunpack.c.h.b16 %v539
  %v746 = vunpack.c.l.b16 %v540
  %v747 = vunpack.c.h.b16 %v540
  %v748 = vunpack.c.l.b16 %v541
  %v749 = vunpack.c.h.b16 %v541
  %v750 = vunpack.c.l.b16 %v542
  %v751 = vunpack.c.h.b16 %v542
  %v752 = vunpack.c.l.b16 %v543
  %v753 = vunpack.c.h.b16 %v543
  %v754 = vunpack.c.l.b16 %v544
  %v755 = vunpack.c.h.b16 %v544
  %v756 = vunpack.c.l.b16 %v545
  %v757 = vunpack.c.h.b16 %v545
  %v758 = vunpack.c.l.b16 %v546
  %v759 = vunpack.c.h.b16 %v546
  %v760 = vunpack.c.l.b16 %v547
  %v761 = vunpack.c.h.b16 %v547
  %v762 = vunpack.c.l.b16 %v548
  %v763 = vunpack.c.h.b16 %v548
  %v764 = vunpack.c.l.b16 %v549
  %v765 = vunpack.c.h.b16 %v549
  %v766 = vunpack.c.l.b16 %v550
  %v767 = vunpack.c.h.b16 %v550
  %v768 = vunpack.c.l.b16 %v551
  %v769 = vunpack.c.h.b16 %v551
  %v770 = vunpack.c.l.b16 %v552
  %v771 = vunpack.c.h.b16 %v552
  %v772 = vunpack.c.l.b16 %v553
  %v773 = vunpack.c.h.b16 %v553
  %v774 = vunpack.c.l.b16 %v554
  %v775 = vunpack.c.h.b16 %v554
  %v776 = vunpack.c.l.b16 %v555
  %v777 = vunpack.c.h.b16 %v555
  %v778 = vunpack.c.l.b16 %v556
  %v779 = vunpack.c.h.b16 %v556
  %v780 = vunpack.c.l.b16 %v557
  %v781 = vunpack.c.h.b16 %v557
  %v782 = vunpack.c.l.b16 %v558
  %v783 = vunpack.c.h.b16 %v558
  %v784 = vunpack.c.l.b16 %v559
  %v785 = vunpack.c.h.b16 %v559
  %v786 = vunpack.c.l.b16 %v560
  %v787 = vunpack.c.h.b16 %v560
  %v788 = vunpack.c.l.b16 %v561
  %v789 = vunpack.c.h.b16 %v561
  %v790 = vunpack.c.l.b16 %v562
  %v791 = vunpack.c.h.b16 %v562
  %v792 = vunpack.c.l.b16 %v563
  %v793 = vunpack.c.h.b16 %v563
  %v794 = vunpack.c.l.b16 %v564
  %v795 = vunpack.c.h.b16 %v564
  %v796 = vunpack.c.l.b16 %v565
  %v797 = vunpack.c.h.b16 %v565
  %v798 = vunpack.c.l.b16 %v566
  %v799 = vunpack.c.h.b16 %v566
  %v800 = vunpack.c.l.b16 %v567
  %v801 = vunpack.c.h.b16 %v567
  %v802 = vunpack.c.l.b16 %v568
  %v803 = vunpack.c.h.b16 %v568
  %v804 = vunpack.c.l.b16 %v569
  %v805 = vunpack.c.h.b16 %v569
  %v806 = vunpack.c.l.b16 %v570
  %v807 = vunpack.c.h.b16 %v570
  %v808 = vunpack.c.l.b16 %v571
  %v809 = vunpack.c.h.b16 %v571
  %v810 = vunpack.c.l.b16 %v572
  %v811 = vunpack.c.h.b16 %v572
  %v812 = vunpack.c.l.b16 %v573
  %v813 = vunpack.c.h.b16 %v573
  %v814 = vunpack.c.l.b16 %v574
  %v815 = vunpack.c.h.b16 %v574
  %v816 = vunpack.c.l.b16 %v575
  %v817 = vunpack.c.h.b16 %v575
  %v818 = vunpack.c.l.b16 %v576
  %v819 = vunpack.c.h.b16 %v576
  %v820 = vunpack.c.l.b16 %v577
  %v821 = vunpack.c.h.b16 %v577
  %v822 = vunpack.c.l.b16 %v578
  %v823 = vunpack.c.h.b16 %v578
  %v824 = vunpack.c.l.b16 %v579
  %v825 = vunpack.c.h.b16 %v579
  %v826 = vunpack.c.l.b16 %v580
  %v827 = vunpack.c.h.b16 %v580
  %v828 = vunpack.c.l.b16 %v581
  %v829 = vunpack.c.h.b16 %v581
  %v830 = vunpack.c.l.b16 %v582
  %v831 = vunpack.c.h.b16 %v582
  %v832 = vunpack.c.l.b16 %v583
  %v833 = vunpack.c.h.b16 %v583
  %v834 = vunpack.c.l.b16 %v584
  %v835 = vunpack.c.h.b16 %v584
  %v836 = vunpack.c.l.b16 %v585
  %v837 = vunpack.c.h.b16 %v585
  %v838 = vunpack.c.l.b16 %v586
  %v839 = vunpack.c.h.b16 %v586
  %v840 = vunpack.c.l.b16 %v587
  %v841 = vunpack.c.h.b16 %v587
  %v842 = vunpack.c.l.b16 %v588
  %v843 = vunpack.c.h.b16 %v588
  %v844 = vunpack.c.l.b16 %v589
  %v845 = vunpack.c.h.b16 %v589
  %v846 = vunpack.c.l.b16 %v590
  %v847 = vunpack.c.h.b16 %v590
  %v848 = vunpack.c.l.b16 %v591
  %v849 = vunpack.c.h.b16 %v591
  %v850 = vunpack.c.l.b16 %v592
  %v851 = vunpack.c.h.b16 %v592
  %v852 = vunpack.c.l.b16 %v593
  %v853 = vunpack.c.h.b16 %v593
  %v854 = vunpack.c.l.b16 %v594
  %v855 = vunpack.c.h.b16 %v594
  %v856 = vunpack.c.l.b16 %v595
  %v857 = vunpack.c.h.b16 %v595
  %v858 = vunpack.c.l.b16 %v596
  %v859 = vunpack.c.h.b16 %v596
  %v860 = vunpack.c.l.b16 %v597
  %v861 = vunpack.c.h.b16 %v597
  %v862 = vunpack.c.l.b16 %v598
  %v863 = vunpack.c.h.b16 %v598
  %v864 = vunpack.c.l.b16 %v599
  %v865 = vunpack.c.h.b16 %v599
  %v866 = vunpack.c.l.b16 %v600
  %v867 = vunpack.c.h.b16 %v600
  %v868 = vunpack.c.l.b16 %v601
  %v869 = vunpack.c.h.b16 %v601
  %v870 = vunpack.c.l.b16 %v602
  %v871 = vunpack.c.h.b16 %v602
  %v872 = vunpack.c.l.b16 %v603
  %v873 = vunpack.c.h.b16 %v603
  %v874 = vunpack.c.l.b16 %v604
  %v875 = vunpack.c.h.b16 %v604
  %v876 = vunpack.c.l.b16 %v605
  %v877 = vunpack.c.h.b16 %v605
  %v878 = vunpack.c.l.b16 %v606
  %v879 = vunpack.c.h.b16 %v606
  %v880 = vunpack.c.l.b16 %v607
  %v881 = vunpack.c.h.b16 %v607
  %v882 = vunpack.c.l.b16 %v608
  %v883 = vunpack.c.h.b16 %v608
  %v884 = vunpack.c.l.b16 %v609
  %v885 = vunpack.c.h.b16 %v609
  %v886 = vunpack.c.l.b16 %v610
  %v887 = vunpack.c.h.b16 %v610
  %v888 = vunpack.c.l.b16 %v611
  %v889 = vunpack.c.h.b16 %v611
  %v890 = vunpack.c.l.b16 %v612
  %v891 = vunpack.c.h.b16 %v612
  %v892 = vunpack.c.l.b16 %v613
  %v893 = vunpack.c.h.b16 %v613
  %v894 = vunpack.c.l.b16 %v614
  %v895 = vunpack.c.h.b16 %v614
  %v896 = vunpack.c.l.b16 %v615
  %v897 = vunpack.c.h.b16 %v615
  %v898 = vunpack.c.l.b16 %v616
  %v899 = vunpack.c.h.b16 %v616
  %v900 = vunpack.c.l.b16 %v617
  %v901 = vunpack.c.h.b16 %v617
  %v902 = vunpack.c.l.b16 %v618
  %v903 = vunpack.c.h.b16 %v618
  %v904 = vunpack.c.l.b16 %v619
  %v905 = vunpack.c.h.b16 %v619
  %v906 = vunpack.c.l.b16 %v620
  %v907 = vunpack.c.h.b16 %v620
  %v908 = vunpack.c.l.b16 %v621
  %v909 = vunpack.c.h.b16 %v621
  %v910 = vunpack.c.l.b16 %v622
  %v911 = vunpack.c.h.b16 %v622
  %v912 = vunpack.c.l.b16 %v623
  %v913 = vunpack.c.h.b16 %v623
  %v914 = vunpack.c.l.b16 %v624
  %v915 = vunpack.c.h.b16 %v624
  %v916 = vunpack.c.l.b16 %v625
  %v917 = vunpack.c.h.b16 %v625
  %v918 = vunpack.c.l.b16 %v626
  %v919 = vunpack.c.h.b16 %v626
  %v920 = vunpack.c.l.b16 %v627
  %v921 = vunpack.c.h.b16 %v627
  %v922 = vunpack.c.l.b16 %v628
  %v923 = vunpack.c.h.b16 %v628
  %v924 = vunpack.c.l.b16 %v629
  %v925 = vunpack.c.h.b16 %v629
  %v926 = vunpack.c.l.b16 %v630
  %v927 = vunpack.c.h.b16 %v630
  %v928 = vunpack.c.l.b16 %v631
  %v929 = vunpack.c.h.b16 %v631
  %v930 = vpack.c.b16 %v742, %v738
  %v931 = vpack.c.b16 %v743, %v739
  %v932 = vpack.c.b16 %v744, %v740
  %v933 = vpack.c.b16 %v745, %v741
  %v934 = vpack.c.b16 %v750, %v746
  %v935 = vpack.c.b16 %v751, %v747
  %v936 = vpack.c.b16 %v752, %v748
  %v937 = vpack.c.b16 %v753, %v749
  %v938 = vpack.c.b16 %v758, %v754
  %v939 = vpack.c.b16 %v759, %v755
  %v940 = vpack.c.b16 %v760, %v756
  %v941 = vpack.c.b16 %v761, %v757
  %v942 = vpack.c.b16 %v766, %v762
  %v943 = vpack.c.b16 %v767, %v763
  %v944 = vpack.c.b16 %v768, %v764
  %v945 = vpack.c.b16 %v769, %v765
  %v946 = vpack.c.b16 %v774, %v770
  %v947 = vpack.c.b16 %v775, %v771
  %v948 = vpack.c.b16 %v776, %v772
  %v949 = vpack.c.b16 %v777, %v773
  %v950 = vpack.c.b16 %v782, %v778
  %v951 = vpack.c.b16 %v783, %v779
  %v952 = vpack.c.b16 %v784, %v780
  %v953 = vpack.c.b16 %v785, %v781
  %v954 = vpack.c.b16 %v790, %v786
  %v955 = vpack.c.b16 %v791, %v787
  %v956 = vpack.c.b16 %v792, %v788
  %v957 = vpack.c.b16 %v793, %v789
  %v958 = vpack.c.b16 %v798, %v794
  %v959 = vpack.c.b16 %v799, %v795
  %v960 = vpack.c.b16 %v800, %v796
  %v961 = vpack.c.b16 %v801, %v797
  %v962 = vpack.c.b16 %v806, %v802
  %v963 = vpack.c.b16 %v807, %v803
  %v964 = vpack.c.b16 %v808, %v804
  %v965 = vpack.c.b16 %v809, %v805
  %v966 = vpack.c.b16 %v814, %v810
  %v967 = vpack.c.b16 %v815, %v811
  %v968 = vpack.c.b16 %v816, %v812
  %v969 = vpack.c.b16 %v817, %v813
  %v970 = vpack.c.b16 %v822, %v818
  %v971 = vpack.c.b16 %v823, %v819
  %v972 = vpack.c.b16 %v824, %v820
  %v973 = vpack.c.b16 %v825, %v821
  %v974 = vpack.c.b16 %v830, %v826
  %v975 = vpack.c.b16 %v831, %v827
  %v976 = vpack.c.b16 %v832, %v828
  %v977 = vpack.c.b16 %v833, %v829
  %v978 = vpack.c.b16 %v838, %v834
  %v979 = vpack.c.b16 %v839, %v835
  %v980 = vpack.c.b16 %v840, %v836
  %v981 = vpack.c.b16 %v841, %v837
  %v982 = vpack.c.b16 %v846, %v842
  %v983 = vpack.c.b16 %v847, %v843
  %v984 = vpack.c.b16 %v848, %v844
  %v985 = vpack.c.b16 %v849, %v845
  %v986 = vpack.c.b16 %v854, %v850
  %v987 = vpack.c.b16 %v855, %v851
  %v988 = vpack.c.b16 %v856, %v852
  %v989 = vpack.c.b16 %v857, %v853
  %v990 = vpack.c.b16 %v862, %v858
  %v991 = vpack.c.b16 %v863, %v859
  %v992 = vpack.c.b16 %v864, %v860
  %v993 = vpack.c.b16 %v865, %v861
  %v994 = vpack.c.b16 %v870, %v866
  %v995 = vpack.c.b16 %v871, %v867
  %v996 = vpack.c.b16 %v872, %v868
  %v997 = vpack.c.b16 %v873, %v869
  %v998 = vpack.c.b16 %v878, %v874
  %v999 = vpack.c.b16 %v879, %v875
  %v1000 = vpack.c.b16 %v880, %v876
  %v1001 = vpack.c.b16 %v881, %v877
  %v1002 = vpack.c.b16 %v886, %v882
  %v1003 = vpack.c.b16 %v887, %v883
  %v1004 = vpack.c.b16 %v888, %v884
  %v1005 = vpack.c.b16 %v889, %v885
  %v1006 = vpack.c.b16 %v894, %v890
  %v1007 = vpack.c.b16 %v895, %v891
  %v1008 = vpack.c.b16 %v896, %v892
  %v1009 = vpack.c.b16 %v897, %v893
  %v1010 = vpack.c.b16 %v902, %v898
  %v1011 = vpack.c.b16 %v903, %v899
  %v1012 = vpack.c.b16 %v904, %v900
  %v1013 = vpack.c.b16 %v905, %v901
  %v1014 = vpack.c.b16 %v910, %v906
  %v1015 = vpack.c.b16 %v911, %v907
  %v1016 = vpack.c.b16 %v912, %v908
  %v1017 = vpack.c.b16 %v913, %v909
  %v1018 = vpack.c.b16 %v918, %v914
  %v1019 = vpack.c.b16 %v919, %v915
  %v1020 = vpack.c.b16 %v920, %v916
  %v1021 = vpack.c.b16 %v921, %v917
  %v1022 = vpack.c.b16 %v926, %v922
  %v1023 = vpack.c.b16 %v927, %v923
  %v1024 = vpack.c.b16 %v928, %v924
  %v1025 = vpack.c.b16 %v929, %v925
  %1122 = vmatpush.bf16.msra.mxu0 %v958
  %1123 = vmatpush.bf16.msra.mxu0 %v954
  %1124 = vmatpush.bf16.msra.mxu0 %v950
  %1125 = vmatpush.bf16.msra.mxu0 %v946
  %1126 = vmatpush.bf16.msra.mxu0 %v942
  %1127 = vmatpush.bf16.msra.mxu0 %v938
  %1128 = vmatpush.bf16.msra.mxu0 %v934
  %1129 = vmatpush.bf16.msra.mxu0 %v930
  %1130 = vmatmul.bf16.gmra.mxu0 %v282
  %v1131 = vpop.f32.mrf.mxu0
  %v1132 = vadd.f32 %v634, %v1131
  %v1133 = vpop.f32.mrf.mxu0
  %v1134 = vadd.f32 %v634, %v1133
  %1135 = vmatmul.bf16.gmra.mxu0 %v283
  %v1136 = vpop.f32.mrf.mxu0
  %v1137 = vadd.f32 %v634, %v1136
  %v1138 = vpop.f32.mrf.mxu0
  %v1139 = vadd.f32 %v634, %v1138
  %1140 = vmatmul.bf16.gmra.mxu0 %v284
  %v1141 = vpop.f32.mrf.mxu0
  %v1142 = vadd.f32 %v634, %v1141
  %v1143 = vpop.f32.mrf.mxu0
  %v1144 = vadd.f32 %v634, %v1143
  %1145 = vmatmul.bf16.gmra.mxu0 %v285
  %v1146 = vpop.f32.mrf.mxu0
  %v1147 = vadd.f32 %v634, %v1146
  %v1148 = vpop.f32.mrf.mxu0
  %v1149 = vadd.f32 %v634, %v1148
  %1150 = vmatmul.bf16.gmra.mxu0 %v286
  %v1151 = vpop.f32.mrf.mxu0
  %v1152 = vadd.f32 %v634, %v1151
  %v1153 = vpop.f32.mrf.mxu0
  %v1154 = vadd.f32 %v634, %v1153
  %1155 = vmatmul.bf16.gmra.mxu0 %v287
  %v1156 = vpop.f32.mrf.mxu0
  %v1157 = vadd.f32 %v634, %v1156
  %v1158 = vpop.f32.mrf.mxu0
  %v1159 = vadd.f32 %v634, %v1158
  %1160 = vmatmul.bf16.gmra.mxu0 %v288
  %v1161 = vpop.f32.mrf.mxu0
  %v1162 = vadd.f32 %v634, %v1161
  %v1163 = vpop.f32.mrf.mxu0
  %v1164 = vadd.f32 %v634, %v1163
  %1165 = vmatmul.bf16.gmra.mxu0 %v289
  %v1166 = vpop.f32.mrf.mxu0
  %v1167 = vadd.f32 %v634, %v1166
  %v1168 = vpop.f32.mrf.mxu0
  %v1169 = vadd.f32 %v634, %v1168
  %1170 = vmatmul.bf16.gmra.mxu0 %v290
  %v1171 = vpop.f32.mrf.mxu0
  %v1172 = vadd.f32 %v634, %v1171
  %v1173 = vpop.f32.mrf.mxu0
  %v1174 = vadd.f32 %v634, %v1173
  %1175 = vmatmul.bf16.gmra.mxu0 %v291
  %v1176 = vpop.f32.mrf.mxu0
  %v1177 = vadd.f32 %v634, %v1176
  %v1178 = vpop.f32.mrf.mxu0
  %v1179 = vadd.f32 %v634, %v1178
  %1180 = vmatmul.bf16.gmra.mxu0 %v292
  %v1181 = vpop.f32.mrf.mxu0
  %v1182 = vadd.f32 %v634, %v1181
  %v1183 = vpop.f32.mrf.mxu0
  %v1184 = vadd.f32 %v634, %v1183
  %1185 = vmatmul.bf16.gmra.mxu0 %v293
  %v1186 = vpop.f32.mrf.mxu0
  %v1187 = vadd.f32 %v634, %v1186
  %v1188 = vpop.f32.mrf.mxu0
  %v1189 = vadd.f32 %v634, %v1188
  %1190 = vmatmul.bf16.gmra.mxu0 %v294
  %v1191 = vpop.f32.mrf.mxu0
  %v1192 = vadd.f32 %v634, %v1191
  %v1193 = vpop.f32.mrf.mxu0
  %v1194 = vadd.f32 %v634, %v1193
  %1195 = vmatmul.bf16.gmra.mxu0 %v295
  %v1196 = vpop.f32.mrf.mxu0
  %v1197 = vadd.f32 %v634, %v1196
  %v1198 = vpop.f32.mrf.mxu0
  %v1199 = vadd.f32 %v634, %v1198
  %1200 = vmatmul.bf16.gmra.mxu0 %v296
  %v1201 = vpop.f32.mrf.mxu0
  %v1202 = vadd.f32 %v634, %v1201
  %v1203 = vpop.f32.mrf.mxu0
  %v1204 = vadd.f32 %v634, %v1203
  %1205 = vmatmul.bf16.gmra.mxu0 %v297
  %v1206 = vpop.f32.mrf.mxu0
  %v1207 = vadd.f32 %v634, %v1206
  %v1208 = vpop.f32.mrf.mxu0
  %v1209 = vadd.f32 %v634, %v1208
  %1210 = vmatmul.bf16.gmra.mxu0 %v298
  %v1211 = vpop.f32.mrf.mxu0
  %v1212 = vadd.f32 %v634, %v1211
  %v1213 = vpop.f32.mrf.mxu0
  %v1214 = vadd.f32 %v634, %v1213
  %1215 = vmatmul.bf16.gmra.mxu0 %v299
  %v1216 = vpop.f32.mrf.mxu0
  %v1217 = vadd.f32 %v634, %v1216
  %v1218 = vpop.f32.mrf.mxu0
  %v1219 = vadd.f32 %v634, %v1218
  %1220 = vmatmul.bf16.gmra.mxu0 %v300
  %v1221 = vpop.f32.mrf.mxu0
  %v1222 = vadd.f32 %v634, %v1221
  %v1223 = vpop.f32.mrf.mxu0
  %v1224 = vadd.f32 %v634, %v1223
  %1225 = vmatmul.bf16.gmra.mxu0 %v301
  %v1226 = vpop.f32.mrf.mxu0
  %v1227 = vadd.f32 %v634, %v1226
  %v1228 = vpop.f32.mrf.mxu0
  %v1229 = vadd.f32 %v634, %v1228
  %1230 = vmatmul.bf16.gmra.mxu0 %v302
  %v1231 = vpop.f32.mrf.mxu0
  %v1232 = vadd.f32 %v634, %v1231
  %v1233 = vpop.f32.mrf.mxu0
  %v1234 = vadd.f32 %v634, %v1233
  %1235 = vmatmul.bf16.gmra.mxu0 %v303
  %v1236 = vpop.f32.mrf.mxu0
  %v1237 = vadd.f32 %v634, %v1236
  %v1238 = vpop.f32.mrf.mxu0
  %v1239 = vadd.f32 %v634, %v1238
  %1240 = vmatmul.bf16.gmra.mxu0 %v304
  %v1241 = vpop.f32.mrf.mxu0
  %v1242 = vadd.f32 %v634, %v1241
  %v1243 = vpop.f32.mrf.mxu0
  %v1244 = vadd.f32 %v634, %v1243
  %1245 = vmatmul.bf16.gmra.mxu0 %v305
  %v1246 = vpop.f32.mrf.mxu0
  %v1247 = vadd.f32 %v634, %v1246
  %v1248 = vpop.f32.mrf.mxu0
  %v1249 = vadd.f32 %v634, %v1248
  %1250 = vmatmul.bf16.gmra.mxu0 %v306
  %v1251 = vpop.f32.mrf.mxu0
  %v1252 = vadd.f32 %v634, %v1251
  %v1253 = vpop.f32.mrf.mxu0
  %v1254 = vadd.f32 %v634, %v1253
  %1255 = vmatmul.bf16.gmra.mxu0 %v307
  %v1256 = vpop.f32.mrf.mxu0
  %v1257 = vadd.f32 %v634, %v1256
  %v1258 = vpop.f32.mrf.mxu0
  %v1259 = vadd.f32 %v634, %v1258
  %1260 = vmatmul.bf16.gmra.mxu0 %v308
  %v1261 = vpop.f32.mrf.mxu0
  %v1262 = vadd.f32 %v634, %v1261
  %v1263 = vpop.f32.mrf.mxu0
  %v1264 = vadd.f32 %v634, %v1263
  %1265 = vmatmul.bf16.gmra.mxu0 %v309
  %v1266 = vpop.f32.mrf.mxu0
  %v1267 = vadd.f32 %v634, %v1266
  %v1268 = vpop.f32.mrf.mxu0
  %v1269 = vadd.f32 %v634, %v1268
  %1270 = vmatmul.bf16.gmra.mxu0 %v310
  %v1271 = vpop.f32.mrf.mxu0
  %v1272 = vadd.f32 %v634, %v1271
  %v1273 = vpop.f32.mrf.mxu0
  %v1274 = vadd.f32 %v634, %v1273
  %1275 = vmatmul.bf16.gmra.mxu0 %v311
  %v1276 = vpop.f32.mrf.mxu0
  %v1277 = vadd.f32 %v634, %v1276
  %v1278 = vpop.f32.mrf.mxu0
  %v1279 = vadd.f32 %v634, %v1278
  %1280 = vmatmul.bf16.gmra.mxu0 %v312
  %v1281 = vpop.f32.mrf.mxu0
  %v1282 = vadd.f32 %v634, %v1281
  %v1283 = vpop.f32.mrf.mxu0
  %v1284 = vadd.f32 %v634, %v1283
  %1285 = vdwg.mxu0
  %1286 = vmatpush.bf16.msra.mxu0 %v990
  %1287 = vmatpush.bf16.msra.mxu0 %v986
  %1288 = vmatpush.bf16.msra.mxu0 %v982
  %1289 = vmatpush.bf16.msra.mxu0 %v978
  %1290 = vmatpush.bf16.msra.mxu0 %v974
  %1291 = vmatpush.bf16.msra.mxu0 %v970
  %1292 = vmatpush.bf16.msra.mxu0 %v966
  %1293 = vmatpush.bf16.msra.mxu0 %v962
  %1294 = vmatmul.bf16.gmra.mxu0 %v468
  %v1295 = vpop.f32.mrf.mxu0
  %v1296 = vadd.f32 %v1132, %v1295
  %v1297 = vpop.f32.mrf.mxu0
  %v1298 = vadd.f32 %v1134, %v1297
  %1299 = vmatmul.bf16.gmra.mxu0 %v469
  %v1300 = vpop.f32.mrf.mxu0
  %v1301 = vadd.f32 %v1137, %v1300
  %v1302 = vpop.f32.mrf.mxu0
  %v1303 = vadd.f32 %v1139, %v1302
  %1304 = vmatmul.bf16.gmra.mxu0 %v470
  %v1305 = vpop.f32.mrf.mxu0
  %v1306 = vadd.f32 %v1142, %v1305
  %v1307 = vpop.f32.mrf.mxu0
  %v1308 = vadd.f32 %v1144, %v1307
  %1309 = vmatmul.bf16.gmra.mxu0 %v471
  %v1310 = vpop.f32.mrf.mxu0
  %v1311 = vadd.f32 %v1147, %v1310
  %v1312 = vpop.f32.mrf.mxu0
  %v1313 = vadd.f32 %v1149, %v1312
  %1314 = vmatmul.bf16.gmra.mxu0 %v472
  %v1315 = vpop.f32.mrf.mxu0
  %v1316 = vadd.f32 %v1152, %v1315
  %v1317 = vpop.f32.mrf.mxu0
  %v1318 = vadd.f32 %v1154, %v1317
  %1319 = vmatmul.bf16.gmra.mxu0 %v473
  %v1320 = vpop.f32.mrf.mxu0
  %v1321 = vadd.f32 %v1157, %v1320
  %v1322 = vpop.f32.mrf.mxu0
  %v1323 = vadd.f32 %v1159, %v1322
  %1324 = vmatmul.bf16.gmra.mxu0 %v474
  %v1325 = vpop.f32.mrf.mxu0
  %v1326 = vadd.f32 %v1162, %v1325
  %v1327 = vpop.f32.mrf.mxu0
  %v1328 = vadd.f32 %v1164, %v1327
  %1329 = vmatmul.bf16.gmra.mxu0 %v475
  %v1330 = vpop.f32.mrf.mxu0
  %v1331 = vadd.f32 %v1167, %v1330
  %v1332 = vpop.f32.mrf.mxu0
  %v1333 = vadd.f32 %v1169, %v1332
  %1334 = vmatmul.bf16.gmra.mxu0 %v476
  %v1335 = vpop.f32.mrf.mxu0
  %v1336 = vadd.f32 %v1172, %v1335
  %v1337 = vpop.f32.mrf.mxu0
  %v1338 = vadd.f32 %v1174, %v1337
  %1339 = vmatmul.bf16.gmra.mxu0 %v477
  %v1340 = vpop.f32.mrf.mxu0
  %v1341 = vadd.f32 %v1177, %v1340
  %v1342 = vpop.f32.mrf.mxu0
  %v1343 = vadd.f32 %v1179, %v1342
  %1344 = vmatmul.bf16.gmra.mxu0 %v478
  %v1345 = vpop.f32.mrf.mxu0
  %v1346 = vadd.f32 %v1182, %v1345
  %v1347 = vpop.f32.mrf.mxu0
  %v1348 = vadd.f32 %v1184, %v1347
  %1349 = vmatmul.bf16.gmra.mxu0 %v479
  %v1350 = vpop.f32.mrf.mxu0
  %v1351 = vadd.f32 %v1187, %v1350
  %v1352 = vpop.f32.mrf.mxu0
  %v1353 = vadd.f32 %v1189, %v1352
  %1354 = vmatmul.bf16.gmra.mxu0 %v480
  %v1355 = vpop.f32.mrf.mxu0
  %v1356 = vadd.f32 %v1192, %v1355
  %v1357 = vpop.f32.mrf.mxu0
  %v1358 = vadd.f32 %v1194, %v1357
  %1359 = vmatmul.bf16.gmra.mxu0 %v481
  %v1360 = vpop.f32.mrf.mxu0
  %v1361 = vadd.f32 %v1197, %v1360
  %v1362 = vpop.f32.mrf.mxu0
  %v1363 = vadd.f32 %v1199, %v1362
  %1364 = vmatmul.bf16.gmra.mxu0 %v482
  %v1365 = vpop.f32.mrf.mxu0
  %v1366 = vadd.f32 %v1202, %v1365
  %v1367 = vpop.f32.mrf.mxu0
  %v1368 = vadd.f32 %v1204, %v1367
  %1369 = vmatmul.bf16.gmra.mxu0 %v483
  %v1370 = vpop.f32.mrf.mxu0
  %v1371 = vadd.f32 %v1207, %v1370
  %v1372 = vpop.f32.mrf.mxu0
  %v1373 = vadd.f32 %v1209, %v1372
  %1374 = vmatmul.bf16.gmra.mxu0 %v484
  %v1375 = vpop.f32.mrf.mxu0
  %v1376 = vadd.f32 %v1212, %v1375
  %v1377 = vpop.f32.mrf.mxu0
  %v1378 = vadd.f32 %v1214, %v1377
  %1379 = vmatmul.bf16.gmra.mxu0 %v485
  %v1380 = vpop.f32.mrf.mxu0
  %v1381 = vadd.f32 %v1217, %v1380
  %v1382 = vpop.f32.mrf.mxu0
  %v1383 = vadd.f32 %v1219, %v1382
  %1384 = vmatmul.bf16.gmra.mxu0 %v486
  %v1385 = vpop.f32.mrf.mxu0
  %v1386 = vadd.f32 %v1222, %v1385
  %v1387 = vpop.f32.mrf.mxu0
  %v1388 = vadd.f32 %v1224, %v1387
  %1389 = vmatmul.bf16.gmra.mxu0 %v487
  %v1390 = vpop.f32.mrf.mxu0
  %v1391 = vadd.f32 %v1227, %v1390
  %v1392 = vpop.f32.mrf.mxu0
  %v1393 = vadd.f32 %v1229, %v1392
  %1394 = vmatmul.bf16.gmra.mxu0 %v488
  %v1395 = vpop.f32.mrf.mxu0
  %v1396 = vadd.f32 %v1232, %v1395
  %v1397 = vpop.f32.mrf.mxu0
  %v1398 = vadd.f32 %v1234, %v1397
  %1399 = vmatmul.bf16.gmra.mxu0 %v489
  %v1400 = vpop.f32.mrf.mxu0
  %v1401 = vadd.f32 %v1237, %v1400
  %v1402 = vpop.f32.mrf.mxu0
  %v1403 = vadd.f32 %v1239, %v1402
  %1404 = vmatmul.bf16.gmra.mxu0 %v490
  %v1405 = vpop.f32.mrf.mxu0
  %v1406 = vadd.f32 %v1242, %v1405
  %v1407 = vpop.f32.mrf.mxu0
  %v1408 = vadd.f32 %v1244, %v1407
  %1409 = vmatmul.bf16.gmra.mxu0 %v491
  %v1410 = vpop.f32.mrf.mxu0
  %v1411 = vadd.f32 %v1247, %v1410
  %v1412 = vpop.f32.mrf.mxu0
  %v1413 = vadd.f32 %v1249, %v1412
  %1414 = vmatmul.bf16.gmra.mxu0 %v492
  %v1415 = vpop.f32.mrf.mxu0
  %v1416 = vadd.f32 %v1252, %v1415
  %v1417 = vpop.f32.mrf.mxu0
  %v1418 = vadd.f32 %v1254, %v1417
  %1419 = vmatmul.bf16.gmra.mxu0 %v493
  %v1420 = vpop.f32.mrf.mxu0
  %v1421 = vadd.f32 %v1257, %v1420
  %v1422 = vpop.f32.mrf.mxu0
  %v1423 = vadd.f32 %v1259, %v1422
  %1424 = vmatmul.bf16.gmra.mxu0 %v494
  %v1425 = vpop.f32.mrf.mxu0
  %v1426 = vadd.f32 %v1262, %v1425
  %v1427 = vpop.f32.mrf.mxu0
  %v1428 = vadd.f32 %v1264, %v1427
  %1429 = vmatmul.bf16.gmra.mxu0 %v495
  %v1430 = vpop.f32.mrf.mxu0
  %v1431 = vadd.f32 %v1267, %v1430
  %v1432 = vpop.f32.mrf.mxu0
  %v1433 = vadd.f32 %v1269, %v1432
  %1434 = vmatmul.bf16.gmra.mxu0 %v496
  %v1435 = vpop.f32.mrf.mxu0
  %v1436 = vadd.f32 %v1272, %v1435
  %v1437 = vpop.f32.mrf.mxu0
  %v1438 = vadd.f32 %v1274, %v1437
  %1439 = vmatmul.bf16.gmra.mxu0 %v497
  %v1440 = vpop.f32.mrf.mxu0
  %v1441 = vadd.f32 %v1277, %v1440
  %v1442 = vpop.f32.mrf.mxu0
  %v1443 = vadd.f32 %v1279, %v1442
  %1444 = vmatmul.bf16.gmra.mxu0 %v498
  %v1445 = vpop.f32.mrf.mxu0
  %v1446 = vadd.f32 %v1282, %v1445
  %v1447 = vpop.f32.mrf.mxu0
  %v1448 = vadd.f32 %v1284, %v1447
  %1449 = vdwg.mxu0
  %1450 = vmatpush.bf16.msra.mxu0 %v1022
  %1451 = vmatpush.bf16.msra.mxu0 %v1018
  %1452 = vmatpush.bf16.msra.mxu0 %v1014
  %1453 = vmatpush.bf16.msra.mxu0 %v1010
  %1454 = vmatpush.bf16.msra.mxu0 %v1006
  %1455 = vmatpush.bf16.msra.mxu0 %v1002
  %1456 = vmatpush.bf16.msra.mxu0 %v998
  %1457 = vmatpush.bf16.msra.mxu0 %v994
  %1458 = vmatmul.bf16.gmra.mxu0 %v283
  %v1459 = vpop.f32.mrf.mxu0
  %v1460 = vadd.f32 %v1296, %v1459
  %v1461 = vpop.f32.mrf.mxu0
  %v1462 = vadd.f32 %v1298, %v1461
  %1463 = vmatmul.bf16.gmra.mxu0 %v284
  %v1464 = vpop.f32.mrf.mxu0
  %v1465 = vadd.f32 %v1301, %v1464
  %v1466 = vpop.f32.mrf.mxu0
  %v1467 = vadd.f32 %v1303, %v1466
  %1468 = vmatmul.bf16.gmra.mxu0 %v285
  %v1469 = vpop.f32.mrf.mxu0
  %v1470 = vadd.f32 %v1306, %v1469
  %v1471 = vpop.f32.mrf.mxu0
  %v1472 = vadd.f32 %v1308, %v1471
  %1473 = vmatmul.bf16.gmra.mxu0 %v286
  %v1474 = vpop.f32.mrf.mxu0
  %v1475 = vadd.f32 %v1311, %v1474
  %v1476 = vpop.f32.mrf.mxu0
  %v1477 = vadd.f32 %v1313, %v1476
  %1478 = vmatmul.bf16.gmra.mxu0 %v287
  %v1479 = vpop.f32.mrf.mxu0
  %v1480 = vadd.f32 %v1316, %v1479
  %v1481 = vpop.f32.mrf.mxu0
  %v1482 = vadd.f32 %v1318, %v1481
  %1483 = vmatmul.bf16.gmra.mxu0 %v288
  %v1484 = vpop.f32.mrf.mxu0
  %v1485 = vadd.f32 %v1321, %v1484
  %v1486 = vpop.f32.mrf.mxu0
  %v1487 = vadd.f32 %v1323, %v1486
  %1488 = vmatmul.bf16.gmra.mxu0 %v289
  %v1489 = vpop.f32.mrf.mxu0
  %v1490 = vadd.f32 %v1326, %v1489
  %v1491 = vpop.f32.mrf.mxu0
  %v1492 = vadd.f32 %v1328, %v1491
  %1493 = vmatmul.bf16.gmra.mxu0 %v290
  %v1494 = vpop.f32.mrf.mxu0
  %v1495 = vadd.f32 %v1331, %v1494
  %v1496 = vpop.f32.mrf.mxu0
  %v1497 = vadd.f32 %v1333, %v1496
  %1498 = vmatmul.bf16.gmra.mxu0 %v291
  %v1499 = vpop.f32.mrf.mxu0
  %v1500 = vadd.f32 %v1336, %v1499
  %v1501 = vpop.f32.mrf.mxu0
  %v1502 = vadd.f32 %v1338, %v1501
  %1503 = vmatmul.bf16.gmra.mxu0 %v292
  %v1504 = vpop.f32.mrf.mxu0
  %v1505 = vadd.f32 %v1341, %v1504
  %v1506 = vpop.f32.mrf.mxu0
  %v1507 = vadd.f32 %v1343, %v1506
  %1508 = vmatmul.bf16.gmra.mxu0 %v293
  %v1509 = vpop.f32.mrf.mxu0
  %v1510 = vadd.f32 %v1346, %v1509
  %v1511 = vpop.f32.mrf.mxu0
  %v1512 = vadd.f32 %v1348, %v1511
  %1513 = vmatmul.bf16.gmra.mxu0 %v294
  %v1514 = vpop.f32.mrf.mxu0
  %v1515 = vadd.f32 %v1351, %v1514
  %v1516 = vpop.f32.mrf.mxu0
  %v1517 = vadd.f32 %v1353, %v1516
  %1518 = vmatmul.bf16.gmra.mxu0 %v295
  %v1519 = vpop.f32.mrf.mxu0
  %v1520 = vadd.f32 %v1356, %v1519
  %v1521 = vpop.f32.mrf.mxu0
  %v1522 = vadd.f32 %v1358, %v1521
  %1523 = vmatmul.bf16.gmra.mxu0 %v296
  %v1524 = vpop.f32.mrf.mxu0
  %v1525 = vadd.f32 %v1361, %v1524
  %v1526 = vpop.f32.mrf.mxu0
  %v1527 = vadd.f32 %v1363, %v1526
  %1528 = vmatmul.bf16.gmra.mxu0 %v297
  %v1529 = vpop.f32.mrf.mxu0
  %v1530 = vadd.f32 %v1366, %v1529
  %v1531 = vpop.f32.mrf.mxu0
  %v1532 = vadd.f32 %v1368, %v1531
  %1533 = vmatmul.bf16.gmra.mxu0 %v298
  %v1534 = vpop.f32.mrf.mxu0
  %v1535 = vadd.f32 %v1371, %v1534
  %v1536 = vpop.f32.mrf.mxu0
  %v1537 = vadd.f32 %v1373, %v1536
  %1538 = vmatmul.bf16.gmra.mxu0 %v299
  %v1539 = vpop.f32.mrf.mxu0
  %v1540 = vadd.f32 %v1376, %v1539
  %v1541 = vpop.f32.mrf.mxu0
  %v1542 = vadd.f32 %v1378, %v1541
  %1543 = vmatmul.bf16.gmra.mxu0 %v300
  %v1544 = vpop.f32.mrf.mxu0
  %v1545 = vadd.f32 %v1381, %v1544
  %v1546 = vpop.f32.mrf.mxu0
  %v1547 = vadd.f32 %v1383, %v1546
  %1548 = vmatmul.bf16.gmra.mxu0 %v301
  %v1549 = vpop.f32.mrf.mxu0
  %v1550 = vadd.f32 %v1386, %v1549
  %v1551 = vpop.f32.mrf.mxu0
  %v1552 = vadd.f32 %v1388, %v1551
  %1553 = vmatmul.bf16.gmra.mxu0 %v302
  %v1554 = vpop.f32.mrf.mxu0
  %v1555 = vadd.f32 %v1391, %v1554
  %v1556 = vpop.f32.mrf.mxu0
  %v1557 = vadd.f32 %v1393, %v1556
  %1558 = vmatmul.bf16.gmra.mxu0 %v303
  %v1559 = vpop.f32.mrf.mxu0
  %v1560 = vadd.f32 %v1396, %v1559
  %v1561 = vpop.f32.mrf.mxu0
  %v1562 = vadd.f32 %v1398, %v1561
  %1563 = vmatmul.bf16.gmra.mxu0 %v304
  %v1564 = vpop.f32.mrf.mxu0
  %v1565 = vadd.f32 %v1401, %v1564
  %v1566 = vpop.f32.mrf.mxu0
  %v1567 = vadd.f32 %v1403, %v1566
  %1568 = vmatmul.bf16.gmra.mxu0 %v305
  %v1569 = vpop.f32.mrf.mxu0
  %v1570 = vadd.f32 %v1406, %v1569
  %v1571 = vpop.f32.mrf.mxu0
  %v1572 = vadd.f32 %v1408, %v1571
  %1573 = vmatmul.bf16.gmra.mxu0 %v306
  %v1574 = vpop.f32.mrf.mxu0
  %v1575 = vadd.f32 %v1411, %v1574
  %v1576 = vpop.f32.mrf.mxu0
  %v1577 = vadd.f32 %v1413, %v1576
  %1578 = vmatmul.bf16.gmra.mxu0 %v307
  %v1579 = vpop.f32.mrf.mxu0
  %v1580 = vadd.f32 %v1416, %v1579
  %v1581 = vpop.f32.mrf.mxu0
  %v1582 = vadd.f32 %v1418, %v1581
  %1583 = vmatmul.bf16.gmra.mxu0 %v308
  %v1584 = vpop.f32.mrf.mxu0
  %v1585 = vadd.f32 %v1421, %v1584
  %v1586 = vpop.f32.mrf.mxu0
  %v1587 = vadd.f32 %v1423, %v1586
  %1588 = vmatmul.bf16.gmra.mxu0 %v309
  %v1589 = vpop.f32.mrf.mxu0
  %v1590 = vadd.f32 %v1426, %v1589
  %v1591 = vpop.f32.mrf.mxu0
  %v1592 = vadd.f32 %v1428, %v1591
  %1593 = vmatmul.bf16.gmra.mxu0 %v310
  %v1594 = vpop.f32.mrf.mxu0
  %v1595 = vadd.f32 %v1431, %v1594
  %v1596 = vpop.f32.mrf.mxu0
  %v1597 = vadd.f32 %v1433, %v1596
  %1598 = vmatmul.bf16.gmra.mxu0 %v311
  %v1599 = vpop.f32.mrf.mxu0
  %v1600 = vadd.f32 %v1436, %v1599
  %v1601 = vpop.f32.mrf.mxu0
  %v1602 = vadd.f32 %v1438, %v1601
  %1603 = vmatmul.bf16.gmra.mxu0 %v312
  %v1604 = vpop.f32.mrf.mxu0
  %v1605 = vadd.f32 %v1441, %v1604
  %v1606 = vpop.f32.mrf.mxu0
  %v1607 = vadd.f32 %v1443, %v1606
  %1608 = vmatmul.bf16.gmra.mxu0 %v534
  %v1609 = vpop.f32.mrf.mxu0
  %v1610 = vadd.f32 %v1446, %v1609
  %v1611 = vpop.f32.mrf.mxu0
  %v1612 = vadd.f32 %v1448, %v1611
  %1613 = vdwg.mxu0
  %1614 = vmatpush.bf16.msra.mxu0 %v959
  %1615 = vmatpush.bf16.msra.mxu0 %v955
  %1616 = vmatpush.bf16.msra.mxu0 %v951
  %1617 = vmatpush.bf16.msra.mxu0 %v947
  %1618 = vmatpush.bf16.msra.mxu0 %v943
  %1619 = vmatpush.bf16.msra.mxu0 %v939
  %1620 = vmatpush.bf16.msra.mxu0 %v935
  %1621 = vmatpush.bf16.msra.mxu0 %v931
  %1622 = vmatmul.bf16.gmra.mxu0 %v282
  %v1623 = vpop.f32.mrf.mxu0
  %v1624 = vadd.f32 %v635, %v1623
  %v1625 = vpop.f32.mrf.mxu0
  %v1626 = vadd.f32 %v635, %v1625
  %1627 = vmatmul.bf16.gmra.mxu0 %v283
  %v1628 = vpop.f32.mrf.mxu0
  %v1629 = vadd.f32 %v635, %v1628
  %v1630 = vpop.f32.mrf.mxu0
  %v1631 = vadd.f32 %v635, %v1630
  %1632 = vmatmul.bf16.gmra.mxu0 %v284
  %v1633 = vpop.f32.mrf.mxu0
  %v1634 = vadd.f32 %v635, %v1633
  %v1635 = vpop.f32.mrf.mxu0
  %v1636 = vadd.f32 %v635, %v1635
  %1637 = vmatmul.bf16.gmra.mxu0 %v285
  %v1638 = vpop.f32.mrf.mxu0
  %v1639 = vadd.f32 %v635, %v1638
  %v1640 = vpop.f32.mrf.mxu0
  %v1641 = vadd.f32 %v635, %v1640
  %1642 = vmatmul.bf16.gmra.mxu0 %v286
  %v1643 = vpop.f32.mrf.mxu0
  %v1644 = vadd.f32 %v635, %v1643
  %v1645 = vpop.f32.mrf.mxu0
  %v1646 = vadd.f32 %v635, %v1645
  %1647 = vmatmul.bf16.gmra.mxu0 %v287
  %v1648 = vpop.f32.mrf.mxu0
  %v1649 = vadd.f32 %v635, %v1648
  %v1650 = vpop.f32.mrf.mxu0
  %v1651 = vadd.f32 %v635, %v1650
  %1652 = vmatmul.bf16.gmra.mxu0 %v288
  %v1653 = vpop.f32.mrf.mxu0
  %v1654 = vadd.f32 %v635, %v1653
  %v1655 = vpop.f32.mrf.mxu0
  %v1656 = vadd.f32 %v635, %v1655
  %1657 = vmatmul.bf16.gmra.mxu0 %v289
  %v1658 = vpop.f32.mrf.mxu0
  %v1659 = vadd.f32 %v635, %v1658
  %v1660 = vpop.f32.mrf.mxu0
  %v1661 = vadd.f32 %v635, %v1660
  %1662 = vmatmul.bf16.gmra.mxu0 %v290
  %v1663 = vpop.f32.mrf.mxu0
  %v1664 = vadd.f32 %v635, %v1663
  %v1665 = vpop.f32.mrf.mxu0
  %v1666 = vadd.f32 %v635, %v1665
  %1667 = vmatmul.bf16.gmra.mxu0 %v291
  %v1668 = vpop.f32.mrf.mxu0
  %v1669 = vadd.f32 %v635, %v1668
  %v1670 = vpop.f32.mrf.mxu0
  %v1671 = vadd.f32 %v635, %v1670
  %1672 = vmatmul.bf16.gmra.mxu0 %v292
  %v1673 = vpop.f32.mrf.mxu0
  %v1674 = vadd.f32 %v635, %v1673
  %v1675 = vpop.f32.mrf.mxu0
  %v1676 = vadd.f32 %v635, %v1675
  %1677 = vmatmul.bf16.gmra.mxu0 %v293
  %v1678 = vpop.f32.mrf.mxu0
  %v1679 = vadd.f32 %v635, %v1678
  %v1680 = vpop.f32.mrf.mxu0
  %v1681 = vadd.f32 %v635, %v1680
  %1682 = vmatmul.bf16.gmra.mxu0 %v294
  %v1683 = vpop.f32.mrf.mxu0
  %v1684 = vadd.f32 %v635, %v1683
  %v1685 = vpop.f32.mrf.mxu0
  %v1686 = vadd.f32 %v635, %v1685
  %1687 = vmatmul.bf16.gmra.mxu0 %v295
  %v1688 = vpop.f32.mrf.mxu0
  %v1689 = vadd.f32 %v635, %v1688
  %v1690 = vpop.f32.mrf.mxu0
  %v1691 = vadd.f32 %v635, %v1690
  %1692 = vmatmul.bf16.gmra.mxu0 %v296
  %v1693 = vpop.f32.mrf.mxu0
  %v1694 = vadd.f32 %v635, %v1693
  %v1695 = vpop.f32.mrf.mxu0
  %v1696 = vadd.f32 %v635, %v1695
  %1697 = vmatmul.bf16.gmra.mxu0 %v297
  %v1698 = vpop.f32.mrf.mxu0
  %v1699 = vadd.f32 %v635, %v1698
  %v1700 = vpop.f32.mrf.mxu0
  %v1701 = vadd.f32 %v635, %v1700
  %1702 = vmatmul.bf16.gmra.mxu0 %v298
  %v1703 = vpop.f32.mrf.mxu0
  %v1704 = vadd.f32 %v635, %v1703
  %v1705 = vpop.f32.mrf.mxu0
  %v1706 = vadd.f32 %v635, %v1705
  %1707 = vmatmul.bf16.gmra.mxu0 %v299
  %v1708 = vpop.f32.mrf.mxu0
  %v1709 = vadd.f32 %v635, %v1708
  %v1710 = vpop.f32.mrf.mxu0
  %v1711 = vadd.f32 %v635, %v1710
  %1712 = vmatmul.bf16.gmra.mxu0 %v300
  %v1713 = vpop.f32.mrf.mxu0
  %v1714 = vadd.f32 %v635, %v1713
  %v1715 = vpop.f32.mrf.mxu0
  %v1716 = vadd.f32 %v635, %v1715
  %1717 = vmatmul.bf16.gmra.mxu0 %v301
  %v1718 = vpop.f32.mrf.mxu0
  %v1719 = vadd.f32 %v635, %v1718
  %v1720 = vpop.f32.mrf.mxu0
  %v1721 = vadd.f32 %v635, %v1720
  %1722 = vmatmul.bf16.gmra.mxu0 %v302
  %v1723 = vpop.f32.mrf.mxu0
  %v1724 = vadd.f32 %v635, %v1723
  %v1725 = vpop.f32.mrf.mxu0
  %v1726 = vadd.f32 %v635, %v1725
  %1727 = vmatmul.bf16.gmra.mxu0 %v303
  %v1728 = vpop.f32.mrf.mxu0
  %v1729 = vadd.f32 %v635, %v1728
  %v1730 = vpop.f32.mrf.mxu0
  %v1731 = vadd.f32 %v635, %v1730
  %1732 = vmatmul.bf16.gmra.mxu0 %v304
  %v1733 = vpop.f32.mrf.mxu0
  %v1734 = vadd.f32 %v635, %v1733
  %v1735 = vpop.f32.mrf.mxu0
  %v1736 = vadd.f32 %v635, %v1735
  %1737 = vmatmul.bf16.gmra.mxu0 %v305
  %v1738 = vpop.f32.mrf.mxu0
  %v1739 = vadd.f32 %v635, %v1738
  %v1740 = vpop.f32.mrf.mxu0
  %v1741 = vadd.f32 %v635, %v1740
  %1742 = vmatmul.bf16.gmra.mxu0 %v306
  %v1743 = vpop.f32.mrf.mxu0
  %v1744 = vadd.f32 %v635, %v1743
  %v1745 = vpop.f32.mrf.mxu0
  %v1746 = vadd.f32 %v635, %v1745
  %1747 = vmatmul.bf16.gmra.mxu0 %v307
  %v1748 = vpop.f32.mrf.mxu0
  %v1749 = vadd.f32 %v635, %v1748
  %v1750 = vpop.f32.mrf.mxu0
  %v1751 = vadd.f32 %v635, %v1750
  %1752 = vmatmul.bf16.gmra.mxu0 %v308
  %v1753 = vpop.f32.mrf.mxu0
  %v1754 = vadd.f32 %v635, %v1753
  %v1755 = vpop.f32.mrf.mxu0
  %v1756 = vadd.f32 %v635, %v1755
  %1757 = vmatmul.bf16.gmra.mxu0 %v309
  %v1758 = vpop.f32.mrf.mxu0
  %v1759 = vadd.f32 %v635, %v1758
  %v1760 = vpop.f32.mrf.mxu0
  %v1761 = vadd.f32 %v635, %v1760
  %1762 = vmatmul.bf16.gmra.mxu0 %v310
  %v1763 = vpop.f32.mrf.mxu0
  %v1764 = vadd.f32 %v635, %v1763
  %v1765 = vpop.f32.mrf.mxu0
  %v1766 = vadd.f32 %v635, %v1765
  %1767 = vmatmul.bf16.gmra.mxu0 %v311
  %v1768 = vpop.f32.mrf.mxu0
  %v1769 = vadd.f32 %v635, %v1768
  %v1770 = vpop.f32.mrf.mxu0
  %v1771 = vadd.f32 %v635, %v1770
  %1772 = vmatmul.bf16.gmra.mxu0 %v312
  %v1773 = vpop.f32.mrf.mxu0
  %v1774 = vadd.f32 %v635, %v1773
  %v1775 = vpop.f32.mrf.mxu0
  %v1776 = vadd.f32 %v635, %v1775
  %1777 = vdwg.mxu0
  %1778 = vmatpush.bf16.msra.mxu0 %v991
  %1779 = vmatpush.bf16.msra.mxu0 %v987
  %1780 = vmatpush.bf16.msra.mxu0 %v983
  %1781 = vmatpush.bf16.msra.mxu0 %v979
  %1782 = vmatpush.bf16.msra.mxu0 %v975
  %1783 = vmatpush.bf16.msra.mxu0 %v971
  %1784 = vmatpush.bf16.msra.mxu0 %v967
  %1785 = vmatpush.bf16.msra.mxu0 %v963
  %1786 = vmatmul.bf16.gmra.mxu0 %v468
  %v1787 = vpop.f32.mrf.mxu0
  %v1788 = vadd.f32 %v1624, %v1787
  %v1789 = vpop.f32.mrf.mxu0
  %v1790 = vadd.f32 %v1626, %v1789
  %1791 = vmatmul.bf16.gmra.mxu0 %v469
  %v1792 = vpop.f32.mrf.mxu0
  %v1793 = vadd.f32 %v1629, %v1792
  %v1794 = vpop.f32.mrf.mxu0
  %v1795 = vadd.f32 %v1631, %v1794
  %1796 = vmatmul.bf16.gmra.mxu0 %v470
  %v1797 = vpop.f32.mrf.mxu0
  %v1798 = vadd.f32 %v1634, %v1797
  %v1799 = vpop.f32.mrf.mxu0
  %v1800 = vadd.f32 %v1636, %v1799
  %1801 = vmatmul.bf16.gmra.mxu0 %v471
  %v1802 = vpop.f32.mrf.mxu0
  %v1803 = vadd.f32 %v1639, %v1802
  %v1804 = vpop.f32.mrf.mxu0
  %v1805 = vadd.f32 %v1641, %v1804
  %1806 = vmatmul.bf16.gmra.mxu0 %v472
  %v1807 = vpop.f32.mrf.mxu0
  %v1808 = vadd.f32 %v1644, %v1807
  %v1809 = vpop.f32.mrf.mxu0
  %v1810 = vadd.f32 %v1646, %v1809
  %1811 = vmatmul.bf16.gmra.mxu0 %v473
  %v1812 = vpop.f32.mrf.mxu0
  %v1813 = vadd.f32 %v1649, %v1812
  %v1814 = vpop.f32.mrf.mxu0
  %v1815 = vadd.f32 %v1651, %v1814
  %1816 = vmatmul.bf16.gmra.mxu0 %v474
  %v1817 = vpop.f32.mrf.mxu0
  %v1818 = vadd.f32 %v1654, %v1817
  %v1819 = vpop.f32.mrf.mxu0
  %v1820 = vadd.f32 %v1656, %v1819
  %1821 = vmatmul.bf16.gmra.mxu0 %v475
  %v1822 = vpop.f32.mrf.mxu0
  %v1823 = vadd.f32 %v1659, %v1822
  %v1824 = vpop.f32.mrf.mxu0
  %v1825 = vadd.f32 %v1661, %v1824
  %1826 = vmatmul.bf16.gmra.mxu0 %v476
  %v1827 = vpop.f32.mrf.mxu0
  %v1828 = vadd.f32 %v1664, %v1827
  %v1829 = vpop.f32.mrf.mxu0
  %v1830 = vadd.f32 %v1666, %v1829
  %1831 = vmatmul.bf16.gmra.mxu0 %v477
  %v1832 = vpop.f32.mrf.mxu0
  %v1833 = vadd.f32 %v1669, %v1832
  %v1834 = vpop.f32.mrf.mxu0
  %v1835 = vadd.f32 %v1671, %v1834
  %1836 = vmatmul.bf16.gmra.mxu0 %v478
  %v1837 = vpop.f32.mrf.mxu0
  %v1838 = vadd.f32 %v1674, %v1837
  %v1839 = vpop.f32.mrf.mxu0
  %v1840 = vadd.f32 %v1676, %v1839
  %1841 = vmatmul.bf16.gmra.mxu0 %v479
  %v1842 = vpop.f32.mrf.mxu0
  %v1843 = vadd.f32 %v1679, %v1842
  %v1844 = vpop.f32.mrf.mxu0
  %v1845 = vadd.f32 %v1681, %v1844
  %1846 = vmatmul.bf16.gmra.mxu0 %v480
  %v1847 = vpop.f32.mrf.mxu0
  %v1848 = vadd.f32 %v1684, %v1847
  %v1849 = vpop.f32.mrf.mxu0
  %v1850 = vadd.f32 %v1686, %v1849
  %1851 = vmatmul.bf16.gmra.mxu0 %v481
  %v1852 = vpop.f32.mrf.mxu0
  %v1853 = vadd.f32 %v1689, %v1852
  %v1854 = vpop.f32.mrf.mxu0
  %v1855 = vadd.f32 %v1691, %v1854
  %1856 = vmatmul.bf16.gmra.mxu0 %v482
  %v1857 = vpop.f32.mrf.mxu0
  %v1858 = vadd.f32 %v1694, %v1857
  %v1859 = vpop.f32.mrf.mxu0
  %v1860 = vadd.f32 %v1696, %v1859
  %1861 = vmatmul.bf16.gmra.mxu0 %v483
  %v1862 = vpop.f32.mrf.mxu0
  %v1863 = vadd.f32 %v1699, %v1862
  %v1864 = vpop.f32.mrf.mxu0
  %v1865 = vadd.f32 %v1701, %v1864
  %1866 = vmatmul.bf16.gmra.mxu0 %v484
  %v1867 = vpop.f32.mrf.mxu0
  %v1868 = vadd.f32 %v1704, %v1867
  %v1869 = vpop.f32.mrf.mxu0
  %v1870 = vadd.f32 %v1706, %v1869
  %1871 = vmatmul.bf16.gmra.mxu0 %v485
  %v1872 = vpop.f32.mrf.mxu0
  %v1873 = vadd.f32 %v1709, %v1872
  %v1874 = vpop.f32.mrf.mxu0
  %v1875 = vadd.f32 %v1711, %v1874
  %1876 = vmatmul.bf16.gmra.mxu0 %v486
  %v1877 = vpop.f32.mrf.mxu0
  %v1878 = vadd.f32 %v1714, %v1877
  %v1879 = vpop.f32.mrf.mxu0
  %v1880 = vadd.f32 %v1716, %v1879
  %1881 = vmatmul.bf16.gmra.mxu0 %v487
  %v1882 = vpop.f32.mrf.mxu0
  %v1883 = vadd.f32 %v1719, %v1882
  %v1884 = vpop.f32.mrf.mxu0
  %v1885 = vadd.f32 %v1721, %v1884
  %1886 = vmatmul.bf16.gmra.mxu0 %v488
  %v1887 = vpop.f32.mrf.mxu0
  %v1888 = vadd.f32 %v1724, %v1887
  %v1889 = vpop.f32.mrf.mxu0
  %v1890 = vadd.f32 %v1726, %v1889
  %1891 = vmatmul.bf16.gmra.mxu0 %v489
  %v1892 = vpop.f32.mrf.mxu0
  %v1893 = vadd.f32 %v1729, %v1892
  %v1894 = vpop.f32.mrf.mxu0
  %v1895 = vadd.f32 %v1731, %v1894
  %1896 = vmatmul.bf16.gmra.mxu0 %v490
  %v1897 = vpop.f32.mrf.mxu0
  %v1898 = vadd.f32 %v1734, %v1897
  %v1899 = vpop.f32.mrf.mxu0
  %v1900 = vadd.f32 %v1736, %v1899
  %1901 = vmatmul.bf16.gmra.mxu0 %v491
  %v1902 = vpop.f32.mrf.mxu0
  %v1903 = vadd.f32 %v1739, %v1902
  %v1904 = vpop.f32.mrf.mxu0
  %v1905 = vadd.f32 %v1741, %v1904
  %1906 = vmatmul.bf16.gmra.mxu0 %v492
  %v1907 = vpop.f32.mrf.mxu0
  %v1908 = vadd.f32 %v1744, %v1907
  %v1909 = vpop.f32.mrf.mxu0
  %v1910 = vadd.f32 %v1746, %v1909
  %1911 = vmatmul.bf16.gmra.mxu0 %v493
  %v1912 = vpop.f32.mrf.mxu0
  %v1913 = vadd.f32 %v1749, %v1912
  %v1914 = vpop.f32.mrf.mxu0
  %v1915 = vadd.f32 %v1751, %v1914
  %1916 = vmatmul.bf16.gmra.mxu0 %v494
  %v1917 = vpop.f32.mrf.mxu0
  %v1918 = vadd.f32 %v1754, %v1917
  %v1919 = vpop.f32.mrf.mxu0
  %v1920 = vadd.f32 %v1756, %v1919
  %1921 = vmatmul.bf16.gmra.mxu0 %v495
  %v1922 = vpop.f32.mrf.mxu0
  %v1923 = vadd.f32 %v1759, %v1922
  %v1924 = vpop.f32.mrf.mxu0
  %v1925 = vadd.f32 %v1761, %v1924
  %1926 = vmatmul.bf16.gmra.mxu0 %v496
  %v1927 = vpop.f32.mrf.mxu0
  %v1928 = vadd.f32 %v1764, %v1927
  %v1929 = vpop.f32.mrf.mxu0
  %v1930 = vadd.f32 %v1766, %v1929
  %1931 = vmatmul.bf16.gmra.mxu0 %v497
  %v1932 = vpop.f32.mrf.mxu0
  %v1933 = vadd.f32 %v1769, %v1932
  %v1934 = vpop.f32.mrf.mxu0
  %v1935 = vadd.f32 %v1771, %v1934
  %1936 = vmatmul.bf16.gmra.mxu0 %v498
  %v1937 = vpop.f32.mrf.mxu0
  %v1938 = vadd.f32 %v1774, %v1937
  %v1939 = vpop.f32.mrf.mxu0
  %v1940 = vadd.f32 %v1776, %v1939
  %1941 = vdwg.mxu0
  %1942 = vmatpush.bf16.msra.mxu0 %v1023
  %1943 = vmatpush.bf16.msra.mxu0 %v1019
  %1944 = vmatpush.bf16.msra.mxu0 %v1015
  %1945 = vmatpush.bf16.msra.mxu0 %v1011
  %1946 = vmatpush.bf16.msra.mxu0 %v1007
  %1947 = vmatpush.bf16.msra.mxu0 %v1003
  %1948 = vmatpush.bf16.msra.mxu0 %v999
  %1949 = vmatpush.bf16.msra.mxu0 %v995
  %1950 = vmatmul.bf16.gmra.mxu0 %v283
  %v1951 = vpop.f32.mrf.mxu0
  %v1952 = vadd.f32 %v1788, %v1951
  %v1953 = vpop.f32.mrf.mxu0
  %v1954 = vadd.f32 %v1790, %v1953
  %1955 = vmatmul.bf16.gmra.mxu0 %v284
  %v1956 = vpop.f32.mrf.mxu0
  %v1957 = vadd.f32 %v1793, %v1956
  %v1958 = vpop.f32.mrf.mxu0
  %v1959 = vadd.f32 %v1795, %v1958
  %1960 = vmatmul.bf16.gmra.mxu0 %v285
  %v1961 = vpop.f32.mrf.mxu0
  %v1962 = vadd.f32 %v1798, %v1961
  %v1963 = vpop.f32.mrf.mxu0
  %v1964 = vadd.f32 %v1800, %v1963
  %1965 = vmatmul.bf16.gmra.mxu0 %v286
  %v1966 = vpop.f32.mrf.mxu0
  %v1967 = vadd.f32 %v1803, %v1966
  %v1968 = vpop.f32.mrf.mxu0
  %v1969 = vadd.f32 %v1805, %v1968
  %1970 = vmatmul.bf16.gmra.mxu0 %v287
  %v1971 = vpop.f32.mrf.mxu0
  %v1972 = vadd.f32 %v1808, %v1971
  %v1973 = vpop.f32.mrf.mxu0
  %v1974 = vadd.f32 %v1810, %v1973
  %1975 = vmatmul.bf16.gmra.mxu0 %v288
  %v1976 = vpop.f32.mrf.mxu0
  %v1977 = vadd.f32 %v1813, %v1976
  %v1978 = vpop.f32.mrf.mxu0
  %v1979 = vadd.f32 %v1815, %v1978
  %1980 = vmatmul.bf16.gmra.mxu0 %v289
  %v1981 = vpop.f32.mrf.mxu0
  %v1982 = vadd.f32 %v1818, %v1981
  %v1983 = vpop.f32.mrf.mxu0
  %v1984 = vadd.f32 %v1820, %v1983
  %1985 = vmatmul.bf16.gmra.mxu0 %v290
  %v1986 = vpop.f32.mrf.mxu0
  %v1987 = vadd.f32 %v1823, %v1986
  %v1988 = vpop.f32.mrf.mxu0
  %v1989 = vadd.f32 %v1825, %v1988
  %1990 = vmatmul.bf16.gmra.mxu0 %v291
  %v1991 = vpop.f32.mrf.mxu0
  %v1992 = vadd.f32 %v1828, %v1991
  %v1993 = vpop.f32.mrf.mxu0
  %v1994 = vadd.f32 %v1830, %v1993
  %1995 = vmatmul.bf16.gmra.mxu0 %v292
  %v1996 = vpop.f32.mrf.mxu0
  %v1997 = vadd.f32 %v1833, %v1996
  %v1998 = vpop.f32.mrf.mxu0
  %v1999 = vadd.f32 %v1835, %v1998
  %2000 = vmatmul.bf16.gmra.mxu0 %v293
  %v2001 = vpop.f32.mrf.mxu0
  %v2002 = vadd.f32 %v1838, %v2001
  %v2003 = vpop.f32.mrf.mxu0
  %v2004 = vadd.f32 %v1840, %v2003
  %2005 = vmatmul.bf16.gmra.mxu0 %v294
  %v2006 = vpop.f32.mrf.mxu0
  %v2007 = vadd.f32 %v1843, %v2006
  %v2008 = vpop.f32.mrf.mxu0
  %v2009 = vadd.f32 %v1845, %v2008
  %2010 = vmatmul.bf16.gmra.mxu0 %v295
  %v2011 = vpop.f32.mrf.mxu0
  %v2012 = vadd.f32 %v1848, %v2011
  %v2013 = vpop.f32.mrf.mxu0
  %v2014 = vadd.f32 %v1850, %v2013
  %2015 = vmatmul.bf16.gmra.mxu0 %v296
  %v2016 = vpop.f32.mrf.mxu0
  %v2017 = vadd.f32 %v1853, %v2016
  %v2018 = vpop.f32.mrf.mxu0
  %v2019 = vadd.f32 %v1855, %v2018
  %2020 = vmatmul.bf16.gmra.mxu0 %v297
  %v2021 = vpop.f32.mrf.mxu0
  %v2022 = vadd.f32 %v1858, %v2021
  %v2023 = vpop.f32.mrf.mxu0
  %v2024 = vadd.f32 %v1860, %v2023
  %2025 = vmatmul.bf16.gmra.mxu0 %v298
  %v2026 = vpop.f32.mrf.mxu0
  %v2027 = vadd.f32 %v1863, %v2026
  %v2028 = vpop.f32.mrf.mxu0
  %v2029 = vadd.f32 %v1865, %v2028
  %2030 = vmatmul.bf16.gmra.mxu0 %v299
  %v2031 = vpop.f32.mrf.mxu0
  %v2032 = vadd.f32 %v1868, %v2031
  %v2033 = vpop.f32.mrf.mxu0
  %v2034 = vadd.f32 %v1870, %v2033
  %2035 = vmatmul.bf16.gmra.mxu0 %v300
  %v2036 = vpop.f32.mrf.mxu0
  %v2037 = vadd.f32 %v1873, %v2036
  %v2038 = vpop.f32.mrf.mxu0
  %v2039 = vadd.f32 %v1875, %v2038
  %2040 = vmatmul.bf16.gmra.mxu0 %v301
  %v2041 = vpop.f32.mrf.mxu0
  %v2042 = vadd.f32 %v1878, %v2041
  %v2043 = vpop.f32.mrf.mxu0
  %v2044 = vadd.f32 %v1880, %v2043
  %2045 = vmatmul.bf16.gmra.mxu0 %v302
  %v2046 = vpop.f32.mrf.mxu0
  %v2047 = vadd.f32 %v1883, %v2046
  %v2048 = vpop.f32.mrf.mxu0
  %v2049 = vadd.f32 %v1885, %v2048
  %2050 = vmatmul.bf16.gmra.mxu0 %v303
  %v2051 = vpop.f32.mrf.mxu0
  %v2052 = vadd.f32 %v1888, %v2051
  %v2053 = vpop.f32.mrf.mxu0
  %v2054 = vadd.f32 %v1890, %v2053
  %2055 = vmatmul.bf16.gmra.mxu0 %v304
  %v2056 = vpop.f32.mrf.mxu0
  %v2057 = vadd.f32 %v1893, %v2056
  %v2058 = vpop.f32.mrf.mxu0
  %v2059 = vadd.f32 %v1895, %v2058
  %2060 = vmatmul.bf16.gmra.mxu0 %v305
  %v2061 = vpop.f32.mrf.mxu0
  %v2062 = vadd.f32 %v1898, %v2061
  %v2063 = vpop.f32.mrf.mxu0
  %v2064 = vadd.f32 %v1900, %v2063
  %2065 = vmatmul.bf16.gmra.mxu0 %v306
  %v2066 = vpop.f32.mrf.mxu0
  %v2067 = vadd.f32 %v1903, %v2066
  %v2068 = vpop.f32.mrf.mxu0
  %v2069 = vadd.f32 %v1905, %v2068
  %2070 = vmatmul.bf16.gmra.mxu0 %v307
  %v2071 = vpop.f32.mrf.mxu0
  %v2072 = vadd.f32 %v1908, %v2071
  %v2073 = vpop.f32.mrf.mxu0
  %v2074 = vadd.f32 %v1910, %v2073
  %2075 = vmatmul.bf16.gmra.mxu0 %v308
  %v2076 = vpop.f32.mrf.mxu0
  %v2077 = vadd.f32 %v1913, %v2076
  %v2078 = vpop.f32.mrf.mxu0
  %v2079 = vadd.f32 %v1915, %v2078
  %2080 = vmatmul.bf16.gmra.mxu0 %v309
  %v2081 = vpop.f32.mrf.mxu0
  %v2082 = vadd.f32 %v1918, %v2081
  %v2083 = vpop.f32.mrf.mxu0
  %v2084 = vadd.f32 %v1920, %v2083
  %2085 = vmatmul.bf16.gmra.mxu0 %v310
  %v2086 = vpop.f32.mrf.mxu0
  %v2087 = vadd.f32 %v1923, %v2086
  %v2088 = vpop.f32.mrf.mxu0
  %v2089 = vadd.f32 %v1925, %v2088
  %2090 = vmatmul.bf16.gmra.mxu0 %v311
  %v2091 = vpop.f32.mrf.mxu0
  %v2092 = vadd.f32 %v1928, %v2091
  %v2093 = vpop.f32.mrf.mxu0
  %v2094 = vadd.f32 %v1930, %v2093
  %2095 = vmatmul.bf16.gmra.mxu0 %v312
  %v2096 = vpop.f32.mrf.mxu0
  %v2097 = vadd.f32 %v1933, %v2096
  %v2098 = vpop.f32.mrf.mxu0
  %v2099 = vadd.f32 %v1935, %v2098
  %2100 = vmatmul.bf16.gmra.mxu0 %v534
  %v2101 = vpop.f32.mrf.mxu0
  %v2102 = vadd.f32 %v1938, %v2101
  %v2103 = vpop.f32.mrf.mxu0
  %v2104 = vadd.f32 %v1940, %v2103
  %2105 = vdwg.mxu0
  %2106 = vmatpush.bf16.msra.mxu0 %v960
  %2107 = vmatpush.bf16.msra.mxu0 %v956
  %2108 = vmatpush.bf16.msra.mxu0 %v952
  %2109 = vmatpush.bf16.msra.mxu0 %v948
  %2110 = vmatpush.bf16.msra.mxu0 %v944
  %2111 = vmatpush.bf16.msra.mxu0 %v940
  %2112 = vmatpush.bf16.msra.mxu0 %v936
  %2113 = vmatpush.bf16.msra.mxu0 %v932
  %2114 = vmatmul.bf16.gmra.mxu0 %v282
  %v2115 = vpop.f32.mrf.mxu0
  %v2116 = vadd.f32 %v636, %v2115
  %v2117 = vpop.f32.mrf.mxu0
  %v2118 = vadd.f32 %v636, %v2117
  %2119 = vmatmul.bf16.gmra.mxu0 %v283
  %v2120 = vpop.f32.mrf.mxu0
  %v2121 = vadd.f32 %v636, %v2120
  %v2122 = vpop.f32.mrf.mxu0
  %v2123 = vadd.f32 %v636, %v2122
  %2124 = vmatmul.bf16.gmra.mxu0 %v284
  %v2125 = vpop.f32.mrf.mxu0
  %v2126 = vadd.f32 %v636, %v2125
  %v2127 = vpop.f32.mrf.mxu0
  %v2128 = vadd.f32 %v636, %v2127
  %2129 = vmatmul.bf16.gmra.mxu0 %v285
  %v2130 = vpop.f32.mrf.mxu0
  %v2131 = vadd.f32 %v636, %v2130
  %v2132 = vpop.f32.mrf.mxu0
  %v2133 = vadd.f32 %v636, %v2132
  %2134 = vmatmul.bf16.gmra.mxu0 %v286
  %v2135 = vpop.f32.mrf.mxu0
  %v2136 = vadd.f32 %v636, %v2135
  %v2137 = vpop.f32.mrf.mxu0
  %v2138 = vadd.f32 %v636, %v2137
  %2139 = vmatmul.bf16.gmra.mxu0 %v287
  %v2140 = vpop.f32.mrf.mxu0
  %v2141 = vadd.f32 %v636, %v2140
  %v2142 = vpop.f32.mrf.mxu0
  %v2143 = vadd.f32 %v636, %v2142
  %2144 = vmatmul.bf16.gmra.mxu0 %v288
  %v2145 = vpop.f32.mrf.mxu0
  %v2146 = vadd.f32 %v636, %v2145
  %v2147 = vpop.f32.mrf.mxu0
  %v2148 = vadd.f32 %v636, %v2147
  %2149 = vmatmul.bf16.gmra.mxu0 %v289
  %v2150 = vpop.f32.mrf.mxu0
  %v2151 = vadd.f32 %v636, %v2150
  %v2152 = vpop.f32.mrf.mxu0
  %v2153 = vadd.f32 %v636, %v2152
  %2154 = vmatmul.bf16.gmra.mxu0 %v290
  %v2155 = vpop.f32.mrf.mxu0
  %v2156 = vadd.f32 %v636, %v2155
  %v2157 = vpop.f32.mrf.mxu0
  %v2158 = vadd.f32 %v636, %v2157
  %2159 = vmatmul.bf16.gmra.mxu0 %v291
  %v2160 = vpop.f32.mrf.mxu0
  %v2161 = vadd.f32 %v636, %v2160
  %v2162 = vpop.f32.mrf.mxu0
  %v2163 = vadd.f32 %v636, %v2162
  %2164 = vmatmul.bf16.gmra.mxu0 %v292
  %v2165 = vpop.f32.mrf.mxu0
  %v2166 = vadd.f32 %v636, %v2165
  %v2167 = vpop.f32.mrf.mxu0
  %v2168 = vadd.f32 %v636, %v2167
  %2169 = vmatmul.bf16.gmra.mxu0 %v293
  %v2170 = vpop.f32.mrf.mxu0
  %v2171 = vadd.f32 %v636, %v2170
  %v2172 = vpop.f32.mrf.mxu0
  %v2173 = vadd.f32 %v636, %v2172
  %2174 = vmatmul.bf16.gmra.mxu0 %v294
  %v2175 = vpop.f32.mrf.mxu0
  %v2176 = vadd.f32 %v636, %v2175
  %v2177 = vpop.f32.mrf.mxu0
  %v2178 = vadd.f32 %v636, %v2177
  %2179 = vmatmul.bf16.gmra.mxu0 %v295
  %v2180 = vpop.f32.mrf.mxu0
  %v2181 = vadd.f32 %v636, %v2180
  %v2182 = vpop.f32.mrf.mxu0
  %v2183 = vadd.f32 %v636, %v2182
  %2184 = vmatmul.bf16.gmra.mxu0 %v296
  %v2185 = vpop.f32.mrf.mxu0
  %v2186 = vadd.f32 %v636, %v2185
  %v2187 = vpop.f32.mrf.mxu0
  %v2188 = vadd.f32 %v636, %v2187
  %2189 = vmatmul.bf16.gmra.mxu0 %v297
  %v2190 = vpop.f32.mrf.mxu0
  %v2191 = vadd.f32 %v636, %v2190
  %v2192 = vpop.f32.mrf.mxu0
  %v2193 = vadd.f32 %v636, %v2192
  %2194 = vmatmul.bf16.gmra.mxu0 %v298
  %v2195 = vpop.f32.mrf.mxu0
  %v2196 = vadd.f32 %v636, %v2195
  %v2197 = vpop.f32.mrf.mxu0
  %v2198 = vadd.f32 %v636, %v2197
  %2199 = vmatmul.bf16.gmra.mxu0 %v299
  %v2200 = vpop.f32.mrf.mxu0
  %v2201 = vadd.f32 %v636, %v2200
  %v2202 = vpop.f32.mrf.mxu0
  %v2203 = vadd.f32 %v636, %v2202
  %2204 = vmatmul.bf16.gmra.mxu0 %v300
  %v2205 = vpop.f32.mrf.mxu0
  %v2206 = vadd.f32 %v636, %v2205
  %v2207 = vpop.f32.mrf.mxu0
  %v2208 = vadd.f32 %v636, %v2207
  %2209 = vmatmul.bf16.gmra.mxu0 %v301
  %v2210 = vpop.f32.mrf.mxu0
  %v2211 = vadd.f32 %v636, %v2210
  %v2212 = vpop.f32.mrf.mxu0
  %v2213 = vadd.f32 %v636, %v2212
  %2214 = vmatmul.bf16.gmra.mxu0 %v302
  %v2215 = vpop.f32.mrf.mxu0
  %v2216 = vadd.f32 %v636, %v2215
  %v2217 = vpop.f32.mrf.mxu0
  %v2218 = vadd.f32 %v636, %v2217
  %2219 = vmatmul.bf16.gmra.mxu0 %v303
  %v2220 = vpop.f32.mrf.mxu0
  %v2221 = vadd.f32 %v636, %v2220
  %v2222 = vpop.f32.mrf.mxu0
  %v2223 = vadd.f32 %v636, %v2222
  %2224 = vmatmul.bf16.gmra.mxu0 %v304
  %v2225 = vpop.f32.mrf.mxu0
  %v2226 = vadd.f32 %v636, %v2225
  %v2227 = vpop.f32.mrf.mxu0
  %v2228 = vadd.f32 %v636, %v2227
  %2229 = vmatmul.bf16.gmra.mxu0 %v305
  %v2230 = vpop.f32.mrf.mxu0
  %v2231 = vadd.f32 %v636, %v2230
  %v2232 = vpop.f32.mrf.mxu0
  %v2233 = vadd.f32 %v636, %v2232
  %2234 = vmatmul.bf16.gmra.mxu0 %v306
  %v2235 = vpop.f32.mrf.mxu0
  %v2236 = vadd.f32 %v636, %v2235
  %v2237 = vpop.f32.mrf.mxu0
  %v2238 = vadd.f32 %v636, %v2237
  %2239 = vmatmul.bf16.gmra.mxu0 %v307
  %v2240 = vpop.f32.mrf.mxu0
  %v2241 = vadd.f32 %v636, %v2240
  %v2242 = vpop.f32.mrf.mxu0
  %v2243 = vadd.f32 %v636, %v2242
  %2244 = vmatmul.bf16.gmra.mxu0 %v308
  %v2245 = vpop.f32.mrf.mxu0
  %v2246 = vadd.f32 %v636, %v2245
  %v2247 = vpop.f32.mrf.mxu0
  %v2248 = vadd.f32 %v636, %v2247
  %2249 = vmatmul.bf16.gmra.mxu0 %v309
  %v2250 = vpop.f32.mrf.mxu0
  %v2251 = vadd.f32 %v636, %v2250
  %v2252 = vpop.f32.mrf.mxu0
  %v2253 = vadd.f32 %v636, %v2252
  %2254 = vmatmul.bf16.gmra.mxu0 %v310
  %v2255 = vpop.f32.mrf.mxu0
  %v2256 = vadd.f32 %v636, %v2255
  %v2257 = vpop.f32.mrf.mxu0
  %v2258 = vadd.f32 %v636, %v2257
  %2259 = vmatmul.bf16.gmra.mxu0 %v311
  %v2260 = vpop.f32.mrf.mxu0
  %v2261 = vadd.f32 %v636, %v2260
  %v2262 = vpop.f32.mrf.mxu0
  %v2263 = vadd.f32 %v636, %v2262
  %2264 = vmatmul.bf16.gmra.mxu0 %v312
  %v2265 = vpop.f32.mrf.mxu0
  %v2266 = vadd.f32 %v636, %v2265
  %v2267 = vpop.f32.mrf.mxu0
  %v2268 = vadd.f32 %v636, %v2267
  %2269 = vdwg.mxu0
  %2270 = vmatpush.bf16.msra.mxu0 %v992
  %2271 = vmatpush.bf16.msra.mxu0 %v988
  %2272 = vmatpush.bf16.msra.mxu0 %v984
  %2273 = vmatpush.bf16.msra.mxu0 %v980
  %2274 = vmatpush.bf16.msra.mxu0 %v976
  %2275 = vmatpush.bf16.msra.mxu0 %v972
  %2276 = vmatpush.bf16.msra.mxu0 %v968
  %2277 = vmatpush.bf16.msra.mxu0 %v964
  %2278 = vmatmul.bf16.gmra.mxu0 %v468
  %v2279 = vpop.f32.mrf.mxu0
  %v2280 = vadd.f32 %v2116, %v2279
  %v2281 = vpop.f32.mrf.mxu0
  %v2282 = vadd.f32 %v2118, %v2281
  %2283 = vmatmul.bf16.gmra.mxu0 %v469
  %v2284 = vpop.f32.mrf.mxu0
  %v2285 = vadd.f32 %v2121, %v2284
  %v2286 = vpop.f32.mrf.mxu0
  %v2287 = vadd.f32 %v2123, %v2286
  %2288 = vmatmul.bf16.gmra.mxu0 %v470
  %v2289 = vpop.f32.mrf.mxu0
  %v2290 = vadd.f32 %v2126, %v2289
  %v2291 = vpop.f32.mrf.mxu0
  %v2292 = vadd.f32 %v2128, %v2291
  %2293 = vmatmul.bf16.gmra.mxu0 %v471
  %v2294 = vpop.f32.mrf.mxu0
  %v2295 = vadd.f32 %v2131, %v2294
  %v2296 = vpop.f32.mrf.mxu0
  %v2297 = vadd.f32 %v2133, %v2296
  %2298 = vmatmul.bf16.gmra.mxu0 %v472
  %v2299 = vpop.f32.mrf.mxu0
  %v2300 = vadd.f32 %v2136, %v2299
  %v2301 = vpop.f32.mrf.mxu0
  %v2302 = vadd.f32 %v2138, %v2301
  %2303 = vmatmul.bf16.gmra.mxu0 %v473
  %v2304 = vpop.f32.mrf.mxu0
  %v2305 = vadd.f32 %v2141, %v2304
  %v2306 = vpop.f32.mrf.mxu0
  %v2307 = vadd.f32 %v2143, %v2306
  %2308 = vmatmul.bf16.gmra.mxu0 %v474
  %v2309 = vpop.f32.mrf.mxu0
  %v2310 = vadd.f32 %v2146, %v2309
  %v2311 = vpop.f32.mrf.mxu0
  %v2312 = vadd.f32 %v2148, %v2311
  %2313 = vmatmul.bf16.gmra.mxu0 %v475
  %v2314 = vpop.f32.mrf.mxu0
  %v2315 = vadd.f32 %v2151, %v2314
  %v2316 = vpop.f32.mrf.mxu0
  %v2317 = vadd.f32 %v2153, %v2316
  %2318 = vmatmul.bf16.gmra.mxu0 %v476
  %v2319 = vpop.f32.mrf.mxu0
  %v2320 = vadd.f32 %v2156, %v2319
  %v2321 = vpop.f32.mrf.mxu0
  %v2322 = vadd.f32 %v2158, %v2321
  %2323 = vmatmul.bf16.gmra.mxu0 %v477
  %v2324 = vpop.f32.mrf.mxu0
  %v2325 = vadd.f32 %v2161, %v2324
  %v2326 = vpop.f32.mrf.mxu0
  %v2327 = vadd.f32 %v2163, %v2326
  %2328 = vmatmul.bf16.gmra.mxu0 %v478
  %v2329 = vpop.f32.mrf.mxu0
  %v2330 = vadd.f32 %v2166, %v2329
  %v2331 = vpop.f32.mrf.mxu0
  %v2332 = vadd.f32 %v2168, %v2331
  %2333 = vmatmul.bf16.gmra.mxu0 %v479
  %v2334 = vpop.f32.mrf.mxu0
  %v2335 = vadd.f32 %v2171, %v2334
  %v2336 = vpop.f32.mrf.mxu0
  %v2337 = vadd.f32 %v2173, %v2336
  %2338 = vmatmul.bf16.gmra.mxu0 %v480
  %v2339 = vpop.f32.mrf.mxu0
  %v2340 = vadd.f32 %v2176, %v2339
  %v2341 = vpop.f32.mrf.mxu0
  %v2342 = vadd.f32 %v2178, %v2341
  %2343 = vmatmul.bf16.gmra.mxu0 %v481
  %v2344 = vpop.f32.mrf.mxu0
  %v2345 = vadd.f32 %v2181, %v2344
  %v2346 = vpop.f32.mrf.mxu0
  %v2347 = vadd.f32 %v2183, %v2346
  %2348 = vmatmul.bf16.gmra.mxu0 %v482
  %v2349 = vpop.f32.mrf.mxu0
  %v2350 = vadd.f32 %v2186, %v2349
  %v2351 = vpop.f32.mrf.mxu0
  %v2352 = vadd.f32 %v2188, %v2351
  %2353 = vmatmul.bf16.gmra.mxu0 %v483
  %v2354 = vpop.f32.mrf.mxu0
  %v2355 = vadd.f32 %v2191, %v2354
  %v2356 = vpop.f32.mrf.mxu0
  %v2357 = vadd.f32 %v2193, %v2356
  %2358 = vmatmul.bf16.gmra.mxu0 %v484
  %v2359 = vpop.f32.mrf.mxu0
  %v2360 = vadd.f32 %v2196, %v2359
  %v2361 = vpop.f32.mrf.mxu0
  %v2362 = vadd.f32 %v2198, %v2361
  %2363 = vmatmul.bf16.gmra.mxu0 %v485
  %v2364 = vpop.f32.mrf.mxu0
  %v2365 = vadd.f32 %v2201, %v2364
  %v2366 = vpop.f32.mrf.mxu0
  %v2367 = vadd.f32 %v2203, %v2366
  %2368 = vmatmul.bf16.gmra.mxu0 %v486
  %v2369 = vpop.f32.mrf.mxu0
  %v2370 = vadd.f32 %v2206, %v2369
  %v2371 = vpop.f32.mrf.mxu0
  %v2372 = vadd.f32 %v2208, %v2371
  %2373 = vmatmul.bf16.gmra.mxu0 %v487
  %v2374 = vpop.f32.mrf.mxu0
  %v2375 = vadd.f32 %v2211, %v2374
  %v2376 = vpop.f32.mrf.mxu0
  %v2377 = vadd.f32 %v2213, %v2376
  %2378 = vmatmul.bf16.gmra.mxu0 %v488
  %v2379 = vpop.f32.mrf.mxu0
  %v2380 = vadd.f32 %v2216, %v2379
  %v2381 = vpop.f32.mrf.mxu0
  %v2382 = vadd.f32 %v2218, %v2381
  %2383 = vmatmul.bf16.gmra.mxu0 %v489
  %v2384 = vpop.f32.mrf.mxu0
  %v2385 = vadd.f32 %v2221, %v2384
  %v2386 = vpop.f32.mrf.mxu0
  %v2387 = vadd.f32 %v2223, %v2386
  %2388 = vmatmul.bf16.gmra.mxu0 %v490
  %v2389 = vpop.f32.mrf.mxu0
  %v2390 = vadd.f32 %v2226, %v2389
  %v2391 = vpop.f32.mrf.mxu0
  %v2392 = vadd.f32 %v2228, %v2391
  %2393 = vmatmul.bf16.gmra.mxu0 %v491
  %v2394 = vpop.f32.mrf.mxu0
  %v2395 = vadd.f32 %v2231, %v2394
  %v2396 = vpop.f32.mrf.mxu0
  %v2397 = vadd.f32 %v2233, %v2396
  %2398 = vmatmul.bf16.gmra.mxu0 %v492
  %v2399 = vpop.f32.mrf.mxu0
  %v2400 = vadd.f32 %v2236, %v2399
  %v2401 = vpop.f32.mrf.mxu0
  %v2402 = vadd.f32 %v2238, %v2401
  %2403 = vmatmul.bf16.gmra.mxu0 %v493
  %v2404 = vpop.f32.mrf.mxu0
  %v2405 = vadd.f32 %v2241, %v2404
  %v2406 = vpop.f32.mrf.mxu0
  %v2407 = vadd.f32 %v2243, %v2406
  %2408 = vmatmul.bf16.gmra.mxu0 %v494
  %v2409 = vpop.f32.mrf.mxu0
  %v2410 = vadd.f32 %v2246, %v2409
  %v2411 = vpop.f32.mrf.mxu0
  %v2412 = vadd.f32 %v2248, %v2411
  %2413 = vmatmul.bf16.gmra.mxu0 %v495
  %v2414 = vpop.f32.mrf.mxu0
  %v2415 = vadd.f32 %v2251, %v2414
  %v2416 = vpop.f32.mrf.mxu0
  %v2417 = vadd.f32 %v2253, %v2416
  %2418 = vmatmul.bf16.gmra.mxu0 %v496
  %v2419 = vpop.f32.mrf.mxu0
  %v2420 = vadd.f32 %v2256, %v2419
  %v2421 = vpop.f32.mrf.mxu0
  %v2422 = vadd.f32 %v2258, %v2421
  %2423 = vmatmul.bf16.gmra.mxu0 %v497
  %v2424 = vpop.f32.mrf.mxu0
  %v2425 = vadd.f32 %v2261, %v2424
  %v2426 = vpop.f32.mrf.mxu0
  %v2427 = vadd.f32 %v2263, %v2426
  %2428 = vmatmul.bf16.gmra.mxu0 %v498
  %v2429 = vpop.f32.mrf.mxu0
  %v2430 = vadd.f32 %v2266, %v2429
  %v2431 = vpop.f32.mrf.mxu0
  %v2432 = vadd.f32 %v2268, %v2431
  %2433 = vdwg.mxu0
  %2434 = vmatpush.bf16.msra.mxu0 %v1024
  %2435 = vmatpush.bf16.msra.mxu0 %v1020
  %2436 = vmatpush.bf16.msra.mxu0 %v1016
  %2437 = vmatpush.bf16.msra.mxu0 %v1012
  %2438 = vmatpush.bf16.msra.mxu0 %v1008
  %2439 = vmatpush.bf16.msra.mxu0 %v1004
  %2440 = vmatpush.bf16.msra.mxu0 %v1000
  %2441 = vmatpush.bf16.msra.mxu0 %v996
  %2442 = vmatmul.bf16.gmra.mxu0 %v283
  %v2443 = vpop.f32.mrf.mxu0
  %v2444 = vadd.f32 %v2280, %v2443
  %v2445 = vpop.f32.mrf.mxu0
  %v2446 = vadd.f32 %v2282, %v2445
  %2447 = vmatmul.bf16.gmra.mxu0 %v284
  %v2448 = vpop.f32.mrf.mxu0
  %v2449 = vadd.f32 %v2285, %v2448
  %v2450 = vpop.f32.mrf.mxu0
  %v2451 = vadd.f32 %v2287, %v2450
  %2452 = vmatmul.bf16.gmra.mxu0 %v285
  %v2453 = vpop.f32.mrf.mxu0
  %v2454 = vadd.f32 %v2290, %v2453
  %v2455 = vpop.f32.mrf.mxu0
  %v2456 = vadd.f32 %v2292, %v2455
  %2457 = vmatmul.bf16.gmra.mxu0 %v286
  %v2458 = vpop.f32.mrf.mxu0
  %v2459 = vadd.f32 %v2295, %v2458
  %v2460 = vpop.f32.mrf.mxu0
  %v2461 = vadd.f32 %v2297, %v2460
  %2462 = vmatmul.bf16.gmra.mxu0 %v287
  %v2463 = vpop.f32.mrf.mxu0
  %v2464 = vadd.f32 %v2300, %v2463
  %v2465 = vpop.f32.mrf.mxu0
  %v2466 = vadd.f32 %v2302, %v2465
  %2467 = vmatmul.bf16.gmra.mxu0 %v288
  %v2468 = vpop.f32.mrf.mxu0
  %v2469 = vadd.f32 %v2305, %v2468
  %v2470 = vpop.f32.mrf.mxu0
  %v2471 = vadd.f32 %v2307, %v2470
  %2472 = vmatmul.bf16.gmra.mxu0 %v289
  %v2473 = vpop.f32.mrf.mxu0
  %v2474 = vadd.f32 %v2310, %v2473
  %v2475 = vpop.f32.mrf.mxu0
  %v2476 = vadd.f32 %v2312, %v2475
  %2477 = vmatmul.bf16.gmra.mxu0 %v290
  %v2478 = vpop.f32.mrf.mxu0
  %v2479 = vadd.f32 %v2315, %v2478
  %v2480 = vpop.f32.mrf.mxu0
  %v2481 = vadd.f32 %v2317, %v2480
  %2482 = vmatmul.bf16.gmra.mxu0 %v291
  %v2483 = vpop.f32.mrf.mxu0
  %v2484 = vadd.f32 %v2320, %v2483
  %v2485 = vpop.f32.mrf.mxu0
  %v2486 = vadd.f32 %v2322, %v2485
  %2487 = vmatmul.bf16.gmra.mxu0 %v292
  %v2488 = vpop.f32.mrf.mxu0
  %v2489 = vadd.f32 %v2325, %v2488
  %v2490 = vpop.f32.mrf.mxu0
  %v2491 = vadd.f32 %v2327, %v2490
  %2492 = vmatmul.bf16.gmra.mxu0 %v293
  %v2493 = vpop.f32.mrf.mxu0
  %v2494 = vadd.f32 %v2330, %v2493
  %v2495 = vpop.f32.mrf.mxu0
  %v2496 = vadd.f32 %v2332, %v2495
  %2497 = vmatmul.bf16.gmra.mxu0 %v294
  %v2498 = vpop.f32.mrf.mxu0
  %v2499 = vadd.f32 %v2335, %v2498
  %v2500 = vpop.f32.mrf.mxu0
  %v2501 = vadd.f32 %v2337, %v2500
  %2502 = vmatmul.bf16.gmra.mxu0 %v295
  %v2503 = vpop.f32.mrf.mxu0
  %v2504 = vadd.f32 %v2340, %v2503
  %v2505 = vpop.f32.mrf.mxu0
  %v2506 = vadd.f32 %v2342, %v2505
  %2507 = vmatmul.bf16.gmra.mxu0 %v296
  %v2508 = vpop.f32.mrf.mxu0
  %v2509 = vadd.f32 %v2345, %v2508
  %v2510 = vpop.f32.mrf.mxu0
  %v2511 = vadd.f32 %v2347, %v2510
  %2512 = vmatmul.bf16.gmra.mxu0 %v297
  %v2513 = vpop.f32.mrf.mxu0
  %v2514 = vadd.f32 %v2350, %v2513
  %v2515 = vpop.f32.mrf.mxu0
  %v2516 = vadd.f32 %v2352, %v2515
  %2517 = vmatmul.bf16.gmra.mxu0 %v298
  %v2518 = vpop.f32.mrf.mxu0
  %v2519 = vadd.f32 %v2355, %v2518
  %v2520 = vpop.f32.mrf.mxu0
  %v2521 = vadd.f32 %v2357, %v2520
  %2522 = vmatmul.bf16.gmra.mxu0 %v299
  %v2523 = vpop.f32.mrf.mxu0
  %v2524 = vadd.f32 %v2360, %v2523
  %v2525 = vpop.f32.mrf.mxu0
  %v2526 = vadd.f32 %v2362, %v2525
  %2527 = vmatmul.bf16.gmra.mxu0 %v300
  %v2528 = vpop.f32.mrf.mxu0
  %v2529 = vadd.f32 %v2365, %v2528
  %v2530 = vpop.f32.mrf.mxu0
  %v2531 = vadd.f32 %v2367, %v2530
  %2532 = vmatmul.bf16.gmra.mxu0 %v301
  %v2533 = vpop.f32.mrf.mxu0
  %v2534 = vadd.f32 %v2370, %v2533
  %v2535 = vpop.f32.mrf.mxu0
  %v2536 = vadd.f32 %v2372, %v2535
  %2537 = vmatmul.bf16.gmra.mxu0 %v302
  %v2538 = vpop.f32.mrf.mxu0
  %v2539 = vadd.f32 %v2375, %v2538
  %v2540 = vpop.f32.mrf.mxu0
  %v2541 = vadd.f32 %v2377, %v2540
  %2542 = vmatmul.bf16.gmra.mxu0 %v303
  %v2543 = vpop.f32.mrf.mxu0
  %v2544 = vadd.f32 %v2380, %v2543
  %v2545 = vpop.f32.mrf.mxu0
  %v2546 = vadd.f32 %v2382, %v2545
  %2547 = vmatmul.bf16.gmra.mxu0 %v304
  %v2548 = vpop.f32.mrf.mxu0
  %v2549 = vadd.f32 %v2385, %v2548
  %v2550 = vpop.f32.mrf.mxu0
  %v2551 = vadd.f32 %v2387, %v2550
  %2552 = vmatmul.bf16.gmra.mxu0 %v305
  %v2553 = vpop.f32.mrf.mxu0
  %v2554 = vadd.f32 %v2390, %v2553
  %v2555 = vpop.f32.mrf.mxu0
  %v2556 = vadd.f32 %v2392, %v2555
  %2557 = vmatmul.bf16.gmra.mxu0 %v306
  %v2558 = vpop.f32.mrf.mxu0
  %v2559 = vadd.f32 %v2395, %v2558
  %v2560 = vpop.f32.mrf.mxu0
  %v2561 = vadd.f32 %v2397, %v2560
  %2562 = vmatmul.bf16.gmra.mxu0 %v307
  %v2563 = vpop.f32.mrf.mxu0
  %v2564 = vadd.f32 %v2400, %v2563
  %v2565 = vpop.f32.mrf.mxu0
  %v2566 = vadd.f32 %v2402, %v2565
  %2567 = vmatmul.bf16.gmra.mxu0 %v308
  %v2568 = vpop.f32.mrf.mxu0
  %v2569 = vadd.f32 %v2405, %v2568
  %v2570 = vpop.f32.mrf.mxu0
  %v2571 = vadd.f32 %v2407, %v2570
  %2572 = vmatmul.bf16.gmra.mxu0 %v309
  %v2573 = vpop.f32.mrf.mxu0
  %v2574 = vadd.f32 %v2410, %v2573
  %v2575 = vpop.f32.mrf.mxu0
  %v2576 = vadd.f32 %v2412, %v2575
  %2577 = vmatmul.bf16.gmra.mxu0 %v310
  %v2578 = vpop.f32.mrf.mxu0
  %v2579 = vadd.f32 %v2415, %v2578
  %v2580 = vpop.f32.mrf.mxu0
  %v2581 = vadd.f32 %v2417, %v2580
  %2582 = vmatmul.bf16.gmra.mxu0 %v311
  %v2583 = vpop.f32.mrf.mxu0
  %v2584 = vadd.f32 %v2420, %v2583
  %v2585 = vpop.f32.mrf.mxu0
  %v2586 = vadd.f32 %v2422, %v2585
  %2587 = vmatmul.bf16.gmra.mxu0 %v312
  %v2588 = vpop.f32.mrf.mxu0
  %v2589 = vadd.f32 %v2425, %v2588
  %v2590 = vpop.f32.mrf.mxu0
  %v2591 = vadd.f32 %v2427, %v2590
  %2592 = vmatmul.bf16.gmra.mxu0 %v534
  %v2593 = vpop.f32.mrf.mxu0
  %v2594 = vadd.f32 %v2430, %v2593
  %v2595 = vpop.f32.mrf.mxu0
  %v2596 = vadd.f32 %v2432, %v2595
  %2597 = vdwg.mxu0
  %2598 = vmatpush.bf16.msra.mxu0 %v961
  %2599 = vmatpush.bf16.msra.mxu0 %v957
  %2600 = vmatpush.bf16.msra.mxu0 %v953
  %2601 = vmatpush.bf16.msra.mxu0 %v949
  %2602 = vmatpush.bf16.msra.mxu0 %v945
  %2603 = vmatpush.bf16.msra.mxu0 %v941
  %2604 = vmatpush.bf16.msra.mxu0 %v937
  %2605 = vmatpush.bf16.msra.mxu0 %v933
  %2606 = vmatmul.bf16.gmra.mxu0 %v282
  %v2607 = vpop.f32.mrf.mxu0
  %v2608 = vadd.f32 %v637, %v2607
  %v2609 = vpop.f32.mrf.mxu0
  %v2610 = vadd.f32 %v637, %v2609
  %2611 = vmatmul.bf16.gmra.mxu0 %v283
  %v2612 = vpop.f32.mrf.mxu0
  %v2613 = vadd.f32 %v637, %v2612
  %v2614 = vpop.f32.mrf.mxu0
  %v2615 = vadd.f32 %v637, %v2614
  %2616 = vmatmul.bf16.gmra.mxu0 %v284
  %v2617 = vpop.f32.mrf.mxu0
  %v2618 = vadd.f32 %v637, %v2617
  %v2619 = vpop.f32.mrf.mxu0
  %v2620 = vadd.f32 %v637, %v2619
  %2621 = vmatmul.bf16.gmra.mxu0 %v285
  %v2622 = vpop.f32.mrf.mxu0
  %v2623 = vadd.f32 %v637, %v2622
  %v2624 = vpop.f32.mrf.mxu0
  %v2625 = vadd.f32 %v637, %v2624
  %2626 = vmatmul.bf16.gmra.mxu0 %v286
  %v2627 = vpop.f32.mrf.mxu0
  %v2628 = vadd.f32 %v637, %v2627
  %v2629 = vpop.f32.mrf.mxu0
  %v2630 = vadd.f32 %v637, %v2629
  %2631 = vmatmul.bf16.gmra.mxu0 %v287
  %v2632 = vpop.f32.mrf.mxu0
  %v2633 = vadd.f32 %v637, %v2632
  %v2634 = vpop.f32.mrf.mxu0
  %v2635 = vadd.f32 %v637, %v2634
  %2636 = vmatmul.bf16.gmra.mxu0 %v288
  %v2637 = vpop.f32.mrf.mxu0
  %v2638 = vadd.f32 %v637, %v2637
  %v2639 = vpop.f32.mrf.mxu0
  %v2640 = vadd.f32 %v637, %v2639
  %2641 = vmatmul.bf16.gmra.mxu0 %v289
  %v2642 = vpop.f32.mrf.mxu0
  %v2643 = vadd.f32 %v637, %v2642
  %v2644 = vpop.f32.mrf.mxu0
  %v2645 = vadd.f32 %v637, %v2644
  %2646 = vmatmul.bf16.gmra.mxu0 %v290
  %v2647 = vpop.f32.mrf.mxu0
  %v2648 = vadd.f32 %v637, %v2647
  %v2649 = vpop.f32.mrf.mxu0
  %v2650 = vadd.f32 %v637, %v2649
  %2651 = vmatmul.bf16.gmra.mxu0 %v291
  %v2652 = vpop.f32.mrf.mxu0
  %v2653 = vadd.f32 %v637, %v2652
  %v2654 = vpop.f32.mrf.mxu0
  %v2655 = vadd.f32 %v637, %v2654
  %2656 = vmatmul.bf16.gmra.mxu0 %v292
  %v2657 = vpop.f32.mrf.mxu0
  %v2658 = vadd.f32 %v637, %v2657
  %v2659 = vpop.f32.mrf.mxu0
  %v2660 = vadd.f32 %v637, %v2659
  %2661 = vmatmul.bf16.gmra.mxu0 %v293
  %v2662 = vpop.f32.mrf.mxu0
  %v2663 = vadd.f32 %v637, %v2662
  %v2664 = vpop.f32.mrf.mxu0
  %v2665 = vadd.f32 %v637, %v2664
  %2666 = vmatmul.bf16.gmra.mxu0 %v294
  %v2667 = vpop.f32.mrf.mxu0
  %v2668 = vadd.f32 %v637, %v2667
  %v2669 = vpop.f32.mrf.mxu0
  %v2670 = vadd.f32 %v637, %v2669
  %2671 = vmatmul.bf16.gmra.mxu0 %v295
  %v2672 = vpop.f32.mrf.mxu0
  %v2673 = vadd.f32 %v637, %v2672
  %v2674 = vpop.f32.mrf.mxu0
  %v2675 = vadd.f32 %v637, %v2674
  %2676 = vmatmul.bf16.gmra.mxu0 %v296
  %v2677 = vpop.f32.mrf.mxu0
  %v2678 = vadd.f32 %v637, %v2677
  %v2679 = vpop.f32.mrf.mxu0
  %v2680 = vadd.f32 %v637, %v2679
  %2681 = vmatmul.bf16.gmra.mxu0 %v297
  %v2682 = vpop.f32.mrf.mxu0
  %v2683 = vadd.f32 %v637, %v2682
  %v2684 = vpop.f32.mrf.mxu0
  %v2685 = vadd.f32 %v637, %v2684
  %2686 = vmatmul.bf16.gmra.mxu0 %v298
  %v2687 = vpop.f32.mrf.mxu0
  %v2688 = vadd.f32 %v637, %v2687
  %v2689 = vpop.f32.mrf.mxu0
  %v2690 = vadd.f32 %v637, %v2689
  %2691 = vmatmul.bf16.gmra.mxu0 %v299
  %v2692 = vpop.f32.mrf.mxu0
  %v2693 = vadd.f32 %v637, %v2692
  %v2694 = vpop.f32.mrf.mxu0
  %v2695 = vadd.f32 %v637, %v2694
  %2696 = vmatmul.bf16.gmra.mxu0 %v300
  %v2697 = vpop.f32.mrf.mxu0
  %v2698 = vadd.f32 %v637, %v2697
  %v2699 = vpop.f32.mrf.mxu0
  %v2700 = vadd.f32 %v637, %v2699
  %2701 = vmatmul.bf16.gmra.mxu0 %v301
  %v2702 = vpop.f32.mrf.mxu0
  %v2703 = vadd.f32 %v637, %v2702
  %v2704 = vpop.f32.mrf.mxu0
  %v2705 = vadd.f32 %v637, %v2704
  %2706 = vmatmul.bf16.gmra.mxu0 %v302
  %v2707 = vpop.f32.mrf.mxu0
  %v2708 = vadd.f32 %v637, %v2707
  %v2709 = vpop.f32.mrf.mxu0
  %v2710 = vadd.f32 %v637, %v2709
  %2711 = vmatmul.bf16.gmra.mxu0 %v303
  %v2712 = vpop.f32.mrf.mxu0
  %v2713 = vadd.f32 %v637, %v2712
  %v2714 = vpop.f32.mrf.mxu0
  %v2715 = vadd.f32 %v637, %v2714
  %2716 = vmatmul.bf16.gmra.mxu0 %v304
  %v2717 = vpop.f32.mrf.mxu0
  %v2718 = vadd.f32 %v637, %v2717
  %v2719 = vpop.f32.mrf.mxu0
  %v2720 = vadd.f32 %v637, %v2719
  %2721 = vmatmul.bf16.gmra.mxu0 %v305
  %v2722 = vpop.f32.mrf.mxu0
  %v2723 = vadd.f32 %v637, %v2722
  %v2724 = vpop.f32.mrf.mxu0
  %v2725 = vadd.f32 %v637, %v2724
  %2726 = vmatmul.bf16.gmra.mxu0 %v306
  %v2727 = vpop.f32.mrf.mxu0
  %v2728 = vadd.f32 %v637, %v2727
  %v2729 = vpop.f32.mrf.mxu0
  %v2730 = vadd.f32 %v637, %v2729
  %2731 = vmatmul.bf16.gmra.mxu0 %v307
  %v2732 = vpop.f32.mrf.mxu0
  %v2733 = vadd.f32 %v637, %v2732
  %v2734 = vpop.f32.mrf.mxu0
  %v2735 = vadd.f32 %v637, %v2734
  %2736 = vmatmul.bf16.gmra.mxu0 %v308
  %v2737 = vpop.f32.mrf.mxu0
  %v2738 = vadd.f32 %v637, %v2737
  %v2739 = vpop.f32.mrf.mxu0
  %v2740 = vadd.f32 %v637, %v2739
  %2741 = vmatmul.bf16.gmra.mxu0 %v309
  %v2742 = vpop.f32.mrf.mxu0
  %v2743 = vadd.f32 %v637, %v2742
  %v2744 = vpop.f32.mrf.mxu0
  %v2745 = vadd.f32 %v637, %v2744
  %2746 = vmatmul.bf16.gmra.mxu0 %v310
  %v2747 = vpop.f32.mrf.mxu0
  %v2748 = vadd.f32 %v637, %v2747
  %v2749 = vpop.f32.mrf.mxu0
  %v2750 = vadd.f32 %v637, %v2749
  %2751 = vmatmul.bf16.gmra.mxu0 %v311
  %v2752 = vpop.f32.mrf.mxu0
  %v2753 = vadd.f32 %v637, %v2752
  %v2754 = vpop.f32.mrf.mxu0
  %v2755 = vadd.f32 %v637, %v2754
  %2756 = vmatmul.bf16.gmra.mxu0 %v312
  %v2757 = vpop.f32.mrf.mxu0
  %v2758 = vadd.f32 %v637, %v2757
  %v2759 = vpop.f32.mrf.mxu0
  %v2760 = vadd.f32 %v637, %v2759
  %2761 = vdwg.mxu0
  %2762 = vmatpush.bf16.msra.mxu0 %v993
  %2763 = vmatpush.bf16.msra.mxu0 %v989
  %2764 = vmatpush.bf16.msra.mxu0 %v985
  %2765 = vmatpush.bf16.msra.mxu0 %v981
  %2766 = vmatpush.bf16.msra.mxu0 %v977
  %2767 = vmatpush.bf16.msra.mxu0 %v973
  %2768 = vmatpush.bf16.msra.mxu0 %v969
  %2769 = vmatpush.bf16.msra.mxu0 %v965
  %2770 = vmatmul.bf16.gmra.mxu0 %v468
  %v2771 = vpop.f32.mrf.mxu0
  %v2772 = vadd.f32 %v2608, %v2771
  %v2773 = vpop.f32.mrf.mxu0
  %v2774 = vadd.f32 %v2610, %v2773
  %2775 = vmatmul.bf16.gmra.mxu0 %v469
  %v2776 = vpop.f32.mrf.mxu0
  %v2777 = vadd.f32 %v2613, %v2776
  %v2778 = vpop.f32.mrf.mxu0
  %v2779 = vadd.f32 %v2615, %v2778
  %2780 = vmatmul.bf16.gmra.mxu0 %v470
  %v2781 = vpop.f32.mrf.mxu0
  %v2782 = vadd.f32 %v2618, %v2781
  %v2783 = vpop.f32.mrf.mxu0
  %v2784 = vadd.f32 %v2620, %v2783
  %2785 = vmatmul.bf16.gmra.mxu0 %v471
  %v2786 = vpop.f32.mrf.mxu0
  %v2787 = vadd.f32 %v2623, %v2786
  %v2788 = vpop.f32.mrf.mxu0
  %v2789 = vadd.f32 %v2625, %v2788
  %2790 = vmatmul.bf16.gmra.mxu0 %v472
  %v2791 = vpop.f32.mrf.mxu0
  %v2792 = vadd.f32 %v2628, %v2791
  %v2793 = vpop.f32.mrf.mxu0
  %v2794 = vadd.f32 %v2630, %v2793
  %2795 = vmatmul.bf16.gmra.mxu0 %v473
  %v2796 = vpop.f32.mrf.mxu0
  %v2797 = vadd.f32 %v2633, %v2796
  %v2798 = vpop.f32.mrf.mxu0
  %v2799 = vadd.f32 %v2635, %v2798
  %2800 = vmatmul.bf16.gmra.mxu0 %v474
  %v2801 = vpop.f32.mrf.mxu0
  %v2802 = vadd.f32 %v2638, %v2801
  %v2803 = vpop.f32.mrf.mxu0
  %v2804 = vadd.f32 %v2640, %v2803
  %2805 = vmatmul.bf16.gmra.mxu0 %v475
  %v2806 = vpop.f32.mrf.mxu0
  %v2807 = vadd.f32 %v2643, %v2806
  %v2808 = vpop.f32.mrf.mxu0
  %v2809 = vadd.f32 %v2645, %v2808
  %2810 = vmatmul.bf16.gmra.mxu0 %v476
  %v2811 = vpop.f32.mrf.mxu0
  %v2812 = vadd.f32 %v2648, %v2811
  %v2813 = vpop.f32.mrf.mxu0
  %v2814 = vadd.f32 %v2650, %v2813
  %2815 = vmatmul.bf16.gmra.mxu0 %v477
  %v2816 = vpop.f32.mrf.mxu0
  %v2817 = vadd.f32 %v2653, %v2816
  %v2818 = vpop.f32.mrf.mxu0
  %v2819 = vadd.f32 %v2655, %v2818
  %2820 = vmatmul.bf16.gmra.mxu0 %v478
  %v2821 = vpop.f32.mrf.mxu0
  %v2822 = vadd.f32 %v2658, %v2821
  %v2823 = vpop.f32.mrf.mxu0
  %v2824 = vadd.f32 %v2660, %v2823
  %2825 = vmatmul.bf16.gmra.mxu0 %v479
  %v2826 = vpop.f32.mrf.mxu0
  %v2827 = vadd.f32 %v2663, %v2826
  %v2828 = vpop.f32.mrf.mxu0
  %v2829 = vadd.f32 %v2665, %v2828
  %2830 = vmatmul.bf16.gmra.mxu0 %v480
  %v2831 = vpop.f32.mrf.mxu0
  %v2832 = vadd.f32 %v2668, %v2831
  %v2833 = vpop.f32.mrf.mxu0
  %v2834 = vadd.f32 %v2670, %v2833
  %2835 = vmatmul.bf16.gmra.mxu0 %v481
  %v2836 = vpop.f32.mrf.mxu0
  %v2837 = vadd.f32 %v2673, %v2836
  %v2838 = vpop.f32.mrf.mxu0
  %v2839 = vadd.f32 %v2675, %v2838
  %2840 = vmatmul.bf16.gmra.mxu0 %v482
  %v2841 = vpop.f32.mrf.mxu0
  %v2842 = vadd.f32 %v2678, %v2841
  %v2843 = vpop.f32.mrf.mxu0
  %v2844 = vadd.f32 %v2680, %v2843
  %2845 = vmatmul.bf16.gmra.mxu0 %v483
  %v2846 = vpop.f32.mrf.mxu0
  %v2847 = vadd.f32 %v2683, %v2846
  %v2848 = vpop.f32.mrf.mxu0
  %v2849 = vadd.f32 %v2685, %v2848
  %2850 = vmatmul.bf16.gmra.mxu0 %v484
  %v2851 = vpop.f32.mrf.mxu0
  %v2852 = vadd.f32 %v2688, %v2851
  %v2853 = vpop.f32.mrf.mxu0
  %v2854 = vadd.f32 %v2690, %v2853
  %2855 = vmatmul.bf16.gmra.mxu0 %v485
  %v2856 = vpop.f32.mrf.mxu0
  %v2857 = vadd.f32 %v2693, %v2856
  %v2858 = vpop.f32.mrf.mxu0
  %v2859 = vadd.f32 %v2695, %v2858
  %2860 = vmatmul.bf16.gmra.mxu0 %v486
  %v2861 = vpop.f32.mrf.mxu0
  %v2862 = vadd.f32 %v2698, %v2861
  %v2863 = vpop.f32.mrf.mxu0
  %v2864 = vadd.f32 %v2700, %v2863
  %2865 = vmatmul.bf16.gmra.mxu0 %v487
  %v2866 = vpop.f32.mrf.mxu0
  %v2867 = vadd.f32 %v2703, %v2866
  %v2868 = vpop.f32.mrf.mxu0
  %v2869 = vadd.f32 %v2705, %v2868
  %2870 = vmatmul.bf16.gmra.mxu0 %v488
  %v2871 = vpop.f32.mrf.mxu0
  %v2872 = vadd.f32 %v2708, %v2871
  %v2873 = vpop.f32.mrf.mxu0
  %v2874 = vadd.f32 %v2710, %v2873
  %2875 = vmatmul.bf16.gmra.mxu0 %v489
  %v2876 = vpop.f32.mrf.mxu0
  %v2877 = vadd.f32 %v2713, %v2876
  %v2878 = vpop.f32.mrf.mxu0
  %v2879 = vadd.f32 %v2715, %v2878
  %2880 = vmatmul.bf16.gmra.mxu0 %v490
  %v2881 = vpop.f32.mrf.mxu0
  %v2882 = vadd.f32 %v2718, %v2881
  %v2883 = vpop.f32.mrf.mxu0
  %v2884 = vadd.f32 %v2720, %v2883
  %2885 = vmatmul.bf16.gmra.mxu0 %v491
  %v2886 = vpop.f32.mrf.mxu0
  %v2887 = vadd.f32 %v2723, %v2886
  %v2888 = vpop.f32.mrf.mxu0
  %v2889 = vadd.f32 %v2725, %v2888
  %2890 = vmatmul.bf16.gmra.mxu0 %v492
  %v2891 = vpop.f32.mrf.mxu0
  %v2892 = vadd.f32 %v2728, %v2891
  %v2893 = vpop.f32.mrf.mxu0
  %v2894 = vadd.f32 %v2730, %v2893
  %2895 = vmatmul.bf16.gmra.mxu0 %v493
  %v2896 = vpop.f32.mrf.mxu0
  %v2897 = vadd.f32 %v2733, %v2896
  %v2898 = vpop.f32.mrf.mxu0
  %v2899 = vadd.f32 %v2735, %v2898
  %2900 = vmatmul.bf16.gmra.mxu0 %v494
  %v2901 = vpop.f32.mrf.mxu0
  %v2902 = vadd.f32 %v2738, %v2901
  %v2903 = vpop.f32.mrf.mxu0
  %v2904 = vadd.f32 %v2740, %v2903
  %2905 = vmatmul.bf16.gmra.mxu0 %v495
  %v2906 = vpop.f32.mrf.mxu0
  %v2907 = vadd.f32 %v2743, %v2906
  %v2908 = vpop.f32.mrf.mxu0
  %v2909 = vadd.f32 %v2745, %v2908
  %2910 = vmatmul.bf16.gmra.mxu0 %v496
  %v2911 = vpop.f32.mrf.mxu0
  %v2912 = vadd.f32 %v2748, %v2911
  %v2913 = vpop.f32.mrf.mxu0
  %v2914 = vadd.f32 %v2750, %v2913
  %2915 = vmatmul.bf16.gmra.mxu0 %v497
  %v2916 = vpop.f32.mrf.mxu0
  %v2917 = vadd.f32 %v2753, %v2916
  %v2918 = vpop.f32.mrf.mxu0
  %v2919 = vadd.f32 %v2755, %v2918
  %2920 = vmatmul.bf16.gmra.mxu0 %v498
  %v2921 = vpop.f32.mrf.mxu0
  %v2922 = vadd.f32 %v2758, %v2921
  %v2923 = vpop.f32.mrf.mxu0
  %v2924 = vadd.f32 %v2760, %v2923
  %2925 = vdwg.mxu0
  %2926 = vmatpush.bf16.msra.mxu0 %v1025
  %2927 = vmatpush.bf16.msra.mxu0 %v1021
  %2928 = vmatpush.bf16.msra.mxu0 %v1017
  %2929 = vmatpush.bf16.msra.mxu0 %v1013
  %2930 = vmatpush.bf16.msra.mxu0 %v1009
  %2931 = vmatpush.bf16.msra.mxu0 %v1005
  %2932 = vmatpush.bf16.msra.mxu0 %v1001
  %2933 = vmatpush.bf16.msra.mxu0 %v997
  %2934 = vmatmul.bf16.gmra.mxu0 %v283
  %v2935 = vpop.f32.mrf.mxu0
  %v2936 = vadd.f32 %v2772, %v2935
  %v2937 = vpop.f32.mrf.mxu0
  %v2938 = vadd.f32 %v2774, %v2937
  %2939 = vmatmul.bf16.gmra.mxu0 %v284
  %v2940 = vpop.f32.mrf.mxu0
  %v2941 = vadd.f32 %v2777, %v2940
  %v2942 = vpop.f32.mrf.mxu0
  %v2943 = vadd.f32 %v2779, %v2942
  %2944 = vmatmul.bf16.gmra.mxu0 %v285
  %v2945 = vpop.f32.mrf.mxu0
  %v2946 = vadd.f32 %v2782, %v2945
  %v2947 = vpop.f32.mrf.mxu0
  %v2948 = vadd.f32 %v2784, %v2947
  %2949 = vmatmul.bf16.gmra.mxu0 %v286
  %v2950 = vpop.f32.mrf.mxu0
  %v2951 = vadd.f32 %v2787, %v2950
  %v2952 = vpop.f32.mrf.mxu0
  %v2953 = vadd.f32 %v2789, %v2952
  %2954 = vmatmul.bf16.gmra.mxu0 %v287
  %v2955 = vpop.f32.mrf.mxu0
  %v2956 = vadd.f32 %v2792, %v2955
  %v2957 = vpop.f32.mrf.mxu0
  %v2958 = vadd.f32 %v2794, %v2957
  %2959 = vmatmul.bf16.gmra.mxu0 %v288
  %v2960 = vpop.f32.mrf.mxu0
  %v2961 = vadd.f32 %v2797, %v2960
  %v2962 = vpop.f32.mrf.mxu0
  %v2963 = vadd.f32 %v2799, %v2962
  %2964 = vmatmul.bf16.gmra.mxu0 %v289
  %v2965 = vpop.f32.mrf.mxu0
  %v2966 = vadd.f32 %v2802, %v2965
  %v2967 = vpop.f32.mrf.mxu0
  %v2968 = vadd.f32 %v2804, %v2967
  %2969 = vmatmul.bf16.gmra.mxu0 %v290
  %v2970 = vpop.f32.mrf.mxu0
  %v2971 = vadd.f32 %v2807, %v2970
  %v2972 = vpop.f32.mrf.mxu0
  %v2973 = vadd.f32 %v2809, %v2972
  %2974 = vmatmul.bf16.gmra.mxu0 %v291
  %v2975 = vpop.f32.mrf.mxu0
  %v2976 = vadd.f32 %v2812, %v2975
  %v2977 = vpop.f32.mrf.mxu0
  %v2978 = vadd.f32 %v2814, %v2977
  %2979 = vmatmul.bf16.gmra.mxu0 %v292
  %v2980 = vpop.f32.mrf.mxu0
  %v2981 = vadd.f32 %v2817, %v2980
  %v2982 = vpop.f32.mrf.mxu0
  %v2983 = vadd.f32 %v2819, %v2982
  %2984 = vmatmul.bf16.gmra.mxu0 %v293
  %v2985 = vpop.f32.mrf.mxu0
  %v2986 = vadd.f32 %v2822, %v2985
  %v2987 = vpop.f32.mrf.mxu0
  %v2988 = vadd.f32 %v2824, %v2987
  %2989 = vmatmul.bf16.gmra.mxu0 %v294
  %v2990 = vpop.f32.mrf.mxu0
  %v2991 = vadd.f32 %v2827, %v2990
  %v2992 = vpop.f32.mrf.mxu0
  %v2993 = vadd.f32 %v2829, %v2992
  %2994 = vmatmul.bf16.gmra.mxu0 %v295
  %v2995 = vpop.f32.mrf.mxu0
  %v2996 = vadd.f32 %v2832, %v2995
  %v2997 = vpop.f32.mrf.mxu0
  %v2998 = vadd.f32 %v2834, %v2997
  %2999 = vmatmul.bf16.gmra.mxu0 %v296
  %v3000 = vpop.f32.mrf.mxu0
  %v3001 = vadd.f32 %v2837, %v3000
  %v3002 = vpop.f32.mrf.mxu0
  %v3003 = vadd.f32 %v2839, %v3002
  %3004 = vmatmul.bf16.gmra.mxu0 %v297
  %v3005 = vpop.f32.mrf.mxu0
  %v3006 = vadd.f32 %v2842, %v3005
  %v3007 = vpop.f32.mrf.mxu0
  %v3008 = vadd.f32 %v2844, %v3007
  %3009 = vmatmul.bf16.gmra.mxu0 %v298
  %v3010 = vpop.f32.mrf.mxu0
  %v3011 = vadd.f32 %v2847, %v3010
  %v3012 = vpop.f32.mrf.mxu0
  %v3013 = vadd.f32 %v2849, %v3012
  %3014 = vmatmul.bf16.gmra.mxu0 %v299
  %v3015 = vpop.f32.mrf.mxu0
  %v3016 = vadd.f32 %v2852, %v3015
  %v3017 = vpop.f32.mrf.mxu0
  %v3018 = vadd.f32 %v2854, %v3017
  %3019 = vmatmul.bf16.gmra.mxu0 %v300
  %v3020 = vpop.f32.mrf.mxu0
  %v3021 = vadd.f32 %v2857, %v3020
  %v3022 = vpop.f32.mrf.mxu0
  %v3023 = vadd.f32 %v2859, %v3022
  %3024 = vmatmul.bf16.gmra.mxu0 %v301
  %v3025 = vpop.f32.mrf.mxu0
  %v3026 = vadd.f32 %v2862, %v3025
  %v3027 = vpop.f32.mrf.mxu0
  %v3028 = vadd.f32 %v2864, %v3027
  %3029 = vmatmul.bf16.gmra.mxu0 %v302
  %v3030 = vpop.f32.mrf.mxu0
  %v3031 = vadd.f32 %v2867, %v3030
  %v3032 = vpop.f32.mrf.mxu0
  %v3033 = vadd.f32 %v2869, %v3032
  %3034 = vmatmul.bf16.gmra.mxu0 %v303
  %v3035 = vpop.f32.mrf.mxu0
  %v3036 = vadd.f32 %v2872, %v3035
  %v3037 = vpop.f32.mrf.mxu0
  %v3038 = vadd.f32 %v2874, %v3037
  %3039 = vmatmul.bf16.gmra.mxu0 %v304
  %v3040 = vpop.f32.mrf.mxu0
  %v3041 = vadd.f32 %v2877, %v3040
  %v3042 = vpop.f32.mrf.mxu0
  %v3043 = vadd.f32 %v2879, %v3042
  %3044 = vmatmul.bf16.gmra.mxu0 %v305
  %v3045 = vpop.f32.mrf.mxu0
  %v3046 = vadd.f32 %v2882, %v3045
  %v3047 = vpop.f32.mrf.mxu0
  %v3048 = vadd.f32 %v2884, %v3047
  %3049 = vmatmul.bf16.gmra.mxu0 %v306
  %v3050 = vpop.f32.mrf.mxu0
  %v3051 = vadd.f32 %v2887, %v3050
  %v3052 = vpop.f32.mrf.mxu0
  %v3053 = vadd.f32 %v2889, %v3052
  %3054 = vmatmul.bf16.gmra.mxu0 %v307
  %v3055 = vpop.f32.mrf.mxu0
  %v3056 = vadd.f32 %v2892, %v3055
  %v3057 = vpop.f32.mrf.mxu0
  %v3058 = vadd.f32 %v2894, %v3057
  %3059 = vmatmul.bf16.gmra.mxu0 %v308
  %v3060 = vpop.f32.mrf.mxu0
  %v3061 = vadd.f32 %v2897, %v3060
  %v3062 = vpop.f32.mrf.mxu0
  %v3063 = vadd.f32 %v2899, %v3062
  %3064 = vmatmul.bf16.gmra.mxu0 %v309
  %v3065 = vpop.f32.mrf.mxu0
  %v3066 = vadd.f32 %v2902, %v3065
  %v3067 = vpop.f32.mrf.mxu0
  %v3068 = vadd.f32 %v2904, %v3067
  %3069 = vmatmul.bf16.gmra.mxu0 %v310
  %v3070 = vpop.f32.mrf.mxu0
  %v3071 = vadd.f32 %v2907, %v3070
  %v3072 = vpop.f32.mrf.mxu0
  %v3073 = vadd.f32 %v2909, %v3072
  %3074 = vmatmul.bf16.gmra.mxu0 %v311
  %v3075 = vpop.f32.mrf.mxu0
  %v3076 = vadd.f32 %v2912, %v3075
  %v3077 = vpop.f32.mrf.mxu0
  %v3078 = vadd.f32 %v2914, %v3077
  %3079 = vmatmul.bf16.gmra.mxu0 %v312
  %v3080 = vpop.f32.mrf.mxu0
  %v3081 = vadd.f32 %v2917, %v3080
  %v3082 = vpop.f32.mrf.mxu0
  %v3083 = vadd.f32 %v2919, %v3082
  %3084 = vmatmul.bf16.gmra.mxu0 %v534
  %v3085 = vpop.f32.mrf.mxu0
  %v3086 = vadd.f32 %v2922, %v3085
  %v3087 = vpop.f32.mrf.mxu0
  %v3088 = vadd.f32 %v2924, %v3087
  %3089 = vdwg.mxu0
  %v3090 = vmax.f32 %v1460, 0.0
  %v3091 = vmax.f32 %v1952, 0.0
  %v3092 = vmax.f32 %v2444, 0.0
  %v3093 = vmax.f32 %v2936, 0.0
  %v3094 = vmax.f32 %v1462, 0.0
  %v3095 = vmax.f32 %v1954, 0.0
  %v3096 = vmax.f32 %v2446, 0.0
  %v3097 = vmax.f32 %v2938, 0.0
  %v3098 = vmax.f32 %v1465, 0.0
  %v3099 = vmax.f32 %v1957, 0.0
  %v3100 = vmax.f32 %v2449, 0.0
  %v3101 = vmax.f32 %v2941, 0.0
  %v3102 = vmax.f32 %v1467, 0.0
  %v3103 = vmax.f32 %v1959, 0.0
  %v3104 = vmax.f32 %v2451, 0.0
  %v3105 = vmax.f32 %v2943, 0.0
  %v3106 = vmax.f32 %v1470, 0.0
  %v3107 = vmax.f32 %v1962, 0.0
  %v3108 = vmax.f32 %v2454, 0.0
  %v3109 = vmax.f32 %v2946, 0.0
  %v3110 = vmax.f32 %v1472, 0.0
  %v3111 = vmax.f32 %v1964, 0.0
  %v3112 = vmax.f32 %v2456, 0.0
  %v3113 = vmax.f32 %v2948, 0.0
  %v3114 = vmax.f32 %v1475, 0.0
  %v3115 = vmax.f32 %v1967, 0.0
  %v3116 = vmax.f32 %v2459, 0.0
  %v3117 = vmax.f32 %v2951, 0.0
  %v3118 = vmax.f32 %v1477, 0.0
  %v3119 = vmax.f32 %v1969, 0.0
  %v3120 = vmax.f32 %v2461, 0.0
  %v3121 = vmax.f32 %v2953, 0.0
  %v3122 = vmax.f32 %v1480, 0.0
  %v3123 = vmax.f32 %v1972, 0.0
  %v3124 = vmax.f32 %v2464, 0.0
  %v3125 = vmax.f32 %v2956, 0.0
  %v3126 = vmax.f32 %v1482, 0.0
  %v3127 = vmax.f32 %v1974, 0.0
  %v3128 = vmax.f32 %v2466, 0.0
  %v3129 = vmax.f32 %v2958, 0.0
  %v3130 = vmax.f32 %v1485, 0.0
  %v3131 = vmax.f32 %v1977, 0.0
  %v3132 = vmax.f32 %v2469, 0.0
  %v3133 = vmax.f32 %v2961, 0.0
  %v3134 = vmax.f32 %v1487, 0.0
  %v3135 = vmax.f32 %v1979, 0.0
  %v3136 = vmax.f32 %v2471, 0.0
  %v3137 = vmax.f32 %v2963, 0.0
  %v3138 = vmax.f32 %v1490, 0.0
  %v3139 = vmax.f32 %v1982, 0.0
  %v3140 = vmax.f32 %v2474, 0.0
  %v3141 = vmax.f32 %v2966, 0.0
  %v3142 = vmax.f32 %v1492, 0.0
  %v3143 = vmax.f32 %v1984, 0.0
  %v3144 = vmax.f32 %v2476, 0.0
  %v3145 = vmax.f32 %v2968, 0.0
  %v3146 = vmax.f32 %v1495, 0.0
  %v3147 = vmax.f32 %v1987, 0.0
  %v3148 = vmax.f32 %v2479, 0.0
  %v3149 = vmax.f32 %v2971, 0.0
  %v3150 = vmax.f32 %v1497, 0.0
  %v3151 = vmax.f32 %v1989, 0.0
  %v3152 = vmax.f32 %v2481, 0.0
  %v3153 = vmax.f32 %v2973, 0.0
  %v3154 = vmax.f32 %v1500, 0.0
  %v3155 = vmax.f32 %v1992, 0.0
  %v3156 = vmax.f32 %v2484, 0.0
  %v3157 = vmax.f32 %v2976, 0.0
  %v3158 = vmax.f32 %v1502, 0.0
  %v3159 = vmax.f32 %v1994, 0.0
  %v3160 = vmax.f32 %v2486, 0.0
  %v3161 = vmax.f32 %v2978, 0.0
  %v3162 = vmax.f32 %v1505, 0.0
  %v3163 = vmax.f32 %v1997, 0.0
  %v3164 = vmax.f32 %v2489, 0.0
  %v3165 = vmax.f32 %v2981, 0.0
  %v3166 = vmax.f32 %v1507, 0.0
  %v3167 = vmax.f32 %v1999, 0.0
  %v3168 = vmax.f32 %v2491, 0.0
  %v3169 = vmax.f32 %v2983, 0.0
  %v3170 = vmax.f32 %v1510, 0.0
  %v3171 = vmax.f32 %v2002, 0.0
  %v3172 = vmax.f32 %v2494, 0.0
  %v3173 = vmax.f32 %v2986, 0.0
  %v3174 = vmax.f32 %v1512, 0.0
  %v3175 = vmax.f32 %v2004, 0.0
  %v3176 = vmax.f32 %v2496, 0.0
  %v3177 = vmax.f32 %v2988, 0.0
  %v3178 = vmax.f32 %v1515, 0.0
  %v3179 = vmax.f32 %v2007, 0.0
  %v3180 = vmax.f32 %v2499, 0.0
  %v3181 = vmax.f32 %v2991, 0.0
  %v3182 = vmax.f32 %v1517, 0.0
  %v3183 = vmax.f32 %v2009, 0.0
  %v3184 = vmax.f32 %v2501, 0.0
  %v3185 = vmax.f32 %v2993, 0.0
  %v3186 = vmax.f32 %v1520, 0.0
  %v3187 = vmax.f32 %v2012, 0.0
  %v3188 = vmax.f32 %v2504, 0.0
  %v3189 = vmax.f32 %v2996, 0.0
  %v3190 = vmax.f32 %v1522, 0.0
  %v3191 = vmax.f32 %v2014, 0.0
  %v3192 = vmax.f32 %v2506, 0.0
  %v3193 = vmax.f32 %v2998, 0.0
  %v3194 = vmax.f32 %v1525, 0.0
  %v3195 = vmax.f32 %v2017, 0.0
  %v3196 = vmax.f32 %v2509, 0.0
  %v3197 = vmax.f32 %v3001, 0.0
  %v3198 = vmax.f32 %v1527, 0.0
  %v3199 = vmax.f32 %v2019, 0.0
  %v3200 = vmax.f32 %v2511, 0.0
  %v3201 = vmax.f32 %v3003, 0.0
  %v3202 = vmax.f32 %v1530, 0.0
  %v3203 = vmax.f32 %v2022, 0.0
  %v3204 = vmax.f32 %v2514, 0.0
  %v3205 = vmax.f32 %v3006, 0.0
  %v3206 = vmax.f32 %v1532, 0.0
  %v3207 = vmax.f32 %v2024, 0.0
  %v3208 = vmax.f32 %v2516, 0.0
  %v3209 = vmax.f32 %v3008, 0.0
  %v3210 = vmax.f32 %v1535, 0.0
  %v3211 = vmax.f32 %v2027, 0.0
  %v3212 = vmax.f32 %v2519, 0.0
  %v3213 = vmax.f32 %v3011, 0.0
  %v3214 = vmax.f32 %v1537, 0.0
  %v3215 = vmax.f32 %v2029, 0.0
  %v3216 = vmax.f32 %v2521, 0.0
  %v3217 = vmax.f32 %v3013, 0.0
  %v3218 = vmax.f32 %v1540, 0.0
  %v3219 = vmax.f32 %v2032, 0.0
  %v3220 = vmax.f32 %v2524, 0.0
  %v3221 = vmax.f32 %v3016, 0.0
  %v3222 = vmax.f32 %v1542, 0.0
  %v3223 = vmax.f32 %v2034, 0.0
  %v3224 = vmax.f32 %v2526, 0.0
  %v3225 = vmax.f32 %v3018, 0.0
  %v3226 = vmax.f32 %v1545, 0.0
  %v3227 = vmax.f32 %v2037, 0.0
  %v3228 = vmax.f32 %v2529, 0.0
  %v3229 = vmax.f32 %v3021, 0.0
  %v3230 = vmax.f32 %v1547, 0.0
  %v3231 = vmax.f32 %v2039, 0.0
  %v3232 = vmax.f32 %v2531, 0.0
  %v3233 = vmax.f32 %v3023, 0.0
  %v3234 = vmax.f32 %v1550, 0.0
  %v3235 = vmax.f32 %v2042, 0.0
  %v3236 = vmax.f32 %v2534, 0.0
  %v3237 = vmax.f32 %v3026, 0.0
  %v3238 = vmax.f32 %v1552, 0.0
  %v3239 = vmax.f32 %v2044, 0.0
  %v3240 = vmax.f32 %v2536, 0.0
  %v3241 = vmax.f32 %v3028, 0.0
  %v3242 = vmax.f32 %v1555, 0.0
  %v3243 = vmax.f32 %v2047, 0.0
  %v3244 = vmax.f32 %v2539, 0.0
  %v3245 = vmax.f32 %v3031, 0.0
  %v3246 = vmax.f32 %v1557, 0.0
  %v3247 = vmax.f32 %v2049, 0.0
  %v3248 = vmax.f32 %v2541, 0.0
  %v3249 = vmax.f32 %v3033, 0.0
  %v3250 = vmax.f32 %v1560, 0.0
  %v3251 = vmax.f32 %v2052, 0.0
  %v3252 = vmax.f32 %v2544, 0.0
  %v3253 = vmax.f32 %v3036, 0.0
  %v3254 = vmax.f32 %v1562, 0.0
  %v3255 = vmax.f32 %v2054, 0.0
  %v3256 = vmax.f32 %v2546, 0.0
  %v3257 = vmax.f32 %v3038, 0.0
  %v3258 = vmax.f32 %v1565, 0.0
  %v3259 = vmax.f32 %v2057, 0.0
  %v3260 = vmax.f32 %v2549, 0.0
  %v3261 = vmax.f32 %v3041, 0.0
  %v3262 = vmax.f32 %v1567, 0.0
  %v3263 = vmax.f32 %v2059, 0.0
  %v3264 = vmax.f32 %v2551, 0.0
  %v3265 = vmax.f32 %v3043, 0.0
  %v3266 = vmax.f32 %v1570, 0.0
  %v3267 = vmax.f32 %v2062, 0.0
  %v3268 = vmax.f32 %v2554, 0.0
  %v3269 = vmax.f32 %v3046, 0.0
  %v3270 = vmax.f32 %v1572, 0.0
  %v3271 = vmax.f32 %v2064, 0.0
  %v3272 = vmax.f32 %v2556, 0.0
  %v3273 = vmax.f32 %v3048, 0.0
  %v3274 = vmax.f32 %v1575, 0.0
  %v3275 = vmax.f32 %v2067, 0.0
  %v3276 = vmax.f32 %v2559, 0.0
  %v3277 = vmax.f32 %v3051, 0.0
  %v3278 = vmax.f32 %v1577, 0.0
  %v3279 = vmax.f32 %v2069, 0.0
  %v3280 = vmax.f32 %v2561, 0.0
  %v3281 = vmax.f32 %v3053, 0.0
  %v3282 = vmax.f32 %v1580, 0.0
  %v3283 = vmax.f32 %v2072, 0.0
  %v3284 = vmax.f32 %v2564, 0.0
  %v3285 = vmax.f32 %v3056, 0.0
  %v3286 = vmax.f32 %v1582, 0.0
  %v3287 = vmax.f32 %v2074, 0.0
  %v3288 = vmax.f32 %v2566, 0.0
  %v3289 = vmax.f32 %v3058, 0.0
  %v3290 = vmax.f32 %v1585, 0.0
  %v3291 = vmax.f32 %v2077, 0.0
  %v3292 = vmax.f32 %v2569, 0.0
  %v3293 = vmax.f32 %v3061, 0.0
  %v3294 = vmax.f32 %v1587, 0.0
  %v3295 = vmax.f32 %v2079, 0.0
  %v3296 = vmax.f32 %v2571, 0.0
  %v3297 = vmax.f32 %v3063, 0.0
  %v3298 = vmax.f32 %v1590, 0.0
  %v3299 = vmax.f32 %v2082, 0.0
  %v3300 = vmax.f32 %v2574, 0.0
  %v3301 = vmax.f32 %v3066, 0.0
  %v3302 = vmax.f32 %v1592, 0.0
  %v3303 = vmax.f32 %v2084, 0.0
  %v3304 = vmax.f32 %v2576, 0.0
  %v3305 = vmax.f32 %v3068, 0.0
  %v3306 = vmax.f32 %v1595, 0.0
  %v3307 = vmax.f32 %v2087, 0.0
  %v3308 = vmax.f32 %v2579, 0.0
  %v3309 = vmax.f32 %v3071, 0.0
  %v3310 = vmax.f32 %v1597, 0.0
  %v3311 = vmax.f32 %v2089, 0.0
  %v3312 = vmax.f32 %v2581, 0.0
  %v3313 = vmax.f32 %v3073, 0.0
  %v3314 = vmax.f32 %v1600, 0.0
  %v3315 = vmax.f32 %v2092, 0.0
  %v3316 = vmax.f32 %v2584, 0.0
  %v3317 = vmax.f32 %v3076, 0.0
  %v3318 = vmax.f32 %v1602, 0.0
  %v3319 = vmax.f32 %v2094, 0.0
  %v3320 = vmax.f32 %v2586, 0.0
  %v3321 = vmax.f32 %v3078, 0.0
  %v3322 = vmax.f32 %v1605, 0.0
  %v3323 = vmax.f32 %v2097, 0.0
  %v3324 = vmax.f32 %v2589, 0.0
  %v3325 = vmax.f32 %v3081, 0.0
  %v3326 = vmax.f32 %v1607, 0.0
  %v3327 = vmax.f32 %v2099, 0.0
  %v3328 = vmax.f32 %v2591, 0.0
  %v3329 = vmax.f32 %v3083, 0.0
  %v3330 = vmax.f32 %v1610, 0.0
  %v3331 = vmax.f32 %v2102, 0.0
  %v3332 = vmax.f32 %v2594, 0.0
  %v3333 = vmax.f32 %v3086, 0.0
  %v3334 = vmax.f32 %v1612, 0.0
  %v3335 = vmax.f32 %v2104, 0.0
  %v3336 = vmax.f32 %v2596, 0.0
  %v3337 = vmax.f32 %v3088, 0.0
  %v3338 = vpack.c.bf16 %v3091, %v3090
  %v3339 = vpack.c.bf16 %v3093, %v3092
  %v3340 = vpack.c.bf16 %v3095, %v3094
  %v3341 = vpack.c.bf16 %v3097, %v3096
  %v3342 = vpack.c.bf16 %v3099, %v3098
  %v3343 = vpack.c.bf16 %v3101, %v3100
  %v3344 = vpack.c.bf16 %v3103, %v3102
  %v3345 = vpack.c.bf16 %v3105, %v3104
  %v3346 = vpack.c.bf16 %v3107, %v3106
  %v3347 = vpack.c.bf16 %v3109, %v3108
  %v3348 = vpack.c.bf16 %v3111, %v3110
  %v3349 = vpack.c.bf16 %v3113, %v3112
  %v3350 = vpack.c.bf16 %v3115, %v3114
  %v3351 = vpack.c.bf16 %v3117, %v3116
  %v3352 = vpack.c.bf16 %v3119, %v3118
  %v3353 = vpack.c.bf16 %v3121, %v3120
  %v3354 = vpack.c.bf16 %v3123, %v3122
  %v3355 = vpack.c.bf16 %v3125, %v3124
  %v3356 = vpack.c.bf16 %v3127, %v3126
  %v3357 = vpack.c.bf16 %v3129, %v3128
  %v3358 = vpack.c.bf16 %v3131, %v3130
  %v3359 = vpack.c.bf16 %v3133, %v3132
  %v3360 = vpack.c.bf16 %v3135, %v3134
  %v3361 = vpack.c.bf16 %v3137, %v3136
  %v3362 = vpack.c.bf16 %v3139, %v3138
  %v3363 = vpack.c.bf16 %v3141, %v3140
  %v3364 = vpack.c.bf16 %v3143, %v3142
  %v3365 = vpack.c.bf16 %v3145, %v3144
  %v3366 = vpack.c.bf16 %v3147, %v3146
  %v3367 = vpack.c.bf16 %v3149, %v3148
  %v3368 = vpack.c.bf16 %v3151, %v3150
  %v3369 = vpack.c.bf16 %v3153, %v3152
  %v3370 = vpack.c.bf16 %v3155, %v3154
  %v3371 = vpack.c.bf16 %v3157, %v3156
  %v3372 = vpack.c.bf16 %v3159, %v3158
  %v3373 = vpack.c.bf16 %v3161, %v3160
  %v3374 = vpack.c.bf16 %v3163, %v3162
  %v3375 = vpack.c.bf16 %v3165, %v3164
  %v3376 = vpack.c.bf16 %v3167, %v3166
  %v3377 = vpack.c.bf16 %v3169, %v3168
  %v3378 = vpack.c.bf16 %v3171, %v3170
  %v3379 = vpack.c.bf16 %v3173, %v3172
  %v3380 = vpack.c.bf16 %v3175, %v3174
  %v3381 = vpack.c.bf16 %v3177, %v3176
  %v3382 = vpack.c.bf16 %v3179, %v3178
  %v3383 = vpack.c.bf16 %v3181, %v3180
  %v3384 = vpack.c.bf16 %v3183, %v3182
  %v3385 = vpack.c.bf16 %v3185, %v3184
  %v3386 = vpack.c.bf16 %v3187, %v3186
  %v3387 = vpack.c.bf16 %v3189, %v3188
  %v3388 = vpack.c.bf16 %v3191, %v3190
  %v3389 = vpack.c.bf16 %v3193, %v3192
  %v3390 = vpack.c.bf16 %v3195, %v3194
  %v3391 = vpack.c.bf16 %v3197, %v3196
  %v3392 = vpack.c.bf16 %v3199, %v3198
  %v3393 = vpack.c.bf16 %v3201, %v3200
  %v3394 = vpack.c.bf16 %v3203, %v3202
  %v3395 = vpack.c.bf16 %v3205, %v3204
  %v3396 = vpack.c.bf16 %v3207, %v3206
  %v3397 = vpack.c.bf16 %v3209, %v3208
  %v3398 = vpack.c.bf16 %v3211, %v3210
  %v3399 = vpack.c.bf16 %v3213, %v3212
  %v3400 = vpack.c.bf16 %v3215, %v3214
  %v3401 = vpack.c.bf16 %v3217, %v3216
  %v3402 = vpack.c.bf16 %v3219, %v3218
  %v3403 = vpack.c.bf16 %v3221, %v3220
  %v3404 = vpack.c.bf16 %v3223, %v3222
  %v3405 = vpack.c.bf16 %v3225, %v3224
  %v3406 = vpack.c.bf16 %v3227, %v3226
  %v3407 = vpack.c.bf16 %v3229, %v3228
  %v3408 = vpack.c.bf16 %v3231, %v3230
  %v3409 = vpack.c.bf16 %v3233, %v3232
  %v3410 = vpack.c.bf16 %v3235, %v3234
  %v3411 = vpack.c.bf16 %v3237, %v3236
  %v3412 = vpack.c.bf16 %v3239, %v3238
  %v3413 = vpack.c.bf16 %v3241, %v3240
  %v3414 = vpack.c.bf16 %v3243, %v3242
  %v3415 = vpack.c.bf16 %v3245, %v3244
  %v3416 = vpack.c.bf16 %v3247, %v3246
  %v3417 = vpack.c.bf16 %v3249, %v3248
  %v3418 = vpack.c.bf16 %v3251, %v3250
  %v3419 = vpack.c.bf16 %v3253, %v3252
  %v3420 = vpack.c.bf16 %v3255, %v3254
  %v3421 = vpack.c.bf16 %v3257, %v3256
  %v3422 = vpack.c.bf16 %v3259, %v3258
  %v3423 = vpack.c.bf16 %v3261, %v3260
  %v3424 = vpack.c.bf16 %v3263, %v3262
  %v3425 = vpack.c.bf16 %v3265, %v3264
  %v3426 = vpack.c.bf16 %v3267, %v3266
  %v3427 = vpack.c.bf16 %v3269, %v3268
  %v3428 = vpack.c.bf16 %v3271, %v3270
  %v3429 = vpack.c.bf16 %v3273, %v3272
  %v3430 = vpack.c.bf16 %v3275, %v3274
  %v3431 = vpack.c.bf16 %v3277, %v3276
  %v3432 = vpack.c.bf16 %v3279, %v3278
  %v3433 = vpack.c.bf16 %v3281, %v3280
  %v3434 = vpack.c.bf16 %v3283, %v3282
  %v3435 = vpack.c.bf16 %v3285, %v3284
  %v3436 = vpack.c.bf16 %v3287, %v3286
  %v3437 = vpack.c.bf16 %v3289, %v3288
  %v3438 = vpack.c.bf16 %v3291, %v3290
  %v3439 = vpack.c.bf16 %v3293, %v3292
  %v3440 = vpack.c.bf16 %v3295, %v3294
  %v3441 = vpack.c.bf16 %v3297, %v3296
  %v3442 = vpack.c.bf16 %v3299, %v3298
  %v3443 = vpack.c.bf16 %v3301, %v3300
  %v3444 = vpack.c.bf16 %v3303, %v3302
  %v3445 = vpack.c.bf16 %v3305, %v3304
  %v3446 = vpack.c.bf16 %v3307, %v3306
  %v3447 = vpack.c.bf16 %v3309, %v3308
  %v3448 = vpack.c.bf16 %v3311, %v3310
  %v3449 = vpack.c.bf16 %v3313, %v3312
  %v3450 = vpack.c.bf16 %v3315, %v3314
  %v3451 = vpack.c.bf16 %v3317, %v3316
  %v3452 = vpack.c.bf16 %v3319, %v3318
  %v3453 = vpack.c.bf16 %v3321, %v3320
  %v3454 = vpack.c.bf16 %v3323, %v3322
  %v3455 = vpack.c.bf16 %v3325, %v3324
  %v3456 = vpack.c.bf16 %v3327, %v3326
  %v3457 = vpack.c.bf16 %v3329, %v3328
  %v3458 = vpack.c.bf16 %v3331, %v3330
  %v3459 = vpack.c.bf16 %v3333, %v3332
  %v3460 = vpack.c.bf16 %v3335, %v3334
  %v3461 = vpack.c.bf16 %v3337, %v3336
  %v3522 = vunpack.c.l.b16 %v3338
  %v3523 = vunpack.c.h.b16 %v3338
  %v3524 = vunpack.c.l.b16 %v3339
  %v3525 = vunpack.c.h.b16 %v3339
  %v3526 = vunpack.c.l.b16 %v3340
  %v3527 = vunpack.c.h.b16 %v3340
  %v3528 = vunpack.c.l.b16 %v3341
  %v3529 = vunpack.c.h.b16 %v3341
  %v3530 = vunpack.c.l.b16 %v3346
  %v3531 = vunpack.c.h.b16 %v3346
  %v3532 = vunpack.c.l.b16 %v3347
  %v3533 = vunpack.c.h.b16 %v3347
  %v3534 = vunpack.c.l.b16 %v3348
  %v3535 = vunpack.c.h.b16 %v3348
  %v3536 = vunpack.c.l.b16 %v3349
  %v3537 = vunpack.c.h.b16 %v3349
  %v3538 = vunpack.c.l.b16 %v3354
  %v3539 = vunpack.c.h.b16 %v3354
  %v3540 = vunpack.c.l.b16 %v3355
  %v3541 = vunpack.c.h.b16 %v3355
  %v3542 = vunpack.c.l.b16 %v3356
  %v3543 = vunpack.c.h.b16 %v3356
  %v3544 = vunpack.c.l.b16 %v3357
  %v3545 = vunpack.c.h.b16 %v3357
  %v3546 = vunpack.c.l.b16 %v3362
  %v3547 = vunpack.c.h.b16 %v3362
  %v3548 = vunpack.c.l.b16 %v3363
  %v3549 = vunpack.c.h.b16 %v3363
  %v3550 = vunpack.c.l.b16 %v3364
  %v3551 = vunpack.c.h.b16 %v3364
  %v3552 = vunpack.c.l.b16 %v3365
  %v3553 = vunpack.c.h.b16 %v3365
  %v3554 = vunpack.c.l.b16 %v3370
  %v3555 = vunpack.c.h.b16 %v3370
  %v3556 = vunpack.c.l.b16 %v3371
  %v3557 = vunpack.c.h.b16 %v3371
  %v3558 = vunpack.c.l.b16 %v3372
  %v3559 = vunpack.c.h.b16 %v3372
  %v3560 = vunpack.c.l.b16 %v3373
  %v3561 = vunpack.c.h.b16 %v3373
  %v3562 = vunpack.c.l.b16 %v3378
  %v3563 = vunpack.c.h.b16 %v3378
  %v3564 = vunpack.c.l.b16 %v3379
  %v3565 = vunpack.c.h.b16 %v3379
  %v3566 = vunpack.c.l.b16 %v3380
  %v3567 = vunpack.c.h.b16 %v3380
  %v3568 = vunpack.c.l.b16 %v3381
  %v3569 = vunpack.c.h.b16 %v3381
  %v3570 = vunpack.c.l.b16 %v3386
  %v3571 = vunpack.c.h.b16 %v3386
  %v3572 = vunpack.c.l.b16 %v3387
  %v3573 = vunpack.c.h.b16 %v3387
  %v3574 = vunpack.c.l.b16 %v3388
  %v3575 = vunpack.c.h.b16 %v3388
  %v3576 = vunpack.c.l.b16 %v3389
  %v3577 = vunpack.c.h.b16 %v3389
  %v3578 = vunpack.c.l.b16 %v3394
  %v3579 = vunpack.c.h.b16 %v3394
  %v3580 = vunpack.c.l.b16 %v3395
  %v3581 = vunpack.c.h.b16 %v3395
  %v3582 = vunpack.c.l.b16 %v3396
  %v3583 = vunpack.c.h.b16 %v3396
  %v3584 = vunpack.c.l.b16 %v3397
  %v3585 = vunpack.c.h.b16 %v3397
  %v3586 = vunpack.c.l.b16 %v3402
  %v3587 = vunpack.c.h.b16 %v3402
  %v3588 = vunpack.c.l.b16 %v3403
  %v3589 = vunpack.c.h.b16 %v3403
  %v3590 = vunpack.c.l.b16 %v3404
  %v3591 = vunpack.c.h.b16 %v3404
  %v3592 = vunpack.c.l.b16 %v3405
  %v3593 = vunpack.c.h.b16 %v3405
  %v3594 = vunpack.c.l.b16 %v3410
  %v3595 = vunpack.c.h.b16 %v3410
  %v3596 = vunpack.c.l.b16 %v3411
  %v3597 = vunpack.c.h.b16 %v3411
  %v3598 = vunpack.c.l.b16 %v3412
  %v3599 = vunpack.c.h.b16 %v3412
  %v3600 = vunpack.c.l.b16 %v3413
  %v3601 = vunpack.c.h.b16 %v3413
  %v3602 = vunpack.c.l.b16 %v3418
  %v3603 = vunpack.c.h.b16 %v3418
  %v3604 = vunpack.c.l.b16 %v3419
  %v3605 = vunpack.c.h.b16 %v3419
  %v3606 = vunpack.c.l.b16 %v3420
  %v3607 = vunpack.c.h.b16 %v3420
  %v3608 = vunpack.c.l.b16 %v3421
  %v3609 = vunpack.c.h.b16 %v3421
  %v3610 = vunpack.c.l.b16 %v3426
  %v3611 = vunpack.c.h.b16 %v3426
  %v3612 = vunpack.c.l.b16 %v3427
  %v3613 = vunpack.c.h.b16 %v3427
  %v3614 = vunpack.c.l.b16 %v3428
  %v3615 = vunpack.c.h.b16 %v3428
  %v3616 = vunpack.c.l.b16 %v3429
  %v3617 = vunpack.c.h.b16 %v3429
  %v3618 = vunpack.c.l.b16 %v3434
  %v3619 = vunpack.c.h.b16 %v3434
  %v3620 = vunpack.c.l.b16 %v3435
  %v3621 = vunpack.c.h.b16 %v3435
  %v3622 = vunpack.c.l.b16 %v3436
  %v3623 = vunpack.c.h.b16 %v3436
  %v3624 = vunpack.c.l.b16 %v3437
  %v3625 = vunpack.c.h.b16 %v3437
  %v3626 = vunpack.c.l.b16 %v3442
  %v3627 = vunpack.c.h.b16 %v3442
  %v3628 = vunpack.c.l.b16 %v3443
  %v3629 = vunpack.c.h.b16 %v3443
  %v3630 = vunpack.c.l.b16 %v3444
  %v3631 = vunpack.c.h.b16 %v3444
  %v3632 = vunpack.c.l.b16 %v3445
  %v3633 = vunpack.c.h.b16 %v3445
  %v3634 = vunpack.c.l.b16 %v3450
  %v3635 = vunpack.c.h.b16 %v3450
  %v3636 = vunpack.c.l.b16 %v3451
  %v3637 = vunpack.c.h.b16 %v3451
  %v3638 = vunpack.c.l.b16 %v3452
  %v3639 = vunpack.c.h.b16 %v3452
  %v3640 = vunpack.c.l.b16 %v3453
  %v3641 = vunpack.c.h.b16 %v3453
  %v3642 = vpack.c.b16 %v3526, %v3522
  %v3643 = vpack.c.b16 %v3527, %v3523
  %v3644 = vpack.c.b16 %v3528, %v3524
  %v3645 = vpack.c.b16 %v3529, %v3525
  %v3646 = vpack.c.b16 %v3534, %v3530
  %v3647 = vpack.c.b16 %v3535, %v3531
  %v3648 = vpack.c.b16 %v3536, %v3532
  %v3649 = vpack.c.b16 %v3537, %v3533
  %v3650 = vpack.c.b16 %v3542, %v3538
  %v3651 = vpack.c.b16 %v3543, %v3539
  %v3652 = vpack.c.b16 %v3544, %v3540
  %v3653 = vpack.c.b16 %v3545, %v3541
  %v3654 = vpack.c.b16 %v3550, %v3546
  %v3655 = vpack.c.b16 %v3551, %v3547
  %v3656 = vpack.c.b16 %v3552, %v3548
  %v3657 = vpack.c.b16 %v3553, %v3549
  %v3658 = vpack.c.b16 %v3558, %v3554
  %v3659 = vpack.c.b16 %v3559, %v3555
  %v3660 = vpack.c.b16 %v3560, %v3556
  %v3661 = vpack.c.b16 %v3561, %v3557
  %v3662 = vpack.c.b16 %v3566, %v3562
  %v3663 = vpack.c.b16 %v3567, %v3563
  %v3664 = vpack.c.b16 %v3568, %v3564
  %v3665 = vpack.c.b16 %v3569, %v3565
  %v3666 = vpack.c.b16 %v3574, %v3570
  %v3667 = vpack.c.b16 %v3575, %v3571
  %v3668 = vpack.c.b16 %v3576, %v3572
  %v3669 = vpack.c.b16 %v3577, %v3573
  %v3670 = vpack.c.b16 %v3582, %v3578
  %v3671 = vpack.c.b16 %v3583, %v3579
  %v3672 = vpack.c.b16 %v3584, %v3580
  %v3673 = vpack.c.b16 %v3585, %v3581
  %v3674 = vpack.c.b16 %v3590, %v3586
  %v3675 = vpack.c.b16 %v3591, %v3587
  %v3676 = vpack.c.b16 %v3592, %v3588
  %v3677 = vpack.c.b16 %v3593, %v3589
  %v3678 = vpack.c.b16 %v3598, %v3594
  %v3679 = vpack.c.b16 %v3599, %v3595
  %v3680 = vpack.c.b16 %v3600, %v3596
  %v3681 = vpack.c.b16 %v3601, %v3597
  %v3682 = vpack.c.b16 %v3606, %v3602
  %v3683 = vpack.c.b16 %v3607, %v3603
  %v3684 = vpack.c.b16 %v3608, %v3604
  %v3685 = vpack.c.b16 %v3609, %v3605
  %v3686 = vpack.c.b16 %v3614, %v3610
  %v3687 = vpack.c.b16 %v3615, %v3611
  %v3688 = vpack.c.b16 %v3616, %v3612
  %v3689 = vpack.c.b16 %v3617, %v3613
  %v3690 = vpack.c.b16 %v3622, %v3618
  %v3691 = vpack.c.b16 %v3623, %v3619
  %v3692 = vpack.c.b16 %v3624, %v3620
  %v3693 = vpack.c.b16 %v3625, %v3621
  %v3694 = vpack.c.b16 %v3630, %v3626
  %v3695 = vpack.c.b16 %v3631, %v3627
  %v3696 = vpack.c.b16 %v3632, %v3628
  %v3697 = vpack.c.b16 %v3633, %v3629
  %v3698 = vpack.c.b16 %v3638, %v3634
  %v3699 = vpack.c.b16 %v3639, %v3635
  %v3700 = vpack.c.b16 %v3640, %v3636
  %v3701 = vpack.c.b16 %v3641, %v3637
  %v3822 = vunpack.c.l.b16 %v3342
  %v3823 = vunpack.c.h.b16 %v3342
  %v3824 = vunpack.c.l.b16 %v3343
  %v3825 = vunpack.c.h.b16 %v3343
  %v3826 = vunpack.c.l.b16 %v3344
  %v3827 = vunpack.c.h.b16 %v3344
  %v3828 = vunpack.c.l.b16 %v3345
  %v3829 = vunpack.c.h.b16 %v3345
  %v3830 = vunpack.c.l.b16 %v3350
  %v3831 = vunpack.c.h.b16 %v3350
  %v3832 = vunpack.c.l.b16 %v3351
  %v3833 = vunpack.c.h.b16 %v3351
  %v3834 = vunpack.c.l.b16 %v3352
  %v3835 = vunpack.c.h.b16 %v3352
  %v3836 = vunpack.c.l.b16 %v3353
  %v3837 = vunpack.c.h.b16 %v3353
  %v3838 = vunpack.c.l.b16 %v3358
  %v3839 = vunpack.c.h.b16 %v3358
  %v3840 = vunpack.c.l.b16 %v3359
  %v3841 = vunpack.c.h.b16 %v3359
  %v3842 = vunpack.c.l.b16 %v3360
  %v3843 = vunpack.c.h.b16 %v3360
  %v3844 = vunpack.c.l.b16 %v3361
  %v3845 = vunpack.c.h.b16 %v3361
  %v3846 = vunpack.c.l.b16 %v3366
  %v3847 = vunpack.c.h.b16 %v3366
  %v3848 = vunpack.c.l.b16 %v3367
  %v3849 = vunpack.c.h.b16 %v3367
  %v3850 = vunpack.c.l.b16 %v3368
  %v3851 = vunpack.c.h.b16 %v3368
  %v3852 = vunpack.c.l.b16 %v3369
  %v3853 = vunpack.c.h.b16 %v3369
  %v3854 = vunpack.c.l.b16 %v3374
  %v3855 = vunpack.c.h.b16 %v3374
  %v3856 = vunpack.c.l.b16 %v3375
  %v3857 = vunpack.c.h.b16 %v3375
  %v3858 = vunpack.c.l.b16 %v3376
  %v3859 = vunpack.c.h.b16 %v3376
  %v3860 = vunpack.c.l.b16 %v3377
  %v3861 = vunpack.c.h.b16 %v3377
  %v3862 = vunpack.c.l.b16 %v3382
  %v3863 = vunpack.c.h.b16 %v3382
  %v3864 = vunpack.c.l.b16 %v3383
  %v3865 = vunpack.c.h.b16 %v3383
  %v3866 = vunpack.c.l.b16 %v3384
  %v3867 = vunpack.c.h.b16 %v3384
  %v3868 = vunpack.c.l.b16 %v3385
  %v3869 = vunpack.c.h.b16 %v3385
  %v3870 = vunpack.c.l.b16 %v3390
  %v3871 = vunpack.c.h.b16 %v3390
  %v3872 = vunpack.c.l.b16 %v3391
  %v3873 = vunpack.c.h.b16 %v3391
  %v3874 = vunpack.c.l.b16 %v3392
  %v3875 = vunpack.c.h.b16 %v3392
  %v3876 = vunpack.c.l.b16 %v3393
  %v3877 = vunpack.c.h.b16 %v3393
  %v3878 = vunpack.c.l.b16 %v3398
  %v3879 = vunpack.c.h.b16 %v3398
  %v3880 = vunpack.c.l.b16 %v3399
  %v3881 = vunpack.c.h.b16 %v3399
  %v3882 = vunpack.c.l.b16 %v3400
  %v3883 = vunpack.c.h.b16 %v3400
  %v3884 = vunpack.c.l.b16 %v3401
  %v3885 = vunpack.c.h.b16 %v3401
  %v3886 = vunpack.c.l.b16 %v3406
  %v3887 = vunpack.c.h.b16 %v3406
  %v3888 = vunpack.c.l.b16 %v3407
  %v3889 = vunpack.c.h.b16 %v3407
  %v3890 = vunpack.c.l.b16 %v3408
  %v3891 = vunpack.c.h.b16 %v3408
  %v3892 = vunpack.c.l.b16 %v3409
  %v3893 = vunpack.c.h.b16 %v3409
  %v3894 = vunpack.c.l.b16 %v3414
  %v3895 = vunpack.c.h.b16 %v3414
  %v3896 = vunpack.c.l.b16 %v3415
  %v3897 = vunpack.c.h.b16 %v3415
  %v3898 = vunpack.c.l.b16 %v3416
  %v3899 = vunpack.c.h.b16 %v3416
  %v3900 = vunpack.c.l.b16 %v3417
  %v3901 = vunpack.c.h.b16 %v3417
  %v3902 = vunpack.c.l.b16 %v3422
  %v3903 = vunpack.c.h.b16 %v3422
  %v3904 = vunpack.c.l.b16 %v3423
  %v3905 = vunpack.c.h.b16 %v3423
  %v3906 = vunpack.c.l.b16 %v3424
  %v3907 = vunpack.c.h.b16 %v3424
  %v3908 = vunpack.c.l.b16 %v3425
  %v3909 = vunpack.c.h.b16 %v3425
  %v3910 = vunpack.c.l.b16 %v3430
  %v3911 = vunpack.c.h.b16 %v3430
  %v3912 = vunpack.c.l.b16 %v3431
  %v3913 = vunpack.c.h.b16 %v3431
  %v3914 = vunpack.c.l.b16 %v3432
  %v3915 = vunpack.c.h.b16 %v3432
  %v3916 = vunpack.c.l.b16 %v3433
  %v3917 = vunpack.c.h.b16 %v3433
  %v3918 = vunpack.c.l.b16 %v3438
  %v3919 = vunpack.c.h.b16 %v3438
  %v3920 = vunpack.c.l.b16 %v3439
  %v3921 = vunpack.c.h.b16 %v3439
  %v3922 = vunpack.c.l.b16 %v3440
  %v3923 = vunpack.c.h.b16 %v3440
  %v3924 = vunpack.c.l.b16 %v3441
  %v3925 = vunpack.c.h.b16 %v3441
  %v3926 = vunpack.c.l.b16 %v3446
  %v3927 = vunpack.c.h.b16 %v3446
  %v3928 = vunpack.c.l.b16 %v3447
  %v3929 = vunpack.c.h.b16 %v3447
  %v3930 = vunpack.c.l.b16 %v3448
  %v3931 = vunpack.c.h.b16 %v3448
  %v3932 = vunpack.c.l.b16 %v3449
  %v3933 = vunpack.c.h.b16 %v3449
  %v3934 = vunpack.c.l.b16 %v3454
  %v3935 = vunpack.c.h.b16 %v3454
  %v3936 = vunpack.c.l.b16 %v3455
  %v3937 = vunpack.c.h.b16 %v3455
  %v3938 = vunpack.c.l.b16 %v3456
  %v3939 = vunpack.c.h.b16 %v3456
  %v3940 = vunpack.c.l.b16 %v3457
  %v3941 = vunpack.c.h.b16 %v3457
  %v3942 = vpack.c.b16 %v3826, %v3822
  %v3943 = vpack.c.b16 %v3827, %v3823
  %v3944 = vpack.c.b16 %v3828, %v3824
  %v3945 = vpack.c.b16 %v3829, %v3825
  %v3946 = vpack.c.b16 %v3834, %v3830
  %v3947 = vpack.c.b16 %v3835, %v3831
  %v3948 = vpack.c.b16 %v3836, %v3832
  %v3949 = vpack.c.b16 %v3837, %v3833
  %v3950 = vpack.c.b16 %v3842, %v3838
  %v3951 = vpack.c.b16 %v3843, %v3839
  %v3952 = vpack.c.b16 %v3844, %v3840
  %v3953 = vpack.c.b16 %v3845, %v3841
  %v3954 = vpack.c.b16 %v3850, %v3846
  %v3955 = vpack.c.b16 %v3851, %v3847
  %v3956 = vpack.c.b16 %v3852, %v3848
  %v3957 = vpack.c.b16 %v3853, %v3849
  %v3958 = vpack.c.b16 %v3858, %v3854
  %v3959 = vpack.c.b16 %v3859, %v3855
  %v3960 = vpack.c.b16 %v3860, %v3856
  %v3961 = vpack.c.b16 %v3861, %v3857
  %v3962 = vpack.c.b16 %v3866, %v3862
  %v3963 = vpack.c.b16 %v3867, %v3863
  %v3964 = vpack.c.b16 %v3868, %v3864
  %v3965 = vpack.c.b16 %v3869, %v3865
  %v3966 = vpack.c.b16 %v3874, %v3870
  %v3967 = vpack.c.b16 %v3875, %v3871
  %v3968 = vpack.c.b16 %v3876, %v3872
  %v3969 = vpack.c.b16 %v3877, %v3873
  %v3970 = vpack.c.b16 %v3882, %v3878
  %v3971 = vpack.c.b16 %v3883, %v3879
  %v3972 = vpack.c.b16 %v3884, %v3880
  %v3973 = vpack.c.b16 %v3885, %v3881
  %v3974 = vpack.c.b16 %v3890, %v3886
  %v3975 = vpack.c.b16 %v3891, %v3887
  %v3976 = vpack.c.b16 %v3892, %v3888
  %v3977 = vpack.c.b16 %v3893, %v3889
  %v3978 = vpack.c.b16 %v3898, %v3894
  %v3979 = vpack.c.b16 %v3899, %v3895
  %v3980 = vpack.c.b16 %v3900, %v3896
  %v3981 = vpack.c.b16 %v3901, %v3897
  %v3982 = vpack.c.b16 %v3906, %v3902
  %v3983 = vpack.c.b16 %v3907, %v3903
  %v3984 = vpack.c.b16 %v3908, %v3904
  %v3985 = vpack.c.b16 %v3909, %v3905
  %v3986 = vpack.c.b16 %v3914, %v3910
  %v3987 = vpack.c.b16 %v3915, %v3911
  %v3988 = vpack.c.b16 %v3916, %v3912
  %v3989 = vpack.c.b16 %v3917, %v3913
  %v3990 = vpack.c.b16 %v3922, %v3918
  %v3991 = vpack.c.b16 %v3923, %v3919
  %v3992 = vpack.c.b16 %v3924, %v3920
  %v3993 = vpack.c.b16 %v3925, %v3921
  %v3994 = vpack.c.b16 %v3930, %v3926
  %v3995 = vpack.c.b16 %v3931, %v3927
  %v3996 = vpack.c.b16 %v3932, %v3928
  %v3997 = vpack.c.b16 %v3933, %v3929
  %v3998 = vpack.c.b16 %v3938, %v3934
  %v3999 = vpack.c.b16 %v3939, %v3935
  %v4000 = vpack.c.b16 %v3940, %v3936
  %v4001 = vpack.c.b16 %v3941, %v3937
  %v4066 = vunpack.c.l.b16 %v3458
  %v4067 = vunpack.c.h.b16 %v3458
  %v4068 = vunpack.c.l.b16 %v3459
  %v4069 = vunpack.c.h.b16 %v3459
  %v4070 = vunpack.c.l.b16 %v3460
  %v4071 = vunpack.c.h.b16 %v3460
  %v4072 = vunpack.c.l.b16 %v3461
  %v4073 = vunpack.c.h.b16 %v3461
  %v4074 = vpack.c.b16 %v4070, %v4066
  %v4075 = vpack.c.b16 %v4071, %v4067
  %v4076 = vpack.c.b16 %v4072, %v4068
  %v4077 = vpack.c.b16 %v4073, %v4069
  %v4082 = vld [vmem:[%s3] sm:$0xff]
  %v4083 = vld [vmem:[%s3 + $0x8] sm:$0xff]
  %v4084 = vld [vmem:[%s3 + $0x10] sm:$0xff]
  %v4085 = vld [vmem:[%s3 + $0x18] sm:$0xff]
  %v4086 = vld [vmem:[%s3 + $0x20] sm:$0xff]
  %v4087 = vld [vmem:[%s3 + $0x28] sm:$0xff]
  %v4088 = vld [vmem:[%s3 + $0x30] sm:$0xff]
  %v4089 = vld [vmem:[%s3 + $0x38] sm:$0xff]
  %v4090 = vld [vmem:[%s3 + $0x40] sm:$0xff]
  %v4091 = vld [vmem:[%s3 + $0x48] sm:$0xff]
  %v4092 = vld [vmem:[%s3 + $0x50] sm:$0xff]
  %v4093 = vld [vmem:[%s3 + $0x58] sm:$0xff]
  %v4094 = vld [vmem:[%s3 + $0x60] sm:$0xff]
  %v4095 = vld [vmem:[%s3 + $0x68] sm:$0xff]
  %v4096 = vld [vmem:[%s3 + $0x70] sm:$0xff]
  %v4097 = vld [vmem:[%s3 + $0x78] sm:$0xff]
  %v4098 = vld [vmem:[%s3 + $0x80] sm:$0xff]
  %v4099 = vld [vmem:[%s3 + $0x88] sm:$0xff]
  %v4100 = vld [vmem:[%s3 + $0x90] sm:$0xff]
  %v4101 = vld [vmem:[%s3 + $0x98] sm:$0xff]
  %v4102 = vld [vmem:[%s3 + $0xa0] sm:$0xff]
  %v4103 = vld [vmem:[%s3 + $0xa8] sm:$0xff]
  %v4104 = vld [vmem:[%s3 + $0xb0] sm:$0xff]
  %v4105 = vld [vmem:[%s3 + $0xb8] sm:$0xff]
  %v4106 = vld [vmem:[%s3 + $0xc0] sm:$0xff]
  %v4107 = vld [vmem:[%s3 + $0xc8] sm:$0xff]
  %v4108 = vld [vmem:[%s3 + $0xd0] sm:$0xff]
  %v4109 = vld [vmem:[%s3 + $0xd8] sm:$0xff]
  %v4110 = vld [vmem:[%s3 + $0xe0] sm:$0xff]
  %v4111 = vld [vmem:[%s3 + $0xe8] sm:$0xff]
  %v4112 = vld [vmem:[%s3 + $0xf0] sm:$0xff]
  %v4113 = vld [vmem:[%s3 + $0xf8] sm:$0xff]
  %v4114 = vld [vmem:[%s3 + $0x100] sm:$0xff]
  %v4115 = vld [vmem:[%s3 + $0x108] sm:$0xff]
  %v4116 = vld [vmem:[%s3 + $0x110] sm:$0xff]
  %v4117 = vld [vmem:[%s3 + $0x118] sm:$0xff]
  %v4118 = vld [vmem:[%s3 + $0x120] sm:$0xff]
  %v4119 = vld [vmem:[%s3 + $0x128] sm:$0xff]
  %v4120 = vld [vmem:[%s3 + $0x130] sm:$0xff]
  %v4121 = vld [vmem:[%s3 + $0x138] sm:$0xff]
  %v4122 = vld [vmem:[%s3 + $0x140] sm:$0xff]
  %v4123 = vld [vmem:[%s3 + $0x148] sm:$0xff]
  %v4124 = vld [vmem:[%s3 + $0x150] sm:$0xff]
  %v4125 = vld [vmem:[%s3 + $0x158] sm:$0xff]
  %v4126 = vld [vmem:[%s3 + $0x160] sm:$0xff]
  %v4127 = vld [vmem:[%s3 + $0x168] sm:$0xff]
  %v4128 = vld [vmem:[%s3 + $0x170] sm:$0xff]
  %v4129 = vld [vmem:[%s3 + $0x178] sm:$0xff]
  %v4130 = vld [vmem:[%s3 + $0x180] sm:$0xff]
  %v4131 = vld [vmem:[%s3 + $0x188] sm:$0xff]
  %v4132 = vld [vmem:[%s3 + $0x190] sm:$0xff]
  %v4133 = vld [vmem:[%s3 + $0x198] sm:$0xff]
  %v4134 = vld [vmem:[%s3 + $0x1a0] sm:$0xff]
  %v4135 = vld [vmem:[%s3 + $0x1a8] sm:$0xff]
  %v4136 = vld [vmem:[%s3 + $0x1b0] sm:$0xff]
  %v4137 = vld [vmem:[%s3 + $0x1b8] sm:$0xff]
  %v4138 = vld [vmem:[%s3 + $0x1c0] sm:$0xff]
  %v4139 = vld [vmem:[%s3 + $0x1c8] sm:$0xff]
  %v4140 = vld [vmem:[%s3 + $0x1d0] sm:$0xff]
  %v4141 = vld [vmem:[%s3 + $0x1d8] sm:$0xff]
  %v4142 = vld [vmem:[%s3 + $0x1e0] sm:$0xff]
  %v4143 = vld [vmem:[%s3 + $0x1e8] sm:$0xff]
  %v4144 = vld [vmem:[%s3 + $0x1f0] sm:$0xff]
  %v4145 = vld [vmem:[%s3 + $0x1f8] sm:$0xff]
  %v4146 = vld [vmem:[%s3 + $0x200] sm:$0xff]
  %v4147 = vld [vmem:[%s3 + $0x208] sm:$0xff]
  %v4148 = vld [vmem:[%s3 + $0x210] sm:$0xff]
  %v4149 = vld [vmem:[%s3 + $0x218] sm:$0xff]
  %v4150 = vld [vmem:[%s3 + $0x220] sm:$0xff]
  %v4151 = vld [vmem:[%s3 + $0x228] sm:$0xff]
  %v4152 = vld [vmem:[%s3 + $0x230] sm:$0xff]
  %v4153 = vld [vmem:[%s3 + $0x238] sm:$0xff]
  %v4154 = vld [vmem:[%s3 + $0x240] sm:$0xff]
  %v4155 = vld [vmem:[%s3 + $0x248] sm:$0xff]
  %v4156 = vld [vmem:[%s3 + $0x250] sm:$0xff]
  %v4157 = vld [vmem:[%s3 + $0x258] sm:$0xff]
  %v4158 = vld [vmem:[%s3 + $0x260] sm:$0xff]
  %v4159 = vld [vmem:[%s3 + $0x268] sm:$0xff]
  %v4160 = vld [vmem:[%s3 + $0x270] sm:$0xff]
  %v4161 = vld [vmem:[%s3 + $0x278] sm:$0xff]
  %v4162 = vld [vmem:[%s3 + $0x280] sm:$0xff]
  %v4163 = vld [vmem:[%s3 + $0x288] sm:$0xff]
  %v4164 = vld [vmem:[%s3 + $0x290] sm:$0xff]
  %v4165 = vld [vmem:[%s3 + $0x298] sm:$0xff]
  %v4166 = vld [vmem:[%s3 + $0x2a0] sm:$0xff]
  %v4167 = vld [vmem:[%s3 + $0x2a8] sm:$0xff]
  %v4168 = vld [vmem:[%s3 + $0x2b0] sm:$0xff]
  %v4169 = vld [vmem:[%s3 + $0x2b8] sm:$0xff]
  %v4170 = vld [vmem:[%s3 + $0x2c0] sm:$0xff]
  %v4171 = vld [vmem:[%s3 + $0x2c8] sm:$0xff]
  %v4172 = vld [vmem:[%s3 + $0x2d0] sm:$0xff]
  %v4173 = vld [vmem:[%s3 + $0x2d8] sm:$0xff]
  %v4174 = vld [vmem:[%s3 + $0x2e0] sm:$0xff]
  %v4175 = vld [vmem:[%s3 + $0x2e8] sm:$0xff]
  %v4176 = vld [vmem:[%s3 + $0x2f0] sm:$0xff]
  %v4177 = vld [vmem:[%s3 + $0x2f8] sm:$0xff]
  %v4178 = vld [vmem:[%s3 + $0x300] sm:$0xff]
  %v4179 = vld [vmem:[%s3 + $0x308] sm:$0xff]
  %v4180 = vld [vmem:[%s3 + $0x310] sm:$0xff]
  %v4181 = vld [vmem:[%s3 + $0x318] sm:$0xff]
  %v4182 = vld [vmem:[%s3 + $0x320] sm:$0xff]
  %v4183 = vld [vmem:[%s3 + $0x328] sm:$0xff]
  %v4184 = vld [vmem:[%s3 + $0x330] sm:$0xff]
  %v4185 = vld [vmem:[%s3 + $0x338] sm:$0xff]
  %v4186 = vld [vmem:[%s3 + $0x340] sm:$0xff]
  %v4187 = vld [vmem:[%s3 + $0x348] sm:$0xff]
  %v4188 = vld [vmem:[%s3 + $0x350] sm:$0xff]
  %v4189 = vld [vmem:[%s3 + $0x358] sm:$0xff]
  %v4190 = vld [vmem:[%s3 + $0x360] sm:$0xff]
  %v4191 = vld [vmem:[%s3 + $0x368] sm:$0xff]
  %v4192 = vld [vmem:[%s3 + $0x370] sm:$0xff]
  %v4193 = vld [vmem:[%s3 + $0x378] sm:$0xff]
  %v4194 = vld [vmem:[%s3 + $0x380] sm:$0xff]
  %v4195 = vld [vmem:[%s3 + $0x388] sm:$0xff]
  %v4196 = vld [vmem:[%s3 + $0x390] sm:$0xff]
  %v4197 = vld [vmem:[%s3 + $0x398] sm:$0xff]
  %v4198 = vld [vmem:[%s3 + $0x3a0] sm:$0xff]
  %v4199 = vld [vmem:[%s3 + $0x3a8] sm:$0xff]
  %v4200 = vld [vmem:[%s3 + $0x3b0] sm:$0xff]
  %v4201 = vld [vmem:[%s3 + $0x3b8] sm:$0xff]
  %v4202 = vld [vmem:[%s3 + $0x3c0] sm:$0xff]
  %v4203 = vld [vmem:[%s3 + $0x3c8] sm:$0xff]
  %v4204 = vld [vmem:[%s3 + $0x3d0] sm:$0xff]
  %v4205 = vld [vmem:[%s3 + $0x3d8] sm:$0xff]
  %v4206 = vld [vmem:[%s3 + $0x3e0] sm:$0xff]
  %v4207 = vld [vmem:[%s3 + $0x3e8] sm:$0xff]
  %v4208 = vld [vmem:[%s3 + $0x3f0] sm:$0xff]
  %v4209 = vld [vmem:[%s3 + $0x3f8] sm:$0xff]
  %v4210 = vld [vmem:[%s3 + $0x400] sm:$0xff]
  %v4211 = vld [vmem:[%s3 + $0x408] sm:$0xff]
  %v4212 = vld [vmem:[%s3 + $0x410] sm:$0xff]
  %v4213 = vld [vmem:[%s3 + $0x418] sm:$0xff]
  %v4214 = vld [vmem:[%s3 + $0x420] sm:$0xff]
  %v4215 = vld [vmem:[%s3 + $0x428] sm:$0xff]
  %v4216 = vld [vmem:[%s3 + $0x430] sm:$0xff]
  %v4217 = vld [vmem:[%s3 + $0x438] sm:$0xff]
  %v4218 = vld [vmem:[%s3 + $0x440] sm:$0xff]
  %v4219 = vld [vmem:[%s3 + $0x448] sm:$0xff]
  %v4220 = vld [vmem:[%s3 + $0x450] sm:$0xff]
  %v4221 = vld [vmem:[%s3 + $0x458] sm:$0xff]
  %v4222 = vld [vmem:[%s3 + $0x460] sm:$0xff]
  %v4223 = vld [vmem:[%s3 + $0x468] sm:$0xff]
  %v4224 = vld [vmem:[%s3 + $0x470] sm:$0xff]
  %v4225 = vld [vmem:[%s3 + $0x478] sm:$0xff]
  %v4226 = vld [vmem:[%s3 + $0x480] sm:$0xff]
  %v4227 = vld [vmem:[%s3 + $0x488] sm:$0xff]
  %v4228 = vld [vmem:[%s3 + $0x490] sm:$0xff]
  %v4229 = vld [vmem:[%s3 + $0x498] sm:$0xff]
  %v4230 = vld [vmem:[%s3 + $0x4a0] sm:$0xff]
  %v4231 = vld [vmem:[%s3 + $0x4a8] sm:$0xff]
  %v4232 = vld [vmem:[%s3 + $0x4b0] sm:$0xff]
  %v4233 = vld [vmem:[%s3 + $0x4b8] sm:$0xff]
  %v4234 = vld [vmem:[%s3 + $0x4c0] sm:$0xff]
  %v4235 = vld [vmem:[%s3 + $0x4c8] sm:$0xff]
  %v4236 = vld [vmem:[%s3 + $0x4d0] sm:$0xff]
  %v4237 = vld [vmem:[%s3 + $0x4d8] sm:$0xff]
  %v4238 = vld [vmem:[%s3 + $0x4e0] sm:$0xff]
  %v4239 = vld [vmem:[%s3 + $0x4e8] sm:$0xff]
  %v4240 = vld [vmem:[%s3 + $0x4f0] sm:$0xff]
  %v4241 = vld [vmem:[%s3 + $0x4f8] sm:$0xff]
  %v4242 = vld [vmem:[%s3 + $0x500] sm:$0xff]
  %v4243 = vld [vmem:[%s3 + $0x508] sm:$0xff]
  %v4244 = vld [vmem:[%s3 + $0x510] sm:$0xff]
  %v4245 = vld [vmem:[%s3 + $0x518] sm:$0xff]
  %v4246 = vld [vmem:[%s3 + $0x520] sm:$0xff]
  %v4247 = vld [vmem:[%s3 + $0x528] sm:$0xff]
  %v4248 = vld [vmem:[%s3 + $0x530] sm:$0xff]
  %v4249 = vld [vmem:[%s3 + $0x538] sm:$0xff]
  %v4250 = vld [vmem:[%s3 + $0x540] sm:$0xff]
  %v4251 = vld [vmem:[%s3 + $0x548] sm:$0xff]
  %v4252 = vld [vmem:[%s3 + $0x550] sm:$0xff]
  %v4253 = vld [vmem:[%s3 + $0x558] sm:$0xff]
  %v4254 = vld [vmem:[%s3 + $0x560] sm:$0xff]
  %v4255 = vld [vmem:[%s3 + $0x568] sm:$0xff]
  %v4256 = vld [vmem:[%s3 + $0x570] sm:$0xff]
  %v4257 = vld [vmem:[%s3 + $0x578] sm:$0xff]
  %v4258 = vld [vmem:[%s3 + $0x580] sm:$0xff]
  %v4259 = vld [vmem:[%s3 + $0x588] sm:$0xff]
  %v4260 = vld [vmem:[%s3 + $0x590] sm:$0xff]
  %v4261 = vld [vmem:[%s3 + $0x598] sm:$0xff]
  %v4262 = vld [vmem:[%s3 + $0x5a0] sm:$0xff]
  %v4263 = vld [vmem:[%s3 + $0x5a8] sm:$0xff]
  %v4264 = vld [vmem:[%s3 + $0x5b0] sm:$0xff]
  %v4265 = vld [vmem:[%s3 + $0x5b8] sm:$0xff]
  %v4266 = vld [vmem:[%s3 + $0x5c0] sm:$0xff]
  %v4267 = vld [vmem:[%s3 + $0x5c8] sm:$0xff]
  %v4268 = vld [vmem:[%s3 + $0x5d0] sm:$0xff]
  %v4269 = vld [vmem:[%s3 + $0x5d8] sm:$0xff]
  %v4270 = vld [vmem:[%s3 + $0x5e0] sm:$0xff]
  %v4271 = vld [vmem:[%s3 + $0x5e8] sm:$0xff]
  %v4272 = vld [vmem:[%s3 + $0x5f0] sm:$0xff]
  %v4273 = vld [vmem:[%s3 + $0x5f8] sm:$0xff]
  %v4274 = vld [vmem:[%s4] sm:$0x3]
  %v4276 = vperm.slane %v4274, 0
  %v4277 = vperm.slane %v4274, 1
  %v4472 = vunpack.c.l.b16 %v4082
  %v4473 = vunpack.c.h.b16 %v4082
  %v4474 = vunpack.c.l.b16 %v4083
  %v4475 = vunpack.c.h.b16 %v4083
  %v4476 = vunpack.c.l.b16 %v4084
  %v4477 = vunpack.c.h.b16 %v4084
  %v4478 = vunpack.c.l.b16 %v4085
  %v4479 = vunpack.c.h.b16 %v4085
  %v4480 = vunpack.c.l.b16 %v4086
  %v4481 = vunpack.c.h.b16 %v4086
  %v4482 = vunpack.c.l.b16 %v4087
  %v4483 = vunpack.c.h.b16 %v4087
  %v4484 = vunpack.c.l.b16 %v4088
  %v4485 = vunpack.c.h.b16 %v4088
  %v4486 = vunpack.c.l.b16 %v4089
  %v4487 = vunpack.c.h.b16 %v4089
  %v4488 = vunpack.c.l.b16 %v4090
  %v4489 = vunpack.c.h.b16 %v4090
  %v4490 = vunpack.c.l.b16 %v4091
  %v4491 = vunpack.c.h.b16 %v4091
  %v4492 = vunpack.c.l.b16 %v4092
  %v4493 = vunpack.c.h.b16 %v4092
  %v4494 = vunpack.c.l.b16 %v4093
  %v4495 = vunpack.c.h.b16 %v4093
  %v4496 = vunpack.c.l.b16 %v4094
  %v4497 = vunpack.c.h.b16 %v4094
  %v4498 = vunpack.c.l.b16 %v4095
  %v4499 = vunpack.c.h.b16 %v4095
  %v4500 = vunpack.c.l.b16 %v4096
  %v4501 = vunpack.c.h.b16 %v4096
  %v4502 = vunpack.c.l.b16 %v4097
  %v4503 = vunpack.c.h.b16 %v4097
  %v4504 = vunpack.c.l.b16 %v4098
  %v4505 = vunpack.c.h.b16 %v4098
  %v4506 = vunpack.c.l.b16 %v4099
  %v4507 = vunpack.c.h.b16 %v4099
  %v4508 = vunpack.c.l.b16 %v4100
  %v4509 = vunpack.c.h.b16 %v4100
  %v4510 = vunpack.c.l.b16 %v4101
  %v4511 = vunpack.c.h.b16 %v4101
  %v4512 = vunpack.c.l.b16 %v4102
  %v4513 = vunpack.c.h.b16 %v4102
  %v4514 = vunpack.c.l.b16 %v4103
  %v4515 = vunpack.c.h.b16 %v4103
  %v4516 = vunpack.c.l.b16 %v4104
  %v4517 = vunpack.c.h.b16 %v4104
  %v4518 = vunpack.c.l.b16 %v4105
  %v4519 = vunpack.c.h.b16 %v4105
  %v4520 = vunpack.c.l.b16 %v4106
  %v4521 = vunpack.c.h.b16 %v4106
  %v4522 = vunpack.c.l.b16 %v4107
  %v4523 = vunpack.c.h.b16 %v4107
  %v4524 = vunpack.c.l.b16 %v4108
  %v4525 = vunpack.c.h.b16 %v4108
  %v4526 = vunpack.c.l.b16 %v4109
  %v4527 = vunpack.c.h.b16 %v4109
  %v4528 = vunpack.c.l.b16 %v4110
  %v4529 = vunpack.c.h.b16 %v4110
  %v4530 = vunpack.c.l.b16 %v4111
  %v4531 = vunpack.c.h.b16 %v4111
  %v4532 = vunpack.c.l.b16 %v4112
  %v4533 = vunpack.c.h.b16 %v4112
  %v4534 = vunpack.c.l.b16 %v4113
  %v4535 = vunpack.c.h.b16 %v4113
  %v4536 = vunpack.c.l.b16 %v4114
  %v4537 = vunpack.c.h.b16 %v4114
  %v4538 = vunpack.c.l.b16 %v4115
  %v4539 = vunpack.c.h.b16 %v4115
  %v4540 = vunpack.c.l.b16 %v4116
  %v4541 = vunpack.c.h.b16 %v4116
  %v4542 = vunpack.c.l.b16 %v4117
  %v4543 = vunpack.c.h.b16 %v4117
  %v4544 = vunpack.c.l.b16 %v4118
  %v4545 = vunpack.c.h.b16 %v4118
  %v4546 = vunpack.c.l.b16 %v4119
  %v4547 = vunpack.c.h.b16 %v4119
  %v4548 = vunpack.c.l.b16 %v4120
  %v4549 = vunpack.c.h.b16 %v4120
  %v4550 = vunpack.c.l.b16 %v4121
  %v4551 = vunpack.c.h.b16 %v4121
  %v4552 = vunpack.c.l.b16 %v4122
  %v4553 = vunpack.c.h.b16 %v4122
  %v4554 = vunpack.c.l.b16 %v4123
  %v4555 = vunpack.c.h.b16 %v4123
  %v4556 = vunpack.c.l.b16 %v4124
  %v4557 = vunpack.c.h.b16 %v4124
  %v4558 = vunpack.c.l.b16 %v4125
  %v4559 = vunpack.c.h.b16 %v4125
  %v4560 = vunpack.c.l.b16 %v4126
  %v4561 = vunpack.c.h.b16 %v4126
  %v4562 = vunpack.c.l.b16 %v4127
  %v4563 = vunpack.c.h.b16 %v4127
  %v4564 = vunpack.c.l.b16 %v4128
  %v4565 = vunpack.c.h.b16 %v4128
  %v4566 = vunpack.c.l.b16 %v4129
  %v4567 = vunpack.c.h.b16 %v4129
  %v4568 = vunpack.c.l.b16 %v4130
  %v4569 = vunpack.c.h.b16 %v4130
  %v4570 = vunpack.c.l.b16 %v4131
  %v4571 = vunpack.c.h.b16 %v4131
  %v4572 = vunpack.c.l.b16 %v4132
  %v4573 = vunpack.c.h.b16 %v4132
  %v4574 = vunpack.c.l.b16 %v4133
  %v4575 = vunpack.c.h.b16 %v4133
  %v4576 = vunpack.c.l.b16 %v4134
  %v4577 = vunpack.c.h.b16 %v4134
  %v4578 = vunpack.c.l.b16 %v4135
  %v4579 = vunpack.c.h.b16 %v4135
  %v4580 = vunpack.c.l.b16 %v4136
  %v4581 = vunpack.c.h.b16 %v4136
  %v4582 = vunpack.c.l.b16 %v4137
  %v4583 = vunpack.c.h.b16 %v4137
  %v4584 = vunpack.c.l.b16 %v4138
  %v4585 = vunpack.c.h.b16 %v4138
  %v4586 = vunpack.c.l.b16 %v4139
  %v4587 = vunpack.c.h.b16 %v4139
  %v4588 = vunpack.c.l.b16 %v4140
  %v4589 = vunpack.c.h.b16 %v4140
  %v4590 = vunpack.c.l.b16 %v4141
  %v4591 = vunpack.c.h.b16 %v4141
  %v4592 = vunpack.c.l.b16 %v4142
  %v4593 = vunpack.c.h.b16 %v4142
  %v4594 = vunpack.c.l.b16 %v4143
  %v4595 = vunpack.c.h.b16 %v4143
  %v4596 = vunpack.c.l.b16 %v4144
  %v4597 = vunpack.c.h.b16 %v4144
  %v4598 = vunpack.c.l.b16 %v4145
  %v4599 = vunpack.c.h.b16 %v4145
  %v4600 = vunpack.c.l.b16 %v4146
  %v4601 = vunpack.c.h.b16 %v4146
  %v4602 = vunpack.c.l.b16 %v4147
  %v4603 = vunpack.c.h.b16 %v4147
  %v4604 = vunpack.c.l.b16 %v4148
  %v4605 = vunpack.c.h.b16 %v4148
  %v4606 = vunpack.c.l.b16 %v4149
  %v4607 = vunpack.c.h.b16 %v4149
  %v4608 = vunpack.c.l.b16 %v4150
  %v4609 = vunpack.c.h.b16 %v4150
  %v4610 = vunpack.c.l.b16 %v4151
  %v4611 = vunpack.c.h.b16 %v4151
  %v4612 = vunpack.c.l.b16 %v4152
  %v4613 = vunpack.c.h.b16 %v4152
  %v4614 = vunpack.c.l.b16 %v4153
  %v4615 = vunpack.c.h.b16 %v4153
  %v4616 = vunpack.c.l.b16 %v4154
  %v4617 = vunpack.c.h.b16 %v4154
  %v4618 = vunpack.c.l.b16 %v4155
  %v4619 = vunpack.c.h.b16 %v4155
  %v4620 = vunpack.c.l.b16 %v4156
  %v4621 = vunpack.c.h.b16 %v4156
  %v4622 = vunpack.c.l.b16 %v4157
  %v4623 = vunpack.c.h.b16 %v4157
  %v4624 = vunpack.c.l.b16 %v4158
  %v4625 = vunpack.c.h.b16 %v4158
  %v4626 = vunpack.c.l.b16 %v4159
  %v4627 = vunpack.c.h.b16 %v4159
  %v4628 = vunpack.c.l.b16 %v4160
  %v4629 = vunpack.c.h.b16 %v4160
  %v4630 = vunpack.c.l.b16 %v4161
  %v4631 = vunpack.c.h.b16 %v4161
  %v4632 = vunpack.c.l.b16 %v4162
  %v4633 = vunpack.c.h.b16 %v4162
  %v4634 = vunpack.c.l.b16 %v4163
  %v4635 = vunpack.c.h.b16 %v4163
  %v4636 = vunpack.c.l.b16 %v4164
  %v4637 = vunpack.c.h.b16 %v4164
  %v4638 = vunpack.c.l.b16 %v4165
  %v4639 = vunpack.c.h.b16 %v4165
  %v4640 = vunpack.c.l.b16 %v4166
  %v4641 = vunpack.c.h.b16 %v4166
  %v4642 = vunpack.c.l.b16 %v4167
  %v4643 = vunpack.c.h.b16 %v4167
  %v4644 = vunpack.c.l.b16 %v4168
  %v4645 = vunpack.c.h.b16 %v4168
  %v4646 = vunpack.c.l.b16 %v4169
  %v4647 = vunpack.c.h.b16 %v4169
  %v4648 = vunpack.c.l.b16 %v4170
  %v4649 = vunpack.c.h.b16 %v4170
  %v4650 = vunpack.c.l.b16 %v4171
  %v4651 = vunpack.c.h.b16 %v4171
  %v4652 = vunpack.c.l.b16 %v4172
  %v4653 = vunpack.c.h.b16 %v4172
  %v4654 = vunpack.c.l.b16 %v4173
  %v4655 = vunpack.c.h.b16 %v4173
  %v4656 = vunpack.c.l.b16 %v4174
  %v4657 = vunpack.c.h.b16 %v4174
  %v4658 = vunpack.c.l.b16 %v4175
  %v4659 = vunpack.c.h.b16 %v4175
  %v4660 = vunpack.c.l.b16 %v4176
  %v4661 = vunpack.c.h.b16 %v4176
  %v4662 = vunpack.c.l.b16 %v4177
  %v4663 = vunpack.c.h.b16 %v4177
  %v4664 = vunpack.c.l.b16 %v4178
  %v4665 = vunpack.c.h.b16 %v4178
  %v4666 = vunpack.c.l.b16 %v4179
  %v4667 = vunpack.c.h.b16 %v4179
  %v4668 = vunpack.c.l.b16 %v4180
  %v4669 = vunpack.c.h.b16 %v4180
  %v4670 = vunpack.c.l.b16 %v4181
  %v4671 = vunpack.c.h.b16 %v4181
  %v4672 = vunpack.c.l.b16 %v4182
  %v4673 = vunpack.c.h.b16 %v4182
  %v4674 = vunpack.c.l.b16 %v4183
  %v4675 = vunpack.c.h.b16 %v4183
  %v4676 = vunpack.c.l.b16 %v4184
  %v4677 = vunpack.c.h.b16 %v4184
  %v4678 = vunpack.c.l.b16 %v4185
  %v4679 = vunpack.c.h.b16 %v4185
  %v4680 = vunpack.c.l.b16 %v4186
  %v4681 = vunpack.c.h.b16 %v4186
  %v4682 = vunpack.c.l.b16 %v4187
  %v4683 = vunpack.c.h.b16 %v4187
  %v4684 = vunpack.c.l.b16 %v4188
  %v4685 = vunpack.c.h.b16 %v4188
  %v4686 = vunpack.c.l.b16 %v4189
  %v4687 = vunpack.c.h.b16 %v4189
  %v4688 = vunpack.c.l.b16 %v4190
  %v4689 = vunpack.c.h.b16 %v4190
  %v4690 = vunpack.c.l.b16 %v4191
  %v4691 = vunpack.c.h.b16 %v4191
  %v4692 = vunpack.c.l.b16 %v4192
  %v4693 = vunpack.c.h.b16 %v4192
  %v4694 = vunpack.c.l.b16 %v4193
  %v4695 = vunpack.c.h.b16 %v4193
  %v4696 = vunpack.c.l.b16 %v4194
  %v4697 = vunpack.c.h.b16 %v4194
  %v4698 = vunpack.c.l.b16 %v4195
  %v4699 = vunpack.c.h.b16 %v4195
  %v4700 = vunpack.c.l.b16 %v4196
  %v4701 = vunpack.c.h.b16 %v4196
  %v4702 = vunpack.c.l.b16 %v4197
  %v4703 = vunpack.c.h.b16 %v4197
  %v4704 = vunpack.c.l.b16 %v4198
  %v4705 = vunpack.c.h.b16 %v4198
  %v4706 = vunpack.c.l.b16 %v4199
  %v4707 = vunpack.c.h.b16 %v4199
  %v4708 = vunpack.c.l.b16 %v4200
  %v4709 = vunpack.c.h.b16 %v4200
  %v4710 = vunpack.c.l.b16 %v4201
  %v4711 = vunpack.c.h.b16 %v4201
  %v4712 = vunpack.c.l.b16 %v4202
  %v4713 = vunpack.c.h.b16 %v4202
  %v4714 = vunpack.c.l.b16 %v4203
  %v4715 = vunpack.c.h.b16 %v4203
  %v4716 = vunpack.c.l.b16 %v4204
  %v4717 = vunpack.c.h.b16 %v4204
  %v4718 = vunpack.c.l.b16 %v4205
  %v4719 = vunpack.c.h.b16 %v4205
  %v4720 = vunpack.c.l.b16 %v4206
  %v4721 = vunpack.c.h.b16 %v4206
  %v4722 = vunpack.c.l.b16 %v4207
  %v4723 = vunpack.c.h.b16 %v4207
  %v4724 = vunpack.c.l.b16 %v4208
  %v4725 = vunpack.c.h.b16 %v4208
  %v4726 = vunpack.c.l.b16 %v4209
  %v4727 = vunpack.c.h.b16 %v4209
  %v4728 = vunpack.c.l.b16 %v4210
  %v4729 = vunpack.c.h.b16 %v4210
  %v4730 = vunpack.c.l.b16 %v4211
  %v4731 = vunpack.c.h.b16 %v4211
  %v4732 = vunpack.c.l.b16 %v4212
  %v4733 = vunpack.c.h.b16 %v4212
  %v4734 = vunpack.c.l.b16 %v4213
  %v4735 = vunpack.c.h.b16 %v4213
  %v4736 = vunpack.c.l.b16 %v4214
  %v4737 = vunpack.c.h.b16 %v4214
  %v4738 = vunpack.c.l.b16 %v4215
  %v4739 = vunpack.c.h.b16 %v4215
  %v4740 = vunpack.c.l.b16 %v4216
  %v4741 = vunpack.c.h.b16 %v4216
  %v4742 = vunpack.c.l.b16 %v4217
  %v4743 = vunpack.c.h.b16 %v4217
  %v4744 = vunpack.c.l.b16 %v4218
  %v4745 = vunpack.c.h.b16 %v4218
  %v4746 = vunpack.c.l.b16 %v4219
  %v4747 = vunpack.c.h.b16 %v4219
  %v4748 = vunpack.c.l.b16 %v4220
  %v4749 = vunpack.c.h.b16 %v4220
  %v4750 = vunpack.c.l.b16 %v4221
  %v4751 = vunpack.c.h.b16 %v4221
  %v4752 = vunpack.c.l.b16 %v4222
  %v4753 = vunpack.c.h.b16 %v4222
  %v4754 = vunpack.c.l.b16 %v4223
  %v4755 = vunpack.c.h.b16 %v4223
  %v4756 = vunpack.c.l.b16 %v4224
  %v4757 = vunpack.c.h.b16 %v4224
  %v4758 = vunpack.c.l.b16 %v4225
  %v4759 = vunpack.c.h.b16 %v4225
  %v4760 = vunpack.c.l.b16 %v4226
  %v4761 = vunpack.c.h.b16 %v4226
  %v4762 = vunpack.c.l.b16 %v4227
  %v4763 = vunpack.c.h.b16 %v4227
  %v4764 = vunpack.c.l.b16 %v4228
  %v4765 = vunpack.c.h.b16 %v4228
  %v4766 = vunpack.c.l.b16 %v4229
  %v4767 = vunpack.c.h.b16 %v4229
  %v4768 = vunpack.c.l.b16 %v4230
  %v4769 = vunpack.c.h.b16 %v4230
  %v4770 = vunpack.c.l.b16 %v4231
  %v4771 = vunpack.c.h.b16 %v4231
  %v4772 = vunpack.c.l.b16 %v4232
  %v4773 = vunpack.c.h.b16 %v4232
  %v4774 = vunpack.c.l.b16 %v4233
  %v4775 = vunpack.c.h.b16 %v4233
  %v4776 = vunpack.c.l.b16 %v4234
  %v4777 = vunpack.c.h.b16 %v4234
  %v4778 = vunpack.c.l.b16 %v4235
  %v4779 = vunpack.c.h.b16 %v4235
  %v4780 = vunpack.c.l.b16 %v4236
  %v4781 = vunpack.c.h.b16 %v4236
  %v4782 = vunpack.c.l.b16 %v4237
  %v4783 = vunpack.c.h.b16 %v4237
  %v4784 = vunpack.c.l.b16 %v4238
  %v4785 = vunpack.c.h.b16 %v4238
  %v4786 = vunpack.c.l.b16 %v4239
  %v4787 = vunpack.c.h.b16 %v4239
  %v4788 = vunpack.c.l.b16 %v4240
  %v4789 = vunpack.c.h.b16 %v4240
  %v4790 = vunpack.c.l.b16 %v4241
  %v4791 = vunpack.c.h.b16 %v4241
  %v4792 = vunpack.c.l.b16 %v4242
  %v4793 = vunpack.c.h.b16 %v4242
  %v4794 = vunpack.c.l.b16 %v4243
  %v4795 = vunpack.c.h.b16 %v4243
  %v4796 = vunpack.c.l.b16 %v4244
  %v4797 = vunpack.c.h.b16 %v4244
  %v4798 = vunpack.c.l.b16 %v4245
  %v4799 = vunpack.c.h.b16 %v4245
  %v4800 = vunpack.c.l.b16 %v4246
  %v4801 = vunpack.c.h.b16 %v4246
  %v4802 = vunpack.c.l.b16 %v4247
  %v4803 = vunpack.c.h.b16 %v4247
  %v4804 = vunpack.c.l.b16 %v4248
  %v4805 = vunpack.c.h.b16 %v4248
  %v4806 = vunpack.c.l.b16 %v4249
  %v4807 = vunpack.c.h.b16 %v4249
  %v4808 = vunpack.c.l.b16 %v4250
  %v4809 = vunpack.c.h.b16 %v4250
  %v4810 = vunpack.c.l.b16 %v4251
  %v4811 = vunpack.c.h.b16 %v4251
  %v4812 = vunpack.c.l.b16 %v4252
  %v4813 = vunpack.c.h.b16 %v4252
  %v4814 = vunpack.c.l.b16 %v4253
  %v4815 = vunpack.c.h.b16 %v4253
  %v4816 = vunpack.c.l.b16 %v4254
  %v4817 = vunpack.c.h.b16 %v4254
  %v4818 = vunpack.c.l.b16 %v4255
  %v4819 = vunpack.c.h.b16 %v4255
  %v4820 = vunpack.c.l.b16 %v4256
  %v4821 = vunpack.c.h.b16 %v4256
  %v4822 = vunpack.c.l.b16 %v4257
  %v4823 = vunpack.c.h.b16 %v4257
  %v4824 = vunpack.c.l.b16 %v4258
  %v4825 = vunpack.c.h.b16 %v4258
  %v4826 = vunpack.c.l.b16 %v4259
  %v4827 = vunpack.c.h.b16 %v4259
  %v4828 = vunpack.c.l.b16 %v4260
  %v4829 = vunpack.c.h.b16 %v4260
  %v4830 = vunpack.c.l.b16 %v4261
  %v4831 = vunpack.c.h.b16 %v4261
  %v4832 = vunpack.c.l.b16 %v4262
  %v4833 = vunpack.c.h.b16 %v4262
  %v4834 = vunpack.c.l.b16 %v4263
  %v4835 = vunpack.c.h.b16 %v4263
  %v4836 = vunpack.c.l.b16 %v4264
  %v4837 = vunpack.c.h.b16 %v4264
  %v4838 = vunpack.c.l.b16 %v4265
  %v4839 = vunpack.c.h.b16 %v4265
  %v4840 = vunpack.c.l.b16 %v4266
  %v4841 = vunpack.c.h.b16 %v4266
  %v4842 = vunpack.c.l.b16 %v4267
  %v4843 = vunpack.c.h.b16 %v4267
  %v4844 = vunpack.c.l.b16 %v4268
  %v4845 = vunpack.c.h.b16 %v4268
  %v4846 = vunpack.c.l.b16 %v4269
  %v4847 = vunpack.c.h.b16 %v4269
  %v4848 = vunpack.c.l.b16 %v4270
  %v4849 = vunpack.c.h.b16 %v4270
  %v4850 = vunpack.c.l.b16 %v4271
  %v4851 = vunpack.c.h.b16 %v4271
  %v4852 = vunpack.c.l.b16 %v4272
  %v4853 = vunpack.c.h.b16 %v4272
  %v4854 = vunpack.c.l.b16 %v4273
  %v4855 = vunpack.c.h.b16 %v4273
  %v4856 = vpack.c.b16 %v4474, %v4472
  %v4857 = vpack.c.b16 %v4475, %v4473
  %v4858 = vpack.c.b16 %v4478, %v4476
  %v4859 = vpack.c.b16 %v4479, %v4477
  %v4860 = vpack.c.b16 %v4482, %v4480
  %v4861 = vpack.c.b16 %v4483, %v4481
  %v4862 = vpack.c.b16 %v4486, %v4484
  %v4863 = vpack.c.b16 %v4487, %v4485
  %v4864 = vpack.c.b16 %v4490, %v4488
  %v4865 = vpack.c.b16 %v4491, %v4489
  %v4866 = vpack.c.b16 %v4494, %v4492
  %v4867 = vpack.c.b16 %v4495, %v4493
  %v4868 = vpack.c.b16 %v4498, %v4496
  %v4869 = vpack.c.b16 %v4499, %v4497
  %v4870 = vpack.c.b16 %v4502, %v4500
  %v4871 = vpack.c.b16 %v4503, %v4501
  %v4872 = vpack.c.b16 %v4506, %v4504
  %v4873 = vpack.c.b16 %v4507, %v4505
  %v4874 = vpack.c.b16 %v4510, %v4508
  %v4875 = vpack.c.b16 %v4511, %v4509
  %v4876 = vpack.c.b16 %v4514, %v4512
  %v4877 = vpack.c.b16 %v4515, %v4513
  %v4878 = vpack.c.b16 %v4518, %v4516
  %v4879 = vpack.c.b16 %v4519, %v4517
  %v4880 = vpack.c.b16 %v4522, %v4520
  %v4881 = vpack.c.b16 %v4523, %v4521
  %v4882 = vpack.c.b16 %v4526, %v4524
  %v4883 = vpack.c.b16 %v4527, %v4525
  %v4884 = vpack.c.b16 %v4530, %v4528
  %v4885 = vpack.c.b16 %v4531, %v4529
  %v4886 = vpack.c.b16 %v4534, %v4532
  %v4887 = vpack.c.b16 %v4535, %v4533
  %v4888 = vpack.c.b16 %v4538, %v4536
  %v4889 = vpack.c.b16 %v4539, %v4537
  %v4890 = vpack.c.b16 %v4542, %v4540
  %v4891 = vpack.c.b16 %v4543, %v4541
  %v4892 = vpack.c.b16 %v4546, %v4544
  %v4893 = vpack.c.b16 %v4547, %v4545
  %v4894 = vpack.c.b16 %v4550, %v4548
  %v4895 = vpack.c.b16 %v4551, %v4549
  %v4896 = vpack.c.b16 %v4554, %v4552
  %v4897 = vpack.c.b16 %v4555, %v4553
  %v4898 = vpack.c.b16 %v4558, %v4556
  %v4899 = vpack.c.b16 %v4559, %v4557
  %v4900 = vpack.c.b16 %v4562, %v4560
  %v4901 = vpack.c.b16 %v4563, %v4561
  %v4902 = vpack.c.b16 %v4566, %v4564
  %v4903 = vpack.c.b16 %v4567, %v4565
  %v4904 = vpack.c.b16 %v4570, %v4568
  %v4905 = vpack.c.b16 %v4571, %v4569
  %v4906 = vpack.c.b16 %v4574, %v4572
  %v4907 = vpack.c.b16 %v4575, %v4573
  %v4908 = vpack.c.b16 %v4578, %v4576
  %v4909 = vpack.c.b16 %v4579, %v4577
  %v4910 = vpack.c.b16 %v4582, %v4580
  %v4911 = vpack.c.b16 %v4583, %v4581
  %v4912 = vpack.c.b16 %v4586, %v4584
  %v4913 = vpack.c.b16 %v4587, %v4585
  %v4914 = vpack.c.b16 %v4590, %v4588
  %v4915 = vpack.c.b16 %v4591, %v4589
  %v4916 = vpack.c.b16 %v4594, %v4592
  %v4917 = vpack.c.b16 %v4595, %v4593
  %v4918 = vpack.c.b16 %v4598, %v4596
  %v4919 = vpack.c.b16 %v4599, %v4597
  %v4920 = vpack.c.b16 %v4602, %v4600
  %v4921 = vpack.c.b16 %v4603, %v4601
  %v4922 = vpack.c.b16 %v4606, %v4604
  %v4923 = vpack.c.b16 %v4607, %v4605
  %v4924 = vpack.c.b16 %v4610, %v4608
  %v4925 = vpack.c.b16 %v4611, %v4609
  %v4926 = vpack.c.b16 %v4614, %v4612
  %v4927 = vpack.c.b16 %v4615, %v4613
  %v4928 = vpack.c.b16 %v4618, %v4616
  %v4929 = vpack.c.b16 %v4619, %v4617
  %v4930 = vpack.c.b16 %v4622, %v4620
  %v4931 = vpack.c.b16 %v4623, %v4621
  %v4932 = vpack.c.b16 %v4626, %v4624
  %v4933 = vpack.c.b16 %v4627, %v4625
  %v4934 = vpack.c.b16 %v4630, %v4628
  %v4935 = vpack.c.b16 %v4631, %v4629
  %v4936 = vpack.c.b16 %v4634, %v4632
  %v4937 = vpack.c.b16 %v4635, %v4633
  %v4938 = vpack.c.b16 %v4638, %v4636
  %v4939 = vpack.c.b16 %v4639, %v4637
  %v4940 = vpack.c.b16 %v4642, %v4640
  %v4941 = vpack.c.b16 %v4643, %v4641
  %v4942 = vpack.c.b16 %v4646, %v4644
  %v4943 = vpack.c.b16 %v4647, %v4645
  %v4944 = vpack.c.b16 %v4650, %v4648
  %v4945 = vpack.c.b16 %v4651, %v4649
  %v4946 = vpack.c.b16 %v4654, %v4652
  %v4947 = vpack.c.b16 %v4655, %v4653
  %v4948 = vpack.c.b16 %v4658, %v4656
  %v4949 = vpack.c.b16 %v4659, %v4657
  %v4950 = vpack.c.b16 %v4662, %v4660
  %v4951 = vpack.c.b16 %v4663, %v4661
  %v4952 = vpack.c.b16 %v4666, %v4664
  %v4953 = vpack.c.b16 %v4667, %v4665
  %v4954 = vpack.c.b16 %v4670, %v4668
  %v4955 = vpack.c.b16 %v4671, %v4669
  %v4956 = vpack.c.b16 %v4674, %v4672
  %v4957 = vpack.c.b16 %v4675, %v4673
  %v4958 = vpack.c.b16 %v4678, %v4676
  %v4959 = vpack.c.b16 %v4679, %v4677
  %v4960 = vpack.c.b16 %v4682, %v4680
  %v4961 = vpack.c.b16 %v4683, %v4681
  %v4962 = vpack.c.b16 %v4686, %v4684
  %v4963 = vpack.c.b16 %v4687, %v4685
  %v4964 = vpack.c.b16 %v4690, %v4688
  %v4965 = vpack.c.b16 %v4691, %v4689
  %v4966 = vpack.c.b16 %v4694, %v4692
  %v4967 = vpack.c.b16 %v4695, %v4693
  %v4968 = vpack.c.b16 %v4698, %v4696
  %v4969 = vpack.c.b16 %v4699, %v4697
  %v4970 = vpack.c.b16 %v4702, %v4700
  %v4971 = vpack.c.b16 %v4703, %v4701
  %v4972 = vpack.c.b16 %v4706, %v4704
  %v4973 = vpack.c.b16 %v4707, %v4705
  %v4974 = vpack.c.b16 %v4710, %v4708
  %v4975 = vpack.c.b16 %v4711, %v4709
  %v4976 = vpack.c.b16 %v4714, %v4712
  %v4977 = vpack.c.b16 %v4715, %v4713
  %v4978 = vpack.c.b16 %v4718, %v4716
  %v4979 = vpack.c.b16 %v4719, %v4717
  %v4980 = vpack.c.b16 %v4722, %v4720
  %v4981 = vpack.c.b16 %v4723, %v4721
  %v4982 = vpack.c.b16 %v4726, %v4724
  %v4983 = vpack.c.b16 %v4727, %v4725
  %v4984 = vpack.c.b16 %v4730, %v4728
  %v4985 = vpack.c.b16 %v4731, %v4729
  %v4986 = vpack.c.b16 %v4734, %v4732
  %v4987 = vpack.c.b16 %v4735, %v4733
  %v4988 = vpack.c.b16 %v4738, %v4736
  %v4989 = vpack.c.b16 %v4739, %v4737
  %v4990 = vpack.c.b16 %v4742, %v4740
  %v4991 = vpack.c.b16 %v4743, %v4741
  %v4992 = vpack.c.b16 %v4746, %v4744
  %v4993 = vpack.c.b16 %v4747, %v4745
  %v4994 = vpack.c.b16 %v4750, %v4748
  %v4995 = vpack.c.b16 %v4751, %v4749
  %v4996 = vpack.c.b16 %v4754, %v4752
  %v4997 = vpack.c.b16 %v4755, %v4753
  %v4998 = vpack.c.b16 %v4758, %v4756
  %v4999 = vpack.c.b16 %v4759, %v4757
  %v5000 = vpack.c.b16 %v4762, %v4760
  %v5001 = vpack.c.b16 %v4763, %v4761
  %v5002 = vpack.c.b16 %v4766, %v4764
  %v5003 = vpack.c.b16 %v4767, %v4765
  %v5004 = vpack.c.b16 %v4770, %v4768
  %v5005 = vpack.c.b16 %v4771, %v4769
  %v5006 = vpack.c.b16 %v4774, %v4772
  %v5007 = vpack.c.b16 %v4775, %v4773
  %v5008 = vpack.c.b16 %v4778, %v4776
  %v5009 = vpack.c.b16 %v4779, %v4777
  %v5010 = vpack.c.b16 %v4782, %v4780
  %v5011 = vpack.c.b16 %v4783, %v4781
  %v5012 = vpack.c.b16 %v4786, %v4784
  %v5013 = vpack.c.b16 %v4787, %v4785
  %v5014 = vpack.c.b16 %v4790, %v4788
  %v5015 = vpack.c.b16 %v4791, %v4789
  %v5016 = vpack.c.b16 %v4794, %v4792
  %v5017 = vpack.c.b16 %v4795, %v4793
  %v5018 = vpack.c.b16 %v4798, %v4796
  %v5019 = vpack.c.b16 %v4799, %v4797
  %v5020 = vpack.c.b16 %v4802, %v4800
  %v5021 = vpack.c.b16 %v4803, %v4801
  %v5022 = vpack.c.b16 %v4806, %v4804
  %v5023 = vpack.c.b16 %v4807, %v4805
  %v5024 = vpack.c.b16 %v4810, %v4808
  %v5025 = vpack.c.b16 %v4811, %v4809
  %v5026 = vpack.c.b16 %v4814, %v4812
  %v5027 = vpack.c.b16 %v4815, %v4813
  %v5028 = vpack.c.b16 %v4818, %v4816
  %v5029 = vpack.c.b16 %v4819, %v4817
  %v5030 = vpack.c.b16 %v4822, %v4820
  %v5031 = vpack.c.b16 %v4823, %v4821
  %v5032 = vpack.c.b16 %v4826, %v4824
  %v5033 = vpack.c.b16 %v4827, %v4825
  %v5034 = vpack.c.b16 %v4830, %v4828
  %v5035 = vpack.c.b16 %v4831, %v4829
  %v5036 = vpack.c.b16 %v4834, %v4832
  %v5037 = vpack.c.b16 %v4835, %v4833
  %v5038 = vpack.c.b16 %v4838, %v4836
  %v5039 = vpack.c.b16 %v4839, %v4837
  %v5040 = vpack.c.b16 %v4842, %v4840
  %v5041 = vpack.c.b16 %v4843, %v4841
  %v5042 = vpack.c.b16 %v4846, %v4844
  %v5043 = vpack.c.b16 %v4847, %v4845
  %v5044 = vpack.c.b16 %v4850, %v4848
  %v5045 = vpack.c.b16 %v4851, %v4849
  %v5046 = vpack.c.b16 %v4854, %v4852
  %v5047 = vpack.c.b16 %v4855, %v4853
  %5240 = vmatpush.bf16.msra.mxu0 %v4870
  %5241 = vmatpush.bf16.msra.mxu0 %v4868
  %5242 = vmatpush.bf16.msra.mxu0 %v4866
  %5243 = vmatpush.bf16.msra.mxu0 %v4864
  %5244 = vmatpush.bf16.msra.mxu0 %v4862
  %5245 = vmatpush.bf16.msra.mxu0 %v4860
  %5246 = vmatpush.bf16.msra.mxu0 %v4858
  %5247 = vmatpush.bf16.msra.mxu0 %v4856
  %5248 = vmatmul.bf16.gmra.mxu0 %v3642
  %v5249 = vpop.f32.mrf.mxu0
  %v5250 = vadd.f32 %v4276, %v5249
  %v5251 = vpop.f32.mrf.mxu0
  %v5252 = vadd.f32 %v4276, %v5251
  %5253 = vmatmul.bf16.gmra.mxu0 %v3646
  %v5254 = vpop.f32.mrf.mxu0
  %v5255 = vadd.f32 %v4276, %v5254
  %v5256 = vpop.f32.mrf.mxu0
  %v5257 = vadd.f32 %v4276, %v5256
  %5258 = vmatmul.bf16.gmra.mxu0 %v3650
  %v5259 = vpop.f32.mrf.mxu0
  %v5260 = vadd.f32 %v4276, %v5259
  %v5261 = vpop.f32.mrf.mxu0
  %v5262 = vadd.f32 %v4276, %v5261
  %5263 = vmatmul.bf16.gmra.mxu0 %v3654
  %v5264 = vpop.f32.mrf.mxu0
  %v5265 = vadd.f32 %v4276, %v5264
  %v5266 = vpop.f32.mrf.mxu0
  %v5267 = vadd.f32 %v4276, %v5266
  %5268 = vmatmul.bf16.gmra.mxu0 %v3658
  %v5269 = vpop.f32.mrf.mxu0
  %v5270 = vadd.f32 %v4276, %v5269
  %v5271 = vpop.f32.mrf.mxu0
  %v5272 = vadd.f32 %v4276, %v5271
  %5273 = vmatmul.bf16.gmra.mxu0 %v3662
  %v5274 = vpop.f32.mrf.mxu0
  %v5275 = vadd.f32 %v4276, %v5274
  %v5276 = vpop.f32.mrf.mxu0
  %v5277 = vadd.f32 %v4276, %v5276
  %5278 = vmatmul.bf16.gmra.mxu0 %v3666
  %v5279 = vpop.f32.mrf.mxu0
  %v5280 = vadd.f32 %v4276, %v5279
  %v5281 = vpop.f32.mrf.mxu0
  %v5282 = vadd.f32 %v4276, %v5281
  %5283 = vmatmul.bf16.gmra.mxu0 %v3670
  %v5284 = vpop.f32.mrf.mxu0
  %v5285 = vadd.f32 %v4276, %v5284
  %v5286 = vpop.f32.mrf.mxu0
  %v5287 = vadd.f32 %v4276, %v5286
  %5288 = vmatmul.bf16.gmra.mxu0 %v3674
  %v5289 = vpop.f32.mrf.mxu0
  %v5290 = vadd.f32 %v4276, %v5289
  %v5291 = vpop.f32.mrf.mxu0
  %v5292 = vadd.f32 %v4276, %v5291
  %5293 = vmatmul.bf16.gmra.mxu0 %v3678
  %v5294 = vpop.f32.mrf.mxu0
  %v5295 = vadd.f32 %v4276, %v5294
  %v5296 = vpop.f32.mrf.mxu0
  %v5297 = vadd.f32 %v4276, %v5296
  %5298 = vmatmul.bf16.gmra.mxu0 %v3682
  %v5299 = vpop.f32.mrf.mxu0
  %v5300 = vadd.f32 %v4276, %v5299
  %v5301 = vpop.f32.mrf.mxu0
  %v5302 = vadd.f32 %v4276, %v5301
  %5303 = vmatmul.bf16.gmra.mxu0 %v3686
  %v5304 = vpop.f32.mrf.mxu0
  %v5305 = vadd.f32 %v4276, %v5304
  %v5306 = vpop.f32.mrf.mxu0
  %v5307 = vadd.f32 %v4276, %v5306
  %5308 = vmatmul.bf16.gmra.mxu0 %v3690
  %v5309 = vpop.f32.mrf.mxu0
  %v5310 = vadd.f32 %v4276, %v5309
  %v5311 = vpop.f32.mrf.mxu0
  %v5312 = vadd.f32 %v4276, %v5311
  %5313 = vmatmul.bf16.gmra.mxu0 %v3694
  %v5314 = vpop.f32.mrf.mxu0
  %v5315 = vadd.f32 %v4276, %v5314
  %v5316 = vpop.f32.mrf.mxu0
  %v5317 = vadd.f32 %v4276, %v5316
  %5318 = vmatmul.bf16.gmra.mxu0 %v3698
  %v5319 = vpop.f32.mrf.mxu0
  %v5320 = vadd.f32 %v4276, %v5319
  %v5321 = vpop.f32.mrf.mxu0
  %v5322 = vadd.f32 %v4276, %v5321
  %5323 = vdwg.mxu0
  %5324 = vmatpush.bf16.msra.mxu0 %v4886
  %5325 = vmatpush.bf16.msra.mxu0 %v4884
  %5326 = vmatpush.bf16.msra.mxu0 %v4882
  %5327 = vmatpush.bf16.msra.mxu0 %v4880
  %5328 = vmatpush.bf16.msra.mxu0 %v4878
  %5329 = vmatpush.bf16.msra.mxu0 %v4876
  %5330 = vmatpush.bf16.msra.mxu0 %v4874
  %5331 = vmatpush.bf16.msra.mxu0 %v4872
  %5332 = vmatmul.bf16.gmra.mxu0 %v3643
  %v5333 = vpop.f32.mrf.mxu0
  %v5334 = vadd.f32 %v5250, %v5333
  %v5335 = vpop.f32.mrf.mxu0
  %v5336 = vadd.f32 %v5252, %v5335
  %5337 = vmatmul.bf16.gmra.mxu0 %v3647
  %v5338 = vpop.f32.mrf.mxu0
  %v5339 = vadd.f32 %v5255, %v5338
  %v5340 = vpop.f32.mrf.mxu0
  %v5341 = vadd.f32 %v5257, %v5340
  %5342 = vmatmul.bf16.gmra.mxu0 %v3651
  %v5343 = vpop.f32.mrf.mxu0
  %v5344 = vadd.f32 %v5260, %v5343
  %v5345 = vpop.f32.mrf.mxu0
  %v5346 = vadd.f32 %v5262, %v5345
  %5347 = vmatmul.bf16.gmra.mxu0 %v3655
  %v5348 = vpop.f32.mrf.mxu0
  %v5349 = vadd.f32 %v5265, %v5348
  %v5350 = vpop.f32.mrf.mxu0
  %v5351 = vadd.f32 %v5267, %v5350
  %5352 = vmatmul.bf16.gmra.mxu0 %v3659
  %v5353 = vpop.f32.mrf.mxu0
  %v5354 = vadd.f32 %v5270, %v5353
  %v5355 = vpop.f32.mrf.mxu0
  %v5356 = vadd.f32 %v5272, %v5355
  %5357 = vmatmul.bf16.gmra.mxu0 %v3663
  %v5358 = vpop.f32.mrf.mxu0
  %v5359 = vadd.f32 %v5275, %v5358
  %v5360 = vpop.f32.mrf.mxu0
  %v5361 = vadd.f32 %v5277, %v5360
  %5362 = vmatmul.bf16.gmra.mxu0 %v3667
  %v5363 = vpop.f32.mrf.mxu0
  %v5364 = vadd.f32 %v5280, %v5363
  %v5365 = vpop.f32.mrf.mxu0
  %v5366 = vadd.f32 %v5282, %v5365
  %5367 = vmatmul.bf16.gmra.mxu0 %v3671
  %v5368 = vpop.f32.mrf.mxu0
  %v5369 = vadd.f32 %v5285, %v5368
  %v5370 = vpop.f32.mrf.mxu0
  %v5371 = vadd.f32 %v5287, %v5370
  %5372 = vmatmul.bf16.gmra.mxu0 %v3675
  %v5373 = vpop.f32.mrf.mxu0
  %v5374 = vadd.f32 %v5290, %v5373
  %v5375 = vpop.f32.mrf.mxu0
  %v5376 = vadd.f32 %v5292, %v5375
  %5377 = vmatmul.bf16.gmra.mxu0 %v3679
  %v5378 = vpop.f32.mrf.mxu0
  %v5379 = vadd.f32 %v5295, %v5378
  %v5380 = vpop.f32.mrf.mxu0
  %v5381 = vadd.f32 %v5297, %v5380
  %5382 = vmatmul.bf16.gmra.mxu0 %v3683
  %v5383 = vpop.f32.mrf.mxu0
  %v5384 = vadd.f32 %v5300, %v5383
  %v5385 = vpop.f32.mrf.mxu0
  %v5386 = vadd.f32 %v5302, %v5385
  %5387 = vmatmul.bf16.gmra.mxu0 %v3687
  %v5388 = vpop.f32.mrf.mxu0
  %v5389 = vadd.f32 %v5305, %v5388
  %v5390 = vpop.f32.mrf.mxu0
  %v5391 = vadd.f32 %v5307, %v5390
  %5392 = vmatmul.bf16.gmra.mxu0 %v3691
  %v5393 = vpop.f32.mrf.mxu0
  %v5394 = vadd.f32 %v5310, %v5393
  %v5395 = vpop.f32.mrf.mxu0
  %v5396 = vadd.f32 %v5312, %v5395
  %5397 = vmatmul.bf16.gmra.mxu0 %v3695
  %v5398 = vpop.f32.mrf.mxu0
  %v5399 = vadd.f32 %v5315, %v5398
  %v5400 = vpop.f32.mrf.mxu0
  %v5401 = vadd.f32 %v5317, %v5400
  %5402 = vmatmul.bf16.gmra.mxu0 %v3699
  %v5403 = vpop.f32.mrf.mxu0
  %v5404 = vadd.f32 %v5320, %v5403
  %v5405 = vpop.f32.mrf.mxu0
  %v5406 = vadd.f32 %v5322, %v5405
  %5407 = vdwg.mxu0
  %5408 = vmatpush.bf16.msra.mxu0 %v4902
  %5409 = vmatpush.bf16.msra.mxu0 %v4900
  %5410 = vmatpush.bf16.msra.mxu0 %v4898
  %5411 = vmatpush.bf16.msra.mxu0 %v4896
  %5412 = vmatpush.bf16.msra.mxu0 %v4894
  %5413 = vmatpush.bf16.msra.mxu0 %v4892
  %5414 = vmatpush.bf16.msra.mxu0 %v4890
  %5415 = vmatpush.bf16.msra.mxu0 %v4888
  %5416 = vmatmul.bf16.gmra.mxu0 %v3644
  %v5417 = vpop.f32.mrf.mxu0
  %v5418 = vadd.f32 %v5334, %v5417
  %v5419 = vpop.f32.mrf.mxu0
  %v5420 = vadd.f32 %v5336, %v5419
  %5421 = vmatmul.bf16.gmra.mxu0 %v3648
  %v5422 = vpop.f32.mrf.mxu0
  %v5423 = vadd.f32 %v5339, %v5422
  %v5424 = vpop.f32.mrf.mxu0
  %v5425 = vadd.f32 %v5341, %v5424
  %5426 = vmatmul.bf16.gmra.mxu0 %v3652
  %v5427 = vpop.f32.mrf.mxu0
  %v5428 = vadd.f32 %v5344, %v5427
  %v5429 = vpop.f32.mrf.mxu0
  %v5430 = vadd.f32 %v5346, %v5429
  %5431 = vmatmul.bf16.gmra.mxu0 %v3656
  %v5432 = vpop.f32.mrf.mxu0
  %v5433 = vadd.f32 %v5349, %v5432
  %v5434 = vpop.f32.mrf.mxu0
  %v5435 = vadd.f32 %v5351, %v5434
  %5436 = vmatmul.bf16.gmra.mxu0 %v3660
  %v5437 = vpop.f32.mrf.mxu0
  %v5438 = vadd.f32 %v5354, %v5437
  %v5439 = vpop.f32.mrf.mxu0
  %v5440 = vadd.f32 %v5356, %v5439
  %5441 = vmatmul.bf16.gmra.mxu0 %v3664
  %v5442 = vpop.f32.mrf.mxu0
  %v5443 = vadd.f32 %v5359, %v5442
  %v5444 = vpop.f32.mrf.mxu0
  %v5445 = vadd.f32 %v5361, %v5444
  %5446 = vmatmul.bf16.gmra.mxu0 %v3668
  %v5447 = vpop.f32.mrf.mxu0
  %v5448 = vadd.f32 %v5364, %v5447
  %v5449 = vpop.f32.mrf.mxu0
  %v5450 = vadd.f32 %v5366, %v5449
  %5451 = vmatmul.bf16.gmra.mxu0 %v3672
  %v5452 = vpop.f32.mrf.mxu0
  %v5453 = vadd.f32 %v5369, %v5452
  %v5454 = vpop.f32.mrf.mxu0
  %v5455 = vadd.f32 %v5371, %v5454
  %5456 = vmatmul.bf16.gmra.mxu0 %v3676
  %v5457 = vpop.f32.mrf.mxu0
  %v5458 = vadd.f32 %v5374, %v5457
  %v5459 = vpop.f32.mrf.mxu0
  %v5460 = vadd.f32 %v5376, %v5459
  %5461 = vmatmul.bf16.gmra.mxu0 %v3680
  %v5462 = vpop.f32.mrf.mxu0
  %v5463 = vadd.f32 %v5379, %v5462
  %v5464 = vpop.f32.mrf.mxu0
  %v5465 = vadd.f32 %v5381, %v5464
  %5466 = vmatmul.bf16.gmra.mxu0 %v3684
  %v5467 = vpop.f32.mrf.mxu0
  %v5468 = vadd.f32 %v5384, %v5467
  %v5469 = vpop.f32.mrf.mxu0
  %v5470 = vadd.f32 %v5386, %v5469
  %5471 = vmatmul.bf16.gmra.mxu0 %v3688
  %v5472 = vpop.f32.mrf.mxu0
  %v5473 = vadd.f32 %v5389, %v5472
  %v5474 = vpop.f32.mrf.mxu0
  %v5475 = vadd.f32 %v5391, %v5474
  %5476 = vmatmul.bf16.gmra.mxu0 %v3692
  %v5477 = vpop.f32.mrf.mxu0
  %v5478 = vadd.f32 %v5394, %v5477
  %v5479 = vpop.f32.mrf.mxu0
  %v5480 = vadd.f32 %v5396, %v5479
  %5481 = vmatmul.bf16.gmra.mxu0 %v3696
  %v5482 = vpop.f32.mrf.mxu0
  %v5483 = vadd.f32 %v5399, %v5482
  %v5484 = vpop.f32.mrf.mxu0
  %v5485 = vadd.f32 %v5401, %v5484
  %5486 = vmatmul.bf16.gmra.mxu0 %v3700
  %v5487 = vpop.f32.mrf.mxu0
  %v5488 = vadd.f32 %v5404, %v5487
  %v5489 = vpop.f32.mrf.mxu0
  %v5490 = vadd.f32 %v5406, %v5489
  %5491 = vdwg.mxu0
  %5492 = vmatpush.bf16.msra.mxu0 %v4918
  %5493 = vmatpush.bf16.msra.mxu0 %v4916
  %5494 = vmatpush.bf16.msra.mxu0 %v4914
  %5495 = vmatpush.bf16.msra.mxu0 %v4912
  %5496 = vmatpush.bf16.msra.mxu0 %v4910
  %5497 = vmatpush.bf16.msra.mxu0 %v4908
  %5498 = vmatpush.bf16.msra.mxu0 %v4906
  %5499 = vmatpush.bf16.msra.mxu0 %v4904
  %5500 = vmatmul.bf16.gmra.mxu0 %v3645
  %v5501 = vpop.f32.mrf.mxu0
  %v5502 = vadd.f32 %v5418, %v5501
  %v5503 = vpop.f32.mrf.mxu0
  %v5504 = vadd.f32 %v5420, %v5503
  %5505 = vmatmul.bf16.gmra.mxu0 %v3649
  %v5506 = vpop.f32.mrf.mxu0
  %v5507 = vadd.f32 %v5423, %v5506
  %v5508 = vpop.f32.mrf.mxu0
  %v5509 = vadd.f32 %v5425, %v5508
  %5510 = vmatmul.bf16.gmra.mxu0 %v3653
  %v5511 = vpop.f32.mrf.mxu0
  %v5512 = vadd.f32 %v5428, %v5511
  %v5513 = vpop.f32.mrf.mxu0
  %v5514 = vadd.f32 %v5430, %v5513
  %5515 = vmatmul.bf16.gmra.mxu0 %v3657
  %v5516 = vpop.f32.mrf.mxu0
  %v5517 = vadd.f32 %v5433, %v5516
  %v5518 = vpop.f32.mrf.mxu0
  %v5519 = vadd.f32 %v5435, %v5518
  %5520 = vmatmul.bf16.gmra.mxu0 %v3661
  %v5521 = vpop.f32.mrf.mxu0
  %v5522 = vadd.f32 %v5438, %v5521
  %v5523 = vpop.f32.mrf.mxu0
  %v5524 = vadd.f32 %v5440, %v5523
  %5525 = vmatmul.bf16.gmra.mxu0 %v3665
  %v5526 = vpop.f32.mrf.mxu0
  %v5527 = vadd.f32 %v5443, %v5526
  %v5528 = vpop.f32.mrf.mxu0
  %v5529 = vadd.f32 %v5445, %v5528
  %5530 = vmatmul.bf16.gmra.mxu0 %v3669
  %v5531 = vpop.f32.mrf.mxu0
  %v5532 = vadd.f32 %v5448, %v5531
  %v5533 = vpop.f32.mrf.mxu0
  %v5534 = vadd.f32 %v5450, %v5533
  %5535 = vmatmul.bf16.gmra.mxu0 %v3673
  %v5536 = vpop.f32.mrf.mxu0
  %v5537 = vadd.f32 %v5453, %v5536
  %v5538 = vpop.f32.mrf.mxu0
  %v5539 = vadd.f32 %v5455, %v5538
  %5540 = vmatmul.bf16.gmra.mxu0 %v3677
  %v5541 = vpop.f32.mrf.mxu0
  %v5542 = vadd.f32 %v5458, %v5541
  %v5543 = vpop.f32.mrf.mxu0
  %v5544 = vadd.f32 %v5460, %v5543
  %5545 = vmatmul.bf16.gmra.mxu0 %v3681
  %v5546 = vpop.f32.mrf.mxu0
  %v5547 = vadd.f32 %v5463, %v5546
  %v5548 = vpop.f32.mrf.mxu0
  %v5549 = vadd.f32 %v5465, %v5548
  %5550 = vmatmul.bf16.gmra.mxu0 %v3685
  %v5551 = vpop.f32.mrf.mxu0
  %v5552 = vadd.f32 %v5468, %v5551
  %v5553 = vpop.f32.mrf.mxu0
  %v5554 = vadd.f32 %v5470, %v5553
  %5555 = vmatmul.bf16.gmra.mxu0 %v3689
  %v5556 = vpop.f32.mrf.mxu0
  %v5557 = vadd.f32 %v5473, %v5556
  %v5558 = vpop.f32.mrf.mxu0
  %v5559 = vadd.f32 %v5475, %v5558
  %5560 = vmatmul.bf16.gmra.mxu0 %v3693
  %v5561 = vpop.f32.mrf.mxu0
  %v5562 = vadd.f32 %v5478, %v5561
  %v5563 = vpop.f32.mrf.mxu0
  %v5564 = vadd.f32 %v5480, %v5563
  %5565 = vmatmul.bf16.gmra.mxu0 %v3697
  %v5566 = vpop.f32.mrf.mxu0
  %v5567 = vadd.f32 %v5483, %v5566
  %v5568 = vpop.f32.mrf.mxu0
  %v5569 = vadd.f32 %v5485, %v5568
  %5570 = vmatmul.bf16.gmra.mxu0 %v3701
  %v5571 = vpop.f32.mrf.mxu0
  %v5572 = vadd.f32 %v5488, %v5571
  %v5573 = vpop.f32.mrf.mxu0
  %v5574 = vadd.f32 %v5490, %v5573
  %5575 = vdwg.mxu0
  %5576 = vmatpush.bf16.msra.mxu0 %v4934
  %5577 = vmatpush.bf16.msra.mxu0 %v4932
  %5578 = vmatpush.bf16.msra.mxu0 %v4930
  %5579 = vmatpush.bf16.msra.mxu0 %v4928
  %5580 = vmatpush.bf16.msra.mxu0 %v4926
  %5581 = vmatpush.bf16.msra.mxu0 %v4924
  %5582 = vmatpush.bf16.msra.mxu0 %v4922
  %5583 = vmatpush.bf16.msra.mxu0 %v4920
  %5584 = vmatmul.bf16.gmra.mxu0 %v3942
  %v5585 = vpop.f32.mrf.mxu0
  %v5586 = vadd.f32 %v5502, %v5585
  %v5587 = vpop.f32.mrf.mxu0
  %v5588 = vadd.f32 %v5504, %v5587
  %5589 = vmatmul.bf16.gmra.mxu0 %v3946
  %v5590 = vpop.f32.mrf.mxu0
  %v5591 = vadd.f32 %v5507, %v5590
  %v5592 = vpop.f32.mrf.mxu0
  %v5593 = vadd.f32 %v5509, %v5592
  %5594 = vmatmul.bf16.gmra.mxu0 %v3950
  %v5595 = vpop.f32.mrf.mxu0
  %v5596 = vadd.f32 %v5512, %v5595
  %v5597 = vpop.f32.mrf.mxu0
  %v5598 = vadd.f32 %v5514, %v5597
  %5599 = vmatmul.bf16.gmra.mxu0 %v3954
  %v5600 = vpop.f32.mrf.mxu0
  %v5601 = vadd.f32 %v5517, %v5600
  %v5602 = vpop.f32.mrf.mxu0
  %v5603 = vadd.f32 %v5519, %v5602
  %5604 = vmatmul.bf16.gmra.mxu0 %v3958
  %v5605 = vpop.f32.mrf.mxu0
  %v5606 = vadd.f32 %v5522, %v5605
  %v5607 = vpop.f32.mrf.mxu0
  %v5608 = vadd.f32 %v5524, %v5607
  %5609 = vmatmul.bf16.gmra.mxu0 %v3962
  %v5610 = vpop.f32.mrf.mxu0
  %v5611 = vadd.f32 %v5527, %v5610
  %v5612 = vpop.f32.mrf.mxu0
  %v5613 = vadd.f32 %v5529, %v5612
  %5614 = vmatmul.bf16.gmra.mxu0 %v3966
  %v5615 = vpop.f32.mrf.mxu0
  %v5616 = vadd.f32 %v5532, %v5615
  %v5617 = vpop.f32.mrf.mxu0
  %v5618 = vadd.f32 %v5534, %v5617
  %5619 = vmatmul.bf16.gmra.mxu0 %v3970
  %v5620 = vpop.f32.mrf.mxu0
  %v5621 = vadd.f32 %v5537, %v5620
  %v5622 = vpop.f32.mrf.mxu0
  %v5623 = vadd.f32 %v5539, %v5622
  %5624 = vmatmul.bf16.gmra.mxu0 %v3974
  %v5625 = vpop.f32.mrf.mxu0
  %v5626 = vadd.f32 %v5542, %v5625
  %v5627 = vpop.f32.mrf.mxu0
  %v5628 = vadd.f32 %v5544, %v5627
  %5629 = vmatmul.bf16.gmra.mxu0 %v3978
  %v5630 = vpop.f32.mrf.mxu0
  %v5631 = vadd.f32 %v5547, %v5630
  %v5632 = vpop.f32.mrf.mxu0
  %v5633 = vadd.f32 %v5549, %v5632
  %5634 = vmatmul.bf16.gmra.mxu0 %v3982
  %v5635 = vpop.f32.mrf.mxu0
  %v5636 = vadd.f32 %v5552, %v5635
  %v5637 = vpop.f32.mrf.mxu0
  %v5638 = vadd.f32 %v5554, %v5637
  %5639 = vmatmul.bf16.gmra.mxu0 %v3986
  %v5640 = vpop.f32.mrf.mxu0
  %v5641 = vadd.f32 %v5557, %v5640
  %v5642 = vpop.f32.mrf.mxu0
  %v5643 = vadd.f32 %v5559, %v5642
  %5644 = vmatmul.bf16.gmra.mxu0 %v3990
  %v5645 = vpop.f32.mrf.mxu0
  %v5646 = vadd.f32 %v5562, %v5645
  %v5647 = vpop.f32.mrf.mxu0
  %v5648 = vadd.f32 %v5564, %v5647
  %5649 = vmatmul.bf16.gmra.mxu0 %v3994
  %v5650 = vpop.f32.mrf.mxu0
  %v5651 = vadd.f32 %v5567, %v5650
  %v5652 = vpop.f32.mrf.mxu0
  %v5653 = vadd.f32 %v5569, %v5652
  %5654 = vmatmul.bf16.gmra.mxu0 %v3998
  %v5655 = vpop.f32.mrf.mxu0
  %v5656 = vadd.f32 %v5572, %v5655
  %v5657 = vpop.f32.mrf.mxu0
  %v5658 = vadd.f32 %v5574, %v5657
  %5659 = vdwg.mxu0
  %5660 = vmatpush.bf16.msra.mxu0 %v4950
  %5661 = vmatpush.bf16.msra.mxu0 %v4948
  %5662 = vmatpush.bf16.msra.mxu0 %v4946
  %5663 = vmatpush.bf16.msra.mxu0 %v4944
  %5664 = vmatpush.bf16.msra.mxu0 %v4942
  %5665 = vmatpush.bf16.msra.mxu0 %v4940
  %5666 = vmatpush.bf16.msra.mxu0 %v4938
  %5667 = vmatpush.bf16.msra.mxu0 %v4936
  %5668 = vmatmul.bf16.gmra.mxu0 %v3943
  %v5669 = vpop.f32.mrf.mxu0
  %v5670 = vadd.f32 %v5586, %v5669
  %v5671 = vpop.f32.mrf.mxu0
  %v5672 = vadd.f32 %v5588, %v5671
  %5673 = vmatmul.bf16.gmra.mxu0 %v3947
  %v5674 = vpop.f32.mrf.mxu0
  %v5675 = vadd.f32 %v5591, %v5674
  %v5676 = vpop.f32.mrf.mxu0
  %v5677 = vadd.f32 %v5593, %v5676
  %5678 = vmatmul.bf16.gmra.mxu0 %v3951
  %v5679 = vpop.f32.mrf.mxu0
  %v5680 = vadd.f32 %v5596, %v5679
  %v5681 = vpop.f32.mrf.mxu0
  %v5682 = vadd.f32 %v5598, %v5681
  %5683 = vmatmul.bf16.gmra.mxu0 %v3955
  %v5684 = vpop.f32.mrf.mxu0
  %v5685 = vadd.f32 %v5601, %v5684
  %v5686 = vpop.f32.mrf.mxu0
  %v5687 = vadd.f32 %v5603, %v5686
  %5688 = vmatmul.bf16.gmra.mxu0 %v3959
  %v5689 = vpop.f32.mrf.mxu0
  %v5690 = vadd.f32 %v5606, %v5689
  %v5691 = vpop.f32.mrf.mxu0
  %v5692 = vadd.f32 %v5608, %v5691
  %5693 = vmatmul.bf16.gmra.mxu0 %v3963
  %v5694 = vpop.f32.mrf.mxu0
  %v5695 = vadd.f32 %v5611, %v5694
  %v5696 = vpop.f32.mrf.mxu0
  %v5697 = vadd.f32 %v5613, %v5696
  %5698 = vmatmul.bf16.gmra.mxu0 %v3967
  %v5699 = vpop.f32.mrf.mxu0
  %v5700 = vadd.f32 %v5616, %v5699
  %v5701 = vpop.f32.mrf.mxu0
  %v5702 = vadd.f32 %v5618, %v5701
  %5703 = vmatmul.bf16.gmra.mxu0 %v3971
  %v5704 = vpop.f32.mrf.mxu0
  %v5705 = vadd.f32 %v5621, %v5704
  %v5706 = vpop.f32.mrf.mxu0
  %v5707 = vadd.f32 %v5623, %v5706
  %5708 = vmatmul.bf16.gmra.mxu0 %v3975
  %v5709 = vpop.f32.mrf.mxu0
  %v5710 = vadd.f32 %v5626, %v5709
  %v5711 = vpop.f32.mrf.mxu0
  %v5712 = vadd.f32 %v5628, %v5711
  %5713 = vmatmul.bf16.gmra.mxu0 %v3979
  %v5714 = vpop.f32.mrf.mxu0
  %v5715 = vadd.f32 %v5631, %v5714
  %v5716 = vpop.f32.mrf.mxu0
  %v5717 = vadd.f32 %v5633, %v5716
  %5718 = vmatmul.bf16.gmra.mxu0 %v3983
  %v5719 = vpop.f32.mrf.mxu0
  %v5720 = vadd.f32 %v5636, %v5719
  %v5721 = vpop.f32.mrf.mxu0
  %v5722 = vadd.f32 %v5638, %v5721
  %5723 = vmatmul.bf16.gmra.mxu0 %v3987
  %v5724 = vpop.f32.mrf.mxu0
  %v5725 = vadd.f32 %v5641, %v5724
  %v5726 = vpop.f32.mrf.mxu0
  %v5727 = vadd.f32 %v5643, %v5726
  %5728 = vmatmul.bf16.gmra.mxu0 %v3991
  %v5729 = vpop.f32.mrf.mxu0
  %v5730 = vadd.f32 %v5646, %v5729
  %v5731 = vpop.f32.mrf.mxu0
  %v5732 = vadd.f32 %v5648, %v5731
  %5733 = vmatmul.bf16.gmra.mxu0 %v3995
  %v5734 = vpop.f32.mrf.mxu0
  %v5735 = vadd.f32 %v5651, %v5734
  %v5736 = vpop.f32.mrf.mxu0
  %v5737 = vadd.f32 %v5653, %v5736
  %5738 = vmatmul.bf16.gmra.mxu0 %v3999
  %v5739 = vpop.f32.mrf.mxu0
  %v5740 = vadd.f32 %v5656, %v5739
  %v5741 = vpop.f32.mrf.mxu0
  %v5742 = vadd.f32 %v5658, %v5741
  %5743 = vdwg.mxu0
  %5744 = vmatpush.bf16.msra.mxu0 %v4966
  %5745 = vmatpush.bf16.msra.mxu0 %v4964
  %5746 = vmatpush.bf16.msra.mxu0 %v4962
  %5747 = vmatpush.bf16.msra.mxu0 %v4960
  %5748 = vmatpush.bf16.msra.mxu0 %v4958
  %5749 = vmatpush.bf16.msra.mxu0 %v4956
  %5750 = vmatpush.bf16.msra.mxu0 %v4954
  %5751 = vmatpush.bf16.msra.mxu0 %v4952
  %5752 = vmatmul.bf16.gmra.mxu0 %v3944
  %v5753 = vpop.f32.mrf.mxu0
  %v5754 = vadd.f32 %v5670, %v5753
  %v5755 = vpop.f32.mrf.mxu0
  %v5756 = vadd.f32 %v5672, %v5755
  %5757 = vmatmul.bf16.gmra.mxu0 %v3948
  %v5758 = vpop.f32.mrf.mxu0
  %v5759 = vadd.f32 %v5675, %v5758
  %v5760 = vpop.f32.mrf.mxu0
  %v5761 = vadd.f32 %v5677, %v5760
  %5762 = vmatmul.bf16.gmra.mxu0 %v3952
  %v5763 = vpop.f32.mrf.mxu0
  %v5764 = vadd.f32 %v5680, %v5763
  %v5765 = vpop.f32.mrf.mxu0
  %v5766 = vadd.f32 %v5682, %v5765
  %5767 = vmatmul.bf16.gmra.mxu0 %v3956
  %v5768 = vpop.f32.mrf.mxu0
  %v5769 = vadd.f32 %v5685, %v5768
  %v5770 = vpop.f32.mrf.mxu0
  %v5771 = vadd.f32 %v5687, %v5770
  %5772 = vmatmul.bf16.gmra.mxu0 %v3960
  %v5773 = vpop.f32.mrf.mxu0
  %v5774 = vadd.f32 %v5690, %v5773
  %v5775 = vpop.f32.mrf.mxu0
  %v5776 = vadd.f32 %v5692, %v5775
  %5777 = vmatmul.bf16.gmra.mxu0 %v3964
  %v5778 = vpop.f32.mrf.mxu0
  %v5779 = vadd.f32 %v5695, %v5778
  %v5780 = vpop.f32.mrf.mxu0
  %v5781 = vadd.f32 %v5697, %v5780
  %5782 = vmatmul.bf16.gmra.mxu0 %v3968
  %v5783 = vpop.f32.mrf.mxu0
  %v5784 = vadd.f32 %v5700, %v5783
  %v5785 = vpop.f32.mrf.mxu0
  %v5786 = vadd.f32 %v5702, %v5785
  %5787 = vmatmul.bf16.gmra.mxu0 %v3972
  %v5788 = vpop.f32.mrf.mxu0
  %v5789 = vadd.f32 %v5705, %v5788
  %v5790 = vpop.f32.mrf.mxu0
  %v5791 = vadd.f32 %v5707, %v5790
  %5792 = vmatmul.bf16.gmra.mxu0 %v3976
  %v5793 = vpop.f32.mrf.mxu0
  %v5794 = vadd.f32 %v5710, %v5793
  %v5795 = vpop.f32.mrf.mxu0
  %v5796 = vadd.f32 %v5712, %v5795
  %5797 = vmatmul.bf16.gmra.mxu0 %v3980
  %v5798 = vpop.f32.mrf.mxu0
  %v5799 = vadd.f32 %v5715, %v5798
  %v5800 = vpop.f32.mrf.mxu0
  %v5801 = vadd.f32 %v5717, %v5800
  %5802 = vmatmul.bf16.gmra.mxu0 %v3984
  %v5803 = vpop.f32.mrf.mxu0
  %v5804 = vadd.f32 %v5720, %v5803
  %v5805 = vpop.f32.mrf.mxu0
  %v5806 = vadd.f32 %v5722, %v5805
  %5807 = vmatmul.bf16.gmra.mxu0 %v3988
  %v5808 = vpop.f32.mrf.mxu0
  %v5809 = vadd.f32 %v5725, %v5808
  %v5810 = vpop.f32.mrf.mxu0
  %v5811 = vadd.f32 %v5727, %v5810
  %5812 = vmatmul.bf16.gmra.mxu0 %v3992
  %v5813 = vpop.f32.mrf.mxu0
  %v5814 = vadd.f32 %v5730, %v5813
  %v5815 = vpop.f32.mrf.mxu0
  %v5816 = vadd.f32 %v5732, %v5815
  %5817 = vmatmul.bf16.gmra.mxu0 %v3996
  %v5818 = vpop.f32.mrf.mxu0
  %v5819 = vadd.f32 %v5735, %v5818
  %v5820 = vpop.f32.mrf.mxu0
  %v5821 = vadd.f32 %v5737, %v5820
  %5822 = vmatmul.bf16.gmra.mxu0 %v4000
  %v5823 = vpop.f32.mrf.mxu0
  %v5824 = vadd.f32 %v5740, %v5823
  %v5825 = vpop.f32.mrf.mxu0
  %v5826 = vadd.f32 %v5742, %v5825
  %5827 = vdwg.mxu0
  %5828 = vmatpush.bf16.msra.mxu0 %v4982
  %5829 = vmatpush.bf16.msra.mxu0 %v4980
  %5830 = vmatpush.bf16.msra.mxu0 %v4978
  %5831 = vmatpush.bf16.msra.mxu0 %v4976
  %5832 = vmatpush.bf16.msra.mxu0 %v4974
  %5833 = vmatpush.bf16.msra.mxu0 %v4972
  %5834 = vmatpush.bf16.msra.mxu0 %v4970
  %5835 = vmatpush.bf16.msra.mxu0 %v4968
  %5836 = vmatmul.bf16.gmra.mxu0 %v3945
  %v5837 = vpop.f32.mrf.mxu0
  %v5838 = vadd.f32 %v5754, %v5837
  %v5839 = vpop.f32.mrf.mxu0
  %v5840 = vadd.f32 %v5756, %v5839
  %5841 = vmatmul.bf16.gmra.mxu0 %v3949
  %v5842 = vpop.f32.mrf.mxu0
  %v5843 = vadd.f32 %v5759, %v5842
  %v5844 = vpop.f32.mrf.mxu0
  %v5845 = vadd.f32 %v5761, %v5844
  %5846 = vmatmul.bf16.gmra.mxu0 %v3953
  %v5847 = vpop.f32.mrf.mxu0
  %v5848 = vadd.f32 %v5764, %v5847
  %v5849 = vpop.f32.mrf.mxu0
  %v5850 = vadd.f32 %v5766, %v5849
  %5851 = vmatmul.bf16.gmra.mxu0 %v3957
  %v5852 = vpop.f32.mrf.mxu0
  %v5853 = vadd.f32 %v5769, %v5852
  %v5854 = vpop.f32.mrf.mxu0
  %v5855 = vadd.f32 %v5771, %v5854
  %5856 = vmatmul.bf16.gmra.mxu0 %v3961
  %v5857 = vpop.f32.mrf.mxu0
  %v5858 = vadd.f32 %v5774, %v5857
  %v5859 = vpop.f32.mrf.mxu0
  %v5860 = vadd.f32 %v5776, %v5859
  %5861 = vmatmul.bf16.gmra.mxu0 %v3965
  %v5862 = vpop.f32.mrf.mxu0
  %v5863 = vadd.f32 %v5779, %v5862
  %v5864 = vpop.f32.mrf.mxu0
  %v5865 = vadd.f32 %v5781, %v5864
  %5866 = vmatmul.bf16.gmra.mxu0 %v3969
  %v5867 = vpop.f32.mrf.mxu0
  %v5868 = vadd.f32 %v5784, %v5867
  %v5869 = vpop.f32.mrf.mxu0
  %v5870 = vadd.f32 %v5786, %v5869
  %5871 = vmatmul.bf16.gmra.mxu0 %v3973
  %v5872 = vpop.f32.mrf.mxu0
  %v5873 = vadd.f32 %v5789, %v5872
  %v5874 = vpop.f32.mrf.mxu0
  %v5875 = vadd.f32 %v5791, %v5874
  %5876 = vmatmul.bf16.gmra.mxu0 %v3977
  %v5877 = vpop.f32.mrf.mxu0
  %v5878 = vadd.f32 %v5794, %v5877
  %v5879 = vpop.f32.mrf.mxu0
  %v5880 = vadd.f32 %v5796, %v5879
  %5881 = vmatmul.bf16.gmra.mxu0 %v3981
  %v5882 = vpop.f32.mrf.mxu0
  %v5883 = vadd.f32 %v5799, %v5882
  %v5884 = vpop.f32.mrf.mxu0
  %v5885 = vadd.f32 %v5801, %v5884
  %5886 = vmatmul.bf16.gmra.mxu0 %v3985
  %v5887 = vpop.f32.mrf.mxu0
  %v5888 = vadd.f32 %v5804, %v5887
  %v5889 = vpop.f32.mrf.mxu0
  %v5890 = vadd.f32 %v5806, %v5889
  %5891 = vmatmul.bf16.gmra.mxu0 %v3989
  %v5892 = vpop.f32.mrf.mxu0
  %v5893 = vadd.f32 %v5809, %v5892
  %v5894 = vpop.f32.mrf.mxu0
  %v5895 = vadd.f32 %v5811, %v5894
  %5896 = vmatmul.bf16.gmra.mxu0 %v3993
  %v5897 = vpop.f32.mrf.mxu0
  %v5898 = vadd.f32 %v5814, %v5897
  %v5899 = vpop.f32.mrf.mxu0
  %v5900 = vadd.f32 %v5816, %v5899
  %5901 = vmatmul.bf16.gmra.mxu0 %v3997
  %v5902 = vpop.f32.mrf.mxu0
  %v5903 = vadd.f32 %v5819, %v5902
  %v5904 = vpop.f32.mrf.mxu0
  %v5905 = vadd.f32 %v5821, %v5904
  %5906 = vmatmul.bf16.gmra.mxu0 %v4001
  %v5907 = vpop.f32.mrf.mxu0
  %v5908 = vadd.f32 %v5824, %v5907
  %v5909 = vpop.f32.mrf.mxu0
  %v5910 = vadd.f32 %v5826, %v5909
  %5911 = vdwg.mxu0
  %5912 = vmatpush.bf16.msra.mxu0 %v4998
  %5913 = vmatpush.bf16.msra.mxu0 %v4996
  %5914 = vmatpush.bf16.msra.mxu0 %v4994
  %5915 = vmatpush.bf16.msra.mxu0 %v4992
  %5916 = vmatpush.bf16.msra.mxu0 %v4990
  %5917 = vmatpush.bf16.msra.mxu0 %v4988
  %5918 = vmatpush.bf16.msra.mxu0 %v4986
  %5919 = vmatpush.bf16.msra.mxu0 %v4984
  %5920 = vmatmul.bf16.gmra.mxu0 %v3646
  %v5921 = vpop.f32.mrf.mxu0
  %v5922 = vadd.f32 %v5838, %v5921
  %v5923 = vpop.f32.mrf.mxu0
  %v5924 = vadd.f32 %v5840, %v5923
  %5925 = vmatmul.bf16.gmra.mxu0 %v3650
  %v5926 = vpop.f32.mrf.mxu0
  %v5927 = vadd.f32 %v5843, %v5926
  %v5928 = vpop.f32.mrf.mxu0
  %v5929 = vadd.f32 %v5845, %v5928
  %5930 = vmatmul.bf16.gmra.mxu0 %v3654
  %v5931 = vpop.f32.mrf.mxu0
  %v5932 = vadd.f32 %v5848, %v5931
  %v5933 = vpop.f32.mrf.mxu0
  %v5934 = vadd.f32 %v5850, %v5933
  %5935 = vmatmul.bf16.gmra.mxu0 %v3658
  %v5936 = vpop.f32.mrf.mxu0
  %v5937 = vadd.f32 %v5853, %v5936
  %v5938 = vpop.f32.mrf.mxu0
  %v5939 = vadd.f32 %v5855, %v5938
  %5940 = vmatmul.bf16.gmra.mxu0 %v3662
  %v5941 = vpop.f32.mrf.mxu0
  %v5942 = vadd.f32 %v5858, %v5941
  %v5943 = vpop.f32.mrf.mxu0
  %v5944 = vadd.f32 %v5860, %v5943
  %5945 = vmatmul.bf16.gmra.mxu0 %v3666
  %v5946 = vpop.f32.mrf.mxu0
  %v5947 = vadd.f32 %v5863, %v5946
  %v5948 = vpop.f32.mrf.mxu0
  %v5949 = vadd.f32 %v5865, %v5948
  %5950 = vmatmul.bf16.gmra.mxu0 %v3670
  %v5951 = vpop.f32.mrf.mxu0
  %v5952 = vadd.f32 %v5868, %v5951
  %v5953 = vpop.f32.mrf.mxu0
  %v5954 = vadd.f32 %v5870, %v5953
  %5955 = vmatmul.bf16.gmra.mxu0 %v3674
  %v5956 = vpop.f32.mrf.mxu0
  %v5957 = vadd.f32 %v5873, %v5956
  %v5958 = vpop.f32.mrf.mxu0
  %v5959 = vadd.f32 %v5875, %v5958
  %5960 = vmatmul.bf16.gmra.mxu0 %v3678
  %v5961 = vpop.f32.mrf.mxu0
  %v5962 = vadd.f32 %v5878, %v5961
  %v5963 = vpop.f32.mrf.mxu0
  %v5964 = vadd.f32 %v5880, %v5963
  %5965 = vmatmul.bf16.gmra.mxu0 %v3682
  %v5966 = vpop.f32.mrf.mxu0
  %v5967 = vadd.f32 %v5883, %v5966
  %v5968 = vpop.f32.mrf.mxu0
  %v5969 = vadd.f32 %v5885, %v5968
  %5970 = vmatmul.bf16.gmra.mxu0 %v3686
  %v5971 = vpop.f32.mrf.mxu0
  %v5972 = vadd.f32 %v5888, %v5971
  %v5973 = vpop.f32.mrf.mxu0
  %v5974 = vadd.f32 %v5890, %v5973
  %5975 = vmatmul.bf16.gmra.mxu0 %v3690
  %v5976 = vpop.f32.mrf.mxu0
  %v5977 = vadd.f32 %v5893, %v5976
  %v5978 = vpop.f32.mrf.mxu0
  %v5979 = vadd.f32 %v5895, %v5978
  %5980 = vmatmul.bf16.gmra.mxu0 %v3694
  %v5981 = vpop.f32.mrf.mxu0
  %v5982 = vadd.f32 %v5898, %v5981
  %v5983 = vpop.f32.mrf.mxu0
  %v5984 = vadd.f32 %v5900, %v5983
  %5985 = vmatmul.bf16.gmra.mxu0 %v3698
  %v5986 = vpop.f32.mrf.mxu0
  %v5987 = vadd.f32 %v5903, %v5986
  %v5988 = vpop.f32.mrf.mxu0
  %v5989 = vadd.f32 %v5905, %v5988
  %5990 = vmatmul.bf16.gmra.mxu0 %v4074
  %v5991 = vpop.f32.mrf.mxu0
  %v5992 = vadd.f32 %v5908, %v5991
  %v5993 = vpop.f32.mrf.mxu0
  %v5994 = vadd.f32 %v5910, %v5993
  %5995 = vdwg.mxu0
  %5996 = vmatpush.bf16.msra.mxu0 %v5014
  %5997 = vmatpush.bf16.msra.mxu0 %v5012
  %5998 = vmatpush.bf16.msra.mxu0 %v5010
  %5999 = vmatpush.bf16.msra.mxu0 %v5008
  %6000 = vmatpush.bf16.msra.mxu0 %v5006
  %6001 = vmatpush.bf16.msra.mxu0 %v5004
  %6002 = vmatpush.bf16.msra.mxu0 %v5002
  %6003 = vmatpush.bf16.msra.mxu0 %v5000
  %6004 = vmatmul.bf16.gmra.mxu0 %v3647
  %v6005 = vpop.f32.mrf.mxu0
  %v6006 = vadd.f32 %v5922, %v6005
  %v6007 = vpop.f32.mrf.mxu0
  %v6008 = vadd.f32 %v5924, %v6007
  %6009 = vmatmul.bf16.gmra.mxu0 %v3651
  %v6010 = vpop.f32.mrf.mxu0
  %v6011 = vadd.f32 %v5927, %v6010
  %v6012 = vpop.f32.mrf.mxu0
  %v6013 = vadd.f32 %v5929, %v6012
  %6014 = vmatmul.bf16.gmra.mxu0 %v3655
  %v6015 = vpop.f32.mrf.mxu0
  %v6016 = vadd.f32 %v5932, %v6015
  %v6017 = vpop.f32.mrf.mxu0
  %v6018 = vadd.f32 %v5934, %v6017
  %6019 = vmatmul.bf16.gmra.mxu0 %v3659
  %v6020 = vpop.f32.mrf.mxu0
  %v6021 = vadd.f32 %v5937, %v6020
  %v6022 = vpop.f32.mrf.mxu0
  %v6023 = vadd.f32 %v5939, %v6022
  %6024 = vmatmul.bf16.gmra.mxu0 %v3663
  %v6025 = vpop.f32.mrf.mxu0
  %v6026 = vadd.f32 %v5942, %v6025
  %v6027 = vpop.f32.mrf.mxu0
  %v6028 = vadd.f32 %v5944, %v6027
  %6029 = vmatmul.bf16.gmra.mxu0 %v3667
  %v6030 = vpop.f32.mrf.mxu0
  %v6031 = vadd.f32 %v5947, %v6030
  %v6032 = vpop.f32.mrf.mxu0
  %v6033 = vadd.f32 %v5949, %v6032
  %6034 = vmatmul.bf16.gmra.mxu0 %v3671
  %v6035 = vpop.f32.mrf.mxu0
  %v6036 = vadd.f32 %v5952, %v6035
  %v6037 = vpop.f32.mrf.mxu0
  %v6038 = vadd.f32 %v5954, %v6037
  %6039 = vmatmul.bf16.gmra.mxu0 %v3675
  %v6040 = vpop.f32.mrf.mxu0
  %v6041 = vadd.f32 %v5957, %v6040
  %v6042 = vpop.f32.mrf.mxu0
  %v6043 = vadd.f32 %v5959, %v6042
  %6044 = vmatmul.bf16.gmra.mxu0 %v3679
  %v6045 = vpop.f32.mrf.mxu0
  %v6046 = vadd.f32 %v5962, %v6045
  %v6047 = vpop.f32.mrf.mxu0
  %v6048 = vadd.f32 %v5964, %v6047
  %6049 = vmatmul.bf16.gmra.mxu0 %v3683
  %v6050 = vpop.f32.mrf.mxu0
  %v6051 = vadd.f32 %v5967, %v6050
  %v6052 = vpop.f32.mrf.mxu0
  %v6053 = vadd.f32 %v5969, %v6052
  %6054 = vmatmul.bf16.gmra.mxu0 %v3687
  %v6055 = vpop.f32.mrf.mxu0
  %v6056 = vadd.f32 %v5972, %v6055
  %v6057 = vpop.f32.mrf.mxu0
  %v6058 = vadd.f32 %v5974, %v6057
  %6059 = vmatmul.bf16.gmra.mxu0 %v3691
  %v6060 = vpop.f32.mrf.mxu0
  %v6061 = vadd.f32 %v5977, %v6060
  %v6062 = vpop.f32.mrf.mxu0
  %v6063 = vadd.f32 %v5979, %v6062
  %6064 = vmatmul.bf16.gmra.mxu0 %v3695
  %v6065 = vpop.f32.mrf.mxu0
  %v6066 = vadd.f32 %v5982, %v6065
  %v6067 = vpop.f32.mrf.mxu0
  %v6068 = vadd.f32 %v5984, %v6067
  %6069 = vmatmul.bf16.gmra.mxu0 %v3699
  %v6070 = vpop.f32.mrf.mxu0
  %v6071 = vadd.f32 %v5987, %v6070
  %v6072 = vpop.f32.mrf.mxu0
  %v6073 = vadd.f32 %v5989, %v6072
  %6074 = vmatmul.bf16.gmra.mxu0 %v4075
  %v6075 = vpop.f32.mrf.mxu0
  %v6076 = vadd.f32 %v5992, %v6075
  %v6077 = vpop.f32.mrf.mxu0
  %v6078 = vadd.f32 %v5994, %v6077
  %6079 = vdwg.mxu0
  %6080 = vmatpush.bf16.msra.mxu0 %v5030
  %6081 = vmatpush.bf16.msra.mxu0 %v5028
  %6082 = vmatpush.bf16.msra.mxu0 %v5026
  %6083 = vmatpush.bf16.msra.mxu0 %v5024
  %6084 = vmatpush.bf16.msra.mxu0 %v5022
  %6085 = vmatpush.bf16.msra.mxu0 %v5020
  %6086 = vmatpush.bf16.msra.mxu0 %v5018
  %6087 = vmatpush.bf16.msra.mxu0 %v5016
  %6088 = vmatmul.bf16.gmra.mxu0 %v3648
  %v6089 = vpop.f32.mrf.mxu0
  %v6090 = vadd.f32 %v6006, %v6089
  %v6091 = vpop.f32.mrf.mxu0
  %v6092 = vadd.f32 %v6008, %v6091
  %6093 = vmatmul.bf16.gmra.mxu0 %v3652
  %v6094 = vpop.f32.mrf.mxu0
  %v6095 = vadd.f32 %v6011, %v6094
  %v6096 = vpop.f32.mrf.mxu0
  %v6097 = vadd.f32 %v6013, %v6096
  %6098 = vmatmul.bf16.gmra.mxu0 %v3656
  %v6099 = vpop.f32.mrf.mxu0
  %v6100 = vadd.f32 %v6016, %v6099
  %v6101 = vpop.f32.mrf.mxu0
  %v6102 = vadd.f32 %v6018, %v6101
  %6103 = vmatmul.bf16.gmra.mxu0 %v3660
  %v6104 = vpop.f32.mrf.mxu0
  %v6105 = vadd.f32 %v6021, %v6104
  %v6106 = vpop.f32.mrf.mxu0
  %v6107 = vadd.f32 %v6023, %v6106
  %6108 = vmatmul.bf16.gmra.mxu0 %v3664
  %v6109 = vpop.f32.mrf.mxu0
  %v6110 = vadd.f32 %v6026, %v6109
  %v6111 = vpop.f32.mrf.mxu0
  %v6112 = vadd.f32 %v6028, %v6111
  %6113 = vmatmul.bf16.gmra.mxu0 %v3668
  %v6114 = vpop.f32.mrf.mxu0
  %v6115 = vadd.f32 %v6031, %v6114
  %v6116 = vpop.f32.mrf.mxu0
  %v6117 = vadd.f32 %v6033, %v6116
  %6118 = vmatmul.bf16.gmra.mxu0 %v3672
  %v6119 = vpop.f32.mrf.mxu0
  %v6120 = vadd.f32 %v6036, %v6119
  %v6121 = vpop.f32.mrf.mxu0
  %v6122 = vadd.f32 %v6038, %v6121
  %6123 = vmatmul.bf16.gmra.mxu0 %v3676
  %v6124 = vpop.f32.mrf.mxu0
  %v6125 = vadd.f32 %v6041, %v6124
  %v6126 = vpop.f32.mrf.mxu0
  %v6127 = vadd.f32 %v6043, %v6126
  %6128 = vmatmul.bf16.gmra.mxu0 %v3680
  %v6129 = vpop.f32.mrf.mxu0
  %v6130 = vadd.f32 %v6046, %v6129
  %v6131 = vpop.f32.mrf.mxu0
  %v6132 = vadd.f32 %v6048, %v6131
  %6133 = vmatmul.bf16.gmra.mxu0 %v3684
  %v6134 = vpop.f32.mrf.mxu0
  %v6135 = vadd.f32 %v6051, %v6134
  %v6136 = vpop.f32.mrf.mxu0
  %v6137 = vadd.f32 %v6053, %v6136
  %6138 = vmatmul.bf16.gmra.mxu0 %v3688
  %v6139 = vpop.f32.mrf.mxu0
  %v6140 = vadd.f32 %v6056, %v6139
  %v6141 = vpop.f32.mrf.mxu0
  %v6142 = vadd.f32 %v6058, %v6141
  %6143 = vmatmul.bf16.gmra.mxu0 %v3692
  %v6144 = vpop.f32.mrf.mxu0
  %v6145 = vadd.f32 %v6061, %v6144
  %v6146 = vpop.f32.mrf.mxu0
  %v6147 = vadd.f32 %v6063, %v6146
  %6148 = vmatmul.bf16.gmra.mxu0 %v3696
  %v6149 = vpop.f32.mrf.mxu0
  %v6150 = vadd.f32 %v6066, %v6149
  %v6151 = vpop.f32.mrf.mxu0
  %v6152 = vadd.f32 %v6068, %v6151
  %6153 = vmatmul.bf16.gmra.mxu0 %v3700
  %v6154 = vpop.f32.mrf.mxu0
  %v6155 = vadd.f32 %v6071, %v6154
  %v6156 = vpop.f32.mrf.mxu0
  %v6157 = vadd.f32 %v6073, %v6156
  %6158 = vmatmul.bf16.gmra.mxu0 %v4076
  %v6159 = vpop.f32.mrf.mxu0
  %v6160 = vadd.f32 %v6076, %v6159
  %v6161 = vpop.f32.mrf.mxu0
  %v6162 = vadd.f32 %v6078, %v6161
  %6163 = vdwg.mxu0
  %6164 = vmatpush.bf16.msra.mxu0 %v5046
  %6165 = vmatpush.bf16.msra.mxu0 %v5044
  %6166 = vmatpush.bf16.msra.mxu0 %v5042
  %6167 = vmatpush.bf16.msra.mxu0 %v5040
  %6168 = vmatpush.bf16.msra.mxu0 %v5038
  %6169 = vmatpush.bf16.msra.mxu0 %v5036
  %6170 = vmatpush.bf16.msra.mxu0 %v5034
  %6171 = vmatpush.bf16.msra.mxu0 %v5032
  %6172 = vmatmul.bf16.gmra.mxu0 %v3649
  %v6173 = vpop.f32.mrf.mxu0
  %v6174 = vadd.f32 %v6090, %v6173
  %v6175 = vpop.f32.mrf.mxu0
  %v6176 = vadd.f32 %v6092, %v6175
  %6177 = vmatmul.bf16.gmra.mxu0 %v3653
  %v6178 = vpop.f32.mrf.mxu0
  %v6179 = vadd.f32 %v6095, %v6178
  %v6180 = vpop.f32.mrf.mxu0
  %v6181 = vadd.f32 %v6097, %v6180
  %6182 = vmatmul.bf16.gmra.mxu0 %v3657
  %v6183 = vpop.f32.mrf.mxu0
  %v6184 = vadd.f32 %v6100, %v6183
  %v6185 = vpop.f32.mrf.mxu0
  %v6186 = vadd.f32 %v6102, %v6185
  %6187 = vmatmul.bf16.gmra.mxu0 %v3661
  %v6188 = vpop.f32.mrf.mxu0
  %v6189 = vadd.f32 %v6105, %v6188
  %v6190 = vpop.f32.mrf.mxu0
  %v6191 = vadd.f32 %v6107, %v6190
  %6192 = vmatmul.bf16.gmra.mxu0 %v3665
  %v6193 = vpop.f32.mrf.mxu0
  %v6194 = vadd.f32 %v6110, %v6193
  %v6195 = vpop.f32.mrf.mxu0
  %v6196 = vadd.f32 %v6112, %v6195
  %6197 = vmatmul.bf16.gmra.mxu0 %v3669
  %v6198 = vpop.f32.mrf.mxu0
  %v6199 = vadd.f32 %v6115, %v6198
  %v6200 = vpop.f32.mrf.mxu0
  %v6201 = vadd.f32 %v6117, %v6200
  %6202 = vmatmul.bf16.gmra.mxu0 %v3673
  %v6203 = vpop.f32.mrf.mxu0
  %v6204 = vadd.f32 %v6120, %v6203
  %v6205 = vpop.f32.mrf.mxu0
  %v6206 = vadd.f32 %v6122, %v6205
  %6207 = vmatmul.bf16.gmra.mxu0 %v3677
  %v6208 = vpop.f32.mrf.mxu0
  %v6209 = vadd.f32 %v6125, %v6208
  %v6210 = vpop.f32.mrf.mxu0
  %v6211 = vadd.f32 %v6127, %v6210
  %6212 = vmatmul.bf16.gmra.mxu0 %v3681
  %v6213 = vpop.f32.mrf.mxu0
  %v6214 = vadd.f32 %v6130, %v6213
  %v6215 = vpop.f32.mrf.mxu0
  %v6216 = vadd.f32 %v6132, %v6215
  %6217 = vmatmul.bf16.gmra.mxu0 %v3685
  %v6218 = vpop.f32.mrf.mxu0
  %v6219 = vadd.f32 %v6135, %v6218
  %v6220 = vpop.f32.mrf.mxu0
  %v6221 = vadd.f32 %v6137, %v6220
  %6222 = vmatmul.bf16.gmra.mxu0 %v3689
  %v6223 = vpop.f32.mrf.mxu0
  %v6224 = vadd.f32 %v6140, %v6223
  %v6225 = vpop.f32.mrf.mxu0
  %v6226 = vadd.f32 %v6142, %v6225
  %6227 = vmatmul.bf16.gmra.mxu0 %v3693
  %v6228 = vpop.f32.mrf.mxu0
  %v6229 = vadd.f32 %v6145, %v6228
  %v6230 = vpop.f32.mrf.mxu0
  %v6231 = vadd.f32 %v6147, %v6230
  %6232 = vmatmul.bf16.gmra.mxu0 %v3697
  %v6233 = vpop.f32.mrf.mxu0
  %v6234 = vadd.f32 %v6150, %v6233
  %v6235 = vpop.f32.mrf.mxu0
  %v6236 = vadd.f32 %v6152, %v6235
  %6237 = vmatmul.bf16.gmra.mxu0 %v3701
  %v6238 = vpop.f32.mrf.mxu0
  %v6239 = vadd.f32 %v6155, %v6238
  %v6240 = vpop.f32.mrf.mxu0
  %v6241 = vadd.f32 %v6157, %v6240
  %6242 = vmatmul.bf16.gmra.mxu0 %v4077
  %v6243 = vpop.f32.mrf.mxu0
  %v6244 = vadd.f32 %v6160, %v6243
  %v6245 = vpop.f32.mrf.mxu0
  %v6246 = vadd.f32 %v6162, %v6245
  %6247 = vdwg.mxu0
  %6248 = vmatpush.bf16.msra.mxu0 %v4871
  %6249 = vmatpush.bf16.msra.mxu0 %v4869
  %6250 = vmatpush.bf16.msra.mxu0 %v4867
  %6251 = vmatpush.bf16.msra.mxu0 %v4865
  %6252 = vmatpush.bf16.msra.mxu0 %v4863
  %6253 = vmatpush.bf16.msra.mxu0 %v4861
  %6254 = vmatpush.bf16.msra.mxu0 %v4859
  %6255 = vmatpush.bf16.msra.mxu0 %v4857
  %6256 = vmatmul.bf16.gmra.mxu0 %v3642
  %v6257 = vpop.f32.mrf.mxu0
  %v6258 = vadd.f32 %v4277, %v6257
  %v6259 = vpop.f32.mrf.mxu0
  %v6260 = vadd.f32 %v4277, %v6259
  %6261 = vmatmul.bf16.gmra.mxu0 %v3646
  %v6262 = vpop.f32.mrf.mxu0
  %v6263 = vadd.f32 %v4277, %v6262
  %v6264 = vpop.f32.mrf.mxu0
  %v6265 = vadd.f32 %v4277, %v6264
  %6266 = vmatmul.bf16.gmra.mxu0 %v3650
  %v6267 = vpop.f32.mrf.mxu0
  %v6268 = vadd.f32 %v4277, %v6267
  %v6269 = vpop.f32.mrf.mxu0
  %v6270 = vadd.f32 %v4277, %v6269
  %6271 = vmatmul.bf16.gmra.mxu0 %v3654
  %v6272 = vpop.f32.mrf.mxu0
  %v6273 = vadd.f32 %v4277, %v6272
  %v6274 = vpop.f32.mrf.mxu0
  %v6275 = vadd.f32 %v4277, %v6274
  %6276 = vmatmul.bf16.gmra.mxu0 %v3658
  %v6277 = vpop.f32.mrf.mxu0
  %v6278 = vadd.f32 %v4277, %v6277
  %v6279 = vpop.f32.mrf.mxu0
  %v6280 = vadd.f32 %v4277, %v6279
  %6281 = vmatmul.bf16.gmra.mxu0 %v3662
  %v6282 = vpop.f32.mrf.mxu0
  %v6283 = vadd.f32 %v4277, %v6282
  %v6284 = vpop.f32.mrf.mxu0
  %v6285 = vadd.f32 %v4277, %v6284
  %6286 = vmatmul.bf16.gmra.mxu0 %v3666
  %v6287 = vpop.f32.mrf.mxu0
  %v6288 = vadd.f32 %v4277, %v6287
  %v6289 = vpop.f32.mrf.mxu0
  %v6290 = vadd.f32 %v4277, %v6289
  %6291 = vmatmul.bf16.gmra.mxu0 %v3670
  %v6292 = vpop.f32.mrf.mxu0
  %v6293 = vadd.f32 %v4277, %v6292
  %v6294 = vpop.f32.mrf.mxu0
  %v6295 = vadd.f32 %v4277, %v6294
  %6296 = vmatmul.bf16.gmra.mxu0 %v3674
  %v6297 = vpop.f32.mrf.mxu0
  %v6298 = vadd.f32 %v4277, %v6297
  %v6299 = vpop.f32.mrf.mxu0
  %v6300 = vadd.f32 %v4277, %v6299
  %6301 = vmatmul.bf16.gmra.mxu0 %v3678
  %v6302 = vpop.f32.mrf.mxu0
  %v6303 = vadd.f32 %v4277, %v6302
  %v6304 = vpop.f32.mrf.mxu0
  %v6305 = vadd.f32 %v4277, %v6304
  %6306 = vmatmul.bf16.gmra.mxu0 %v3682
  %v6307 = vpop.f32.mrf.mxu0
  %v6308 = vadd.f32 %v4277, %v6307
  %v6309 = vpop.f32.mrf.mxu0
  %v6310 = vadd.f32 %v4277, %v6309
  %6311 = vmatmul.bf16.gmra.mxu0 %v3686
  %v6312 = vpop.f32.mrf.mxu0
  %v6313 = vadd.f32 %v4277, %v6312
  %v6314 = vpop.f32.mrf.mxu0
  %v6315 = vadd.f32 %v4277, %v6314
  %6316 = vmatmul.bf16.gmra.mxu0 %v3690
  %v6317 = vpop.f32.mrf.mxu0
  %v6318 = vadd.f32 %v4277, %v6317
  %v6319 = vpop.f32.mrf.mxu0
  %v6320 = vadd.f32 %v4277, %v6319
  %6321 = vmatmul.bf16.gmra.mxu0 %v3694
  %v6322 = vpop.f32.mrf.mxu0
  %v6323 = vadd.f32 %v4277, %v6322
  %v6324 = vpop.f32.mrf.mxu0
  %v6325 = vadd.f32 %v4277, %v6324
  %6326 = vmatmul.bf16.gmra.mxu0 %v3698
  %v6327 = vpop.f32.mrf.mxu0
  %v6328 = vadd.f32 %v4277, %v6327
  %v6329 = vpop.f32.mrf.mxu0
  %v6330 = vadd.f32 %v4277, %v6329
  %6331 = vdwg.mxu0
  %6332 = vmatpush.bf16.msra.mxu0 %v4887
  %6333 = vmatpush.bf16.msra.mxu0 %v4885
  %6334 = vmatpush.bf16.msra.mxu0 %v4883
  %6335 = vmatpush.bf16.msra.mxu0 %v4881
  %6336 = vmatpush.bf16.msra.mxu0 %v4879
  %6337 = vmatpush.bf16.msra.mxu0 %v4877
  %6338 = vmatpush.bf16.msra.mxu0 %v4875
  %6339 = vmatpush.bf16.msra.mxu0 %v4873
  %6340 = vmatmul.bf16.gmra.mxu0 %v3643
  %v6341 = vpop.f32.mrf.mxu0
  %v6342 = vadd.f32 %v6258, %v6341
  %v6343 = vpop.f32.mrf.mxu0
  %v6344 = vadd.f32 %v6260, %v6343
  %6345 = vmatmul.bf16.gmra.mxu0 %v3647
  %v6346 = vpop.f32.mrf.mxu0
  %v6347 = vadd.f32 %v6263, %v6346
  %v6348 = vpop.f32.mrf.mxu0
  %v6349 = vadd.f32 %v6265, %v6348
  %6350 = vmatmul.bf16.gmra.mxu0 %v3651
  %v6351 = vpop.f32.mrf.mxu0
  %v6352 = vadd.f32 %v6268, %v6351
  %v6353 = vpop.f32.mrf.mxu0
  %v6354 = vadd.f32 %v6270, %v6353
  %6355 = vmatmul.bf16.gmra.mxu0 %v3655
  %v6356 = vpop.f32.mrf.mxu0
  %v6357 = vadd.f32 %v6273, %v6356
  %v6358 = vpop.f32.mrf.mxu0
  %v6359 = vadd.f32 %v6275, %v6358
  %6360 = vmatmul.bf16.gmra.mxu0 %v3659
  %v6361 = vpop.f32.mrf.mxu0
  %v6362 = vadd.f32 %v6278, %v6361
  %v6363 = vpop.f32.mrf.mxu0
  %v6364 = vadd.f32 %v6280, %v6363
  %6365 = vmatmul.bf16.gmra.mxu0 %v3663
  %v6366 = vpop.f32.mrf.mxu0
  %v6367 = vadd.f32 %v6283, %v6366
  %v6368 = vpop.f32.mrf.mxu0
  %v6369 = vadd.f32 %v6285, %v6368
  %6370 = vmatmul.bf16.gmra.mxu0 %v3667
  %v6371 = vpop.f32.mrf.mxu0
  %v6372 = vadd.f32 %v6288, %v6371
  %v6373 = vpop.f32.mrf.mxu0
  %v6374 = vadd.f32 %v6290, %v6373
  %6375 = vmatmul.bf16.gmra.mxu0 %v3671
  %v6376 = vpop.f32.mrf.mxu0
  %v6377 = vadd.f32 %v6293, %v6376
  %v6378 = vpop.f32.mrf.mxu0
  %v6379 = vadd.f32 %v6295, %v6378
  %6380 = vmatmul.bf16.gmra.mxu0 %v3675
  %v6381 = vpop.f32.mrf.mxu0
  %v6382 = vadd.f32 %v6298, %v6381
  %v6383 = vpop.f32.mrf.mxu0
  %v6384 = vadd.f32 %v6300, %v6383
  %6385 = vmatmul.bf16.gmra.mxu0 %v3679
  %v6386 = vpop.f32.mrf.mxu0
  %v6387 = vadd.f32 %v6303, %v6386
  %v6388 = vpop.f32.mrf.mxu0
  %v6389 = vadd.f32 %v6305, %v6388
  %6390 = vmatmul.bf16.gmra.mxu0 %v3683
  %v6391 = vpop.f32.mrf.mxu0
  %v6392 = vadd.f32 %v6308, %v6391
  %v6393 = vpop.f32.mrf.mxu0
  %v6394 = vadd.f32 %v6310, %v6393
  %6395 = vmatmul.bf16.gmra.mxu0 %v3687
  %v6396 = vpop.f32.mrf.mxu0
  %v6397 = vadd.f32 %v6313, %v6396
  %v6398 = vpop.f32.mrf.mxu0
  %v6399 = vadd.f32 %v6315, %v6398
  %6400 = vmatmul.bf16.gmra.mxu0 %v3691
  %v6401 = vpop.f32.mrf.mxu0
  %v6402 = vadd.f32 %v6318, %v6401
  %v6403 = vpop.f32.mrf.mxu0
  %v6404 = vadd.f32 %v6320, %v6403
  %6405 = vmatmul.bf16.gmra.mxu0 %v3695
  %v6406 = vpop.f32.mrf.mxu0
  %v6407 = vadd.f32 %v6323, %v6406
  %v6408 = vpop.f32.mrf.mxu0
  %v6409 = vadd.f32 %v6325, %v6408
  %6410 = vmatmul.bf16.gmra.mxu0 %v3699
  %v6411 = vpop.f32.mrf.mxu0
  %v6412 = vadd.f32 %v6328, %v6411
  %v6413 = vpop.f32.mrf.mxu0
  %v6414 = vadd.f32 %v6330, %v6413
  %6415 = vdwg.mxu0
  %6416 = vmatpush.bf16.msra.mxu0 %v4903
  %6417 = vmatpush.bf16.msra.mxu0 %v4901
  %6418 = vmatpush.bf16.msra.mxu0 %v4899
  %6419 = vmatpush.bf16.msra.mxu0 %v4897
  %6420 = vmatpush.bf16.msra.mxu0 %v4895
  %6421 = vmatpush.bf16.msra.mxu0 %v4893
  %6422 = vmatpush.bf16.msra.mxu0 %v4891
  %6423 = vmatpush.bf16.msra.mxu0 %v4889
  %6424 = vmatmul.bf16.gmra.mxu0 %v3644
  %v6425 = vpop.f32.mrf.mxu0
  %v6426 = vadd.f32 %v6342, %v6425
  %v6427 = vpop.f32.mrf.mxu0
  %v6428 = vadd.f32 %v6344, %v6427
  %6429 = vmatmul.bf16.gmra.mxu0 %v3648
  %v6430 = vpop.f32.mrf.mxu0
  %v6431 = vadd.f32 %v6347, %v6430
  %v6432 = vpop.f32.mrf.mxu0
  %v6433 = vadd.f32 %v6349, %v6432
  %6434 = vmatmul.bf16.gmra.mxu0 %v3652
  %v6435 = vpop.f32.mrf.mxu0
  %v6436 = vadd.f32 %v6352, %v6435
  %v6437 = vpop.f32.mrf.mxu0
  %v6438 = vadd.f32 %v6354, %v6437
  %6439 = vmatmul.bf16.gmra.mxu0 %v3656
  %v6440 = vpop.f32.mrf.mxu0
  %v6441 = vadd.f32 %v6357, %v6440
  %v6442 = vpop.f32.mrf.mxu0
  %v6443 = vadd.f32 %v6359, %v6442
  %6444 = vmatmul.bf16.gmra.mxu0 %v3660
  %v6445 = vpop.f32.mrf.mxu0
  %v6446 = vadd.f32 %v6362, %v6445
  %v6447 = vpop.f32.mrf.mxu0
  %v6448 = vadd.f32 %v6364, %v6447
  %6449 = vmatmul.bf16.gmra.mxu0 %v3664
  %v6450 = vpop.f32.mrf.mxu0
  %v6451 = vadd.f32 %v6367, %v6450
  %v6452 = vpop.f32.mrf.mxu0
  %v6453 = vadd.f32 %v6369, %v6452
  %6454 = vmatmul.bf16.gmra.mxu0 %v3668
  %v6455 = vpop.f32.mrf.mxu0
  %v6456 = vadd.f32 %v6372, %v6455
  %v6457 = vpop.f32.mrf.mxu0
  %v6458 = vadd.f32 %v6374, %v6457
  %6459 = vmatmul.bf16.gmra.mxu0 %v3672
  %v6460 = vpop.f32.mrf.mxu0
  %v6461 = vadd.f32 %v6377, %v6460
  %v6462 = vpop.f32.mrf.mxu0
  %v6463 = vadd.f32 %v6379, %v6462
  %6464 = vmatmul.bf16.gmra.mxu0 %v3676
  %v6465 = vpop.f32.mrf.mxu0
  %v6466 = vadd.f32 %v6382, %v6465
  %v6467 = vpop.f32.mrf.mxu0
  %v6468 = vadd.f32 %v6384, %v6467
  %6469 = vmatmul.bf16.gmra.mxu0 %v3680
  %v6470 = vpop.f32.mrf.mxu0
  %v6471 = vadd.f32 %v6387, %v6470
  %v6472 = vpop.f32.mrf.mxu0
  %v6473 = vadd.f32 %v6389, %v6472
  %6474 = vmatmul.bf16.gmra.mxu0 %v3684
  %v6475 = vpop.f32.mrf.mxu0
  %v6476 = vadd.f32 %v6392, %v6475
  %v6477 = vpop.f32.mrf.mxu0
  %v6478 = vadd.f32 %v6394, %v6477
  %6479 = vmatmul.bf16.gmra.mxu0 %v3688
  %v6480 = vpop.f32.mrf.mxu0
  %v6481 = vadd.f32 %v6397, %v6480
  %v6482 = vpop.f32.mrf.mxu0
  %v6483 = vadd.f32 %v6399, %v6482
  %6484 = vmatmul.bf16.gmra.mxu0 %v3692
  %v6485 = vpop.f32.mrf.mxu0
  %v6486 = vadd.f32 %v6402, %v6485
  %v6487 = vpop.f32.mrf.mxu0
  %v6488 = vadd.f32 %v6404, %v6487
  %6489 = vmatmul.bf16.gmra.mxu0 %v3696
  %v6490 = vpop.f32.mrf.mxu0
  %v6491 = vadd.f32 %v6407, %v6490
  %v6492 = vpop.f32.mrf.mxu0
  %v6493 = vadd.f32 %v6409, %v6492
  %6494 = vmatmul.bf16.gmra.mxu0 %v3700
  %v6495 = vpop.f32.mrf.mxu0
  %v6496 = vadd.f32 %v6412, %v6495
  %v6497 = vpop.f32.mrf.mxu0
  %v6498 = vadd.f32 %v6414, %v6497
  %6499 = vdwg.mxu0
  %6500 = vmatpush.bf16.msra.mxu0 %v4919
  %6501 = vmatpush.bf16.msra.mxu0 %v4917
  %6502 = vmatpush.bf16.msra.mxu0 %v4915
  %6503 = vmatpush.bf16.msra.mxu0 %v4913
  %6504 = vmatpush.bf16.msra.mxu0 %v4911
  %6505 = vmatpush.bf16.msra.mxu0 %v4909
  %6506 = vmatpush.bf16.msra.mxu0 %v4907
  %6507 = vmatpush.bf16.msra.mxu0 %v4905
  %6508 = vmatmul.bf16.gmra.mxu0 %v3645
  %v6509 = vpop.f32.mrf.mxu0
  %v6510 = vadd.f32 %v6426, %v6509
  %v6511 = vpop.f32.mrf.mxu0
  %v6512 = vadd.f32 %v6428, %v6511
  %6513 = vmatmul.bf16.gmra.mxu0 %v3649
  %v6514 = vpop.f32.mrf.mxu0
  %v6515 = vadd.f32 %v6431, %v6514
  %v6516 = vpop.f32.mrf.mxu0
  %v6517 = vadd.f32 %v6433, %v6516
  %6518 = vmatmul.bf16.gmra.mxu0 %v3653
  %v6519 = vpop.f32.mrf.mxu0
  %v6520 = vadd.f32 %v6436, %v6519
  %v6521 = vpop.f32.mrf.mxu0
  %v6522 = vadd.f32 %v6438, %v6521
  %6523 = vmatmul.bf16.gmra.mxu0 %v3657
  %v6524 = vpop.f32.mrf.mxu0
  %v6525 = vadd.f32 %v6441, %v6524
  %v6526 = vpop.f32.mrf.mxu0
  %v6527 = vadd.f32 %v6443, %v6526
  %6528 = vmatmul.bf16.gmra.mxu0 %v3661
  %v6529 = vpop.f32.mrf.mxu0
  %v6530 = vadd.f32 %v6446, %v6529
  %v6531 = vpop.f32.mrf.mxu0
  %v6532 = vadd.f32 %v6448, %v6531
  %6533 = vmatmul.bf16.gmra.mxu0 %v3665
  %v6534 = vpop.f32.mrf.mxu0
  %v6535 = vadd.f32 %v6451, %v6534
  %v6536 = vpop.f32.mrf.mxu0
  %v6537 = vadd.f32 %v6453, %v6536
  %6538 = vmatmul.bf16.gmra.mxu0 %v3669
  %v6539 = vpop.f32.mrf.mxu0
  %v6540 = vadd.f32 %v6456, %v6539
  %v6541 = vpop.f32.mrf.mxu0
  %v6542 = vadd.f32 %v6458, %v6541
  %6543 = vmatmul.bf16.gmra.mxu0 %v3673
  %v6544 = vpop.f32.mrf.mxu0
  %v6545 = vadd.f32 %v6461, %v6544
  %v6546 = vpop.f32.mrf.mxu0
  %v6547 = vadd.f32 %v6463, %v6546
  %6548 = vmatmul.bf16.gmra.mxu0 %v3677
  %v6549 = vpop.f32.mrf.mxu0
  %v6550 = vadd.f32 %v6466, %v6549
  %v6551 = vpop.f32.mrf.mxu0
  %v6552 = vadd.f32 %v6468, %v6551
  %6553 = vmatmul.bf16.gmra.mxu0 %v3681
  %v6554 = vpop.f32.mrf.mxu0
  %v6555 = vadd.f32 %v6471, %v6554
  %v6556 = vpop.f32.mrf.mxu0
  %v6557 = vadd.f32 %v6473, %v6556
  %6558 = vmatmul.bf16.gmra.mxu0 %v3685
  %v6559 = vpop.f32.mrf.mxu0
  %v6560 = vadd.f32 %v6476, %v6559
  %v6561 = vpop.f32.mrf.mxu0
  %v6562 = vadd.f32 %v6478, %v6561
  %6563 = vmatmul.bf16.gmra.mxu0 %v3689
  %v6564 = vpop.f32.mrf.mxu0
  %v6565 = vadd.f32 %v6481, %v6564
  %v6566 = vpop.f32.mrf.mxu0
  %v6567 = vadd.f32 %v6483, %v6566
  %6568 = vmatmul.bf16.gmra.mxu0 %v3693
  %v6569 = vpop.f32.mrf.mxu0
  %v6570 = vadd.f32 %v6486, %v6569
  %v6571 = vpop.f32.mrf.mxu0
  %v6572 = vadd.f32 %v6488, %v6571
  %6573 = vmatmul.bf16.gmra.mxu0 %v3697
  %v6574 = vpop.f32.mrf.mxu0
  %v6575 = vadd.f32 %v6491, %v6574
  %v6576 = vpop.f32.mrf.mxu0
  %v6577 = vadd.f32 %v6493, %v6576
  %6578 = vmatmul.bf16.gmra.mxu0 %v3701
  %v6579 = vpop.f32.mrf.mxu0
  %v6580 = vadd.f32 %v6496, %v6579
  %v6581 = vpop.f32.mrf.mxu0
  %v6582 = vadd.f32 %v6498, %v6581
  %6583 = vdwg.mxu0
  %6584 = vmatpush.bf16.msra.mxu0 %v4935
  %6585 = vmatpush.bf16.msra.mxu0 %v4933
  %6586 = vmatpush.bf16.msra.mxu0 %v4931
  %6587 = vmatpush.bf16.msra.mxu0 %v4929
  %6588 = vmatpush.bf16.msra.mxu0 %v4927
  %6589 = vmatpush.bf16.msra.mxu0 %v4925
  %6590 = vmatpush.bf16.msra.mxu0 %v4923
  %6591 = vmatpush.bf16.msra.mxu0 %v4921
  %6592 = vmatmul.bf16.gmra.mxu0 %v3942
  %v6593 = vpop.f32.mrf.mxu0
  %v6594 = vadd.f32 %v6510, %v6593
  %v6595 = vpop.f32.mrf.mxu0
  %v6596 = vadd.f32 %v6512, %v6595
  %6597 = vmatmul.bf16.gmra.mxu0 %v3946
  %v6598 = vpop.f32.mrf.mxu0
  %v6599 = vadd.f32 %v6515, %v6598
  %v6600 = vpop.f32.mrf.mxu0
  %v6601 = vadd.f32 %v6517, %v6600
  %6602 = vmatmul.bf16.gmra.mxu0 %v3950
  %v6603 = vpop.f32.mrf.mxu0
  %v6604 = vadd.f32 %v6520, %v6603
  %v6605 = vpop.f32.mrf.mxu0
  %v6606 = vadd.f32 %v6522, %v6605
  %6607 = vmatmul.bf16.gmra.mxu0 %v3954
  %v6608 = vpop.f32.mrf.mxu0
  %v6609 = vadd.f32 %v6525, %v6608
  %v6610 = vpop.f32.mrf.mxu0
  %v6611 = vadd.f32 %v6527, %v6610
  %6612 = vmatmul.bf16.gmra.mxu0 %v3958
  %v6613 = vpop.f32.mrf.mxu0
  %v6614 = vadd.f32 %v6530, %v6613
  %v6615 = vpop.f32.mrf.mxu0
  %v6616 = vadd.f32 %v6532, %v6615
  %6617 = vmatmul.bf16.gmra.mxu0 %v3962
  %v6618 = vpop.f32.mrf.mxu0
  %v6619 = vadd.f32 %v6535, %v6618
  %v6620 = vpop.f32.mrf.mxu0
  %v6621 = vadd.f32 %v6537, %v6620
  %6622 = vmatmul.bf16.gmra.mxu0 %v3966
  %v6623 = vpop.f32.mrf.mxu0
  %v6624 = vadd.f32 %v6540, %v6623
  %v6625 = vpop.f32.mrf.mxu0
  %v6626 = vadd.f32 %v6542, %v6625
  %6627 = vmatmul.bf16.gmra.mxu0 %v3970
  %v6628 = vpop.f32.mrf.mxu0
  %v6629 = vadd.f32 %v6545, %v6628
  %v6630 = vpop.f32.mrf.mxu0
  %v6631 = vadd.f32 %v6547, %v6630
  %6632 = vmatmul.bf16.gmra.mxu0 %v3974
  %v6633 = vpop.f32.mrf.mxu0
  %v6634 = vadd.f32 %v6550, %v6633
  %v6635 = vpop.f32.mrf.mxu0
  %v6636 = vadd.f32 %v6552, %v6635
  %6637 = vmatmul.bf16.gmra.mxu0 %v3978
  %v6638 = vpop.f32.mrf.mxu0
  %v6639 = vadd.f32 %v6555, %v6638
  %v6640 = vpop.f32.mrf.mxu0
  %v6641 = vadd.f32 %v6557, %v6640
  %6642 = vmatmul.bf16.gmra.mxu0 %v3982
  %v6643 = vpop.f32.mrf.mxu0
  %v6644 = vadd.f32 %v6560, %v6643
  %v6645 = vpop.f32.mrf.mxu0
  %v6646 = vadd.f32 %v6562, %v6645
  %6647 = vmatmul.bf16.gmra.mxu0 %v3986
  %v6648 = vpop.f32.mrf.mxu0
  %v6649 = vadd.f32 %v6565, %v6648
  %v6650 = vpop.f32.mrf.mxu0
  %v6651 = vadd.f32 %v6567, %v6650
  %6652 = vmatmul.bf16.gmra.mxu0 %v3990
  %v6653 = vpop.f32.mrf.mxu0
  %v6654 = vadd.f32 %v6570, %v6653
  %v6655 = vpop.f32.mrf.mxu0
  %v6656 = vadd.f32 %v6572, %v6655
  %6657 = vmatmul.bf16.gmra.mxu0 %v3994
  %v6658 = vpop.f32.mrf.mxu0
  %v6659 = vadd.f32 %v6575, %v6658
  %v6660 = vpop.f32.mrf.mxu0
  %v6661 = vadd.f32 %v6577, %v6660
  %6662 = vmatmul.bf16.gmra.mxu0 %v3998
  %v6663 = vpop.f32.mrf.mxu0
  %v6664 = vadd.f32 %v6580, %v6663
  %v6665 = vpop.f32.mrf.mxu0
  %v6666 = vadd.f32 %v6582, %v6665
  %6667 = vdwg.mxu0
  %6668 = vmatpush.bf16.msra.mxu0 %v4951
  %6669 = vmatpush.bf16.msra.mxu0 %v4949
  %6670 = vmatpush.bf16.msra.mxu0 %v4947
  %6671 = vmatpush.bf16.msra.mxu0 %v4945
  %6672 = vmatpush.bf16.msra.mxu0 %v4943
  %6673 = vmatpush.bf16.msra.mxu0 %v4941
  %6674 = vmatpush.bf16.msra.mxu0 %v4939
  %6675 = vmatpush.bf16.msra.mxu0 %v4937
  %6676 = vmatmul.bf16.gmra.mxu0 %v3943
  %v6677 = vpop.f32.mrf.mxu0
  %v6678 = vadd.f32 %v6594, %v6677
  %v6679 = vpop.f32.mrf.mxu0
  %v6680 = vadd.f32 %v6596, %v6679
  %6681 = vmatmul.bf16.gmra.mxu0 %v3947
  %v6682 = vpop.f32.mrf.mxu0
  %v6683 = vadd.f32 %v6599, %v6682
  %v6684 = vpop.f32.mrf.mxu0
  %v6685 = vadd.f32 %v6601, %v6684
  %6686 = vmatmul.bf16.gmra.mxu0 %v3951
  %v6687 = vpop.f32.mrf.mxu0
  %v6688 = vadd.f32 %v6604, %v6687
  %v6689 = vpop.f32.mrf.mxu0
  %v6690 = vadd.f32 %v6606, %v6689
  %6691 = vmatmul.bf16.gmra.mxu0 %v3955
  %v6692 = vpop.f32.mrf.mxu0
  %v6693 = vadd.f32 %v6609, %v6692
  %v6694 = vpop.f32.mrf.mxu0
  %v6695 = vadd.f32 %v6611, %v6694
  %6696 = vmatmul.bf16.gmra.mxu0 %v3959
  %v6697 = vpop.f32.mrf.mxu0
  %v6698 = vadd.f32 %v6614, %v6697
  %v6699 = vpop.f32.mrf.mxu0
  %v6700 = vadd.f32 %v6616, %v6699
  %6701 = vmatmul.bf16.gmra.mxu0 %v3963
  %v6702 = vpop.f32.mrf.mxu0
  %v6703 = vadd.f32 %v6619, %v6702
  %v6704 = vpop.f32.mrf.mxu0
  %v6705 = vadd.f32 %v6621, %v6704
  %6706 = vmatmul.bf16.gmra.mxu0 %v3967
  %v6707 = vpop.f32.mrf.mxu0
  %v6708 = vadd.f32 %v6624, %v6707
  %v6709 = vpop.f32.mrf.mxu0
  %v6710 = vadd.f32 %v6626, %v6709
  %6711 = vmatmul.bf16.gmra.mxu0 %v3971
  %v6712 = vpop.f32.mrf.mxu0
  %v6713 = vadd.f32 %v6629, %v6712
  %v6714 = vpop.f32.mrf.mxu0
  %v6715 = vadd.f32 %v6631, %v6714
  %6716 = vmatmul.bf16.gmra.mxu0 %v3975
  %v6717 = vpop.f32.mrf.mxu0
  %v6718 = vadd.f32 %v6634, %v6717
  %v6719 = vpop.f32.mrf.mxu0
  %v6720 = vadd.f32 %v6636, %v6719
  %6721 = vmatmul.bf16.gmra.mxu0 %v3979
  %v6722 = vpop.f32.mrf.mxu0
  %v6723 = vadd.f32 %v6639, %v6722
  %v6724 = vpop.f32.mrf.mxu0
  %v6725 = vadd.f32 %v6641, %v6724
  %6726 = vmatmul.bf16.gmra.mxu0 %v3983
  %v6727 = vpop.f32.mrf.mxu0
  %v6728 = vadd.f32 %v6644, %v6727
  %v6729 = vpop.f32.mrf.mxu0
  %v6730 = vadd.f32 %v6646, %v6729
  %6731 = vmatmul.bf16.gmra.mxu0 %v3987
  %v6732 = vpop.f32.mrf.mxu0
  %v6733 = vadd.f32 %v6649, %v6732
  %v6734 = vpop.f32.mrf.mxu0
  %v6735 = vadd.f32 %v6651, %v6734
  %6736 = vmatmul.bf16.gmra.mxu0 %v3991
  %v6737 = vpop.f32.mrf.mxu0
  %v6738 = vadd.f32 %v6654, %v6737
  %v6739 = vpop.f32.mrf.mxu0
  %v6740 = vadd.f32 %v6656, %v6739
  %6741 = vmatmul.bf16.gmra.mxu0 %v3995
  %v6742 = vpop.f32.mrf.mxu0
  %v6743 = vadd.f32 %v6659, %v6742
  %v6744 = vpop.f32.mrf.mxu0
  %v6745 = vadd.f32 %v6661, %v6744
  %6746 = vmatmul.bf16.gmra.mxu0 %v3999
  %v6747 = vpop.f32.mrf.mxu0
  %v6748 = vadd.f32 %v6664, %v6747
  %v6749 = vpop.f32.mrf.mxu0
  %v6750 = vadd.f32 %v6666, %v6749
  %6751 = vdwg.mxu0
  %6752 = vmatpush.bf16.msra.mxu0 %v4967
  %6753 = vmatpush.bf16.msra.mxu0 %v4965
  %6754 = vmatpush.bf16.msra.mxu0 %v4963
  %6755 = vmatpush.bf16.msra.mxu0 %v4961
  %6756 = vmatpush.bf16.msra.mxu0 %v4959
  %6757 = vmatpush.bf16.msra.mxu0 %v4957
  %6758 = vmatpush.bf16.msra.mxu0 %v4955
  %6759 = vmatpush.bf16.msra.mxu0 %v4953
  %6760 = vmatmul.bf16.gmra.mxu0 %v3944
  %v6761 = vpop.f32.mrf.mxu0
  %v6762 = vadd.f32 %v6678, %v6761
  %v6763 = vpop.f32.mrf.mxu0
  %v6764 = vadd.f32 %v6680, %v6763
  %6765 = vmatmul.bf16.gmra.mxu0 %v3948
  %v6766 = vpop.f32.mrf.mxu0
  %v6767 = vadd.f32 %v6683, %v6766
  %v6768 = vpop.f32.mrf.mxu0
  %v6769 = vadd.f32 %v6685, %v6768
  %6770 = vmatmul.bf16.gmra.mxu0 %v3952
  %v6771 = vpop.f32.mrf.mxu0
  %v6772 = vadd.f32 %v6688, %v6771
  %v6773 = vpop.f32.mrf.mxu0
  %v6774 = vadd.f32 %v6690, %v6773
  %6775 = vmatmul.bf16.gmra.mxu0 %v3956
  %v6776 = vpop.f32.mrf.mxu0
  %v6777 = vadd.f32 %v6693, %v6776
  %v6778 = vpop.f32.mrf.mxu0
  %v6779 = vadd.f32 %v6695, %v6778
  %6780 = vmatmul.bf16.gmra.mxu0 %v3960
  %v6781 = vpop.f32.mrf.mxu0
  %v6782 = vadd.f32 %v6698, %v6781
  %v6783 = vpop.f32.mrf.mxu0
  %v6784 = vadd.f32 %v6700, %v6783
  %6785 = vmatmul.bf16.gmra.mxu0 %v3964
  %v6786 = vpop.f32.mrf.mxu0
  %v6787 = vadd.f32 %v6703, %v6786
  %v6788 = vpop.f32.mrf.mxu0
  %v6789 = vadd.f32 %v6705, %v6788
  %6790 = vmatmul.bf16.gmra.mxu0 %v3968
  %v6791 = vpop.f32.mrf.mxu0
  %v6792 = vadd.f32 %v6708, %v6791
  %v6793 = vpop.f32.mrf.mxu0
  %v6794 = vadd.f32 %v6710, %v6793
  %6795 = vmatmul.bf16.gmra.mxu0 %v3972
  %v6796 = vpop.f32.mrf.mxu0
  %v6797 = vadd.f32 %v6713, %v6796
  %v6798 = vpop.f32.mrf.mxu0
  %v6799 = vadd.f32 %v6715, %v6798
  %6800 = vmatmul.bf16.gmra.mxu0 %v3976
  %v6801 = vpop.f32.mrf.mxu0
  %v6802 = vadd.f32 %v6718, %v6801
  %v6803 = vpop.f32.mrf.mxu0
  %v6804 = vadd.f32 %v6720, %v6803
  %6805 = vmatmul.bf16.gmra.mxu0 %v3980
  %v6806 = vpop.f32.mrf.mxu0
  %v6807 = vadd.f32 %v6723, %v6806
  %v6808 = vpop.f32.mrf.mxu0
  %v6809 = vadd.f32 %v6725, %v6808
  %6810 = vmatmul.bf16.gmra.mxu0 %v3984
  %v6811 = vpop.f32.mrf.mxu0
  %v6812 = vadd.f32 %v6728, %v6811
  %v6813 = vpop.f32.mrf.mxu0
  %v6814 = vadd.f32 %v6730, %v6813
  %6815 = vmatmul.bf16.gmra.mxu0 %v3988
  %v6816 = vpop.f32.mrf.mxu0
  %v6817 = vadd.f32 %v6733, %v6816
  %v6818 = vpop.f32.mrf.mxu0
  %v6819 = vadd.f32 %v6735, %v6818
  %6820 = vmatmul.bf16.gmra.mxu0 %v3992
  %v6821 = vpop.f32.mrf.mxu0
  %v6822 = vadd.f32 %v6738, %v6821
  %v6823 = vpop.f32.mrf.mxu0
  %v6824 = vadd.f32 %v6740, %v6823
  %6825 = vmatmul.bf16.gmra.mxu0 %v3996
  %v6826 = vpop.f32.mrf.mxu0
  %v6827 = vadd.f32 %v6743, %v6826
  %v6828 = vpop.f32.mrf.mxu0
  %v6829 = vadd.f32 %v6745, %v6828
  %6830 = vmatmul.bf16.gmra.mxu0 %v4000
  %v6831 = vpop.f32.mrf.mxu0
  %v6832 = vadd.f32 %v6748, %v6831
  %v6833 = vpop.f32.mrf.mxu0
  %v6834 = vadd.f32 %v6750, %v6833
  %6835 = vdwg.mxu0
  %6836 = vmatpush.bf16.msra.mxu0 %v4983
  %6837 = vmatpush.bf16.msra.mxu0 %v4981
  %6838 = vmatpush.bf16.msra.mxu0 %v4979
  %6839 = vmatpush.bf16.msra.mxu0 %v4977
  %6840 = vmatpush.bf16.msra.mxu0 %v4975
  %6841 = vmatpush.bf16.msra.mxu0 %v4973
  %6842 = vmatpush.bf16.msra.mxu0 %v4971
  %6843 = vmatpush.bf16.msra.mxu0 %v4969
  %6844 = vmatmul.bf16.gmra.mxu0 %v3945
  %v6845 = vpop.f32.mrf.mxu0
  %v6846 = vadd.f32 %v6762, %v6845
  %v6847 = vpop.f32.mrf.mxu0
  %v6848 = vadd.f32 %v6764, %v6847
  %6849 = vmatmul.bf16.gmra.mxu0 %v3949
  %v6850 = vpop.f32.mrf.mxu0
  %v6851 = vadd.f32 %v6767, %v6850
  %v6852 = vpop.f32.mrf.mxu0
  %v6853 = vadd.f32 %v6769, %v6852
  %6854 = vmatmul.bf16.gmra.mxu0 %v3953
  %v6855 = vpop.f32.mrf.mxu0
  %v6856 = vadd.f32 %v6772, %v6855
  %v6857 = vpop.f32.mrf.mxu0
  %v6858 = vadd.f32 %v6774, %v6857
  %6859 = vmatmul.bf16.gmra.mxu0 %v3957
  %v6860 = vpop.f32.mrf.mxu0
  %v6861 = vadd.f32 %v6777, %v6860
  %v6862 = vpop.f32.mrf.mxu0
  %v6863 = vadd.f32 %v6779, %v6862
  %6864 = vmatmul.bf16.gmra.mxu0 %v3961
  %v6865 = vpop.f32.mrf.mxu0
  %v6866 = vadd.f32 %v6782, %v6865
  %v6867 = vpop.f32.mrf.mxu0
  %v6868 = vadd.f32 %v6784, %v6867
  %6869 = vmatmul.bf16.gmra.mxu0 %v3965
  %v6870 = vpop.f32.mrf.mxu0
  %v6871 = vadd.f32 %v6787, %v6870
  %v6872 = vpop.f32.mrf.mxu0
  %v6873 = vadd.f32 %v6789, %v6872
  %6874 = vmatmul.bf16.gmra.mxu0 %v3969
  %v6875 = vpop.f32.mrf.mxu0
  %v6876 = vadd.f32 %v6792, %v6875
  %v6877 = vpop.f32.mrf.mxu0
  %v6878 = vadd.f32 %v6794, %v6877
  %6879 = vmatmul.bf16.gmra.mxu0 %v3973
  %v6880 = vpop.f32.mrf.mxu0
  %v6881 = vadd.f32 %v6797, %v6880
  %v6882 = vpop.f32.mrf.mxu0
  %v6883 = vadd.f32 %v6799, %v6882
  %6884 = vmatmul.bf16.gmra.mxu0 %v3977
  %v6885 = vpop.f32.mrf.mxu0
  %v6886 = vadd.f32 %v6802, %v6885
  %v6887 = vpop.f32.mrf.mxu0
  %v6888 = vadd.f32 %v6804, %v6887
  %6889 = vmatmul.bf16.gmra.mxu0 %v3981
  %v6890 = vpop.f32.mrf.mxu0
  %v6891 = vadd.f32 %v6807, %v6890
  %v6892 = vpop.f32.mrf.mxu0
  %v6893 = vadd.f32 %v6809, %v6892
  %6894 = vmatmul.bf16.gmra.mxu0 %v3985
  %v6895 = vpop.f32.mrf.mxu0
  %v6896 = vadd.f32 %v6812, %v6895
  %v6897 = vpop.f32.mrf.mxu0
  %v6898 = vadd.f32 %v6814, %v6897
  %6899 = vmatmul.bf16.gmra.mxu0 %v3989
  %v6900 = vpop.f32.mrf.mxu0
  %v6901 = vadd.f32 %v6817, %v6900
  %v6902 = vpop.f32.mrf.mxu0
  %v6903 = vadd.f32 %v6819, %v6902
  %6904 = vmatmul.bf16.gmra.mxu0 %v3993
  %v6905 = vpop.f32.mrf.mxu0
  %v6906 = vadd.f32 %v6822, %v6905
  %v6907 = vpop.f32.mrf.mxu0
  %v6908 = vadd.f32 %v6824, %v6907
  %6909 = vmatmul.bf16.gmra.mxu0 %v3997
  %v6910 = vpop.f32.mrf.mxu0
  %v6911 = vadd.f32 %v6827, %v6910
  %v6912 = vpop.f32.mrf.mxu0
  %v6913 = vadd.f32 %v6829, %v6912
  %6914 = vmatmul.bf16.gmra.mxu0 %v4001
  %v6915 = vpop.f32.mrf.mxu0
  %v6916 = vadd.f32 %v6832, %v6915
  %v6917 = vpop.f32.mrf.mxu0
  %v6918 = vadd.f32 %v6834, %v6917
  %6919 = vdwg.mxu0
  %6920 = vmatpush.bf16.msra.mxu0 %v4999
  %6921 = vmatpush.bf16.msra.mxu0 %v4997
  %6922 = vmatpush.bf16.msra.mxu0 %v4995
  %6923 = vmatpush.bf16.msra.mxu0 %v4993
  %6924 = vmatpush.bf16.msra.mxu0 %v4991
  %6925 = vmatpush.bf16.msra.mxu0 %v4989
  %6926 = vmatpush.bf16.msra.mxu0 %v4987
  %6927 = vmatpush.bf16.msra.mxu0 %v4985
  %6928 = vmatmul.bf16.gmra.mxu0 %v3646
  %v6929 = vpop.f32.mrf.mxu0
  %v6930 = vadd.f32 %v6846, %v6929
  %v6931 = vpop.f32.mrf.mxu0
  %v6932 = vadd.f32 %v6848, %v6931
  %6933 = vmatmul.bf16.gmra.mxu0 %v3650
  %v6934 = vpop.f32.mrf.mxu0
  %v6935 = vadd.f32 %v6851, %v6934
  %v6936 = vpop.f32.mrf.mxu0
  %v6937 = vadd.f32 %v6853, %v6936
  %6938 = vmatmul.bf16.gmra.mxu0 %v3654
  %v6939 = vpop.f32.mrf.mxu0
  %v6940 = vadd.f32 %v6856, %v6939
  %v6941 = vpop.f32.mrf.mxu0
  %v6942 = vadd.f32 %v6858, %v6941
  %6943 = vmatmul.bf16.gmra.mxu0 %v3658
  %v6944 = vpop.f32.mrf.mxu0
  %v6945 = vadd.f32 %v6861, %v6944
  %v6946 = vpop.f32.mrf.mxu0
  %v6947 = vadd.f32 %v6863, %v6946
  %6948 = vmatmul.bf16.gmra.mxu0 %v3662
  %v6949 = vpop.f32.mrf.mxu0
  %v6950 = vadd.f32 %v6866, %v6949
  %v6951 = vpop.f32.mrf.mxu0
  %v6952 = vadd.f32 %v6868, %v6951
  %6953 = vmatmul.bf16.gmra.mxu0 %v3666
  %v6954 = vpop.f32.mrf.mxu0
  %v6955 = vadd.f32 %v6871, %v6954
  %v6956 = vpop.f32.mrf.mxu0
  %v6957 = vadd.f32 %v6873, %v6956
  %6958 = vmatmul.bf16.gmra.mxu0 %v3670
  %v6959 = vpop.f32.mrf.mxu0
  %v6960 = vadd.f32 %v6876, %v6959
  %v6961 = vpop.f32.mrf.mxu0
  %v6962 = vadd.f32 %v6878, %v6961
  %6963 = vmatmul.bf16.gmra.mxu0 %v3674
  %v6964 = vpop.f32.mrf.mxu0
  %v6965 = vadd.f32 %v6881, %v6964
  %v6966 = vpop.f32.mrf.mxu0
  %v6967 = vadd.f32 %v6883, %v6966
  %6968 = vmatmul.bf16.gmra.mxu0 %v3678
  %v6969 = vpop.f32.mrf.mxu0
  %v6970 = vadd.f32 %v6886, %v6969
  %v6971 = vpop.f32.mrf.mxu0
  %v6972 = vadd.f32 %v6888, %v6971
  %6973 = vmatmul.bf16.gmra.mxu0 %v3682
  %v6974 = vpop.f32.mrf.mxu0
  %v6975 = vadd.f32 %v6891, %v6974
  %v6976 = vpop.f32.mrf.mxu0
  %v6977 = vadd.f32 %v6893, %v6976
  %6978 = vmatmul.bf16.gmra.mxu0 %v3686
  %v6979 = vpop.f32.mrf.mxu0
  %v6980 = vadd.f32 %v6896, %v6979
  %v6981 = vpop.f32.mrf.mxu0
  %v6982 = vadd.f32 %v6898, %v6981
  %6983 = vmatmul.bf16.gmra.mxu0 %v3690
  %v6984 = vpop.f32.mrf.mxu0
  %v6985 = vadd.f32 %v6901, %v6984
  %v6986 = vpop.f32.mrf.mxu0
  %v6987 = vadd.f32 %v6903, %v6986
  %6988 = vmatmul.bf16.gmra.mxu0 %v3694
  %v6989 = vpop.f32.mrf.mxu0
  %v6990 = vadd.f32 %v6906, %v6989
  %v6991 = vpop.f32.mrf.mxu0
  %v6992 = vadd.f32 %v6908, %v6991
  %6993 = vmatmul.bf16.gmra.mxu0 %v3698
  %v6994 = vpop.f32.mrf.mxu0
  %v6995 = vadd.f32 %v6911, %v6994
  %v6996 = vpop.f32.mrf.mxu0
  %v6997 = vadd.f32 %v6913, %v6996
  %6998 = vmatmul.bf16.gmra.mxu0 %v4074
  %v6999 = vpop.f32.mrf.mxu0
  %v7000 = vadd.f32 %v6916, %v6999
  %v7001 = vpop.f32.mrf.mxu0
  %v7002 = vadd.f32 %v6918, %v7001
  %7003 = vdwg.mxu0
  %7004 = vmatpush.bf16.msra.mxu0 %v5015
  %7005 = vmatpush.bf16.msra.mxu0 %v5013
  %7006 = vmatpush.bf16.msra.mxu0 %v5011
  %7007 = vmatpush.bf16.msra.mxu0 %v5009
  %7008 = vmatpush.bf16.msra.mxu0 %v5007
  %7009 = vmatpush.bf16.msra.mxu0 %v5005
  %7010 = vmatpush.bf16.msra.mxu0 %v5003
  %7011 = vmatpush.bf16.msra.mxu0 %v5001
  %7012 = vmatmul.bf16.gmra.mxu0 %v3647
  %v7013 = vpop.f32.mrf.mxu0
  %v7014 = vadd.f32 %v6930, %v7013
  %v7015 = vpop.f32.mrf.mxu0
  %v7016 = vadd.f32 %v6932, %v7015
  %7017 = vmatmul.bf16.gmra.mxu0 %v3651
  %v7018 = vpop.f32.mrf.mxu0
  %v7019 = vadd.f32 %v6935, %v7018
  %v7020 = vpop.f32.mrf.mxu0
  %v7021 = vadd.f32 %v6937, %v7020
  %7022 = vmatmul.bf16.gmra.mxu0 %v3655
  %v7023 = vpop.f32.mrf.mxu0
  %v7024 = vadd.f32 %v6940, %v7023
  %v7025 = vpop.f32.mrf.mxu0
  %v7026 = vadd.f32 %v6942, %v7025
  %7027 = vmatmul.bf16.gmra.mxu0 %v3659
  %v7028 = vpop.f32.mrf.mxu0
  %v7029 = vadd.f32 %v6945, %v7028
  %v7030 = vpop.f32.mrf.mxu0
  %v7031 = vadd.f32 %v6947, %v7030
  %7032 = vmatmul.bf16.gmra.mxu0 %v3663
  %v7033 = vpop.f32.mrf.mxu0
  %v7034 = vadd.f32 %v6950, %v7033
  %v7035 = vpop.f32.mrf.mxu0
  %v7036 = vadd.f32 %v6952, %v7035
  %7037 = vmatmul.bf16.gmra.mxu0 %v3667
  %v7038 = vpop.f32.mrf.mxu0
  %v7039 = vadd.f32 %v6955, %v7038
  %v7040 = vpop.f32.mrf.mxu0
  %v7041 = vadd.f32 %v6957, %v7040
  %7042 = vmatmul.bf16.gmra.mxu0 %v3671
  %v7043 = vpop.f32.mrf.mxu0
  %v7044 = vadd.f32 %v6960, %v7043
  %v7045 = vpop.f32.mrf.mxu0
  %v7046 = vadd.f32 %v6962, %v7045
  %7047 = vmatmul.bf16.gmra.mxu0 %v3675
  %v7048 = vpop.f32.mrf.mxu0
  %v7049 = vadd.f32 %v6965, %v7048
  %v7050 = vpop.f32.mrf.mxu0
  %v7051 = vadd.f32 %v6967, %v7050
  %7052 = vmatmul.bf16.gmra.mxu0 %v3679
  %v7053 = vpop.f32.mrf.mxu0
  %v7054 = vadd.f32 %v6970, %v7053
  %v7055 = vpop.f32.mrf.mxu0
  %v7056 = vadd.f32 %v6972, %v7055
  %7057 = vmatmul.bf16.gmra.mxu0 %v3683
  %v7058 = vpop.f32.mrf.mxu0
  %v7059 = vadd.f32 %v6975, %v7058
  %v7060 = vpop.f32.mrf.mxu0
  %v7061 = vadd.f32 %v6977, %v7060
  %7062 = vmatmul.bf16.gmra.mxu0 %v3687
  %v7063 = vpop.f32.mrf.mxu0
  %v7064 = vadd.f32 %v6980, %v7063
  %v7065 = vpop.f32.mrf.mxu0
  %v7066 = vadd.f32 %v6982, %v7065
  %7067 = vmatmul.bf16.gmra.mxu0 %v3691
  %v7068 = vpop.f32.mrf.mxu0
  %v7069 = vadd.f32 %v6985, %v7068
  %v7070 = vpop.f32.mrf.mxu0
  %v7071 = vadd.f32 %v6987, %v7070
  %7072 = vmatmul.bf16.gmra.mxu0 %v3695
  %v7073 = vpop.f32.mrf.mxu0
  %v7074 = vadd.f32 %v6990, %v7073
  %v7075 = vpop.f32.mrf.mxu0
  %v7076 = vadd.f32 %v6992, %v7075
  %7077 = vmatmul.bf16.gmra.mxu0 %v3699
  %v7078 = vpop.f32.mrf.mxu0
  %v7079 = vadd.f32 %v6995, %v7078
  %v7080 = vpop.f32.mrf.mxu0
  %v7081 = vadd.f32 %v6997, %v7080
  %7082 = vmatmul.bf16.gmra.mxu0 %v4075
  %v7083 = vpop.f32.mrf.mxu0
  %v7084 = vadd.f32 %v7000, %v7083
  %v7085 = vpop.f32.mrf.mxu0
  %v7086 = vadd.f32 %v7002, %v7085
  %7087 = vdwg.mxu0
  %7088 = vmatpush.bf16.msra.mxu0 %v5031
  %7089 = vmatpush.bf16.msra.mxu0 %v5029
  %7090 = vmatpush.bf16.msra.mxu0 %v5027
  %7091 = vmatpush.bf16.msra.mxu0 %v5025
  %7092 = vmatpush.bf16.msra.mxu0 %v5023
  %7093 = vmatpush.bf16.msra.mxu0 %v5021
  %7094 = vmatpush.bf16.msra.mxu0 %v5019
  %7095 = vmatpush.bf16.msra.mxu0 %v5017
  %7096 = vmatmul.bf16.gmra.mxu0 %v3648
  %v7097 = vpop.f32.mrf.mxu0
  %v7098 = vadd.f32 %v7014, %v7097
  %v7099 = vpop.f32.mrf.mxu0
  %v7100 = vadd.f32 %v7016, %v7099
  %7101 = vmatmul.bf16.gmra.mxu0 %v3652
  %v7102 = vpop.f32.mrf.mxu0
  %v7103 = vadd.f32 %v7019, %v7102
  %v7104 = vpop.f32.mrf.mxu0
  %v7105 = vadd.f32 %v7021, %v7104
  %7106 = vmatmul.bf16.gmra.mxu0 %v3656
  %v7107 = vpop.f32.mrf.mxu0
  %v7108 = vadd.f32 %v7024, %v7107
  %v7109 = vpop.f32.mrf.mxu0
  %v7110 = vadd.f32 %v7026, %v7109
  %7111 = vmatmul.bf16.gmra.mxu0 %v3660
  %v7112 = vpop.f32.mrf.mxu0
  %v7113 = vadd.f32 %v7029, %v7112
  %v7114 = vpop.f32.mrf.mxu0
  %v7115 = vadd.f32 %v7031, %v7114
  %7116 = vmatmul.bf16.gmra.mxu0 %v3664
  %v7117 = vpop.f32.mrf.mxu0
  %v7118 = vadd.f32 %v7034, %v7117
  %v7119 = vpop.f32.mrf.mxu0
  %v7120 = vadd.f32 %v7036, %v7119
  %7121 = vmatmul.bf16.gmra.mxu0 %v3668
  %v7122 = vpop.f32.mrf.mxu0
  %v7123 = vadd.f32 %v7039, %v7122
  %v7124 = vpop.f32.mrf.mxu0
  %v7125 = vadd.f32 %v7041, %v7124
  %7126 = vmatmul.bf16.gmra.mxu0 %v3672
  %v7127 = vpop.f32.mrf.mxu0
  %v7128 = vadd.f32 %v7044, %v7127
  %v7129 = vpop.f32.mrf.mxu0
  %v7130 = vadd.f32 %v7046, %v7129
  %7131 = vmatmul.bf16.gmra.mxu0 %v3676
  %v7132 = vpop.f32.mrf.mxu0
  %v7133 = vadd.f32 %v7049, %v7132
  %v7134 = vpop.f32.mrf.mxu0
  %v7135 = vadd.f32 %v7051, %v7134
  %7136 = vmatmul.bf16.gmra.mxu0 %v3680
  %v7137 = vpop.f32.mrf.mxu0
  %v7138 = vadd.f32 %v7054, %v7137
  %v7139 = vpop.f32.mrf.mxu0
  %v7140 = vadd.f32 %v7056, %v7139
  %7141 = vmatmul.bf16.gmra.mxu0 %v3684
  %v7142 = vpop.f32.mrf.mxu0
  %v7143 = vadd.f32 %v7059, %v7142
  %v7144 = vpop.f32.mrf.mxu0
  %v7145 = vadd.f32 %v7061, %v7144
  %7146 = vmatmul.bf16.gmra.mxu0 %v3688
  %v7147 = vpop.f32.mrf.mxu0
  %v7148 = vadd.f32 %v7064, %v7147
  %v7149 = vpop.f32.mrf.mxu0
  %v7150 = vadd.f32 %v7066, %v7149
  %7151 = vmatmul.bf16.gmra.mxu0 %v3692
  %v7152 = vpop.f32.mrf.mxu0
  %v7153 = vadd.f32 %v7069, %v7152
  %v7154 = vpop.f32.mrf.mxu0
  %v7155 = vadd.f32 %v7071, %v7154
  %7156 = vmatmul.bf16.gmra.mxu0 %v3696
  %v7157 = vpop.f32.mrf.mxu0
  %v7158 = vadd.f32 %v7074, %v7157
  %v7159 = vpop.f32.mrf.mxu0
  %v7160 = vadd.f32 %v7076, %v7159
  %7161 = vmatmul.bf16.gmra.mxu0 %v3700
  %v7162 = vpop.f32.mrf.mxu0
  %v7163 = vadd.f32 %v7079, %v7162
  %v7164 = vpop.f32.mrf.mxu0
  %v7165 = vadd.f32 %v7081, %v7164
  %7166 = vmatmul.bf16.gmra.mxu0 %v4076
  %v7167 = vpop.f32.mrf.mxu0
  %v7168 = vadd.f32 %v7084, %v7167
  %v7169 = vpop.f32.mrf.mxu0
  %v7170 = vadd.f32 %v7086, %v7169
  %7171 = vdwg.mxu0
  %7172 = vmatpush.bf16.msra.mxu0 %v5047
  %7173 = vmatpush.bf16.msra.mxu0 %v5045
  %7174 = vmatpush.bf16.msra.mxu0 %v5043
  %7175 = vmatpush.bf16.msra.mxu0 %v5041
  %7176 = vmatpush.bf16.msra.mxu0 %v5039
  %7177 = vmatpush.bf16.msra.mxu0 %v5037
  %7178 = vmatpush.bf16.msra.mxu0 %v5035
  %7179 = vmatpush.bf16.msra.mxu0 %v5033
  %7180 = vmatmul.bf16.gmra.mxu0 %v3649
  %v7181 = vpop.f32.mrf.mxu0
  %v7182 = vadd.f32 %v7098, %v7181
  %v7183 = vpop.f32.mrf.mxu0
  %v7184 = vadd.f32 %v7100, %v7183
  %7185 = vmatmul.bf16.gmra.mxu0 %v3653
  %v7186 = vpop.f32.mrf.mxu0
  %v7187 = vadd.f32 %v7103, %v7186
  %v7188 = vpop.f32.mrf.mxu0
  %v7189 = vadd.f32 %v7105, %v7188
  %7190 = vmatmul.bf16.gmra.mxu0 %v3657
  %v7191 = vpop.f32.mrf.mxu0
  %v7192 = vadd.f32 %v7108, %v7191
  %v7193 = vpop.f32.mrf.mxu0
  %v7194 = vadd.f32 %v7110, %v7193
  %7195 = vmatmul.bf16.gmra.mxu0 %v3661
  %v7196 = vpop.f32.mrf.mxu0
  %v7197 = vadd.f32 %v7113, %v7196
  %v7198 = vpop.f32.mrf.mxu0
  %v7199 = vadd.f32 %v7115, %v7198
  %7200 = vmatmul.bf16.gmra.mxu0 %v3665
  %v7201 = vpop.f32.mrf.mxu0
  %v7202 = vadd.f32 %v7118, %v7201
  %v7203 = vpop.f32.mrf.mxu0
  %v7204 = vadd.f32 %v7120, %v7203
  %7205 = vmatmul.bf16.gmra.mxu0 %v3669
  %v7206 = vpop.f32.mrf.mxu0
  %v7207 = vadd.f32 %v7123, %v7206
  %v7208 = vpop.f32.mrf.mxu0
  %v7209 = vadd.f32 %v7125, %v7208
  %7210 = vmatmul.bf16.gmra.mxu0 %v3673
  %v7211 = vpop.f32.mrf.mxu0
  %v7212 = vadd.f32 %v7128, %v7211
  %v7213 = vpop.f32.mrf.mxu0
  %v7214 = vadd.f32 %v7130, %v7213
  %7215 = vmatmul.bf16.gmra.mxu0 %v3677
  %v7216 = vpop.f32.mrf.mxu0
  %v7217 = vadd.f32 %v7133, %v7216
  %v7218 = vpop.f32.mrf.mxu0
  %v7219 = vadd.f32 %v7135, %v7218
  %7220 = vmatmul.bf16.gmra.mxu0 %v3681
  %v7221 = vpop.f32.mrf.mxu0
  %v7222 = vadd.f32 %v7138, %v7221
  %v7223 = vpop.f32.mrf.mxu0
  %v7224 = vadd.f32 %v7140, %v7223
  %7225 = vmatmul.bf16.gmra.mxu0 %v3685
  %v7226 = vpop.f32.mrf.mxu0
  %v7227 = vadd.f32 %v7143, %v7226
  %v7228 = vpop.f32.mrf.mxu0
  %v7229 = vadd.f32 %v7145, %v7228
  %7230 = vmatmul.bf16.gmra.mxu0 %v3689
  %v7231 = vpop.f32.mrf.mxu0
  %v7232 = vadd.f32 %v7148, %v7231
  %v7233 = vpop.f32.mrf.mxu0
  %v7234 = vadd.f32 %v7150, %v7233
  %7235 = vmatmul.bf16.gmra.mxu0 %v3693
  %v7236 = vpop.f32.mrf.mxu0
  %v7237 = vadd.f32 %v7153, %v7236
  %v7238 = vpop.f32.mrf.mxu0
  %v7239 = vadd.f32 %v7155, %v7238
  %7240 = vmatmul.bf16.gmra.mxu0 %v3697
  %v7241 = vpop.f32.mrf.mxu0
  %v7242 = vadd.f32 %v7158, %v7241
  %v7243 = vpop.f32.mrf.mxu0
  %v7244 = vadd.f32 %v7160, %v7243
  %7245 = vmatmul.bf16.gmra.mxu0 %v3701
  %v7246 = vpop.f32.mrf.mxu0
  %v7247 = vadd.f32 %v7163, %v7246
  %v7248 = vpop.f32.mrf.mxu0
  %v7249 = vadd.f32 %v7165, %v7248
  %7250 = vmatmul.bf16.gmra.mxu0 %v4077
  %v7251 = vpop.f32.mrf.mxu0
  %v7252 = vadd.f32 %v7168, %v7251
  %v7253 = vpop.f32.mrf.mxu0
  %v7254 = vadd.f32 %v7170, %v7253
  %7255 = vdwg.mxu0
  %v7256 = vmax.f32 %v6174, 0.0
  %v7257 = vmax.f32 %v7182, 0.0
  %v7258 = vmax.f32 %v6176, 0.0
  %v7259 = vmax.f32 %v7184, 0.0
  %v7260 = vmax.f32 %v6179, 0.0
  %v7261 = vmax.f32 %v7187, 0.0
  %v7262 = vmax.f32 %v6181, 0.0
  %v7263 = vmax.f32 %v7189, 0.0
  %v7264 = vmax.f32 %v6184, 0.0
  %v7265 = vmax.f32 %v7192, 0.0
  %v7266 = vmax.f32 %v6186, 0.0
  %v7267 = vmax.f32 %v7194, 0.0
  %v7268 = vmax.f32 %v6189, 0.0
  %v7269 = vmax.f32 %v7197, 0.0
  %v7270 = vmax.f32 %v6191, 0.0
  %v7271 = vmax.f32 %v7199, 0.0
  %v7272 = vmax.f32 %v6194, 0.0
  %v7273 = vmax.f32 %v7202, 0.0
  %v7274 = vmax.f32 %v6196, 0.0
  %v7275 = vmax.f32 %v7204, 0.0
  %v7276 = vmax.f32 %v6199, 0.0
  %v7277 = vmax.f32 %v7207, 0.0
  %v7278 = vmax.f32 %v6201, 0.0
  %v7279 = vmax.f32 %v7209, 0.0
  %v7280 = vmax.f32 %v6204, 0.0
  %v7281 = vmax.f32 %v7212, 0.0
  %v7282 = vmax.f32 %v6206, 0.0
  %v7283 = vmax.f32 %v7214, 0.0
  %v7284 = vmax.f32 %v6209, 0.0
  %v7285 = vmax.f32 %v7217, 0.0
  %v7286 = vmax.f32 %v6211, 0.0
  %v7287 = vmax.f32 %v7219, 0.0
  %v7288 = vmax.f32 %v6214, 0.0
  %v7289 = vmax.f32 %v7222, 0.0
  %v7290 = vmax.f32 %v6216, 0.0
  %v7291 = vmax.f32 %v7224, 0.0
  %v7292 = vmax.f32 %v6219, 0.0
  %v7293 = vmax.f32 %v7227, 0.0
  %v7294 = vmax.f32 %v6221, 0.0
  %v7295 = vmax.f32 %v7229, 0.0
  %v7296 = vmax.f32 %v6224, 0.0
  %v7297 = vmax.f32 %v7232, 0.0
  %v7298 = vmax.f32 %v6226, 0.0
  %v7299 = vmax.f32 %v7234, 0.0
  %v7300 = vmax.f32 %v6229, 0.0
  %v7301 = vmax.f32 %v7237, 0.0
  %v7302 = vmax.f32 %v6231, 0.0
  %v7303 = vmax.f32 %v7239, 0.0
  %v7304 = vmax.f32 %v6234, 0.0
  %v7305 = vmax.f32 %v7242, 0.0
  %v7306 = vmax.f32 %v6236, 0.0
  %v7307 = vmax.f32 %v7244, 0.0
  %v7308 = vmax.f32 %v6239, 0.0
  %v7309 = vmax.f32 %v7247, 0.0
  %v7310 = vmax.f32 %v6241, 0.0
  %v7311 = vmax.f32 %v7249, 0.0
  %v7312 = vmax.f32 %v6244, 0.0
  %v7313 = vmax.f32 %v7252, 0.0
  %v7314 = vmax.f32 %v6246, 0.0
  %v7315 = vmax.f32 %v7254, 0.0
  %v7316 = vpack.c.bf16 %v7257, %v7256
  %v7317 = vpack.c.bf16 %v7259, %v7258
  %v7318 = vpack.c.bf16 %v7261, %v7260
  %v7319 = vpack.c.bf16 %v7263, %v7262
  %v7320 = vpack.c.bf16 %v7265, %v7264
  %v7321 = vpack.c.bf16 %v7267, %v7266
  %v7322 = vpack.c.bf16 %v7269, %v7268
  %v7323 = vpack.c.bf16 %v7271, %v7270
  %v7324 = vpack.c.bf16 %v7273, %v7272
  %v7325 = vpack.c.bf16 %v7275, %v7274
  %v7326 = vpack.c.bf16 %v7277, %v7276
  %v7327 = vpack.c.bf16 %v7279, %v7278
  %v7328 = vpack.c.bf16 %v7281, %v7280
  %v7329 = vpack.c.bf16 %v7283, %v7282
  %v7330 = vpack.c.bf16 %v7285, %v7284
  %v7331 = vpack.c.bf16 %v7287, %v7286
  %v7332 = vpack.c.bf16 %v7289, %v7288
  %v7333 = vpack.c.bf16 %v7291, %v7290
  %v7334 = vpack.c.bf16 %v7293, %v7292
  %v7335 = vpack.c.bf16 %v7295, %v7294
  %v7336 = vpack.c.bf16 %v7297, %v7296
  %v7337 = vpack.c.bf16 %v7299, %v7298
  %v7338 = vpack.c.bf16 %v7301, %v7300
  %v7339 = vpack.c.bf16 %v7303, %v7302
  %v7340 = vpack.c.bf16 %v7305, %v7304
  %v7341 = vpack.c.bf16 %v7307, %v7306
  %v7342 = vpack.c.bf16 %v7309, %v7308
  %v7343 = vpack.c.bf16 %v7311, %v7310
  %v7344 = vpack.c.bf16 %v7313, %v7312
  %v7345 = vpack.c.bf16 %v7315, %v7314
  %v7360 = vunpack.c.l.b16 %v7316
  %v7361 = vunpack.c.h.b16 %v7316
  %v7362 = vunpack.c.l.b16 %v7317
  %v7363 = vunpack.c.h.b16 %v7317
  %v7364 = vunpack.c.l.b16 %v7320
  %v7365 = vunpack.c.h.b16 %v7320
  %v7366 = vunpack.c.l.b16 %v7321
  %v7367 = vunpack.c.h.b16 %v7321
  %v7368 = vunpack.c.l.b16 %v7324
  %v7369 = vunpack.c.h.b16 %v7324
  %v7370 = vunpack.c.l.b16 %v7325
  %v7371 = vunpack.c.h.b16 %v7325
  %v7372 = vunpack.c.l.b16 %v7328
  %v7373 = vunpack.c.h.b16 %v7328
  %v7374 = vunpack.c.l.b16 %v7329
  %v7375 = vunpack.c.h.b16 %v7329
  %v7376 = vunpack.c.l.b16 %v7332
  %v7377 = vunpack.c.h.b16 %v7332
  %v7378 = vunpack.c.l.b16 %v7333
  %v7379 = vunpack.c.h.b16 %v7333
  %v7380 = vunpack.c.l.b16 %v7336
  %v7381 = vunpack.c.h.b16 %v7336
  %v7382 = vunpack.c.l.b16 %v7337
  %v7383 = vunpack.c.h.b16 %v7337
  %v7384 = vunpack.c.l.b16 %v7340
  %v7385 = vunpack.c.h.b16 %v7340
  %v7386 = vunpack.c.l.b16 %v7341
  %v7387 = vunpack.c.h.b16 %v7341
  %v7388 = vpack.c.b16 %v7362, %v7360
  %v7389 = vpack.c.b16 %v7363, %v7361
  %v7390 = vpack.c.b16 %v7366, %v7364
  %v7391 = vpack.c.b16 %v7367, %v7365
  %v7392 = vpack.c.b16 %v7370, %v7368
  %v7393 = vpack.c.b16 %v7371, %v7369
  %v7394 = vpack.c.b16 %v7374, %v7372
  %v7395 = vpack.c.b16 %v7375, %v7373
  %v7396 = vpack.c.b16 %v7378, %v7376
  %v7397 = vpack.c.b16 %v7379, %v7377
  %v7398 = vpack.c.b16 %v7382, %v7380
  %v7399 = vpack.c.b16 %v7383, %v7381
  %v7400 = vpack.c.b16 %v7386, %v7384
  %v7401 = vpack.c.b16 %v7387, %v7385
  %v7430 = vunpack.c.l.b16 %v7318
  %v7431 = vunpack.c.h.b16 %v7318
  %v7432 = vunpack.c.l.b16 %v7319
  %v7433 = vunpack.c.h.b16 %v7319
  %v7434 = vunpack.c.l.b16 %v7322
  %v7435 = vunpack.c.h.b16 %v7322
  %v7436 = vunpack.c.l.b16 %v7323
  %v7437 = vunpack.c.h.b16 %v7323
  %v7438 = vunpack.c.l.b16 %v7326
  %v7439 = vunpack.c.h.b16 %v7326
  %v7440 = vunpack.c.l.b16 %v7327
  %v7441 = vunpack.c.h.b16 %v7327
  %v7442 = vunpack.c.l.b16 %v7330
  %v7443 = vunpack.c.h.b16 %v7330
  %v7444 = vunpack.c.l.b16 %v7331
  %v7445 = vunpack.c.h.b16 %v7331
  %v7446 = vunpack.c.l.b16 %v7334
  %v7447 = vunpack.c.h.b16 %v7334
  %v7448 = vunpack.c.l.b16 %v7335
  %v7449 = vunpack.c.h.b16 %v7335
  %v7450 = vunpack.c.l.b16 %v7338
  %v7451 = vunpack.c.h.b16 %v7338
  %v7452 = vunpack.c.l.b16 %v7339
  %v7453 = vunpack.c.h.b16 %v7339
  %v7454 = vunpack.c.l.b16 %v7342
  %v7455 = vunpack.c.h.b16 %v7342
  %v7456 = vunpack.c.l.b16 %v7343
  %v7457 = vunpack.c.h.b16 %v7343
  %v7458 = vpack.c.b16 %v7432, %v7430
  %v7459 = vpack.c.b16 %v7433, %v7431
  %v7460 = vpack.c.b16 %v7436, %v7434
  %v7461 = vpack.c.b16 %v7437, %v7435
  %v7462 = vpack.c.b16 %v7440, %v7438
  %v7463 = vpack.c.b16 %v7441, %v7439
  %v7464 = vpack.c.b16 %v7444, %v7442
  %v7465 = vpack.c.b16 %v7445, %v7443
  %v7466 = vpack.c.b16 %v7448, %v7446
  %v7467 = vpack.c.b16 %v7449, %v7447
  %v7468 = vpack.c.b16 %v7452, %v7450
  %v7469 = vpack.c.b16 %v7453, %v7451
  %v7470 = vpack.c.b16 %v7456, %v7454
  %v7471 = vpack.c.b16 %v7457, %v7455
  %v7488 = vunpack.c.l.b16 %v7344
  %v7489 = vunpack.c.h.b16 %v7344
  %v7490 = vunpack.c.l.b16 %v7345
  %v7491 = vunpack.c.h.b16 %v7345
  %v7492 = vpack.c.b16 %v7490, %v7488
  %v7493 = vpack.c.b16 %v7491, %v7489
  %v7496 = vld [vmem:[%s5] sm:$0xf]
  %v7497 = vld [vmem:[%s5 + $0x4] sm:$0xf]
  %v7498 = vld [vmem:[%s5 + $0x8] sm:$0xf]
  %v7499 = vld [vmem:[%s5 + $0xc] sm:$0xf]
  %v7500 = vld [vmem:[%s5 + $0x10] sm:$0xf]
  %v7501 = vld [vmem:[%s5 + $0x14] sm:$0xf]
  %v7502 = vld [vmem:[%s5 + $0x18] sm:$0xf]
  %v7503 = vld [vmem:[%s5 + $0x1c] sm:$0xf]
  %v7504 = vld [vmem:[%s5 + $0x20] sm:$0xf]
  %v7505 = vld [vmem:[%s5 + $0x24] sm:$0xf]
  %v7506 = vld [vmem:[%s5 + $0x28] sm:$0xf]
  %v7507 = vld [vmem:[%s5 + $0x2c] sm:$0xf]
  %v7508 = vld [vmem:[%s5 + $0x30] sm:$0xf]
  %v7509 = vld [vmem:[%s5 + $0x34] sm:$0xf]
  %v7510 = vld [vmem:[%s5 + $0x38] sm:$0xf]
  %v7511 = vld [vmem:[%s5 + $0x3c] sm:$0xf]
  %v7512 = vld [vmem:[%s5 + $0x40] sm:$0xf]
  %v7513 = vld [vmem:[%s5 + $0x44] sm:$0xf]
  %v7514 = vld [vmem:[%s5 + $0x48] sm:$0xf]
  %v7515 = vld [vmem:[%s5 + $0x4c] sm:$0xf]
  %v7516 = vld [vmem:[%s5 + $0x50] sm:$0xf]
  %v7517 = vld [vmem:[%s5 + $0x54] sm:$0xf]
  %v7518 = vld [vmem:[%s5 + $0x58] sm:$0xf]
  %v7519 = vld [vmem:[%s5 + $0x5c] sm:$0xf]
  %v7520 = vld [vmem:[%s5 + $0x60] sm:$0xf]
  %v7521 = vld [vmem:[%s5 + $0x64] sm:$0xf]
  %v7522 = vld [vmem:[%s5 + $0x68] sm:$0xf]
  %v7523 = vld [vmem:[%s5 + $0x6c] sm:$0xf]
  %v7524 = vld [vmem:[%s5 + $0x70] sm:$0xf]
  %v7525 = vld [vmem:[%s5 + $0x74] sm:$0xf]
  %v7526 = vld [vmem:[%s5 + $0x78] sm:$0xf]
  %v7527 = vld [vmem:[%s5 + $0x7c] sm:$0xf]
  %v7528 = vld [vmem:[%s5 + $0x80] sm:$0xf]
  %v7529 = vld [vmem:[%s5 + $0x84] sm:$0xf]
  %v7530 = vld [vmem:[%s5 + $0x88] sm:$0xf]
  %v7531 = vld [vmem:[%s5 + $0x8c] sm:$0xf]
  %v7532 = vld [vmem:[%s5 + $0x90] sm:$0xf]
  %v7533 = vld [vmem:[%s5 + $0x94] sm:$0xf]
  %v7534 = vld [vmem:[%s5 + $0x98] sm:$0xf]
  %v7535 = vld [vmem:[%s5 + $0x9c] sm:$0xf]
  %v7536 = vld [vmem:[%s5 + $0xa0] sm:$0xf]
  %v7537 = vld [vmem:[%s5 + $0xa4] sm:$0xf]
  %v7538 = vld [vmem:[%s5 + $0xa8] sm:$0xf]
  %v7539 = vld [vmem:[%s5 + $0xac] sm:$0xf]
  %v7540 = vld [vmem:[%s5 + $0xb0] sm:$0xf]
  %v7541 = vld [vmem:[%s5 + $0xb4] sm:$0xf]
  %v7542 = vld [vmem:[%s5 + $0xb8] sm:$0xf]
  %v7543 = vld [vmem:[%s5 + $0xbc] sm:$0xf]
  %v7544 = vld [vmem:[%s5 + $0xc0] sm:$0xf]
  %v7545 = vld [vmem:[%s5 + $0xc4] sm:$0xf]
  %v7546 = vld [vmem:[%s5 + $0xc8] sm:$0xf]
  %v7547 = vld [vmem:[%s5 + $0xcc] sm:$0xf]
  %v7548 = vld [vmem:[%s5 + $0xd0] sm:$0xf]
  %v7549 = vld [vmem:[%s5 + $0xd4] sm:$0xf]
  %v7550 = vld [vmem:[%s5 + $0xd8] sm:$0xf]
  %v7551 = vld [vmem:[%s5 + $0xdc] sm:$0xf]
  %v7552 = vld [vmem:[%s5 + $0xe0] sm:$0xf]
  %v7553 = vld [vmem:[%s5 + $0xe4] sm:$0xf]
  %v7554 = vld [vmem:[%s5 + $0xe8] sm:$0xf]
  %v7555 = vld [vmem:[%s5 + $0xec] sm:$0xf]
  %v7556 = vld [vmem:[%s5 + $0xf0] sm:$0xf]
  %v7557 = vld [vmem:[%s5 + $0xf4] sm:$0xf]
  %v7558 = vld [vmem:[%s5 + $0xf8] sm:$0xf]
  %v7559 = vld [vmem:[%s5 + $0xfc] sm:$0xf]
  %v7560 = vld [vmem:[%s5 + $0x100] sm:$0xf]
  %v7561 = vld [vmem:[%s5 + $0x104] sm:$0xf]
  %v7562 = vld [vmem:[%s5 + $0x108] sm:$0xf]
  %v7563 = vld [vmem:[%s5 + $0x10c] sm:$0xf]
  %v7564 = vld [vmem:[%s5 + $0x110] sm:$0xf]
  %v7565 = vld [vmem:[%s5 + $0x114] sm:$0xf]
  %v7566 = vld [vmem:[%s5 + $0x118] sm:$0xf]
  %v7567 = vld [vmem:[%s5 + $0x11c] sm:$0xf]
  %v7568 = vld [vmem:[%s5 + $0x120] sm:$0xf]
  %v7569 = vld [vmem:[%s5 + $0x124] sm:$0xf]
  %v7570 = vld [vmem:[%s5 + $0x128] sm:$0xf]
  %v7571 = vld [vmem:[%s5 + $0x12c] sm:$0xf]
  %v7572 = vld [vmem:[%s5 + $0x130] sm:$0xf]
  %v7573 = vld [vmem:[%s5 + $0x134] sm:$0xf]
  %v7574 = vld [vmem:[%s5 + $0x138] sm:$0xf]
  %v7575 = vld [vmem:[%s5 + $0x13c] sm:$0xf]
  %v7576 = vld [vmem:[%s5 + $0x140] sm:$0xf]
  %v7577 = vld [vmem:[%s5 + $0x144] sm:$0xf]
  %v7578 = vld [vmem:[%s5 + $0x148] sm:$0xf]
  %v7579 = vld [vmem:[%s5 + $0x14c] sm:$0xf]
  %v7580 = vld [vmem:[%s5 + $0x150] sm:$0xf]
  %v7581 = vld [vmem:[%s5 + $0x154] sm:$0xf]
  %v7582 = vld [vmem:[%s5 + $0x158] sm:$0xf]
  %v7583 = vld [vmem:[%s5 + $0x15c] sm:$0xf]
  %v7584 = vld [vmem:[%s5 + $0x160] sm:$0xf]
  %v7585 = vld [vmem:[%s5 + $0x164] sm:$0xf]
  %v7586 = vld [vmem:[%s5 + $0x168] sm:$0xf]
  %v7587 = vld [vmem:[%s5 + $0x16c] sm:$0xf]
  %v7588 = vld [vmem:[%s5 + $0x170] sm:$0xf]
  %v7589 = vld [vmem:[%s5 + $0x174] sm:$0xf]
  %v7590 = vld [vmem:[%s5 + $0x178] sm:$0xf]
  %v7591 = vld [vmem:[%s5 + $0x17c] sm:$0xf]
  %v7592 = vld [vmem:[%s6] sm:$0x1]
  %v7594 = vperm.slane %v7592, 0
  %v7692 = vunpack.c.l.b16 %v7496
  %v7693 = vunpack.c.l.b16 %v7497
  %v7694 = vunpack.c.l.b16 %v7498
  %v7695 = vunpack.c.l.b16 %v7499
  %v7696 = vunpack.c.l.b16 %v7500
  %v7697 = vunpack.c.l.b16 %v7501
  %v7698 = vunpack.c.l.b16 %v7502
  %v7699 = vunpack.c.l.b16 %v7503
  %v7700 = vunpack.c.l.b16 %v7504
  %v7701 = vunpack.c.l.b16 %v7505
  %v7702 = vunpack.c.l.b16 %v7506
  %v7703 = vunpack.c.l.b16 %v7507
  %v7704 = vunpack.c.l.b16 %v7508
  %v7705 = vunpack.c.l.b16 %v7509
  %v7706 = vunpack.c.l.b16 %v7510
  %v7707 = vunpack.c.l.b16 %v7511
  %v7708 = vunpack.c.l.b16 %v7512
  %v7709 = vunpack.c.l.b16 %v7513
  %v7710 = vunpack.c.l.b16 %v7514
  %v7711 = vunpack.c.l.b16 %v7515
  %v7712 = vunpack.c.l.b16 %v7516
  %v7713 = vunpack.c.l.b16 %v7517
  %v7714 = vunpack.c.l.b16 %v7518
  %v7715 = vunpack.c.l.b16 %v7519
  %v7716 = vunpack.c.l.b16 %v7520
  %v7717 = vunpack.c.l.b16 %v7521
  %v7718 = vunpack.c.l.b16 %v7522
  %v7719 = vunpack.c.l.b16 %v7523
  %v7720 = vunpack.c.l.b16 %v7524
  %v7721 = vunpack.c.l.b16 %v7525
  %v7722 = vunpack.c.l.b16 %v7526
  %v7723 = vunpack.c.l.b16 %v7527
  %v7724 = vunpack.c.l.b16 %v7528
  %v7725 = vunpack.c.l.b16 %v7529
  %v7726 = vunpack.c.l.b16 %v7530
  %v7727 = vunpack.c.l.b16 %v7531
  %v7728 = vunpack.c.l.b16 %v7532
  %v7729 = vunpack.c.l.b16 %v7533
  %v7730 = vunpack.c.l.b16 %v7534
  %v7731 = vunpack.c.l.b16 %v7535
  %v7732 = vunpack.c.l.b16 %v7536
  %v7733 = vunpack.c.l.b16 %v7537
  %v7734 = vunpack.c.l.b16 %v7538
  %v7735 = vunpack.c.l.b16 %v7539
  %v7736 = vunpack.c.l.b16 %v7540
  %v7737 = vunpack.c.l.b16 %v7541
  %v7738 = vunpack.c.l.b16 %v7542
  %v7739 = vunpack.c.l.b16 %v7543
  %v7740 = vunpack.c.l.b16 %v7544
  %v7741 = vunpack.c.l.b16 %v7545
  %v7742 = vunpack.c.l.b16 %v7546
  %v7743 = vunpack.c.l.b16 %v7547
  %v7744 = vunpack.c.l.b16 %v7548
  %v7745 = vunpack.c.l.b16 %v7549
  %v7746 = vunpack.c.l.b16 %v7550
  %v7747 = vunpack.c.l.b16 %v7551
  %v7748 = vunpack.c.l.b16 %v7552
  %v7749 = vunpack.c.l.b16 %v7553
  %v7750 = vunpack.c.l.b16 %v7554
  %v7751 = vunpack.c.l.b16 %v7555
  %v7752 = vunpack.c.l.b16 %v7556
  %v7753 = vunpack.c.l.b16 %v7557
  %v7754 = vunpack.c.l.b16 %v7558
  %v7755 = vunpack.c.l.b16 %v7559
  %v7756 = vunpack.c.l.b16 %v7560
  %v7757 = vunpack.c.l.b16 %v7561
  %v7758 = vunpack.c.l.b16 %v7562
  %v7759 = vunpack.c.l.b16 %v7563
  %v7760 = vunpack.c.l.b16 %v7564
  %v7761 = vunpack.c.l.b16 %v7565
  %v7762 = vunpack.c.l.b16 %v7566
  %v7763 = vunpack.c.l.b16 %v7567
  %v7764 = vunpack.c.l.b16 %v7568
  %v7765 = vunpack.c.l.b16 %v7569
  %v7766 = vunpack.c.l.b16 %v7570
  %v7767 = vunpack.c.l.b16 %v7571
  %v7768 = vunpack.c.l.b16 %v7572
  %v7769 = vunpack.c.l.b16 %v7573
  %v7770 = vunpack.c.l.b16 %v7574
  %v7771 = vunpack.c.l.b16 %v7575
  %v7772 = vunpack.c.l.b16 %v7576
  %v7773 = vunpack.c.l.b16 %v7577
  %v7774 = vunpack.c.l.b16 %v7578
  %v7775 = vunpack.c.l.b16 %v7579
  %v7776 = vunpack.c.l.b16 %v7580
  %v7777 = vunpack.c.l.b16 %v7581
  %v7778 = vunpack.c.l.b16 %v7582
  %v7779 = vunpack.c.l.b16 %v7583
  %v7780 = vunpack.c.l.b16 %v7584
  %v7781 = vunpack.c.l.b16 %v7585
  %v7782 = vunpack.c.l.b16 %v7586
  %v7783 = vunpack.c.l.b16 %v7587
  %v7784 = vunpack.c.l.b16 %v7588
  %v7785 = vunpack.c.l.b16 %v7589
  %v7786 = vunpack.c.l.b16 %v7590
  %v7787 = vunpack.c.l.b16 %v7591
  %v7788 = vpack.c.b16 %v7693, %v7692
  %v7789 = vpack.c.b16 %v7695, %v7694
  %v7790 = vpack.c.b16 %v7697, %v7696
  %v7791 = vpack.c.b16 %v7699, %v7698
  %v7792 = vpack.c.b16 %v7701, %v7700
  %v7793 = vpack.c.b16 %v7703, %v7702
  %v7794 = vpack.c.b16 %v7705, %v7704
  %v7795 = vpack.c.b16 %v7707, %v7706
  %v7796 = vpack.c.b16 %v7709, %v7708
  %v7797 = vpack.c.b16 %v7711, %v7710
  %v7798 = vpack.c.b16 %v7713, %v7712
  %v7799 = vpack.c.b16 %v7715, %v7714
  %v7800 = vpack.c.b16 %v7717, %v7716
  %v7801 = vpack.c.b16 %v7719, %v7718
  %v7802 = vpack.c.b16 %v7721, %v7720
  %v7803 = vpack.c.b16 %v7723, %v7722
  %v7804 = vpack.c.b16 %v7725, %v7724
  %v7805 = vpack.c.b16 %v7727, %v7726
  %v7806 = vpack.c.b16 %v7729, %v7728
  %v7807 = vpack.c.b16 %v7731, %v7730
  %v7808 = vpack.c.b16 %v7733, %v7732
  %v7809 = vpack.c.b16 %v7735, %v7734
  %v7810 = vpack.c.b16 %v7737, %v7736
  %v7811 = vpack.c.b16 %v7739, %v7738
  %v7812 = vpack.c.b16 %v7741, %v7740
  %v7813 = vpack.c.b16 %v7743, %v7742
  %v7814 = vpack.c.b16 %v7745, %v7744
  %v7815 = vpack.c.b16 %v7747, %v7746
  %v7816 = vpack.c.b16 %v7749, %v7748
  %v7817 = vpack.c.b16 %v7751, %v7750
  %v7818 = vpack.c.b16 %v7753, %v7752
  %v7819 = vpack.c.b16 %v7755, %v7754
  %v7820 = vpack.c.b16 %v7757, %v7756
  %v7821 = vpack.c.b16 %v7759, %v7758
  %v7822 = vpack.c.b16 %v7761, %v7760
  %v7823 = vpack.c.b16 %v7763, %v7762
  %v7824 = vpack.c.b16 %v7765, %v7764
  %v7825 = vpack.c.b16 %v7767, %v7766
  %v7826 = vpack.c.b16 %v7769, %v7768
  %v7827 = vpack.c.b16 %v7771, %v7770
  %v7828 = vpack.c.b16 %v7773, %v7772
  %v7829 = vpack.c.b16 %v7775, %v7774
  %v7830 = vpack.c.b16 %v7777, %v7776
  %v7831 = vpack.c.b16 %v7779, %v7778
  %v7832 = vpack.c.b16 %v7781, %v7780
  %v7833 = vpack.c.b16 %v7783, %v7782
  %v7834 = vpack.c.b16 %v7785, %v7784
  %v7835 = vpack.c.b16 %v7787, %v7786
  %7884 = vmatpush.bf16.msra.mxu0 %v7795
  %7885 = vmatpush.bf16.msra.mxu0 %v7794
  %7886 = vmatpush.bf16.msra.mxu0 %v7793
  %7887 = vmatpush.bf16.msra.mxu0 %v7792
  %7888 = vmatpush.bf16.msra.mxu0 %v7791
  %7889 = vmatpush.bf16.msra.mxu0 %v7790
  %7890 = vmatpush.bf16.msra.mxu0 %v7789
  %7891 = vmatpush.bf16.msra.mxu0 %v7788
  %7892 = vmatmul.bf16.gmra.mxu0 %v7388
  %v7893 = vpop.f32.mrf.mxu0
  %v7894 = vadd.f32 %v7594, %v7893
  %v7895 = vpop.f32.mrf.mxu0
  %v7896 = vadd.f32 %v7594, %v7895
  %7897 = vmatmul.bf16.gmra.mxu0 %v7390
  %v7898 = vpop.f32.mrf.mxu0
  %v7899 = vadd.f32 %v7594, %v7898
  %v7900 = vpop.f32.mrf.mxu0
  %v7901 = vadd.f32 %v7594, %v7900
  %7902 = vmatmul.bf16.gmra.mxu0 %v7392
  %v7903 = vpop.f32.mrf.mxu0
  %v7904 = vadd.f32 %v7594, %v7903
  %v7905 = vpop.f32.mrf.mxu0
  %v7906 = vadd.f32 %v7594, %v7905
  %7907 = vmatmul.bf16.gmra.mxu0 %v7394
  %v7908 = vpop.f32.mrf.mxu0
  %v7909 = vadd.f32 %v7594, %v7908
  %v7910 = vpop.f32.mrf.mxu0
  %v7911 = vadd.f32 %v7594, %v7910
  %7912 = vmatmul.bf16.gmra.mxu0 %v7396
  %v7913 = vpop.f32.mrf.mxu0
  %v7914 = vadd.f32 %v7594, %v7913
  %v7915 = vpop.f32.mrf.mxu0
  %v7916 = vadd.f32 %v7594, %v7915
  %7917 = vmatmul.bf16.gmra.mxu0 %v7398
  %v7918 = vpop.f32.mrf.mxu0
  %v7919 = vadd.f32 %v7594, %v7918
  %v7920 = vpop.f32.mrf.mxu0
  %v7921 = vadd.f32 %v7594, %v7920
  %7922 = vmatmul.bf16.gmra.mxu0 %v7400
  %v7923 = vpop.f32.mrf.mxu0
  %v7924 = vadd.f32 %v7594, %v7923
  %v7925 = vpop.f32.mrf.mxu0
  %v7926 = vadd.f32 %v7594, %v7925
  %7927 = vdwg.mxu0
  %7928 = vmatpush.bf16.msra.mxu0 %v7803
  %7929 = vmatpush.bf16.msra.mxu0 %v7802
  %7930 = vmatpush.bf16.msra.mxu0 %v7801
  %7931 = vmatpush.bf16.msra.mxu0 %v7800
  %7932 = vmatpush.bf16.msra.mxu0 %v7799
  %7933 = vmatpush.bf16.msra.mxu0 %v7798
  %7934 = vmatpush.bf16.msra.mxu0 %v7797
  %7935 = vmatpush.bf16.msra.mxu0 %v7796
  %7936 = vmatmul.bf16.gmra.mxu0 %v7389
  %v7937 = vpop.f32.mrf.mxu0
  %v7938 = vadd.f32 %v7894, %v7937
  %v7939 = vpop.f32.mrf.mxu0
  %v7940 = vadd.f32 %v7896, %v7939
  %7941 = vmatmul.bf16.gmra.mxu0 %v7391
  %v7942 = vpop.f32.mrf.mxu0
  %v7943 = vadd.f32 %v7899, %v7942
  %v7944 = vpop.f32.mrf.mxu0
  %v7945 = vadd.f32 %v7901, %v7944
  %7946 = vmatmul.bf16.gmra.mxu0 %v7393
  %v7947 = vpop.f32.mrf.mxu0
  %v7948 = vadd.f32 %v7904, %v7947
  %v7949 = vpop.f32.mrf.mxu0
  %v7950 = vadd.f32 %v7906, %v7949
  %7951 = vmatmul.bf16.gmra.mxu0 %v7395
  %v7952 = vpop.f32.mrf.mxu0
  %v7953 = vadd.f32 %v7909, %v7952
  %v7954 = vpop.f32.mrf.mxu0
  %v7955 = vadd.f32 %v7911, %v7954
  %7956 = vmatmul.bf16.gmra.mxu0 %v7397
  %v7957 = vpop.f32.mrf.mxu0
  %v7958 = vadd.f32 %v7914, %v7957
  %v7959 = vpop.f32.mrf.mxu0
  %v7960 = vadd.f32 %v7916, %v7959
  %7961 = vmatmul.bf16.gmra.mxu0 %v7399
  %v7962 = vpop.f32.mrf.mxu0
  %v7963 = vadd.f32 %v7919, %v7962
  %v7964 = vpop.f32.mrf.mxu0
  %v7965 = vadd.f32 %v7921, %v7964
  %7966 = vmatmul.bf16.gmra.mxu0 %v7401
  %v7967 = vpop.f32.mrf.mxu0
  %v7968 = vadd.f32 %v7924, %v7967
  %v7969 = vpop.f32.mrf.mxu0
  %v7970 = vadd.f32 %v7926, %v7969
  %7971 = vdwg.mxu0
  %7972 = vmatpush.bf16.msra.mxu0 %v7811
  %7973 = vmatpush.bf16.msra.mxu0 %v7810
  %7974 = vmatpush.bf16.msra.mxu0 %v7809
  %7975 = vmatpush.bf16.msra.mxu0 %v7808
  %7976 = vmatpush.bf16.msra.mxu0 %v7807
  %7977 = vmatpush.bf16.msra.mxu0 %v7806
  %7978 = vmatpush.bf16.msra.mxu0 %v7805
  %7979 = vmatpush.bf16.msra.mxu0 %v7804
  %7980 = vmatmul.bf16.gmra.mxu0 %v7458
  %v7981 = vpop.f32.mrf.mxu0
  %v7982 = vadd.f32 %v7938, %v7981
  %v7983 = vpop.f32.mrf.mxu0
  %v7984 = vadd.f32 %v7940, %v7983
  %7985 = vmatmul.bf16.gmra.mxu0 %v7460
  %v7986 = vpop.f32.mrf.mxu0
  %v7987 = vadd.f32 %v7943, %v7986
  %v7988 = vpop.f32.mrf.mxu0
  %v7989 = vadd.f32 %v7945, %v7988
  %7990 = vmatmul.bf16.gmra.mxu0 %v7462
  %v7991 = vpop.f32.mrf.mxu0
  %v7992 = vadd.f32 %v7948, %v7991
  %v7993 = vpop.f32.mrf.mxu0
  %v7994 = vadd.f32 %v7950, %v7993
  %7995 = vmatmul.bf16.gmra.mxu0 %v7464
  %v7996 = vpop.f32.mrf.mxu0
  %v7997 = vadd.f32 %v7953, %v7996
  %v7998 = vpop.f32.mrf.mxu0
  %v7999 = vadd.f32 %v7955, %v7998
  %8000 = vmatmul.bf16.gmra.mxu0 %v7466
  %v8001 = vpop.f32.mrf.mxu0
  %v8002 = vadd.f32 %v7958, %v8001
  %v8003 = vpop.f32.mrf.mxu0
  %v8004 = vadd.f32 %v7960, %v8003
  %8005 = vmatmul.bf16.gmra.mxu0 %v7468
  %v8006 = vpop.f32.mrf.mxu0
  %v8007 = vadd.f32 %v7963, %v8006
  %v8008 = vpop.f32.mrf.mxu0
  %v8009 = vadd.f32 %v7965, %v8008
  %8010 = vmatmul.bf16.gmra.mxu0 %v7470
  %v8011 = vpop.f32.mrf.mxu0
  %v8012 = vadd.f32 %v7968, %v8011
  %v8013 = vpop.f32.mrf.mxu0
  %v8014 = vadd.f32 %v7970, %v8013
  %8015 = vdwg.mxu0
  %8016 = vmatpush.bf16.msra.mxu0 %v7819
  %8017 = vmatpush.bf16.msra.mxu0 %v7818
  %8018 = vmatpush.bf16.msra.mxu0 %v7817
  %8019 = vmatpush.bf16.msra.mxu0 %v7816
  %8020 = vmatpush.bf16.msra.mxu0 %v7815
  %8021 = vmatpush.bf16.msra.mxu0 %v7814
  %8022 = vmatpush.bf16.msra.mxu0 %v7813
  %8023 = vmatpush.bf16.msra.mxu0 %v7812
  %8024 = vmatmul.bf16.gmra.mxu0 %v7459
  %v8025 = vpop.f32.mrf.mxu0
  %v8026 = vadd.f32 %v7982, %v8025
  %v8027 = vpop.f32.mrf.mxu0
  %v8028 = vadd.f32 %v7984, %v8027
  %8029 = vmatmul.bf16.gmra.mxu0 %v7461
  %v8030 = vpop.f32.mrf.mxu0
  %v8031 = vadd.f32 %v7987, %v8030
  %v8032 = vpop.f32.mrf.mxu0
  %v8033 = vadd.f32 %v7989, %v8032
  %8034 = vmatmul.bf16.gmra.mxu0 %v7463
  %v8035 = vpop.f32.mrf.mxu0
  %v8036 = vadd.f32 %v7992, %v8035
  %v8037 = vpop.f32.mrf.mxu0
  %v8038 = vadd.f32 %v7994, %v8037
  %8039 = vmatmul.bf16.gmra.mxu0 %v7465
  %v8040 = vpop.f32.mrf.mxu0
  %v8041 = vadd.f32 %v7997, %v8040
  %v8042 = vpop.f32.mrf.mxu0
  %v8043 = vadd.f32 %v7999, %v8042
  %8044 = vmatmul.bf16.gmra.mxu0 %v7467
  %v8045 = vpop.f32.mrf.mxu0
  %v8046 = vadd.f32 %v8002, %v8045
  %v8047 = vpop.f32.mrf.mxu0
  %v8048 = vadd.f32 %v8004, %v8047
  %8049 = vmatmul.bf16.gmra.mxu0 %v7469
  %v8050 = vpop.f32.mrf.mxu0
  %v8051 = vadd.f32 %v8007, %v8050
  %v8052 = vpop.f32.mrf.mxu0
  %v8053 = vadd.f32 %v8009, %v8052
  %8054 = vmatmul.bf16.gmra.mxu0 %v7471
  %v8055 = vpop.f32.mrf.mxu0
  %v8056 = vadd.f32 %v8012, %v8055
  %v8057 = vpop.f32.mrf.mxu0
  %v8058 = vadd.f32 %v8014, %v8057
  %8059 = vdwg.mxu0
  %8060 = vmatpush.bf16.msra.mxu0 %v7827
  %8061 = vmatpush.bf16.msra.mxu0 %v7826
  %8062 = vmatpush.bf16.msra.mxu0 %v7825
  %8063 = vmatpush.bf16.msra.mxu0 %v7824
  %8064 = vmatpush.bf16.msra.mxu0 %v7823
  %8065 = vmatpush.bf16.msra.mxu0 %v7822
  %8066 = vmatpush.bf16.msra.mxu0 %v7821
  %8067 = vmatpush.bf16.msra.mxu0 %v7820
  %8068 = vmatmul.bf16.gmra.mxu0 %v7390
  %v8069 = vpop.f32.mrf.mxu0
  %v8070 = vadd.f32 %v8026, %v8069
  %v8071 = vpop.f32.mrf.mxu0
  %v8072 = vadd.f32 %v8028, %v8071
  %8073 = vmatmul.bf16.gmra.mxu0 %v7392
  %v8074 = vpop.f32.mrf.mxu0
  %v8075 = vadd.f32 %v8031, %v8074
  %v8076 = vpop.f32.mrf.mxu0
  %v8077 = vadd.f32 %v8033, %v8076
  %8078 = vmatmul.bf16.gmra.mxu0 %v7394
  %v8079 = vpop.f32.mrf.mxu0
  %v8080 = vadd.f32 %v8036, %v8079
  %v8081 = vpop.f32.mrf.mxu0
  %v8082 = vadd.f32 %v8038, %v8081
  %8083 = vmatmul.bf16.gmra.mxu0 %v7396
  %v8084 = vpop.f32.mrf.mxu0
  %v8085 = vadd.f32 %v8041, %v8084
  %v8086 = vpop.f32.mrf.mxu0
  %v8087 = vadd.f32 %v8043, %v8086
  %8088 = vmatmul.bf16.gmra.mxu0 %v7398
  %v8089 = vpop.f32.mrf.mxu0
  %v8090 = vadd.f32 %v8046, %v8089
  %v8091 = vpop.f32.mrf.mxu0
  %v8092 = vadd.f32 %v8048, %v8091
  %8093 = vmatmul.bf16.gmra.mxu0 %v7400
  %v8094 = vpop.f32.mrf.mxu0
  %v8095 = vadd.f32 %v8051, %v8094
  %v8096 = vpop.f32.mrf.mxu0
  %v8097 = vadd.f32 %v8053, %v8096
  %8098 = vmatmul.bf16.gmra.mxu0 %v7492
  %v8099 = vpop.f32.mrf.mxu0
  %v8100 = vadd.f32 %v8056, %v8099
  %v8101 = vpop.f32.mrf.mxu0
  %v8102 = vadd.f32 %v8058, %v8101
  %8103 = vdwg.mxu0
  %8104 = vmatpush.bf16.msra.mxu0 %v7835
  %8105 = vmatpush.bf16.msra.mxu0 %v7834
  %8106 = vmatpush.bf16.msra.mxu0 %v7833
  %8107 = vmatpush.bf16.msra.mxu0 %v7832
  %8108 = vmatpush.bf16.msra.mxu0 %v7831
  %8109 = vmatpush.bf16.msra.mxu0 %v7830
  %8110 = vmatpush.bf16.msra.mxu0 %v7829
  %8111 = vmatpush.bf16.msra.mxu0 %v7828
  %8112 = vmatmul.bf16.gmra.mxu0 %v7391
  %v8113 = vpop.f32.mrf.mxu0
  %v8114 = vadd.f32 %v8070, %v8113
  %v8115 = vpop.f32.mrf.mxu0
  %v8116 = vadd.f32 %v8072, %v8115
  %8117 = vmatmul.bf16.gmra.mxu0 %v7393
  %v8118 = vpop.f32.mrf.mxu0
  %v8119 = vadd.f32 %v8075, %v8118
  %v8120 = vpop.f32.mrf.mxu0
  %v8121 = vadd.f32 %v8077, %v8120
  %8122 = vmatmul.bf16.gmra.mxu0 %v7395
  %v8123 = vpop.f32.mrf.mxu0
  %v8124 = vadd.f32 %v8080, %v8123
  %v8125 = vpop.f32.mrf.mxu0
  %v8126 = vadd.f32 %v8082, %v8125
  %8127 = vmatmul.bf16.gmra.mxu0 %v7397
  %v8128 = vpop.f32.mrf.mxu0
  %v8129 = vadd.f32 %v8085, %v8128
  %v8130 = vpop.f32.mrf.mxu0
  %v8131 = vadd.f32 %v8087, %v8130
  %8132 = vmatmul.bf16.gmra.mxu0 %v7399
  %v8133 = vpop.f32.mrf.mxu0
  %v8134 = vadd.f32 %v8090, %v8133
  %v8135 = vpop.f32.mrf.mxu0
  %v8136 = vadd.f32 %v8092, %v8135
  %8137 = vmatmul.bf16.gmra.mxu0 %v7401
  %v8138 = vpop.f32.mrf.mxu0
  %v8139 = vadd.f32 %v8095, %v8138
  %v8140 = vpop.f32.mrf.mxu0
  %v8141 = vadd.f32 %v8097, %v8140
  %8142 = vmatmul.bf16.gmra.mxu0 %v7493
  %v8143 = vpop.f32.mrf.mxu0
  %v8144 = vadd.f32 %v8100, %v8143
  %v8145 = vpop.f32.mrf.mxu0
  %v8146 = vadd.f32 %v8102, %v8145
  %8147 = vdwg.mxu0
  %v8148 = vmax.f32 %v8114, 0.0
  %v8149 = vmax.f32 %v8116, 0.0
  %v8150 = vmax.f32 %v8119, 0.0
  %v8151 = vmax.f32 %v8121, 0.0
  %v8152 = vmax.f32 %v8124, 0.0
  %v8153 = vmax.f32 %v8126, 0.0
  %v8154 = vmax.f32 %v8129, 0.0
  %v8155 = vmax.f32 %v8131, 0.0
  %v8156 = vmax.f32 %v8134, 0.0
  %v8157 = vmax.f32 %v8136, 0.0
  %v8158 = vmax.f32 %v8139, 0.0
  %v8159 = vmax.f32 %v8141, 0.0
  %v8160 = vmax.f32 %v8144, 0.0
  %v8161 = vmax.f32 %v8146, 0.0
  %v8162 = vpack.c.bf16 %v8148, %v8148
  %v8163 = vpack.c.bf16 %v8149, %v8149
  %v8164 = vpack.c.bf16 %v8150, %v8150
  %v8165 = vpack.c.bf16 %v8151, %v8151
  %v8166 = vpack.c.bf16 %v8152, %v8152
  %v8167 = vpack.c.bf16 %v8153, %v8153
  %v8168 = vpack.c.bf16 %v8154, %v8154
  %v8169 = vpack.c.bf16 %v8155, %v8155
  %v8170 = vpack.c.bf16 %v8156, %v8156
  %v8171 = vpack.c.bf16 %v8157, %v8157
  %v8172 = vpack.c.bf16 %v8158, %v8158
  %v8173 = vpack.c.bf16 %v8159, %v8159
  %v8174 = vpack.c.bf16 %v8160, %v8160
  %v8175 = vpack.c.bf16 %v8161, %v8161
  %v8176 = vld [vmem:[%s7] sm:$0xf]
  %v8177 = vld [vmem:[%s7 + $0x4] sm:$0xf]
  %v8178 = vld [vmem:[%s7 + $0x8] sm:$0xf]
  %v8179 = vld [vmem:[%s7 + $0xc] sm:$0xf]
  %v8180 = vld [vmem:[%s7 + $0x10] sm:$0xf]
  %v8181 = vld [vmem:[%s7 + $0x14] sm:$0xf]
  %v8182 = vld [vmem:[%s7 + $0x18] sm:$0xf]
  %v8183 = vld [vmem:[%s7 + $0x1c] sm:$0xf]
  %v8184 = vld [vmem:[%s7 + $0x20] sm:$0xf]
  %v8185 = vld [vmem:[%s7 + $0x24] sm:$0xf]
  %v8186 = vld [vmem:[%s7 + $0x28] sm:$0xf]
  %v8187 = vld [vmem:[%s7 + $0x2c] sm:$0xf]
  %v8188 = vld [vmem:[%s7 + $0x30] sm:$0xf]
  %v8189 = vld [vmem:[%s7 + $0x34] sm:$0xf]
  %v8190 = vld [vmem:[%s7 + $0x38] sm:$0xf]
  %v8191 = vld [vmem:[%s7 + $0x3c] sm:$0xf]
  %s8192 = scalar_lea.vmem %s7, 64
  %v8193 = vld [vmem:[%s8192] sm:$0xf]
  %v8194 = vld [vmem:[%s8192 + $0x4] sm:$0xf]
  %v8195 = vld [vmem:[%s8192 + $0x8] sm:$0xf]
  %v8196 = vld [vmem:[%s8192 + $0xc] sm:$0xf]
  %v8197 = vld [vmem:[%s8192 + $0x10] sm:$0xf]
  %v8198 = vld [vmem:[%s8192 + $0x14] sm:$0xf]
  %v8199 = vld [vmem:[%s8192 + $0x18] sm:$0xf]
  %v8200 = vld [vmem:[%s8192 + $0x1c] sm:$0xf]
  %v8201 = vld [vmem:[%s8192 + $0x20] sm:$0xf]
  %v8202 = vld [vmem:[%s8192 + $0x24] sm:$0xf]
  %v8203 = vld [vmem:[%s8192 + $0x28] sm:$0xf]
  %v8204 = vld [vmem:[%s8192 + $0x2c] sm:$0xf]
  %v8205 = vld [vmem:[%s8192 + $0x30] sm:$0xf]
  %v8206 = vld [vmem:[%s8192 + $0x34] sm:$0xf]
  %v8207 = vld [vmem:[%s8192 + $0x38] sm:$0xf]
  %v8208 = vld [vmem:[%s8192 + $0x3c] sm:$0xf]
  %v8211 = vunpack.c.l.b16 %v8164
  %v8212 = vunpack.c.l.b16 %v8165
  %v8213 = vpack.c.b16 %v8212, %v8211
  %v8231 = vunpack.c.l.b16 %v8193
  %v8232 = vunpack.c.l.b16 %v8194
  %v8233 = vunpack.c.l.b16 %v8195
  %v8234 = vunpack.c.l.b16 %v8196
  %v8235 = vunpack.c.l.b16 %v8197
  %v8236 = vunpack.c.l.b16 %v8198
  %v8237 = vunpack.c.l.b16 %v8199
  %v8238 = vunpack.c.l.b16 %v8200
  %v8239 = vunpack.c.l.b16 %v8201
  %v8240 = vunpack.c.l.b16 %v8202
  %v8241 = vunpack.c.l.b16 %v8203
  %v8242 = vunpack.c.l.b16 %v8204
  %v8243 = vunpack.c.l.b16 %v8205
  %v8244 = vunpack.c.l.b16 %v8206
  %v8245 = vunpack.c.l.b16 %v8207
  %v8246 = vunpack.c.l.b16 %v8208
  %v8247 = vpack.c.b16 %v8232, %v8231
  %v8248 = vpack.c.b16 %v8234, %v8233
  %v8249 = vpack.c.b16 %v8236, %v8235
  %v8250 = vpack.c.b16 %v8238, %v8237
  %v8251 = vpack.c.b16 %v8240, %v8239
  %v8252 = vpack.c.b16 %v8242, %v8241
  %v8253 = vpack.c.b16 %v8244, %v8243
  %v8254 = vpack.c.b16 %v8246, %v8245
  %8263 = vmatpush.bf16.msra.mxu0 %v8254
  %8264 = vmatpush.bf16.msra.mxu0 %v8253
  %8265 = vmatpush.bf16.msra.mxu0 %v8252
  %8266 = vmatpush.bf16.msra.mxu0 %v8251
  %8267 = vmatpush.bf16.msra.mxu0 %v8250
  %8268 = vmatpush.bf16.msra.mxu0 %v8249
  %8269 = vmatpush.bf16.msra.mxu0 %v8248
  %8270 = vmatpush.bf16.msra.mxu0 %v8247
  %8271 = vmatmul.bf16.gmra.mxu0 %v8213
  %v8272 = vpop.f32.mrf.mxu0
  %v8273 = vadd.f32 0.0, %v8272
  %v8274 = vpop.f32.mrf.mxu0
  %v8275 = vadd.f32 0.0, %v8274
  %8276 = vdwg.mxu0
  %v8279 = vunpack.c.l.b16 %v8162
  %v8280 = vunpack.c.l.b16 %v8163
  %v8281 = vpack.c.b16 %v8280, %v8279
  %v8299 = vunpack.c.l.b16 %v8176
  %v8300 = vunpack.c.l.b16 %v8177
  %v8301 = vunpack.c.l.b16 %v8178
  %v8302 = vunpack.c.l.b16 %v8179
  %v8303 = vunpack.c.l.b16 %v8180
  %v8304 = vunpack.c.l.b16 %v8181
  %v8305 = vunpack.c.l.b16 %v8182
  %v8306 = vunpack.c.l.b16 %v8183
  %v8307 = vunpack.c.l.b16 %v8184
  %v8308 = vunpack.c.l.b16 %v8185
  %v8309 = vunpack.c.l.b16 %v8186
  %v8310 = vunpack.c.l.b16 %v8187
  %v8311 = vunpack.c.l.b16 %v8188
  %v8312 = vunpack.c.l.b16 %v8189
  %v8313 = vunpack.c.l.b16 %v8190
  %v8314 = vunpack.c.l.b16 %v8191
  %v8315 = vpack.c.b16 %v8300, %v8299
  %v8316 = vpack.c.b16 %v8302, %v8301
  %v8317 = vpack.c.b16 %v8304, %v8303
  %v8318 = vpack.c.b16 %v8306, %v8305
  %v8319 = vpack.c.b16 %v8308, %v8307
  %v8320 = vpack.c.b16 %v8310, %v8309
  %v8321 = vpack.c.b16 %v8312, %v8311
  %v8322 = vpack.c.b16 %v8314, %v8313
  %8331 = vmatpush.bf16.msra.mxu0 %v8322
  %8332 = vmatpush.bf16.msra.mxu0 %v8321
  %8333 = vmatpush.bf16.msra.mxu0 %v8320
  %8334 = vmatpush.bf16.msra.mxu0 %v8319
  %8335 = vmatpush.bf16.msra.mxu0 %v8318
  %8336 = vmatpush.bf16.msra.mxu0 %v8317
  %8337 = vmatpush.bf16.msra.mxu0 %v8316
  %8338 = vmatpush.bf16.msra.mxu0 %v8315
  %8339 = vmatmul.bf16.gmra.mxu0 %v8281
  %v8340 = vpop.f32.mrf.mxu0
  %v8341 = vadd.f32 %v8273, %v8340
  %v8342 = vpop.f32.mrf.mxu0
  %v8343 = vadd.f32 %v8275, %v8342
  %8344 = vdwg.mxu0
  %s8345 = scalar_lea.vmem %s7, 128
  %v8346 = vld [vmem:[%s8345] sm:$0xf]
  %v8347 = vld [vmem:[%s8345 + $0x4] sm:$0xf]
  %v8348 = vld [vmem:[%s8345 + $0x8] sm:$0xf]
  %v8349 = vld [vmem:[%s8345 + $0xc] sm:$0xf]
  %v8350 = vld [vmem:[%s8345 + $0x10] sm:$0xf]
  %v8351 = vld [vmem:[%s8345 + $0x14] sm:$0xf]
  %v8352 = vld [vmem:[%s8345 + $0x18] sm:$0xf]
  %v8353 = vld [vmem:[%s8345 + $0x1c] sm:$0xf]
  %v8354 = vld [vmem:[%s8345 + $0x20] sm:$0xf]
  %v8355 = vld [vmem:[%s8345 + $0x24] sm:$0xf]
  %v8356 = vld [vmem:[%s8345 + $0x28] sm:$0xf]
  %v8357 = vld [vmem:[%s8345 + $0x2c] sm:$0xf]
  %v8358 = vld [vmem:[%s8345 + $0x30] sm:$0xf]
  %v8359 = vld [vmem:[%s8345 + $0x34] sm:$0xf]
  %v8360 = vld [vmem:[%s8345 + $0x38] sm:$0xf]
  %v8361 = vld [vmem:[%s8345 + $0x3c] sm:$0xf]
  %v8364 = vunpack.c.l.b16 %v8166
  %v8365 = vunpack.c.l.b16 %v8167
  %v8366 = vpack.c.b16 %v8365, %v8364
  %v8384 = vunpack.c.l.b16 %v8346
  %v8385 = vunpack.c.l.b16 %v8347
  %v8386 = vunpack.c.l.b16 %v8348
  %v8387 = vunpack.c.l.b16 %v8349
  %v8388 = vunpack.c.l.b16 %v8350
  %v8389 = vunpack.c.l.b16 %v8351
  %v8390 = vunpack.c.l.b16 %v8352
  %v8391 = vunpack.c.l.b16 %v8353
  %v8392 = vunpack.c.l.b16 %v8354
  %v8393 = vunpack.c.l.b16 %v8355
  %v8394 = vunpack.c.l.b16 %v8356
  %v8395 = vunpack.c.l.b16 %v8357
  %v8396 = vunpack.c.l.b16 %v8358
  %v8397 = vunpack.c.l.b16 %v8359
  %v8398 = vunpack.c.l.b16 %v8360
  %v8399 = vunpack.c.l.b16 %v8361
  %v8400 = vpack.c.b16 %v8385, %v8384
  %v8401 = vpack.c.b16 %v8387, %v8386
  %v8402 = vpack.c.b16 %v8389, %v8388
  %v8403 = vpack.c.b16 %v8391, %v8390
  %v8404 = vpack.c.b16 %v8393, %v8392
  %v8405 = vpack.c.b16 %v8395, %v8394
  %v8406 = vpack.c.b16 %v8397, %v8396
  %v8407 = vpack.c.b16 %v8399, %v8398
  %8416 = vmatpush.bf16.msra.mxu0 %v8407
  %8417 = vmatpush.bf16.msra.mxu0 %v8406
  %8418 = vmatpush.bf16.msra.mxu0 %v8405
  %8419 = vmatpush.bf16.msra.mxu0 %v8404
  %8420 = vmatpush.bf16.msra.mxu0 %v8403
  %8421 = vmatpush.bf16.msra.mxu0 %v8402
  %8422 = vmatpush.bf16.msra.mxu0 %v8401
  %8423 = vmatpush.bf16.msra.mxu0 %v8400
  %8424 = vmatmul.bf16.gmra.mxu0 %v8366
  %v8425 = vpop.f32.mrf.mxu0
  %v8426 = vadd.f32 0.0, %v8425
  %v8427 = vpop.f32.mrf.mxu0
  %v8428 = vadd.f32 0.0, %v8427
  %8429 = vdwg.mxu0
  %v8430 = vadd.f32 %v8341, %v8426
  %v8431 = vadd.f32 %v8343, %v8428
  %s8432 = scalar_lea.vmem %s7, 192
  %v8433 = vld [vmem:[%s8432] sm:$0xf]
  %v8434 = vld [vmem:[%s8432 + $0x4] sm:$0xf]
  %v8435 = vld [vmem:[%s8432 + $0x8] sm:$0xf]
  %v8436 = vld [vmem:[%s8432 + $0xc] sm:$0xf]
  %v8437 = vld [vmem:[%s8432 + $0x10] sm:$0xf]
  %v8438 = vld [vmem:[%s8432 + $0x14] sm:$0xf]
  %v8439 = vld [vmem:[%s8432 + $0x18] sm:$0xf]
  %v8440 = vld [vmem:[%s8432 + $0x1c] sm:$0xf]
  %v8441 = vld [vmem:[%s8432 + $0x20] sm:$0xf]
  %v8442 = vld [vmem:[%s8432 + $0x24] sm:$0xf]
  %v8443 = vld [vmem:[%s8432 + $0x28] sm:$0xf]
  %v8444 = vld [vmem:[%s8432 + $0x2c] sm:$0xf]
  %v8445 = vld [vmem:[%s8432 + $0x30] sm:$0xf]
  %v8446 = vld [vmem:[%s8432 + $0x34] sm:$0xf]
  %v8447 = vld [vmem:[%s8432 + $0x38] sm:$0xf]
  %v8448 = vld [vmem:[%s8432 + $0x3c] sm:$0xf]
  %v8451 = vunpack.c.l.b16 %v8168
  %v8452 = vunpack.c.l.b16 %v8169
  %v8453 = vpack.c.b16 %v8452, %v8451
  %v8471 = vunpack.c.l.b16 %v8433
  %v8472 = vunpack.c.l.b16 %v8434
  %v8473 = vunpack.c.l.b16 %v8435
  %v8474 = vunpack.c.l.b16 %v8436
  %v8475 = vunpack.c.l.b16 %v8437
  %v8476 = vunpack.c.l.b16 %v8438
  %v8477 = vunpack.c.l.b16 %v8439
  %v8478 = vunpack.c.l.b16 %v8440
  %v8479 = vunpack.c.l.b16 %v8441
  %v8480 = vunpack.c.l.b16 %v8442
  %v8481 = vunpack.c.l.b16 %v8443
  %v8482 = vunpack.c.l.b16 %v8444
  %v8483 = vunpack.c.l.b16 %v8445
  %v8484 = vunpack.c.l.b16 %v8446
  %v8485 = vunpack.c.l.b16 %v8447
  %v8486 = vunpack.c.l.b16 %v8448
  %v8487 = vpack.c.b16 %v8472, %v8471
  %v8488 = vpack.c.b16 %v8474, %v8473
  %v8489 = vpack.c.b16 %v8476, %v8475
  %v8490 = vpack.c.b16 %v8478, %v8477
  %v8491 = vpack.c.b16 %v8480, %v8479
  %v8492 = vpack.c.b16 %v8482, %v8481
  %v8493 = vpack.c.b16 %v8484, %v8483
  %v8494 = vpack.c.b16 %v8486, %v8485
  %8503 = vmatpush.bf16.msra.mxu0 %v8494
  %8504 = vmatpush.bf16.msra.mxu0 %v8493
  %8505 = vmatpush.bf16.msra.mxu0 %v8492
  %8506 = vmatpush.bf16.msra.mxu0 %v8491
  %8507 = vmatpush.bf16.msra.mxu0 %v8490
  %8508 = vmatpush.bf16.msra.mxu0 %v8489
  %8509 = vmatpush.bf16.msra.mxu0 %v8488
  %8510 = vmatpush.bf16.msra.mxu0 %v8487
  %8511 = vmatmul.bf16.gmra.mxu0 %v8453
  %v8512 = vpop.f32.mrf.mxu0
  %v8513 = vadd.f32 0.0, %v8512
  %v8514 = vpop.f32.mrf.mxu0
  %v8515 = vadd.f32 0.0, %v8514
  %8516 = vdwg.mxu0
  %v8517 = vadd.f32 %v8430, %v8513
  %v8518 = vadd.f32 %v8431, %v8515
  %s8519 = scalar_lea.vmem %s7, 256
  %v8520 = vld [vmem:[%s8519] sm:$0xf]
  %v8521 = vld [vmem:[%s8519 + $0x4] sm:$0xf]
  %v8522 = vld [vmem:[%s8519 + $0x8] sm:$0xf]
  %v8523 = vld [vmem:[%s8519 + $0xc] sm:$0xf]
  %v8524 = vld [vmem:[%s8519 + $0x10] sm:$0xf]
  %v8525 = vld [vmem:[%s8519 + $0x14] sm:$0xf]
  %v8526 = vld [vmem:[%s8519 + $0x18] sm:$0xf]
  %v8527 = vld [vmem:[%s8519 + $0x1c] sm:$0xf]
  %v8528 = vld [vmem:[%s8519 + $0x20] sm:$0xf]
  %v8529 = vld [vmem:[%s8519 + $0x24] sm:$0xf]
  %v8530 = vld [vmem:[%s8519 + $0x28] sm:$0xf]
  %v8531 = vld [vmem:[%s8519 + $0x2c] sm:$0xf]
  %v8532 = vld [vmem:[%s8519 + $0x30] sm:$0xf]
  %v8533 = vld [vmem:[%s8519 + $0x34] sm:$0xf]
  %v8534 = vld [vmem:[%s8519 + $0x38] sm:$0xf]
  %v8535 = vld [vmem:[%s8519 + $0x3c] sm:$0xf]
  %v8538 = vunpack.c.l.b16 %v8170
  %v8539 = vunpack.c.l.b16 %v8171
  %v8540 = vpack.c.b16 %v8539, %v8538
  %v8558 = vunpack.c.l.b16 %v8520
  %v8559 = vunpack.c.l.b16 %v8521
  %v8560 = vunpack.c.l.b16 %v8522
  %v8561 = vunpack.c.l.b16 %v8523
  %v8562 = vunpack.c.l.b16 %v8524
  %v8563 = vunpack.c.l.b16 %v8525
  %v8564 = vunpack.c.l.b16 %v8526
  %v8565 = vunpack.c.l.b16 %v8527
  %v8566 = vunpack.c.l.b16 %v8528
  %v8567 = vunpack.c.l.b16 %v8529
  %v8568 = vunpack.c.l.b16 %v8530
  %v8569 = vunpack.c.l.b16 %v8531
  %v8570 = vunpack.c.l.b16 %v8532
  %v8571 = vunpack.c.l.b16 %v8533
  %v8572 = vunpack.c.l.b16 %v8534
  %v8573 = vunpack.c.l.b16 %v8535
  %v8574 = vpack.c.b16 %v8559, %v8558
  %v8575 = vpack.c.b16 %v8561, %v8560
  %v8576 = vpack.c.b16 %v8563, %v8562
  %v8577 = vpack.c.b16 %v8565, %v8564
  %v8578 = vpack.c.b16 %v8567, %v8566
  %v8579 = vpack.c.b16 %v8569, %v8568
  %v8580 = vpack.c.b16 %v8571, %v8570
  %v8581 = vpack.c.b16 %v8573, %v8572
  %8590 = vmatpush.bf16.msra.mxu0 %v8581
  %8591 = vmatpush.bf16.msra.mxu0 %v8580
  %8592 = vmatpush.bf16.msra.mxu0 %v8579
  %8593 = vmatpush.bf16.msra.mxu0 %v8578
  %8594 = vmatpush.bf16.msra.mxu0 %v8577
  %8595 = vmatpush.bf16.msra.mxu0 %v8576
  %8596 = vmatpush.bf16.msra.mxu0 %v8575
  %8597 = vmatpush.bf16.msra.mxu0 %v8574
  %8598 = vmatmul.bf16.gmra.mxu0 %v8540
  %v8599 = vpop.f32.mrf.mxu0
  %v8600 = vadd.f32 0.0, %v8599
  %v8601 = vpop.f32.mrf.mxu0
  %v8602 = vadd.f32 0.0, %v8601
  %8603 = vdwg.mxu0
  %v8604 = vadd.f32 %v8517, %v8600
  %v8605 = vadd.f32 %v8518, %v8602
  %s8606 = scalar_lea.vmem %s7, 320
  %v8607 = vld [vmem:[%s8606] sm:$0xf]
  %v8608 = vld [vmem:[%s8606 + $0x4] sm:$0xf]
  %v8609 = vld [vmem:[%s8606 + $0x8] sm:$0xf]
  %v8610 = vld [vmem:[%s8606 + $0xc] sm:$0xf]
  %v8611 = vld [vmem:[%s8606 + $0x10] sm:$0xf]
  %v8612 = vld [vmem:[%s8606 + $0x14] sm:$0xf]
  %v8613 = vld [vmem:[%s8606 + $0x18] sm:$0xf]
  %v8614 = vld [vmem:[%s8606 + $0x1c] sm:$0xf]
  %v8615 = vld [vmem:[%s8606 + $0x20] sm:$0xf]
  %v8616 = vld [vmem:[%s8606 + $0x24] sm:$0xf]
  %v8617 = vld [vmem:[%s8606 + $0x28] sm:$0xf]
  %v8618 = vld [vmem:[%s8606 + $0x2c] sm:$0xf]
  %v8619 = vld [vmem:[%s8606 + $0x30] sm:$0xf]
  %v8620 = vld [vmem:[%s8606 + $0x34] sm:$0xf]
  %v8621 = vld [vmem:[%s8606 + $0x38] sm:$0xf]
  %v8622 = vld [vmem:[%s8606 + $0x3c] sm:$0xf]
  %v8625 = vunpack.c.l.b16 %v8172
  %v8626 = vunpack.c.l.b16 %v8173
  %v8627 = vpack.c.b16 %v8626, %v8625
  %v8645 = vunpack.c.l.b16 %v8607
  %v8646 = vunpack.c.l.b16 %v8608
  %v8647 = vunpack.c.l.b16 %v8609
  %v8648 = vunpack.c.l.b16 %v8610
  %v8649 = vunpack.c.l.b16 %v8611
  %v8650 = vunpack.c.l.b16 %v8612
  %v8651 = vunpack.c.l.b16 %v8613
  %v8652 = vunpack.c.l.b16 %v8614
  %v8653 = vunpack.c.l.b16 %v8615
  %v8654 = vunpack.c.l.b16 %v8616
  %v8655 = vunpack.c.l.b16 %v8617
  %v8656 = vunpack.c.l.b16 %v8618
  %v8657 = vunpack.c.l.b16 %v8619
  %v8658 = vunpack.c.l.b16 %v8620
  %v8659 = vunpack.c.l.b16 %v8621
  %v8660 = vunpack.c.l.b16 %v8622
  %v8661 = vpack.c.b16 %v8646, %v8645
  %v8662 = vpack.c.b16 %v8648, %v8647
  %v8663 = vpack.c.b16 %v8650, %v8649
  %v8664 = vpack.c.b16 %v8652, %v8651
  %v8665 = vpack.c.b16 %v8654, %v8653
  %v8666 = vpack.c.b16 %v8656, %v8655
  %v8667 = vpack.c.b16 %v8658, %v8657
  %v8668 = vpack.c.b16 %v8660, %v8659
  %8677 = vmatpush.bf16.msra.mxu0 %v8668
  %8678 = vmatpush.bf16.msra.mxu0 %v8667
  %8679 = vmatpush.bf16.msra.mxu0 %v8666
  %8680 = vmatpush.bf16.msra.mxu0 %v8665
  %8681 = vmatpush.bf16.msra.mxu0 %v8664
  %8682 = vmatpush.bf16.msra.mxu0 %v8663
  %8683 = vmatpush.bf16.msra.mxu0 %v8662
  %8684 = vmatpush.bf16.msra.mxu0 %v8661
  %8685 = vmatmul.bf16.gmra.mxu0 %v8627
  %v8686 = vpop.f32.mrf.mxu0
  %v8687 = vadd.f32 0.0, %v8686
  %v8688 = vpop.f32.mrf.mxu0
  %v8689 = vadd.f32 0.0, %v8688
  %8690 = vdwg.mxu0
  %v8691 = vadd.f32 %v8604, %v8687
  %v8692 = vadd.f32 %v8605, %v8689
  %s8693 = scalar_lea.vmem %s7, 384
  %v8694 = vld [vmem:[%s8693] sm:$0xf]
  %v8695 = vld [vmem:[%s8693 + $0x4] sm:$0xf]
  %v8696 = vld [vmem:[%s8693 + $0x8] sm:$0xf]
  %v8697 = vld [vmem:[%s8693 + $0xc] sm:$0xf]
  %v8698 = vld [vmem:[%s8693 + $0x10] sm:$0xf]
  %v8699 = vld [vmem:[%s8693 + $0x14] sm:$0xf]
  %v8700 = vld [vmem:[%s8693 + $0x18] sm:$0xf]
  %v8701 = vld [vmem:[%s8693 + $0x1c] sm:$0xf]
  %v8702 = vld [vmem:[%s8693 + $0x20] sm:$0xf]
  %v8703 = vld [vmem:[%s8693 + $0x24] sm:$0xf]
  %v8704 = vld [vmem:[%s8693 + $0x28] sm:$0xf]
  %v8705 = vld [vmem:[%s8693 + $0x2c] sm:$0xf]
  %v8706 = vld [vmem:[%s8693 + $0x30] sm:$0xf]
  %v8707 = vld [vmem:[%s8693 + $0x34] sm:$0xf]
  %v8708 = vld [vmem:[%s8693 + $0x38] sm:$0xf]
  %v8709 = vld [vmem:[%s8693 + $0x3c] sm:$0xf]
  %v8712 = vunpack.c.l.b16 %v8174
  %v8713 = vunpack.c.l.b16 %v8175
  %v8714 = vpack.c.b16 %v8713, %v8712
  %v8732 = vunpack.c.l.b16 %v8694
  %v8733 = vunpack.c.l.b16 %v8695
  %v8734 = vunpack.c.l.b16 %v8696
  %v8735 = vunpack.c.l.b16 %v8697
  %v8736 = vunpack.c.l.b16 %v8698
  %v8737 = vunpack.c.l.b16 %v8699
  %v8738 = vunpack.c.l.b16 %v8700
  %v8739 = vunpack.c.l.b16 %v8701
  %v8740 = vunpack.c.l.b16 %v8702
  %v8741 = vunpack.c.l.b16 %v8703
  %v8742 = vunpack.c.l.b16 %v8704
  %v8743 = vunpack.c.l.b16 %v8705
  %v8744 = vunpack.c.l.b16 %v8706
  %v8745 = vunpack.c.l.b16 %v8707
  %v8746 = vunpack.c.l.b16 %v8708
  %v8747 = vunpack.c.l.b16 %v8709
  %v8748 = vpack.c.b16 %v8733, %v8732
  %v8749 = vpack.c.b16 %v8735, %v8734
  %v8750 = vpack.c.b16 %v8737, %v8736
  %v8751 = vpack.c.b16 %v8739, %v8738
  %v8752 = vpack.c.b16 %v8741, %v8740
  %v8753 = vpack.c.b16 %v8743, %v8742
  %v8754 = vpack.c.b16 %v8745, %v8744
  %v8755 = vpack.c.b16 %v8747, %v8746
  %8764 = vmatpush.bf16.msra.mxu0 %v8755
  %8765 = vmatpush.bf16.msra.mxu0 %v8754
  %8766 = vmatpush.bf16.msra.mxu0 %v8753
  %8767 = vmatpush.bf16.msra.mxu0 %v8752
  %8768 = vmatpush.bf16.msra.mxu0 %v8751
  %8769 = vmatpush.bf16.msra.mxu0 %v8750
  %8770 = vmatpush.bf16.msra.mxu0 %v8749
  %8771 = vmatpush.bf16.msra.mxu0 %v8748
  %8772 = vmatmul.bf16.gmra.mxu0 %v8714
  %v8773 = vpop.f32.mrf.mxu0
  %v8774 = vadd.f32 0.0, %v8773
  %v8775 = vpop.f32.mrf.mxu0
  %v8776 = vadd.f32 0.0, %v8775
  %8777 = vdwg.mxu0
  %v8778 = vadd.f32 %v8691, %v8774
  %v8779 = vadd.f32 %v8692, %v8776
  %v8780 = vld [vmem:[%s8] sm:$0x1]
  %v8782 = vperm.slane %v8780, 0
  %v8784 = vadd.f32 %v8778, %v8782
  %v8785 = vadd.f32 %v8779, %v8782
  %v8786 = vmax.f32 %v8784, 0.0
  %v8787 = vmax.f32 %v8785, 0.0
  %8788 = vst [vmem:[%s9] sm:$0xff] %v8786
  %8789 = vst [vmem:[%s9 + $0x8] sm:$0xff] %v8787
  // Predicated region
  $region38: #{cnn_forward.1} parent=0 // pred_check
    _
  $region39: #{cnn_forward.1} parent=0 // pred_check_branch
    %8791 = sbr.rel (0) target = $region41
  $region40: #{cnn_forward.1} parent=0 // pred_region
    _
  $region41: #{cnn_forward.1} parent=0 // pred_fallthru
    _
  // Predicated region
  $region42: #{cnn_forward.1} parent=0 // pred_check
    _
  $region43: #{cnn_forward.1} parent=0 // pred_check_branch
    %8793 = sbr.rel (0) target = $region45
  $region44: #{cnn_forward.1} parent=0 // pred_region
    _
  $region45: #{cnn_forward.1} parent=0 // pred_fallthru
    _

</llo_original>
